<compile_context>
chip_gen: v5e
topology: v5e:2x2
jax: 0.10.0
libtpu: 0.0.40
codegen_flags: <defaults>
</compile_context>

<pallas_src>
import functools

import jax
import jax.numpy as jnp
from jax.experimental import pallas as pl
from jax.experimental.pallas import tpu as pltpu

_LANES = 128  # final logits are padded to a full lane width for a dense store


# ----------------------------------------------------------------------------
# Fused Pallas kernel (one grid step == one image through the whole network)
# ----------------------------------------------------------------------------
def _mri_cnn_kernel(
    x_ref,                                    # (1, S+2, S+2, Cin) padded NHWC input
    w1_ref, sc1_ref, sh1_ref,                 # conv1 (3,3,Cin,hu), BN scale/shift (1,hu)
    w2_ref, sh2_ref,                          # conv2 (3,3,hu,2hu), fused bias (1,2hu)
    w3_ref, sh3_ref,                          # conv3 (3,3,2hu,2hu), fused bias (1,2hu)
    w4_ref, sh4_ref,                          # conv4 (3,3,2hu,3hu), fused bias (1,3hu)
    wfc1_ref, bfc1_ref,                       # fc1 (Po*Po, 3hu, 192), (1, 192)
    wfc2_ref, bfc2_ref,                       # fc2 (192, 128), (1, 128)
    o_ref,                                    # (1, 1, 128) lane-padded logits
    s1_ref, s2_ref, s3_ref,                   # zero-halo padded activations (VMEM)
    y1_ref, yw1_ref, y4_ref, yw4_ref, p4_ref,  # pooling scratch (VMEM)
):
    f32 = jnp.float32
    S = x_ref.shape[1] - 2          # input spatial size
    S2 = S // 2                     # after first 2x2 pool
    Po = S2 // 2                    # after second 2x2 pool

    def conv3x3_relu(load, H, W, w_ref, shift, scale=None):
        """3x3 'same' conv as 9 accumulating tap matmuls; fused affine + ReLU."""
        cin, cout = w_ref.shape[2], w_ref.shape[3]
        acc = None
        for dh in range(3):
            for dw in range(3):
                win = load(dh, dw).reshape(H * W, cin)
                t = jnp.dot(win, w_ref[dh, dw], preferred_element_type=f32)
                acc = t if acc is None else acc + t
        if scale is not None:
            acc = acc * scale
        acc = jnp.maximum(acc + shift, 0.0)
        return acc.reshape(H, W, cout)

    def maxpool2x2(src_ref, mid_ref):
        """2x2 / stride-2 max pool via strided VMEM reads. src_ref: (H, W, C)."""
        H, W, _ = src_ref.shape
        Ho, Wo = H // 2, W // 2
        mid_ref[...] = jnp.maximum(src_ref[:, pl.ds(0, Wo, stride=2), :],
                                   src_ref[:, pl.ds(1, Wo, stride=2), :])
        return jnp.maximum(mid_ref[pl.ds(0, Ho, stride=2), :, :],
                           mid_ref[pl.ds(1, Ho, stride=2), :, :])

    # Zero the padded scratch tiles (halos stay zero, interiors overwritten).
    s1_ref[...] = jnp.zeros_like(s1_ref)
    s2_ref[...] = jnp.zeros_like(s2_ref)
    s3_ref[...] = jnp.zeros_like(s3_ref)

    # conv1: Conv3x3 + BatchNorm(eval, folded with bias) + ReLU + MaxPool2x2.
    y1_ref[...] = conv3x3_relu(
        lambda dh, dw: x_ref[0, dh:dh + S, dw:dw + S, :],
        S, S, w1_ref, sh1_ref[...], scale=sc1_ref[...])
    s1_ref[1:1 + S2, 1:1 + S2, :] = maxpool2x2(y1_ref, yw1_ref)

    # conv2 / conv3: Conv3x3 + ReLU (outputs written into zero-halo tiles).
    s2_ref[1:1 + S2, 1:1 + S2, :] = conv3x3_relu(
        lambda dh, dw: s1_ref[dh:dh + S2, dw:dw + S2, :],
        S2, S2, w2_ref, sh2_ref[...])
    s3_ref[1:1 + S2, 1:1 + S2, :] = conv3x3_relu(
        lambda dh, dw: s2_ref[dh:dh + S2, dw:dw + S2, :],
        S2, S2, w3_ref, sh3_ref[...])

    # conv4: Conv3x3 + ReLU + MaxPool2x2.
    y4_ref[...] = conv3x3_relu(
        lambda dh, dw: s3_ref[dh:dh + S2, dw:dw + S2, :],
        S2, S2, w4_ref, sh4_ref[...])
    p4_ref[...] = maxpool2x2(y4_ref, yw4_ref)

    # FC head: Linear(fc_in, 192) -> ReLU -> Linear(192, out).
    # The torch NCHW flatten order is baked into wfc1's row permutation at init,
    # so we contract position-by-position (no (1, fc_in) relayout needed).
    h = bfc1_ref[...]
    for i in range(Po):
        for j in range(Po):
            h = h + jnp.dot(p4_ref[i, j:j + 1, :], wfc1_ref[i * Po + j],
                            preferred_element_type=f32)
    h = jnp.maximum(h, 0.0)
    o_ref[0] = jnp.dot(h, wfc2_ref[...], preferred_element_type=f32) + bfc2_ref[...]


# ----------------------------------------------------------------------------
# Wrapper
# ----------------------------------------------------------------------------
def _full_spec(shape):
    zeros = (0,) * len(shape)
    return pl.BlockSpec(tuple(shape), lambda b: zeros)


def mri_cnn_forward(x_nchw, p, *, num_classes):
    """Forward pass equivalent to MRI_classification_CNN.forward (eval mode)."""
    B, cin, S, _ = x_nchw.shape
    hu = p["w1"].shape[-1]
    S2 = S // 2
    Po = S // 4

    x = jnp.transpose(x_nchw, (0, 2, 3, 1))                # NCHW -> NHWC
    x_pad = jnp.pad(x, ((0, 0), (1, 1), (1, 1), (0, 0)))   # zero halo for conv1

    ins = (x_pad,
           p["w1"], p["sc1"], p["sh1"],
           p["w2"], p["sh2"],
           p["w3"], p["sh3"],
           p["w4"], p["sh4"],
           p["fc_w1"], p["fc_b1"], p["fc_w2"], p["fc_b2"])

    in_specs = [pl.BlockSpec((1, S + 2, S + 2, cin), lambda b: (b, 0, 0, 0))]
    in_specs += [_full_spec(a.shape) for a in ins[1:]]

    out = pl.pallas_call(
        _mri_cnn_kernel,
        out_shape=jax.ShapeDtypeStruct((B, 1, _LANES), jnp.float32),
        grid=(B,),
        in_specs=in_specs,
        out_specs=pl.BlockSpec((1, 1, _LANES), lambda b: (b, 0, 0)),
        scratch_shapes=[
            pltpu.VMEM((S2 + 2, S2 + 2, hu), jnp.float32),      # s1 (zero-halo)
            pltpu.VMEM((S2 + 2, S2 + 2, 2 * hu), jnp.float32),  # s2 (zero-halo)
            pltpu.VMEM((S2 + 2, S2 + 2, 2 * hu), jnp.float32),  # s3 (zero-halo)
            pltpu.VMEM((S, S, hu), jnp.float32),                # y1 (pre-pool)
            pltpu.VMEM((S, S2, hu), jnp.float32),               # yw1 (w-pooled)
            pltpu.VMEM((S2, S2, 3 * hu), jnp.float32),          # y4 (pre-pool)
            pltpu.VMEM((S2, Po, 3 * hu), jnp.float32),          # yw4 (w-pooled)
            pltpu.VMEM((Po, Po, 3 * hu), jnp.float32),          # p4 (pooled)
        ],
        compiler_params=pltpu.CompilerParams(
            dimension_semantics=("parallel",)),
    )(*ins)

    return out.reshape(B, _LANES)[:, :num_classes]


# ----------------------------------------------------------------------------
# Deterministic parameter init (shapes mirror the PyTorch module)
# ----------------------------------------------------------------------------
def init_params(key, input_channels, hidden_units, output_shape, size):
    assert output_shape <= _LANES
    hu = hidden_units
    c4 = 3 * hu
    po = size // 4
    n_fc1 = 192
    keys = jax.random.split(key, 12)

    def conv_w(k, cout, cin):
        # PyTorch OIHW init, converted to HWIO for the in-kernel tap matmuls.
        w_oihw = jax.random.normal(k, (cout, cin, 3, 3), jnp.float32) * 0.1
        return jnp.transpose(w_oihw, (2, 3, 1, 0))

    def bias(k, n):
        return jax.random.normal(k, (n,), jnp.float32) * 0.01

    w1 = conv_w(keys[0], hu, input_channels)
    b1 = bias(keys[1], hu)
    w2 = conv_w(keys[2], 2 * hu, hu)
    b2 = bias(keys[3], 2 * hu)
    w3 = conv_w(keys[4], 2 * hu, 2 * hu)
    b3 = bias(keys[5], 2 * hu)
    w4 = conv_w(keys[6], c4, 2 * hu)
    b4 = bias(keys[7], c4)

    # BatchNorm2d defaults (gamma=1, beta=0, running stats 0/1), folded in eval
    # mode together with the conv1 bias into a single scale/shift pair.
    gamma = jnp.ones((hu,), jnp.float32)
    beta = jnp.zeros((hu,), jnp.float32)
    running_mean = jnp.zeros((hu,), jnp.float32)
    running_var = jnp.ones((hu,), jnp.float32)
    eps = 1e-5
    sc1 = gamma / jnp.sqrt(running_var + eps)
    sh1 = (b1 - running_mean) * sc1 + beta

    # fc1: PyTorch weight is (192, fc_in) with fc_in flattened in NCHW order
    # (c, i, j).  Permute into (position, channel, out) so the kernel contracts
    # straight off the NHWC-ordered pooled activations (flatten order baked in).
    fc_in = c4 * po * po
    w_fc1_t = jax.random.normal(keys[8], (n_fc1, fc_in), jnp.float32) * 0.05
    w_fc1 = jnp.transpose(w_fc1_t.reshape(n_fc1, c4, po, po), (2, 3, 1, 0))
    w_fc1 = w_fc1.reshape(po * po, c4, n_fc1)
    b_fc1 = bias(keys[9], n_fc1)

    # fc2: (out, 192) -> (192, out), lane-padded to 128 output columns.
    w_fc2_t = jax.random.normal(keys[10], (output_shape, n_fc1), jnp.float32) * 0.05
    w_fc2 = jnp.zeros((n_fc1, _LANES), jnp.float32).at[:, :output_shape].set(w_fc2_t.T)
    b_fc2 = jnp.zeros((_LANES,), jnp.float32).at[:output_shape].set(
        bias(keys[11], output_shape))

    return {
        "w1": w1, "sc1": sc1.reshape(1, hu), "sh1": sh1.reshape(1, hu),
        "w2": w2, "sh2": b2.reshape(1, 2 * hu),
        "w3": w3, "sh3": b3.reshape(1, 2 * hu),
        "w4": w4, "sh4": b4.reshape(1, c4),
        "fc_w1": w_fc1, "fc_b1": b_fc1.reshape(1, n_fc1),
        "fc_w2": w_fc2, "fc_b2": b_fc2.reshape(1, _LANES),
    }


if __name__ == "__main__":
    # Small shapes consistent with the module: B=2, input_channels=4,
    # hidden_units=8, size=16, output_shape=4  -> fc_input_size = 8*3*4*4 = 384.
    B, C_IN, HU, SIZE, OUT = 2, 4, 8, 16, 4

    key = jax.random.PRNGKey(0)
    k_params, k_x = jax.random.split(key)
    params = init_params(k_params, C_IN, HU, OUT, SIZE)
    x = jax.random.normal(k_x, (B, C_IN, SIZE, SIZE), jnp.float32)  # NCHW input

    fwd = jax.jit(functools.partial(mri_cnn_forward, num_classes=OUT))
    logits = fwd(x, params)
    jax.block_until_ready(logits)
    assert logits.shape == (B, OUT), logits.shape
    print("KERNEL_OK")
</pallas_src>

<mosaic_0001>
module attributes {stable_mosaic.version = 11 : i64} {
  func.func @_mri_cnn_kernel(%arg0: i32, %arg1: memref<1x18x18x4xf32, #tpu.memory_space<vmem>>, %arg2: memref<3x3x4x8xf32, #tpu.memory_space<vmem>>, %arg3: memref<1x8xf32, #tpu.memory_space<vmem>>, %arg4: memref<1x8xf32, #tpu.memory_space<vmem>>, %arg5: memref<3x3x8x16xf32, #tpu.memory_space<vmem>>, %arg6: memref<1x16xf32, #tpu.memory_space<vmem>>, %arg7: memref<3x3x16x16xf32, #tpu.memory_space<vmem>>, %arg8: memref<1x16xf32, #tpu.memory_space<vmem>>, %arg9: memref<3x3x16x24xf32, #tpu.memory_space<vmem>>, %arg10: memref<1x24xf32, #tpu.memory_space<vmem>>, %arg11: memref<16x24x192xf32, #tpu.memory_space<vmem>>, %arg12: memref<1x192xf32, #tpu.memory_space<vmem>>, %arg13: memref<192x128xf32, #tpu.memory_space<vmem>>, %arg14: memref<1x128xf32, #tpu.memory_space<vmem>>, %arg15: memref<1x1x128xf32, #tpu.memory_space<vmem>>, %arg16: memref<10x10x8xf32, #tpu.memory_space<vmem>>, %arg17: memref<10x10x16xf32, #tpu.memory_space<vmem>>, %arg18: memref<10x10x16xf32, #tpu.memory_space<vmem>>, %arg19: memref<16x16x8xf32, #tpu.memory_space<vmem>>, %arg20: memref<16x8x8xf32, #tpu.memory_space<vmem>>, %arg21: memref<8x8x24xf32, #tpu.memory_space<vmem>>, %arg22: memref<8x4x24xf32, #tpu.memory_space<vmem>>, %arg23: memref<4x4x24xf32, #tpu.memory_space<vmem>>) attributes {dimension_semantics = [#tpu.dimension_semantics<parallel>], iteration_bounds = array<i64: 2>, scalar_prefetch = 0 : i64, scratch_operands = 8 : i64, tpu.core_type = #tpu.core_type<tc>, window_params = [{transform_indices = @transform_0, window_bounds = array<i64: 1, 18, 18, 4>}, {pipeline_mode = #tpu.pipeline_mode<synchronous>, transform_indices = @transform_1, window_bounds = array<i64: 3, 3, 4, 8>}, {pipeline_mode = #tpu.pipeline_mode<synchronous>, transform_indices = @transform_2, window_bounds = array<i64: 1, 8>}, {pipeline_mode = #tpu.pipeline_mode<synchronous>, transform_indices = @transform_3, window_bounds = array<i64: 1, 8>}, {pipeline_mode = #tpu.pipeline_mode<synchronous>, transform_indices = @transform_4, window_bounds = array<i64: 3, 3, 8, 16>}, {pipeline_mode = #tpu.pipeline_mode<synchronous>, transform_indices = @transform_5, window_bounds = array<i64: 1, 16>}, {pipeline_mode = #tpu.pipeline_mode<synchronous>, transform_indices = @transform_6, window_bounds = array<i64: 3, 3, 16, 16>}, {pipeline_mode = #tpu.pipeline_mode<synchronous>, transform_indices = @transform_7, window_bounds = array<i64: 1, 16>}, {pipeline_mode = #tpu.pipeline_mode<synchronous>, transform_indices = @transform_8, window_bounds = array<i64: 3, 3, 16, 24>}, {pipeline_mode = #tpu.pipeline_mode<synchronous>, transform_indices = @transform_9, window_bounds = array<i64: 1, 24>}, {pipeline_mode = #tpu.pipeline_mode<synchronous>, transform_indices = @transform_10, window_bounds = array<i64: 16, 24, 192>}, {pipeline_mode = #tpu.pipeline_mode<synchronous>, transform_indices = @transform_11, window_bounds = array<i64: 1, 192>}, {pipeline_mode = #tpu.pipeline_mode<synchronous>, transform_indices = @transform_12, window_bounds = array<i64: 192, 128>}, {pipeline_mode = #tpu.pipeline_mode<synchronous>, transform_indices = @transform_13, window_bounds = array<i64: 1, 128>}, {transform_indices = @transform_14, window_bounds = array<i64: 1, 1, 128>}]} {
    %cst = arith.constant 0.000000e+00 : f32
    %0 = vector.broadcast %cst : f32 to vector<10x10x8xf32>
    %c0 = arith.constant 0 : index
    %c0_0 = arith.constant 0 : index
    %c0_1 = arith.constant 0 : index
    %1 = vector.load %arg16[%c0, %c0_0, %c0_1] : memref<10x10x8xf32, #tpu.memory_space<vmem>>, vector<10x10x8xf32>
    tpu.vector_store %arg16[%c0, %c0_0, %c0_1], %0 {strides = array<i32>} : memref<10x10x8xf32, #tpu.memory_space<vmem>>, vector<10x10x8xf32>,
    %cst_2 = arith.constant 0.000000e+00 : f32
    %2 = vector.broadcast %cst_2 : f32 to vector<10x10x16xf32>
    %c0_3 = arith.constant 0 : index
    %c0_4 = arith.constant 0 : index
    %c0_5 = arith.constant 0 : index
    %3 = vector.load %arg17[%c0_3, %c0_4, %c0_5] : memref<10x10x16xf32, #tpu.memory_space<vmem>>, vector<10x10x16xf32>
    tpu.vector_store %arg17[%c0_3, %c0_4, %c0_5], %2 {strides = array<i32>} : memref<10x10x16xf32, #tpu.memory_space<vmem>>, vector<10x10x16xf32>,
    %cst_6 = arith.constant 0.000000e+00 : f32
    %4 = vector.broadcast %cst_6 : f32 to vector<10x10x16xf32>
    %c0_7 = arith.constant 0 : index
    %c0_8 = arith.constant 0 : index
    %c0_9 = arith.constant 0 : index
    %5 = vector.load %arg18[%c0_7, %c0_8, %c0_9] : memref<10x10x16xf32, #tpu.memory_space<vmem>>, vector<10x10x16xf32>
    tpu.vector_store %arg18[%c0_7, %c0_8, %c0_9], %4 {strides = array<i32>} : memref<10x10x16xf32, #tpu.memory_space<vmem>>, vector<10x10x16xf32>,
    %c0_10 = arith.constant 0 : index
    %c0_11 = arith.constant 0 : index
    %6 = vector.load %arg4[%c0_10, %c0_11] : memref<1x8xf32, #tpu.memory_space<vmem>>, vector<1x8xf32>
    %c0_12 = arith.constant 0 : index
    %c0_13 = arith.constant 0 : index
    %7 = vector.load %arg3[%c0_12, %c0_13] : memref<1x8xf32, #tpu.memory_space<vmem>>, vector<1x8xf32>
    %c0_14 = arith.constant 0 : index
    %c0_15 = arith.constant 0 : index
    %c0_16 = arith.constant 0 : index
    %c0_17 = arith.constant 0 : index
    %8 = vector.load %arg1[%c0_14, %c0_15, %c0_16, %c0_17] : memref<1x18x18x4xf32, #tpu.memory_space<vmem>>, vector<1x16x16x4xf32>
    %9 = vector.shape_cast %8 : vector<1x16x16x4xf32> to vector<16x16x4xf32>
    %10 = vector.shape_cast %9 : vector<16x16x4xf32> to vector<256x4xf32>
    %c0_18 = arith.constant 0 : index
    %c0_19 = arith.constant 0 : index
    %c0_20 = arith.constant 0 : index
    %c0_21 = arith.constant 0 : index
    %11 = vector.load %arg2[%c0_18, %c0_19, %c0_20, %c0_21] : memref<3x3x4x8xf32, #tpu.memory_space<vmem>>, vector<1x1x4x8xf32>
    %12 = vector.shape_cast %11 : vector<1x1x4x8xf32> to vector<4x8xf32>
    %cst_22 = arith.constant dense<0.000000e+00> : vector<256x8xf32>
    %13 = tpu.matmul %10, %12, %cst_22 {dimension_numbers = #tpu.dot_dimension_numbers<[1], [0], [0], [1], [0, 0, 1, 1], [], []>} : vector<256x4xf32>, vector<4x8xf32>, vector<256x8xf32> -> vector<256x8xf32>
    %c0_23 = arith.constant 0 : index
    %c0_24 = arith.constant 0 : index
    %c1 = arith.constant 1 : index
    %c0_25 = arith.constant 0 : index
    %14 = vector.load %arg1[%c0_23, %c0_24, %c1, %c0_25] : memref<1x18x18x4xf32, #tpu.memory_space<vmem>>, vector<1x16x16x4xf32>
    %15 = vector.shape_cast %14 : vector<1x16x16x4xf32> to vector<16x16x4xf32>
    %16 = vector.shape_cast %15 : vector<16x16x4xf32> to vector<256x4xf32>
    %c0_26 = arith.constant 0 : index
    %c1_27 = arith.constant 1 : index
    %c0_28 = arith.constant 0 : index
    %c0_29 = arith.constant 0 : index
    %17 = vector.load %arg2[%c0_26, %c1_27, %c0_28, %c0_29] : memref<3x3x4x8xf32, #tpu.memory_space<vmem>>, vector<1x1x4x8xf32>
    %18 = vector.shape_cast %17 : vector<1x1x4x8xf32> to vector<4x8xf32>
    %cst_30 = arith.constant dense<0.000000e+00> : vector<256x8xf32>
    %19 = tpu.matmul %16, %18, %cst_30 {dimension_numbers = #tpu.dot_dimension_numbers<[1], [0], [0], [1], [0, 0, 1, 1], [], []>} : vector<256x4xf32>, vector<4x8xf32>, vector<256x8xf32> -> vector<256x8xf32>
    %20 = arith.addf %13, %19 : vector<256x8xf32>
    %c0_31 = arith.constant 0 : index
    %c0_32 = arith.constant 0 : index
    %c2 = arith.constant 2 : index
    %c0_33 = arith.constant 0 : index
    %21 = vector.load %arg1[%c0_31, %c0_32, %c2, %c0_33] : memref<1x18x18x4xf32, #tpu.memory_space<vmem>>, vector<1x16x16x4xf32>
    %22 = vector.shape_cast %21 : vector<1x16x16x4xf32> to vector<16x16x4xf32>
    %23 = vector.shape_cast %22 : vector<16x16x4xf32> to vector<256x4xf32>
    %c0_34 = arith.constant 0 : index
    %c2_35 = arith.constant 2 : index
    %c0_36 = arith.constant 0 : index
    %c0_37 = arith.constant 0 : index
    %24 = vector.load %arg2[%c0_34, %c2_35, %c0_36, %c0_37] : memref<3x3x4x8xf32, #tpu.memory_space<vmem>>, vector<1x1x4x8xf32>
    %25 = vector.shape_cast %24 : vector<1x1x4x8xf32> to vector<4x8xf32>
    %cst_38 = arith.constant dense<0.000000e+00> : vector<256x8xf32>
    %26 = tpu.matmul %23, %25, %cst_38 {dimension_numbers = #tpu.dot_dimension_numbers<[1], [0], [0], [1], [0, 0, 1, 1], [], []>} : vector<256x4xf32>, vector<4x8xf32>, vector<256x8xf32> -> vector<256x8xf32>
    %27 = arith.addf %20, %26 : vector<256x8xf32>
    %c0_39 = arith.constant 0 : index
    %c1_40 = arith.constant 1 : index
    %c0_41 = arith.constant 0 : index
    %c0_42 = arith.constant 0 : index
    %28 = vector.load %arg1[%c0_39, %c1_40, %c0_41, %c0_42] : memref<1x18x18x4xf32, #tpu.memory_space<vmem>>, vector<1x16x16x4xf32>
    %29 = vector.shape_cast %28 : vector<1x16x16x4xf32> to vector<16x16x4xf32>
    %30 = vector.shape_cast %29 : vector<16x16x4xf32> to vector<256x4xf32>
    %c1_43 = arith.constant 1 : index
    %c0_44 = arith.constant 0 : index
    %c0_45 = arith.constant 0 : index
    %c0_46 = arith.constant 0 : index
    %31 = vector.load %arg2[%c1_43, %c0_44, %c0_45, %c0_46] : memref<3x3x4x8xf32, #tpu.memory_space<vmem>>, vector<1x1x4x8xf32>
    %32 = vector.shape_cast %31 : vector<1x1x4x8xf32> to vector<4x8xf32>
    %cst_47 = arith.constant dense<0.000000e+00> : vector<256x8xf32>
    %33 = tpu.matmul %30, %32, %cst_47 {dimension_numbers = #tpu.dot_dimension_numbers<[1], [0], [0], [1], [0, 0, 1, 1], [], []>} : vector<256x4xf32>, vector<4x8xf32>, vector<256x8xf32> -> vector<256x8xf32>
    %34 = arith.addf %27, %33 : vector<256x8xf32>
    %c0_48 = arith.constant 0 : index
    %c1_49 = arith.constant 1 : index
    %c1_50 = arith.constant 1 : index
    %c0_51 = arith.constant 0 : index
    %35 = vector.load %arg1[%c0_48, %c1_49, %c1_50, %c0_51] : memref<1x18x18x4xf32, #tpu.memory_space<vmem>>, vector<1x16x16x4xf32>
    %36 = vector.shape_cast %35 : vector<1x16x16x4xf32> to vector<16x16x4xf32>
    %37 = vector.shape_cast %36 : vector<16x16x4xf32> to vector<256x4xf32>
    %c1_52 = arith.constant 1 : index
    %c1_53 = arith.constant 1 : index
    %c0_54 = arith.constant 0 : index
    %c0_55 = arith.constant 0 : index
    %38 = vector.load %arg2[%c1_52, %c1_53, %c0_54, %c0_55] : memref<3x3x4x8xf32, #tpu.memory_space<vmem>>, vector<1x1x4x8xf32>
    %39 = vector.shape_cast %38 : vector<1x1x4x8xf32> to vector<4x8xf32>
    %cst_56 = arith.constant dense<0.000000e+00> : vector<256x8xf32>
    %40 = tpu.matmul %37, %39, %cst_56 {dimension_numbers = #tpu.dot_dimension_numbers<[1], [0], [0], [1], [0, 0, 1, 1], [], []>} : vector<256x4xf32>, vector<4x8xf32>, vector<256x8xf32> -> vector<256x8xf32>
    %41 = arith.addf %34, %40 : vector<256x8xf32>
    %c0_57 = arith.constant 0 : index
    %c1_58 = arith.constant 1 : index
    %c2_59 = arith.constant 2 : index
    %c0_60 = arith.constant 0 : index
    %42 = vector.load %arg1[%c0_57, %c1_58, %c2_59, %c0_60] : memref<1x18x18x4xf32, #tpu.memory_space<vmem>>, vector<1x16x16x4xf32>
    %43 = vector.shape_cast %42 : vector<1x16x16x4xf32> to vector<16x16x4xf32>
    %44 = vector.shape_cast %43 : vector<16x16x4xf32> to vector<256x4xf32>
    %c1_61 = arith.constant 1 : index
    %c2_62 = arith.constant 2 : index
    %c0_63 = arith.constant 0 : index
    %c0_64 = arith.constant 0 : index
    %45 = vector.load %arg2[%c1_61, %c2_62, %c0_63, %c0_64] : memref<3x3x4x8xf32, #tpu.memory_space<vmem>>, vector<1x1x4x8xf32>
    %46 = vector.shape_cast %45 : vector<1x1x4x8xf32> to vector<4x8xf32>
    %cst_65 = arith.constant dense<0.000000e+00> : vector<256x8xf32>
    %47 = tpu.matmul %44, %46, %cst_65 {dimension_numbers = #tpu.dot_dimension_numbers<[1], [0], [0], [1], [0, 0, 1, 1], [], []>} : vector<256x4xf32>, vector<4x8xf32>, vector<256x8xf32> -> vector<256x8xf32>
    %48 = arith.addf %41, %47 : vector<256x8xf32>
    %c0_66 = arith.constant 0 : index
    %c2_67 = arith.constant 2 : index
    %c0_68 = arith.constant 0 : index
    %c0_69 = arith.constant 0 : index
    %49 = vector.load %arg1[%c0_66, %c2_67, %c0_68, %c0_69] : memref<1x18x18x4xf32, #tpu.memory_space<vmem>>, vector<1x16x16x4xf32>
    %50 = vector.shape_cast %49 : vector<1x16x16x4xf32> to vector<16x16x4xf32>
    %51 = vector.shape_cast %50 : vector<16x16x4xf32> to vector<256x4xf32>
    %c2_70 = arith.constant 2 : index
    %c0_71 = arith.constant 0 : index
    %c0_72 = arith.constant 0 : index
    %c0_73 = arith.constant 0 : index
    %52 = vector.load %arg2[%c2_70, %c0_71, %c0_72, %c0_73] : memref<3x3x4x8xf32, #tpu.memory_space<vmem>>, vector<1x1x4x8xf32>
    %53 = vector.shape_cast %52 : vector<1x1x4x8xf32> to vector<4x8xf32>
    %cst_74 = arith.constant dense<0.000000e+00> : vector<256x8xf32>
    %54 = tpu.matmul %51, %53, %cst_74 {dimension_numbers = #tpu.dot_dimension_numbers<[1], [0], [0], [1], [0, 0, 1, 1], [], []>} : vector<256x4xf32>, vector<4x8xf32>, vector<256x8xf32> -> vector<256x8xf32>
    %55 = arith.addf %48, %54 : vector<256x8xf32>
    %c0_75 = arith.constant 0 : index
    %c2_76 = arith.constant 2 : index
    %c1_77 = arith.constant 1 : index
    %c0_78 = arith.constant 0 : index
    %56 = vector.load %arg1[%c0_75, %c2_76, %c1_77, %c0_78] : memref<1x18x18x4xf32, #tpu.memory_space<vmem>>, vector<1x16x16x4xf32>
    %57 = vector.shape_cast %56 : vector<1x16x16x4xf32> to vector<16x16x4xf32>
    %58 = vector.shape_cast %57 : vector<16x16x4xf32> to vector<256x4xf32>
    %c2_79 = arith.constant 2 : index
    %c1_80 = arith.constant 1 : index
    %c0_81 = arith.constant 0 : index
    %c0_82 = arith.constant 0 : index
    %59 = vector.load %arg2[%c2_79, %c1_80, %c0_81, %c0_82] : memref<3x3x4x8xf32, #tpu.memory_space<vmem>>, vector<1x1x4x8xf32>
    %60 = vector.shape_cast %59 : vector<1x1x4x8xf32> to vector<4x8xf32>
    %cst_83 = arith.constant dense<0.000000e+00> : vector<256x8xf32>
    %61 = tpu.matmul %58, %60, %cst_83 {dimension_numbers = #tpu.dot_dimension_numbers<[1], [0], [0], [1], [0, 0, 1, 1], [], []>} : vector<256x4xf32>, vector<4x8xf32>, vector<256x8xf32> -> vector<256x8xf32>
    %62 = arith.addf %55, %61 : vector<256x8xf32>
    %c0_84 = arith.constant 0 : index
    %c2_85 = arith.constant 2 : index
    %c2_86 = arith.constant 2 : index
    %c0_87 = arith.constant 0 : index
    %63 = vector.load %arg1[%c0_84, %c2_85, %c2_86, %c0_87] : memref<1x18x18x4xf32, #tpu.memory_space<vmem>>, vector<1x16x16x4xf32>
    %64 = vector.shape_cast %63 : vector<1x16x16x4xf32> to vector<16x16x4xf32>
    %65 = vector.shape_cast %64 : vector<16x16x4xf32> to vector<256x4xf32>
    %c2_88 = arith.constant 2 : index
    %c2_89 = arith.constant 2 : index
    %c0_90 = arith.constant 0 : index
    %c0_91 = arith.constant 0 : index
    %66 = vector.load %arg2[%c2_88, %c2_89, %c0_90, %c0_91] : memref<3x3x4x8xf32, #tpu.memory_space<vmem>>, vector<1x1x4x8xf32>
    %67 = vector.shape_cast %66 : vector<1x1x4x8xf32> to vector<4x8xf32>
    %cst_92 = arith.constant dense<0.000000e+00> : vector<256x8xf32>
    %68 = tpu.matmul %65, %67, %cst_92 {dimension_numbers = #tpu.dot_dimension_numbers<[1], [0], [0], [1], [0, 0, 1, 1], [], []>} : vector<256x4xf32>, vector<4x8xf32>, vector<256x8xf32> -> vector<256x8xf32>
    %69 = arith.addf %62, %68 : vector<256x8xf32>
    %70 = vector.broadcast %7 : vector<1x8xf32> to vector<256x8xf32>
    %71 = arith.mulf %69, %70 : vector<256x8xf32>
    %72 = vector.broadcast %6 : vector<1x8xf32> to vector<256x8xf32>
    %73 = arith.addf %71, %72 : vector<256x8xf32>
    %cst_93 = arith.constant 0.000000e+00 : f32
    %74 = vector.broadcast %cst_93 : f32 to vector<256x8xf32>
    %75 = arith.maximumf %73, %74 : vector<256x8xf32>
    %76 = vector.shape_cast %75 : vector<256x8xf32> to vector<16x16x8xf32>
    %c0_94 = arith.constant 0 : index
    %c0_95 = arith.constant 0 : index
    %c0_96 = arith.constant 0 : index
    %77 = vector.load %arg19[%c0_94, %c0_95, %c0_96] : memref<16x16x8xf32, #tpu.memory_space<vmem>>, vector<16x16x8xf32>
    tpu.vector_store %arg19[%c0_94, %c0_95, %c0_96], %76 {strides = array<i32>} : memref<16x16x8xf32, #tpu.memory_space<vmem>>, vector<16x16x8xf32>,
    %c0_97 = arith.constant 0 : index
    %c0_98 = arith.constant 0 : index
    %c0_99 = arith.constant 0 : index
    %78 = tpu.strided_load %arg19[%c0_97, %c0_98, %c0_99] {strides = array<i32: 1, 2, 1>} : memref<16x16x8xf32, #tpu.memory_space<vmem>>, vector<16x8x8xf32>
    %c0_100 = arith.constant 0 : index
    %c1_101 = arith.constant 1 : index
    %c0_102 = arith.constant 0 : index
    %79 = tpu.strided_load %arg19[%c0_100, %c1_101, %c0_102] {strides = array<i32: 1, 2, 1>} : memref<16x16x8xf32, #tpu.memory_space<vmem>>, vector<16x8x8xf32>
    %80 = arith.maximumf %78, %79 : vector<16x8x8xf32>
    %c0_103 = arith.constant 0 : index
    %c0_104 = arith.constant 0 : index
    %c0_105 = arith.constant 0 : index
    %81 = vector.load %arg20[%c0_103, %c0_104, %c0_105] : memref<16x8x8xf32, #tpu.memory_space<vmem>>, vector<16x8x8xf32>
    tpu.vector_store %arg20[%c0_103, %c0_104, %c0_105], %80 {strides = array<i32>} : memref<16x8x8xf32, #tpu.memory_space<vmem>>, vector<16x8x8xf32>,
    %c0_106 = arith.constant 0 : index
    %c0_107 = arith.constant 0 : index
    %c0_108 = arith.constant 0 : index
    %82 = tpu.strided_load %arg20[%c0_106, %c0_107, %c0_108] {strides = array<i32: 2, 1, 1>} : memref<16x8x8xf32, #tpu.memory_space<vmem>>, vector<8x8x8xf32>
    %c1_109 = arith.constant 1 : index
    %c0_110 = arith.constant 0 : index
    %c0_111 = arith.constant 0 : index
    %83 = tpu.strided_load %arg20[%c1_109, %c0_110, %c0_111] {strides = array<i32: 2, 1, 1>} : memref<16x8x8xf32, #tpu.memory_space<vmem>>, vector<8x8x8xf32>
    %84 = arith.maximumf %82, %83 : vector<8x8x8xf32>
    %c1_112 = arith.constant 1 : index
    %c1_113 = arith.constant 1 : index
    %c0_114 = arith.constant 0 : index
    %85 = vector.load %arg16[%c1_112, %c1_113, %c0_114] : memref<10x10x8xf32, #tpu.memory_space<vmem>>, vector<8x8x8xf32>
    tpu.vector_store %arg16[%c1_112, %c1_113, %c0_114], %84 {strides = array<i32>} : memref<10x10x8xf32, #tpu.memory_space<vmem>>, vector<8x8x8xf32>,
    %c0_115 = arith.constant 0 : index
    %c0_116 = arith.constant 0 : index
    %86 = vector.load %arg6[%c0_115, %c0_116] : memref<1x16xf32, #tpu.memory_space<vmem>>, vector<1x16xf32>
    %c0_117 = arith.constant 0 : index
    %c0_118 = arith.constant 0 : index
    %c0_119 = arith.constant 0 : index
    %87 = vector.load %arg16[%c0_117, %c0_118, %c0_119] : memref<10x10x8xf32, #tpu.memory_space<vmem>>, vector<8x8x8xf32>
    %88 = vector.shape_cast %87 : vector<8x8x8xf32> to vector<64x8xf32>
    %c0_120 = arith.constant 0 : index
    %c0_121 = arith.constant 0 : index
    %c0_122 = arith.constant 0 : index
    %c0_123 = arith.constant 0 : index
    %89 = vector.load %arg5[%c0_120, %c0_121, %c0_122, %c0_123] : memref<3x3x8x16xf32, #tpu.memory_space<vmem>>, vector<1x1x8x16xf32>
    %90 = vector.shape_cast %89 : vector<1x1x8x16xf32> to vector<8x16xf32>
    %cst_124 = arith.constant dense<0.000000e+00> : vector<64x16xf32>
    %91 = tpu.matmul %88, %90, %cst_124 {dimension_numbers = #tpu.dot_dimension_numbers<[1], [0], [0], [1], [0, 0, 1, 1], [], []>} : vector<64x8xf32>, vector<8x16xf32>, vector<64x16xf32> -> vector<64x16xf32>
    %c0_125 = arith.constant 0 : index
    %c1_126 = arith.constant 1 : index
    %c0_127 = arith.constant 0 : index
    %92 = vector.load %arg16[%c0_125, %c1_126, %c0_127] : memref<10x10x8xf32, #tpu.memory_space<vmem>>, vector<8x8x8xf32>
    %93 = vector.shape_cast %92 : vector<8x8x8xf32> to vector<64x8xf32>
    %c0_128 = arith.constant 0 : index
    %c1_129 = arith.constant 1 : index
    %c0_130 = arith.constant 0 : index
    %c0_131 = arith.constant 0 : index
    %94 = vector.load %arg5[%c0_128, %c1_129, %c0_130, %c0_131] : memref<3x3x8x16xf32, #tpu.memory_space<vmem>>, vector<1x1x8x16xf32>
    %95 = vector.shape_cast %94 : vector<1x1x8x16xf32> to vector<8x16xf32>
    %cst_132 = arith.constant dense<0.000000e+00> : vector<64x16xf32>
    %96 = tpu.matmul %93, %95, %cst_132 {dimension_numbers = #tpu.dot_dimension_numbers<[1], [0], [0], [1], [0, 0, 1, 1], [], []>} : vector<64x8xf32>, vector<8x16xf32>, vector<64x16xf32> -> vector<64x16xf32>
    %97 = arith.addf %91, %96 : vector<64x16xf32>
    %c0_133 = arith.constant 0 : index
    %c2_134 = arith.constant 2 : index
    %c0_135 = arith.constant 0 : index
    %98 = vector.load %arg16[%c0_133, %c2_134, %c0_135] : memref<10x10x8xf32, #tpu.memory_space<vmem>>, vector<8x8x8xf32>
    %99 = vector.shape_cast %98 : vector<8x8x8xf32> to vector<64x8xf32>
    %c0_136 = arith.constant 0 : index
    %c2_137 = arith.constant 2 : index
    %c0_138 = arith.constant 0 : index
    %c0_139 = arith.constant 0 : index
    %100 = vector.load %arg5[%c0_136, %c2_137, %c0_138, %c0_139] : memref<3x3x8x16xf32, #tpu.memory_space<vmem>>, vector<1x1x8x16xf32>
    %101 = vector.shape_cast %100 : vector<1x1x8x16xf32> to vector<8x16xf32>
    %cst_140 = arith.constant dense<0.000000e+00> : vector<64x16xf32>
    %102 = tpu.matmul %99, %101, %cst_140 {dimension_numbers = #tpu.dot_dimension_numbers<[1], [0], [0], [1], [0, 0, 1, 1], [], []>} : vector<64x8xf32>, vector<8x16xf32>, vector<64x16xf32> -> vector<64x16xf32>
    %103 = arith.addf %97, %102 : vector<64x16xf32>
    %c1_141 = arith.constant 1 : index
    %c0_142 = arith.constant 0 : index
    %c0_143 = arith.constant 0 : index
    %104 = vector.load %arg16[%c1_141, %c0_142, %c0_143] : memref<10x10x8xf32, #tpu.memory_space<vmem>>, vector<8x8x8xf32>
    %105 = vector.shape_cast %104 : vector<8x8x8xf32> to vector<64x8xf32>
    %c1_144 = arith.constant 1 : index
    %c0_145 = arith.constant 0 : index
    %c0_146 = arith.constant 0 : index
    %c0_147 = arith.constant 0 : index
    %106 = vector.load %arg5[%c1_144, %c0_145, %c0_146, %c0_147] : memref<3x3x8x16xf32, #tpu.memory_space<vmem>>, vector<1x1x8x16xf32>
    %107 = vector.shape_cast %106 : vector<1x1x8x16xf32> to vector<8x16xf32>
    %cst_148 = arith.constant dense<0.000000e+00> : vector<64x16xf32>
    %108 = tpu.matmul %105, %107, %cst_148 {dimension_numbers = #tpu.dot_dimension_numbers<[1], [0], [0], [1], [0, 0, 1, 1], [], []>} : vector<64x8xf32>, vector<8x16xf32>, vector<64x16xf32> -> vector<64x16xf32>
    %109 = arith.addf %103, %108 : vector<64x16xf32>
    %c1_149 = arith.constant 1 : index
    %c1_150 = arith.constant 1 : index
    %c0_151 = arith.constant 0 : index
    %110 = vector.load %arg16[%c1_149, %c1_150, %c0_151] : memref<10x10x8xf32, #tpu.memory_space<vmem>>, vector<8x8x8xf32>
    %111 = vector.shape_cast %110 : vector<8x8x8xf32> to vector<64x8xf32>
    %c1_152 = arith.constant 1 : index
    %c1_153 = arith.constant 1 : index
    %c0_154 = arith.constant 0 : index
    %c0_155 = arith.constant 0 : index
    %112 = vector.load %arg5[%c1_152, %c1_153, %c0_154, %c0_155] : memref<3x3x8x16xf32, #tpu.memory_space<vmem>>, vector<1x1x8x16xf32>
    %113 = vector.shape_cast %112 : vector<1x1x8x16xf32> to vector<8x16xf32>
    %cst_156 = arith.constant dense<0.000000e+00> : vector<64x16xf32>
    %114 = tpu.matmul %111, %113, %cst_156 {dimension_numbers = #tpu.dot_dimension_numbers<[1], [0], [0], [1], [0, 0, 1, 1], [], []>} : vector<64x8xf32>, vector<8x16xf32>, vector<64x16xf32> -> vector<64x16xf32>
    %115 = arith.addf %109, %114 : vector<64x16xf32>
    %c1_157 = arith.constant 1 : index
    %c2_158 = arith.constant 2 : index
    %c0_159 = arith.constant 0 : index
    %116 = vector.load %arg16[%c1_157, %c2_158, %c0_159] : memref<10x10x8xf32, #tpu.memory_space<vmem>>, vector<8x8x8xf32>
    %117 = vector.shape_cast %116 : vector<8x8x8xf32> to vector<64x8xf32>
    %c1_160 = arith.constant 1 : index
    %c2_161 = arith.constant 2 : index
    %c0_162 = arith.constant 0 : index
    %c0_163 = arith.constant 0 : index
    %118 = vector.load %arg5[%c1_160, %c2_161, %c0_162, %c0_163] : memref<3x3x8x16xf32, #tpu.memory_space<vmem>>, vector<1x1x8x16xf32>
    %119 = vector.shape_cast %118 : vector<1x1x8x16xf32> to vector<8x16xf32>
    %cst_164 = arith.constant dense<0.000000e+00> : vector<64x16xf32>
    %120 = tpu.matmul %117, %119, %cst_164 {dimension_numbers = #tpu.dot_dimension_numbers<[1], [0], [0], [1], [0, 0, 1, 1], [], []>} : vector<64x8xf32>, vector<8x16xf32>, vector<64x16xf32> -> vector<64x16xf32>
    %121 = arith.addf %115, %120 : vector<64x16xf32>
    %c2_165 = arith.constant 2 : index
    %c0_166 = arith.constant 0 : index
    %c0_167 = arith.constant 0 : index
    %122 = vector.load %arg16[%c2_165, %c0_166, %c0_167] : memref<10x10x8xf32, #tpu.memory_space<vmem>>, vector<8x8x8xf32>
    %123 = vector.shape_cast %122 : vector<8x8x8xf32> to vector<64x8xf32>
    %c2_168 = arith.constant 2 : index
    %c0_169 = arith.constant 0 : index
    %c0_170 = arith.constant 0 : index
    %c0_171 = arith.constant 0 : index
    %124 = vector.load %arg5[%c2_168, %c0_169, %c0_170, %c0_171] : memref<3x3x8x16xf32, #tpu.memory_space<vmem>>, vector<1x1x8x16xf32>
    %125 = vector.shape_cast %124 : vector<1x1x8x16xf32> to vector<8x16xf32>
    %cst_172 = arith.constant dense<0.000000e+00> : vector<64x16xf32>
    %126 = tpu.matmul %123, %125, %cst_172 {dimension_numbers = #tpu.dot_dimension_numbers<[1], [0], [0], [1], [0, 0, 1, 1], [], []>} : vector<64x8xf32>, vector<8x16xf32>, vector<64x16xf32> -> vector<64x16xf32>
    %127 = arith.addf %121, %126 : vector<64x16xf32>
    %c2_173 = arith.constant 2 : index
    %c1_174 = arith.constant 1 : index
    %c0_175 = arith.constant 0 : index
    %128 = vector.load %arg16[%c2_173, %c1_174, %c0_175] : memref<10x10x8xf32, #tpu.memory_space<vmem>>, vector<8x8x8xf32>
    %129 = vector.shape_cast %128 : vector<8x8x8xf32> to vector<64x8xf32>
    %c2_176 = arith.constant 2 : index
    %c1_177 = arith.constant 1 : index
    %c0_178 = arith.constant 0 : index
    %c0_179 = arith.constant 0 : index
    %130 = vector.load %arg5[%c2_176, %c1_177, %c0_178, %c0_179] : memref<3x3x8x16xf32, #tpu.memory_space<vmem>>, vector<1x1x8x16xf32>
    %131 = vector.shape_cast %130 : vector<1x1x8x16xf32> to vector<8x16xf32>
    %cst_180 = arith.constant dense<0.000000e+00> : vector<64x16xf32>
    %132 = tpu.matmul %129, %131, %cst_180 {dimension_numbers = #tpu.dot_dimension_numbers<[1], [0], [0], [1], [0, 0, 1, 1], [], []>} : vector<64x8xf32>, vector<8x16xf32>, vector<64x16xf32> -> vector<64x16xf32>
    %133 = arith.addf %127, %132 : vector<64x16xf32>
    %c2_181 = arith.constant 2 : index
    %c2_182 = arith.constant 2 : index
    %c0_183 = arith.constant 0 : index
    %134 = vector.load %arg16[%c2_181, %c2_182, %c0_183] : memref<10x10x8xf32, #tpu.memory_space<vmem>>, vector<8x8x8xf32>
    %135 = vector.shape_cast %134 : vector<8x8x8xf32> to vector<64x8xf32>
    %c2_184 = arith.constant 2 : index
    %c2_185 = arith.constant 2 : index
    %c0_186 = arith.constant 0 : index
    %c0_187 = arith.constant 0 : index
    %136 = vector.load %arg5[%c2_184, %c2_185, %c0_186, %c0_187] : memref<3x3x8x16xf32, #tpu.memory_space<vmem>>, vector<1x1x8x16xf32>
    %137 = vector.shape_cast %136 : vector<1x1x8x16xf32> to vector<8x16xf32>
    %cst_188 = arith.constant dense<0.000000e+00> : vector<64x16xf32>
    %138 = tpu.matmul %135, %137, %cst_188 {dimension_numbers = #tpu.dot_dimension_numbers<[1], [0], [0], [1], [0, 0, 1, 1], [], []>} : vector<64x8xf32>, vector<8x16xf32>, vector<64x16xf32> -> vector<64x16xf32>
    %139 = arith.addf %133, %138 : vector<64x16xf32>
    %140 = vector.broadcast %86 : vector<1x16xf32> to vector<64x16xf32>
    %141 = arith.addf %139, %140 : vector<64x16xf32>
    %cst_189 = arith.constant 0.000000e+00 : f32
    %142 = vector.broadcast %cst_189 : f32 to vector<64x16xf32>
    %143 = arith.maximumf %141, %142 : vector<64x16xf32>
    %144 = vector.shape_cast %143 : vector<64x16xf32> to vector<8x8x16xf32>
    %c1_190 = arith.constant 1 : index
    %c1_191 = arith.constant 1 : index
    %c0_192 = arith.constant 0 : index
    %145 = vector.load %arg17[%c1_190, %c1_191, %c0_192] : memref<10x10x16xf32, #tpu.memory_space<vmem>>, vector<8x8x16xf32>
    tpu.vector_store %arg17[%c1_190, %c1_191, %c0_192], %144 {strides = array<i32>} : memref<10x10x16xf32, #tpu.memory_space<vmem>>, vector<8x8x16xf32>,
    %c0_193 = arith.constant 0 : index
    %c0_194 = arith.constant 0 : index
    %146 = vector.load %arg8[%c0_193, %c0_194] : memref<1x16xf32, #tpu.memory_space<vmem>>, vector<1x16xf32>
    %c0_195 = arith.constant 0 : index
    %c0_196 = arith.constant 0 : index
    %c0_197 = arith.constant 0 : index
    %147 = vector.load %arg17[%c0_195, %c0_196, %c0_197] : memref<10x10x16xf32, #tpu.memory_space<vmem>>, vector<8x8x16xf32>
    %148 = vector.shape_cast %147 : vector<8x8x16xf32> to vector<64x16xf32>
    %c0_198 = arith.constant 0 : index
    %c0_199 = arith.constant 0 : index
    %c0_200 = arith.constant 0 : index
    %c0_201 = arith.constant 0 : index
    %149 = vector.load %arg7[%c0_198, %c0_199, %c0_200, %c0_201] : memref<3x3x16x16xf32, #tpu.memory_space<vmem>>, vector<1x1x16x16xf32>
    %150 = vector.shape_cast %149 : vector<1x1x16x16xf32> to vector<16x16xf32>
    %cst_202 = arith.constant dense<0.000000e+00> : vector<64x16xf32>
    %151 = tpu.matmul %148, %150, %cst_202 {dimension_numbers = #tpu.dot_dimension_numbers<[1], [0], [0], [1], [0, 0, 1, 1], [], []>} : vector<64x16xf32>, vector<16x16xf32>, vector<64x16xf32> -> vector<64x16xf32>
    %c0_203 = arith.constant 0 : index
    %c1_204 = arith.constant 1 : index
    %c0_205 = arith.constant 0 : index
    %152 = vector.load %arg17[%c0_203, %c1_204, %c0_205] : memref<10x10x16xf32, #tpu.memory_space<vmem>>, vector<8x8x16xf32>
    %153 = vector.shape_cast %152 : vector<8x8x16xf32> to vector<64x16xf32>
    %c0_206 = arith.constant 0 : index
    %c1_207 = arith.constant 1 : index
    %c0_208 = arith.constant 0 : index
    %c0_209 = arith.constant 0 : index
    %154 = vector.load %arg7[%c0_206, %c1_207, %c0_208, %c0_209] : memref<3x3x16x16xf32, #tpu.memory_space<vmem>>, vector<1x1x16x16xf32>
    %155 = vector.shape_cast %154 : vector<1x1x16x16xf32> to vector<16x16xf32>
    %cst_210 = arith.constant dense<0.000000e+00> : vector<64x16xf32>
    %156 = tpu.matmul %153, %155, %cst_210 {dimension_numbers = #tpu.dot_dimension_numbers<[1], [0], [0], [1], [0, 0, 1, 1], [], []>} : vector<64x16xf32>, vector<16x16xf32>, vector<64x16xf32> -> vector<64x16xf32>
    %157 = arith.addf %151, %156 : vector<64x16xf32>
    %c0_211 = arith.constant 0 : index
    %c2_212 = arith.constant 2 : index
    %c0_213 = arith.constant 0 : index
    %158 = vector.load %arg17[%c0_211, %c2_212, %c0_213] : memref<10x10x16xf32, #tpu.memory_space<vmem>>, vector<8x8x16xf32>
    %159 = vector.shape_cast %158 : vector<8x8x16xf32> to vector<64x16xf32>
    %c0_214 = arith.constant 0 : index
    %c2_215 = arith.constant 2 : index
    %c0_216 = arith.constant 0 : index
    %c0_217 = arith.constant 0 : index
    %160 = vector.load %arg7[%c0_214, %c2_215, %c0_216, %c0_217] : memref<3x3x16x16xf32, #tpu.memory_space<vmem>>, vector<1x1x16x16xf32>
    %161 = vector.shape_cast %160 : vector<1x1x16x16xf32> to vector<16x16xf32>
    %cst_218 = arith.constant dense<0.000000e+00> : vector<64x16xf32>
    %162 = tpu.matmul %159, %161, %cst_218 {dimension_numbers = #tpu.dot_dimension_numbers<[1], [0], [0], [1], [0, 0, 1, 1], [], []>} : vector<64x16xf32>, vector<16x16xf32>, vector<64x16xf32> -> vector<64x16xf32>
    %163 = arith.addf %157, %162 : vector<64x16xf32>
    %c1_219 = arith.constant 1 : index
    %c0_220 = arith.constant 0 : index
    %c0_221 = arith.constant 0 : index
    %164 = vector.load %arg17[%c1_219, %c0_220, %c0_221] : memref<10x10x16xf32, #tpu.memory_space<vmem>>, vector<8x8x16xf32>
    %165 = vector.shape_cast %164 : vector<8x8x16xf32> to vector<64x16xf32>
    %c1_222 = arith.constant 1 : index
    %c0_223 = arith.constant 0 : index
    %c0_224 = arith.constant 0 : index
    %c0_225 = arith.constant 0 : index
    %166 = vector.load %arg7[%c1_222, %c0_223, %c0_224, %c0_225] : memref<3x3x16x16xf32, #tpu.memory_space<vmem>>, vector<1x1x16x16xf32>
    %167 = vector.shape_cast %166 : vector<1x1x16x16xf32> to vector<16x16xf32>
    %cst_226 = arith.constant dense<0.000000e+00> : vector<64x16xf32>
    %168 = tpu.matmul %165, %167, %cst_226 {dimension_numbers = #tpu.dot_dimension_numbers<[1], [0], [0], [1], [0, 0, 1, 1], [], []>} : vector<64x16xf32>, vector<16x16xf32>, vector<64x16xf32> -> vector<64x16xf32>
    %169 = arith.addf %163, %168 : vector<64x16xf32>
    %c1_227 = arith.constant 1 : index
    %c1_228 = arith.constant 1 : index
    %c0_229 = arith.constant 0 : index
    %170 = vector.load %arg17[%c1_227, %c1_228, %c0_229] : memref<10x10x16xf32, #tpu.memory_space<vmem>>, vector<8x8x16xf32>
    %171 = vector.shape_cast %170 : vector<8x8x16xf32> to vector<64x16xf32>
    %c1_230 = arith.constant 1 : index
    %c1_231 = arith.constant 1 : index
    %c0_232 = arith.constant 0 : index
    %c0_233 = arith.constant 0 : index
    %172 = vector.load %arg7[%c1_230, %c1_231, %c0_232, %c0_233] : memref<3x3x16x16xf32, #tpu.memory_space<vmem>>, vector<1x1x16x16xf32>
    %173 = vector.shape_cast %172 : vector<1x1x16x16xf32> to vector<16x16xf32>
    %cst_234 = arith.constant dense<0.000000e+00> : vector<64x16xf32>
    %174 = tpu.matmul %171, %173, %cst_234 {dimension_numbers = #tpu.dot_dimension_numbers<[1], [0], [0], [1], [0, 0, 1, 1], [], []>} : vector<64x16xf32>, vector<16x16xf32>, vector<64x16xf32> -> vector<64x16xf32>
    %175 = arith.addf %169, %174 : vector<64x16xf32>
    %c1_235 = arith.constant 1 : index
    %c2_236 = arith.constant 2 : index
    %c0_237 = arith.constant 0 : index
    %176 = vector.load %arg17[%c1_235, %c2_236, %c0_237] : memref<10x10x16xf32, #tpu.memory_space<vmem>>, vector<8x8x16xf32>
    %177 = vector.shape_cast %176 : vector<8x8x16xf32> to vector<64x16xf32>
    %c1_238 = arith.constant 1 : index
    %c2_239 = arith.constant 2 : index
    %c0_240 = arith.constant 0 : index
    %c0_241 = arith.constant 0 : index
    %178 = vector.load %arg7[%c1_238, %c2_239, %c0_240, %c0_241] : memref<3x3x16x16xf32, #tpu.memory_space<vmem>>, vector<1x1x16x16xf32>
    %179 = vector.shape_cast %178 : vector<1x1x16x16xf32> to vector<16x16xf32>
    %cst_242 = arith.constant dense<0.000000e+00> : vector<64x16xf32>
    %180 = tpu.matmul %177, %179, %cst_242 {dimension_numbers = #tpu.dot_dimension_numbers<[1], [0], [0], [1], [0, 0, 1, 1], [], []>} : vector<64x16xf32>, vector<16x16xf32>, vector<64x16xf32> -> vector<64x16xf32>
    %181 = arith.addf %175, %180 : vector<64x16xf32>
    %c2_243 = arith.constant 2 : index
    %c0_244 = arith.constant 0 : index
    %c0_245 = arith.constant 0 : index
    %182 = vector.load %arg17[%c2_243, %c0_244, %c0_245] : memref<10x10x16xf32, #tpu.memory_space<vmem>>, vector<8x8x16xf32>
    %183 = vector.shape_cast %182 : vector<8x8x16xf32> to vector<64x16xf32>
    %c2_246 = arith.constant 2 : index
    %c0_247 = arith.constant 0 : index
    %c0_248 = arith.constant 0 : index
    %c0_249 = arith.constant 0 : index
    %184 = vector.load %arg7[%c2_246, %c0_247, %c0_248, %c0_249] : memref<3x3x16x16xf32, #tpu.memory_space<vmem>>, vector<1x1x16x16xf32>
    %185 = vector.shape_cast %184 : vector<1x1x16x16xf32> to vector<16x16xf32>
    %cst_250 = arith.constant dense<0.000000e+00> : vector<64x16xf32>
    %186 = tpu.matmul %183, %185, %cst_250 {dimension_numbers = #tpu.dot_dimension_numbers<[1], [0], [0], [1], [0, 0, 1, 1], [], []>} : vector<64x16xf32>, vector<16x16xf32>, vector<64x16xf32> -> vector<64x16xf32>
    %187 = arith.addf %181, %186 : vector<64x16xf32>
    %c2_251 = arith.constant 2 : index
    %c1_252 = arith.constant 1 : index
    %c0_253 = arith.constant 0 : index
    %188 = vector.load %arg17[%c2_251, %c1_252, %c0_253] : memref<10x10x16xf32, #tpu.memory_space<vmem>>, vector<8x8x16xf32>
    %189 = vector.shape_cast %188 : vector<8x8x16xf32> to vector<64x16xf32>
    %c2_254 = arith.constant 2 : index
    %c1_255 = arith.constant 1 : index
    %c0_256 = arith.constant 0 : index
    %c0_257 = arith.constant 0 : index
    %190 = vector.load %arg7[%c2_254, %c1_255, %c0_256, %c0_257] : memref<3x3x16x16xf32, #tpu.memory_space<vmem>>, vector<1x1x16x16xf32>
    %191 = vector.shape_cast %190 : vector<1x1x16x16xf32> to vector<16x16xf32>
    %cst_258 = arith.constant dense<0.000000e+00> : vector<64x16xf32>
    %192 = tpu.matmul %189, %191, %cst_258 {dimension_numbers = #tpu.dot_dimension_numbers<[1], [0], [0], [1], [0, 0, 1, 1], [], []>} : vector<64x16xf32>, vector<16x16xf32>, vector<64x16xf32> -> vector<64x16xf32>
    %193 = arith.addf %187, %192 : vector<64x16xf32>
    %c2_259 = arith.constant 2 : index
    %c2_260 = arith.constant 2 : index
    %c0_261 = arith.constant 0 : index
    %194 = vector.load %arg17[%c2_259, %c2_260, %c0_261] : memref<10x10x16xf32, #tpu.memory_space<vmem>>, vector<8x8x16xf32>
    %195 = vector.shape_cast %194 : vector<8x8x16xf32> to vector<64x16xf32>
    %c2_262 = arith.constant 2 : index
    %c2_263 = arith.constant 2 : index
    %c0_264 = arith.constant 0 : index
    %c0_265 = arith.constant 0 : index
    %196 = vector.load %arg7[%c2_262, %c2_263, %c0_264, %c0_265] : memref<3x3x16x16xf32, #tpu.memory_space<vmem>>, vector<1x1x16x16xf32>
    %197 = vector.shape_cast %196 : vector<1x1x16x16xf32> to vector<16x16xf32>
    %cst_266 = arith.constant dense<0.000000e+00> : vector<64x16xf32>
    %198 = tpu.matmul %195, %197, %cst_266 {dimension_numbers = #tpu.dot_dimension_numbers<[1], [0], [0], [1], [0, 0, 1, 1], [], []>} : vector<64x16xf32>, vector<16x16xf32>, vector<64x16xf32> -> vector<64x16xf32>
    %199 = arith.addf %193, %198 : vector<64x16xf32>
    %200 = vector.broadcast %146 : vector<1x16xf32> to vector<64x16xf32>
    %201 = arith.addf %199, %200 : vector<64x16xf32>
    %cst_267 = arith.constant 0.000000e+00 : f32
    %202 = vector.broadcast %cst_267 : f32 to vector<64x16xf32>
    %203 = arith.maximumf %201, %202 : vector<64x16xf32>
    %204 = vector.shape_cast %203 : vector<64x16xf32> to vector<8x8x16xf32>
    %c1_268 = arith.constant 1 : index
    %c1_269 = arith.constant 1 : index
    %c0_270 = arith.constant 0 : index
    %205 = vector.load %arg18[%c1_268, %c1_269, %c0_270] : memref<10x10x16xf32, #tpu.memory_space<vmem>>, vector<8x8x16xf32>
    tpu.vector_store %arg18[%c1_268, %c1_269, %c0_270], %204 {strides = array<i32>} : memref<10x10x16xf32, #tpu.memory_space<vmem>>, vector<8x8x16xf32>,
    %c0_271 = arith.constant 0 : index
    %c0_272 = arith.constant 0 : index
    %206 = vector.load %arg10[%c0_271, %c0_272] : memref<1x24xf32, #tpu.memory_space<vmem>>, vector<1x24xf32>
    %c0_273 = arith.constant 0 : index
    %c0_274 = arith.constant 0 : index
    %c0_275 = arith.constant 0 : index
    %207 = vector.load %arg18[%c0_273, %c0_274, %c0_275] : memref<10x10x16xf32, #tpu.memory_space<vmem>>, vector<8x8x16xf32>
    %208 = vector.shape_cast %207 : vector<8x8x16xf32> to vector<64x16xf32>
    %c0_276 = arith.constant 0 : index
    %c0_277 = arith.constant 0 : index
    %c0_278 = arith.constant 0 : index
    %c0_279 = arith.constant 0 : index
    %209 = vector.load %arg9[%c0_276, %c0_277, %c0_278, %c0_279] : memref<3x3x16x24xf32, #tpu.memory_space<vmem>>, vector<1x1x16x24xf32>
    %210 = vector.shape_cast %209 : vector<1x1x16x24xf32> to vector<16x24xf32>
    %cst_280 = arith.constant dense<0.000000e+00> : vector<64x24xf32>
    %211 = tpu.matmul %208, %210, %cst_280 {dimension_numbers = #tpu.dot_dimension_numbers<[1], [0], [0], [1], [0, 0, 1, 1], [], []>} : vector<64x16xf32>, vector<16x24xf32>, vector<64x24xf32> -> vector<64x24xf32>
    %c0_281 = arith.constant 0 : index
    %c1_282 = arith.constant 1 : index
    %c0_283 = arith.constant 0 : index
    %212 = vector.load %arg18[%c0_281, %c1_282, %c0_283] : memref<10x10x16xf32, #tpu.memory_space<vmem>>, vector<8x8x16xf32>
    %213 = vector.shape_cast %212 : vector<8x8x16xf32> to vector<64x16xf32>
    %c0_284 = arith.constant 0 : index
    %c1_285 = arith.constant 1 : index
    %c0_286 = arith.constant 0 : index
    %c0_287 = arith.constant 0 : index
    %214 = vector.load %arg9[%c0_284, %c1_285, %c0_286, %c0_287] : memref<3x3x16x24xf32, #tpu.memory_space<vmem>>, vector<1x1x16x24xf32>
    %215 = vector.shape_cast %214 : vector<1x1x16x24xf32> to vector<16x24xf32>
    %cst_288 = arith.constant dense<0.000000e+00> : vector<64x24xf32>
    %216 = tpu.matmul %213, %215, %cst_288 {dimension_numbers = #tpu.dot_dimension_numbers<[1], [0], [0], [1], [0, 0, 1, 1], [], []>} : vector<64x16xf32>, vector<16x24xf32>, vector<64x24xf32> -> vector<64x24xf32>
    %217 = arith.addf %211, %216 : vector<64x24xf32>
    %c0_289 = arith.constant 0 : index
    %c2_290 = arith.constant 2 : index
    %c0_291 = arith.constant 0 : index
    %218 = vector.load %arg18[%c0_289, %c2_290, %c0_291] : memref<10x10x16xf32, #tpu.memory_space<vmem>>, vector<8x8x16xf32>
    %219 = vector.shape_cast %218 : vector<8x8x16xf32> to vector<64x16xf32>
    %c0_292 = arith.constant 0 : index
    %c2_293 = arith.constant 2 : index
    %c0_294 = arith.constant 0 : index
    %c0_295 = arith.constant 0 : index
    %220 = vector.load %arg9[%c0_292, %c2_293, %c0_294, %c0_295] : memref<3x3x16x24xf32, #tpu.memory_space<vmem>>, vector<1x1x16x24xf32>
    %221 = vector.shape_cast %220 : vector<1x1x16x24xf32> to vector<16x24xf32>
    %cst_296 = arith.constant dense<0.000000e+00> : vector<64x24xf32>
    %222 = tpu.matmul %219, %221, %cst_296 {dimension_numbers = #tpu.dot_dimension_numbers<[1], [0], [0], [1], [0, 0, 1, 1], [], []>} : vector<64x16xf32>, vector<16x24xf32>, vector<64x24xf32> -> vector<64x24xf32>
    %223 = arith.addf %217, %222 : vector<64x24xf32>
    %c1_297 = arith.constant 1 : index
    %c0_298 = arith.constant 0 : index
    %c0_299 = arith.constant 0 : index
    %224 = vector.load %arg18[%c1_297, %c0_298, %c0_299] : memref<10x10x16xf32, #tpu.memory_space<vmem>>, vector<8x8x16xf32>
    %225 = vector.shape_cast %224 : vector<8x8x16xf32> to vector<64x16xf32>
    %c1_300 = arith.constant 1 : index
    %c0_301 = arith.constant 0 : index
    %c0_302 = arith.constant 0 : index
    %c0_303 = arith.constant 0 : index
    %226 = vector.load %arg9[%c1_300, %c0_301, %c0_302, %c0_303] : memref<3x3x16x24xf32, #tpu.memory_space<vmem>>, vector<1x1x16x24xf32>
    %227 = vector.shape_cast %226 : vector<1x1x16x24xf32> to vector<16x24xf32>
    %cst_304 = arith.constant dense<0.000000e+00> : vector<64x24xf32>
    %228 = tpu.matmul %225, %227, %cst_304 {dimension_numbers = #tpu.dot_dimension_numbers<[1], [0], [0], [1], [0, 0, 1, 1], [], []>} : vector<64x16xf32>, vector<16x24xf32>, vector<64x24xf32> -> vector<64x24xf32>
    %229 = arith.addf %223, %228 : vector<64x24xf32>
    %c1_305 = arith.constant 1 : index
    %c1_306 = arith.constant 1 : index
    %c0_307 = arith.constant 0 : index
    %230 = vector.load %arg18[%c1_305, %c1_306, %c0_307] : memref<10x10x16xf32, #tpu.memory_space<vmem>>, vector<8x8x16xf32>
    %231 = vector.shape_cast %230 : vector<8x8x16xf32> to vector<64x16xf32>
    %c1_308 = arith.constant 1 : index
    %c1_309 = arith.constant 1 : index
    %c0_310 = arith.constant 0 : index
    %c0_311 = arith.constant 0 : index
    %232 = vector.load %arg9[%c1_308, %c1_309, %c0_310, %c0_311] : memref<3x3x16x24xf32, #tpu.memory_space<vmem>>, vector<1x1x16x24xf32>
    %233 = vector.shape_cast %232 : vector<1x1x16x24xf32> to vector<16x24xf32>
    %cst_312 = arith.constant dense<0.000000e+00> : vector<64x24xf32>
    %234 = tpu.matmul %231, %233, %cst_312 {dimension_numbers = #tpu.dot_dimension_numbers<[1], [0], [0], [1], [0, 0, 1, 1], [], []>} : vector<64x16xf32>, vector<16x24xf32>, vector<64x24xf32> -> vector<64x24xf32>
    %235 = arith.addf %229, %234 : vector<64x24xf32>
    %c1_313 = arith.constant 1 : index
    %c2_314 = arith.constant 2 : index
    %c0_315 = arith.constant 0 : index
    %236 = vector.load %arg18[%c1_313, %c2_314, %c0_315] : memref<10x10x16xf32, #tpu.memory_space<vmem>>, vector<8x8x16xf32>
    %237 = vector.shape_cast %236 : vector<8x8x16xf32> to vector<64x16xf32>
    %c1_316 = arith.constant 1 : index
    %c2_317 = arith.constant 2 : index
    %c0_318 = arith.constant 0 : index
    %c0_319 = arith.constant 0 : index
    %238 = vector.load %arg9[%c1_316, %c2_317, %c0_318, %c0_319] : memref<3x3x16x24xf32, #tpu.memory_space<vmem>>, vector<1x1x16x24xf32>
    %239 = vector.shape_cast %238 : vector<1x1x16x24xf32> to vector<16x24xf32>
    %cst_320 = arith.constant dense<0.000000e+00> : vector<64x24xf32>
    %240 = tpu.matmul %237, %239, %cst_320 {dimension_numbers = #tpu.dot_dimension_numbers<[1], [0], [0], [1], [0, 0, 1, 1], [], []>} : vector<64x16xf32>, vector<16x24xf32>, vector<64x24xf32> -> vector<64x24xf32>
    %241 = arith.addf %235, %240 : vector<64x24xf32>
    %c2_321 = arith.constant 2 : index
    %c0_322 = arith.constant 0 : index
    %c0_323 = arith.constant 0 : index
    %242 = vector.load %arg18[%c2_321, %c0_322, %c0_323] : memref<10x10x16xf32, #tpu.memory_space<vmem>>, vector<8x8x16xf32>
    %243 = vector.shape_cast %242 : vector<8x8x16xf32> to vector<64x16xf32>
    %c2_324 = arith.constant 2 : index
    %c0_325 = arith.constant 0 : index
    %c0_326 = arith.constant 0 : index
    %c0_327 = arith.constant 0 : index
    %244 = vector.load %arg9[%c2_324, %c0_325, %c0_326, %c0_327] : memref<3x3x16x24xf32, #tpu.memory_space<vmem>>, vector<1x1x16x24xf32>
    %245 = vector.shape_cast %244 : vector<1x1x16x24xf32> to vector<16x24xf32>
    %cst_328 = arith.constant dense<0.000000e+00> : vector<64x24xf32>
    %246 = tpu.matmul %243, %245, %cst_328 {dimension_numbers = #tpu.dot_dimension_numbers<[1], [0], [0], [1], [0, 0, 1, 1], [], []>} : vector<64x16xf32>, vector<16x24xf32>, vector<64x24xf32> -> vector<64x24xf32>
    %247 = arith.addf %241, %246 : vector<64x24xf32>
    %c2_329 = arith.constant 2 : index
    %c1_330 = arith.constant 1 : index
    %c0_331 = arith.constant 0 : index
    %248 = vector.load %arg18[%c2_329, %c1_330, %c0_331] : memref<10x10x16xf32, #tpu.memory_space<vmem>>, vector<8x8x16xf32>
    %249 = vector.shape_cast %248 : vector<8x8x16xf32> to vector<64x16xf32>
    %c2_332 = arith.constant 2 : index
    %c1_333 = arith.constant 1 : index
    %c0_334 = arith.constant 0 : index
    %c0_335 = arith.constant 0 : index
    %250 = vector.load %arg9[%c2_332, %c1_333, %c0_334, %c0_335] : memref<3x3x16x24xf32, #tpu.memory_space<vmem>>, vector<1x1x16x24xf32>
    %251 = vector.shape_cast %250 : vector<1x1x16x24xf32> to vector<16x24xf32>
    %cst_336 = arith.constant dense<0.000000e+00> : vector<64x24xf32>
    %252 = tpu.matmul %249, %251, %cst_336 {dimension_numbers = #tpu.dot_dimension_numbers<[1], [0], [0], [1], [0, 0, 1, 1], [], []>} : vector<64x16xf32>, vector<16x24xf32>, vector<64x24xf32> -> vector<64x24xf32>
    %253 = arith.addf %247, %252 : vector<64x24xf32>
    %c2_337 = arith.constant 2 : index
    %c2_338 = arith.constant 2 : index
    %c0_339 = arith.constant 0 : index
    %254 = vector.load %arg18[%c2_337, %c2_338, %c0_339] : memref<10x10x16xf32, #tpu.memory_space<vmem>>, vector<8x8x16xf32>
    %255 = vector.shape_cast %254 : vector<8x8x16xf32> to vector<64x16xf32>
    %c2_340 = arith.constant 2 : index
    %c2_341 = arith.constant 2 : index
    %c0_342 = arith.constant 0 : index
    %c0_343 = arith.constant 0 : index
    %256 = vector.load %arg9[%c2_340, %c2_341, %c0_342, %c0_343] : memref<3x3x16x24xf32, #tpu.memory_space<vmem>>, vector<1x1x16x24xf32>
    %257 = vector.shape_cast %256 : vector<1x1x16x24xf32> to vector<16x24xf32>
    %cst_344 = arith.constant dense<0.000000e+00> : vector<64x24xf32>
    %258 = tpu.matmul %255, %257, %cst_344 {dimension_numbers = #tpu.dot_dimension_numbers<[1], [0], [0], [1], [0, 0, 1, 1], [], []>} : vector<64x16xf32>, vector<16x24xf32>, vector<64x24xf32> -> vector<64x24xf32>
    %259 = arith.addf %253, %258 : vector<64x24xf32>
    %260 = vector.broadcast %206 : vector<1x24xf32> to vector<64x24xf32>
    %261 = arith.addf %259, %260 : vector<64x24xf32>
    %cst_345 = arith.constant 0.000000e+00 : f32
    %262 = vector.broadcast %cst_345 : f32 to vector<64x24xf32>
    %263 = arith.maximumf %261, %262 : vector<64x24xf32>
    %264 = vector.shape_cast %263 : vector<64x24xf32> to vector<8x8x24xf32>
    %c0_346 = arith.constant 0 : index
    %c0_347 = arith.constant 0 : index
    %c0_348 = arith.constant 0 : index
    %265 = vector.load %arg21[%c0_346, %c0_347, %c0_348] : memref<8x8x24xf32, #tpu.memory_space<vmem>>, vector<8x8x24xf32>
    tpu.vector_store %arg21[%c0_346, %c0_347, %c0_348], %264 {strides = array<i32>} : memref<8x8x24xf32, #tpu.memory_space<vmem>>, vector<8x8x24xf32>,
    %c0_349 = arith.constant 0 : index
    %c0_350 = arith.constant 0 : index
    %c0_351 = arith.constant 0 : index
    %266 = tpu.strided_load %arg21[%c0_349, %c0_350, %c0_351] {strides = array<i32: 1, 2, 1>} : memref<8x8x24xf32, #tpu.memory_space<vmem>>, vector<8x4x24xf32>
    %c0_352 = arith.constant 0 : index
    %c1_353 = arith.constant 1 : index
    %c0_354 = arith.constant 0 : index
    %267 = tpu.strided_load %arg21[%c0_352, %c1_353, %c0_354] {strides = array<i32: 1, 2, 1>} : memref<8x8x24xf32, #tpu.memory_space<vmem>>, vector<8x4x24xf32>
    %268 = arith.maximumf %266, %267 : vector<8x4x24xf32>
    %c0_355 = arith.constant 0 : index
    %c0_356 = arith.constant 0 : index
    %c0_357 = arith.constant 0 : index
    %269 = vector.load %arg22[%c0_355, %c0_356, %c0_357] : memref<8x4x24xf32, #tpu.memory_space<vmem>>, vector<8x4x24xf32>
    tpu.vector_store %arg22[%c0_355, %c0_356, %c0_357], %268 {strides = array<i32>} : memref<8x4x24xf32, #tpu.memory_space<vmem>>, vector<8x4x24xf32>,
    %c0_358 = arith.constant 0 : index
    %c0_359 = arith.constant 0 : index
    %c0_360 = arith.constant 0 : index
    %270 = tpu.strided_load %arg22[%c0_358, %c0_359, %c0_360] {strides = array<i32: 2, 1, 1>} : memref<8x4x24xf32, #tpu.memory_space<vmem>>, vector<4x4x24xf32>
    %c1_361 = arith.constant 1 : index
    %c0_362 = arith.constant 0 : index
    %c0_363 = arith.constant 0 : index
    %271 = tpu.strided_load %arg22[%c1_361, %c0_362, %c0_363] {strides = array<i32: 2, 1, 1>} : memref<8x4x24xf32, #tpu.memory_space<vmem>>, vector<4x4x24xf32>
    %272 = arith.maximumf %270, %271 : vector<4x4x24xf32>
    %c0_364 = arith.constant 0 : index
    %c0_365 = arith.constant 0 : index
    %c0_366 = arith.constant 0 : index
    %273 = vector.load %arg23[%c0_364, %c0_365, %c0_366] : memref<4x4x24xf32, #tpu.memory_space<vmem>>, vector<4x4x24xf32>
    tpu.vector_store %arg23[%c0_364, %c0_365, %c0_366], %272 {strides = array<i32>} : memref<4x4x24xf32, #tpu.memory_space<vmem>>, vector<4x4x24xf32>,
    %c0_367 = arith.constant 0 : index
    %c0_368 = arith.constant 0 : index
    %274 = vector.load %arg12[%c0_367, %c0_368] : memref<1x192xf32, #tpu.memory_space<vmem>>, vector<1x192xf32>
    %c0_369 = arith.constant 0 : index
    %c0_370 = arith.constant 0 : index
    %c0_371 = arith.constant 0 : index
    %275 = vector.load %arg23[%c0_369, %c0_370, %c0_371] : memref<4x4x24xf32, #tpu.memory_space<vmem>>, vector<1x1x24xf32>
    %276 = vector.shape_cast %275 : vector<1x1x24xf32> to vector<1x24xf32>
    %c0_372 = arith.constant 0 : index
    %c0_373 = arith.constant 0 : index
    %c0_374 = arith.constant 0 : index
    %277 = vector.load %arg11[%c0_372, %c0_373, %c0_374] : memref<16x24x192xf32, #tpu.memory_space<vmem>>, vector<1x24x192xf32>
    %278 = vector.shape_cast %277 : vector<1x24x192xf32> to vector<24x192xf32>
    %cst_375 = arith.constant dense<0.000000e+00> : vector<1x192xf32>
    %279 = tpu.matmul %276, %278, %cst_375 {dimension_numbers = #tpu.dot_dimension_numbers<[1], [0], [0], [1], [0, 0, 1, 1], [], []>} : vector<1x24xf32>, vector<24x192xf32>, vector<1x192xf32> -> vector<1x192xf32>
    %280 = arith.addf %274, %279 : vector<1x192xf32>
    %c0_376 = arith.constant 0 : index
    %c1_377 = arith.constant 1 : index
    %c0_378 = arith.constant 0 : index
    %281 = vector.load %arg23[%c0_376, %c1_377, %c0_378] : memref<4x4x24xf32, #tpu.memory_space<vmem>>, vector<1x1x24xf32>
    %282 = vector.shape_cast %281 : vector<1x1x24xf32> to vector<1x24xf32>
    %c1_379 = arith.constant 1 : index
    %c0_380 = arith.constant 0 : index
    %c0_381 = arith.constant 0 : index
    %283 = vector.load %arg11[%c1_379, %c0_380, %c0_381] : memref<16x24x192xf32, #tpu.memory_space<vmem>>, vector<1x24x192xf32>
    %284 = vector.shape_cast %283 : vector<1x24x192xf32> to vector<24x192xf32>
    %cst_382 = arith.constant dense<0.000000e+00> : vector<1x192xf32>
    %285 = tpu.matmul %282, %284, %cst_382 {dimension_numbers = #tpu.dot_dimension_numbers<[1], [0], [0], [1], [0, 0, 1, 1], [], []>} : vector<1x24xf32>, vector<24x192xf32>, vector<1x192xf32> -> vector<1x192xf32>
    %286 = arith.addf %280, %285 : vector<1x192xf32>
    %c0_383 = arith.constant 0 : index
    %c2_384 = arith.constant 2 : index
    %c0_385 = arith.constant 0 : index
    %287 = vector.load %arg23[%c0_383, %c2_384, %c0_385] : memref<4x4x24xf32, #tpu.memory_space<vmem>>, vector<1x1x24xf32>
    %288 = vector.shape_cast %287 : vector<1x1x24xf32> to vector<1x24xf32>
    %c2_386 = arith.constant 2 : index
    %c0_387 = arith.constant 0 : index
    %c0_388 = arith.constant 0 : index
    %289 = vector.load %arg11[%c2_386, %c0_387, %c0_388] : memref<16x24x192xf32, #tpu.memory_space<vmem>>, vector<1x24x192xf32>
    %290 = vector.shape_cast %289 : vector<1x24x192xf32> to vector<24x192xf32>
    %cst_389 = arith.constant dense<0.000000e+00> : vector<1x192xf32>
    %291 = tpu.matmul %288, %290, %cst_389 {dimension_numbers = #tpu.dot_dimension_numbers<[1], [0], [0], [1], [0, 0, 1, 1], [], []>} : vector<1x24xf32>, vector<24x192xf32>, vector<1x192xf32> -> vector<1x192xf32>
    %292 = arith.addf %286, %291 : vector<1x192xf32>
    %c0_390 = arith.constant 0 : index
    %c3 = arith.constant 3 : index
    %c0_391 = arith.constant 0 : index
    %293 = vector.load %arg23[%c0_390, %c3, %c0_391] : memref<4x4x24xf32, #tpu.memory_space<vmem>>, vector<1x1x24xf32>
    %294 = vector.shape_cast %293 : vector<1x1x24xf32> to vector<1x24xf32>
    %c3_392 = arith.constant 3 : index
    %c0_393 = arith.constant 0 : index
    %c0_394 = arith.constant 0 : index
    %295 = vector.load %arg11[%c3_392, %c0_393, %c0_394] : memref<16x24x192xf32, #tpu.memory_space<vmem>>, vector<1x24x192xf32>
    %296 = vector.shape_cast %295 : vector<1x24x192xf32> to vector<24x192xf32>
    %cst_395 = arith.constant dense<0.000000e+00> : vector<1x192xf32>
    %297 = tpu.matmul %294, %296, %cst_395 {dimension_numbers = #tpu.dot_dimension_numbers<[1], [0], [0], [1], [0, 0, 1, 1], [], []>} : vector<1x24xf32>, vector<24x192xf32>, vector<1x192xf32> -> vector<1x192xf32>
    %298 = arith.addf %292, %297 : vector<1x192xf32>
    %c1_396 = arith.constant 1 : index
    %c0_397 = arith.constant 0 : index
    %c0_398 = arith.constant 0 : index
    %299 = vector.load %arg23[%c1_396, %c0_397, %c0_398] : memref<4x4x24xf32, #tpu.memory_space<vmem>>, vector<1x1x24xf32>
    %300 = vector.shape_cast %299 : vector<1x1x24xf32> to vector<1x24xf32>
    %c4 = arith.constant 4 : index
    %c0_399 = arith.constant 0 : index
    %c0_400 = arith.constant 0 : index
    %301 = vector.load %arg11[%c4, %c0_399, %c0_400] : memref<16x24x192xf32, #tpu.memory_space<vmem>>, vector<1x24x192xf32>
    %302 = vector.shape_cast %301 : vector<1x24x192xf32> to vector<24x192xf32>
    %cst_401 = arith.constant dense<0.000000e+00> : vector<1x192xf32>
    %303 = tpu.matmul %300, %302, %cst_401 {dimension_numbers = #tpu.dot_dimension_numbers<[1], [0], [0], [1], [0, 0, 1, 1], [], []>} : vector<1x24xf32>, vector<24x192xf32>, vector<1x192xf32> -> vector<1x192xf32>
    %304 = arith.addf %298, %303 : vector<1x192xf32>
    %c1_402 = arith.constant 1 : index
    %c1_403 = arith.constant 1 : index
    %c0_404 = arith.constant 0 : index
    %305 = vector.load %arg23[%c1_402, %c1_403, %c0_404] : memref<4x4x24xf32, #tpu.memory_space<vmem>>, vector<1x1x24xf32>
    %306 = vector.shape_cast %305 : vector<1x1x24xf32> to vector<1x24xf32>
    %c5 = arith.constant 5 : index
    %c0_405 = arith.constant 0 : index
    %c0_406 = arith.constant 0 : index
    %307 = vector.load %arg11[%c5, %c0_405, %c0_406] : memref<16x24x192xf32, #tpu.memory_space<vmem>>, vector<1x24x192xf32>
    %308 = vector.shape_cast %307 : vector<1x24x192xf32> to vector<24x192xf32>
    %cst_407 = arith.constant dense<0.000000e+00> : vector<1x192xf32>
    %309 = tpu.matmul %306, %308, %cst_407 {dimension_numbers = #tpu.dot_dimension_numbers<[1], [0], [0], [1], [0, 0, 1, 1], [], []>} : vector<1x24xf32>, vector<24x192xf32>, vector<1x192xf32> -> vector<1x192xf32>
    %310 = arith.addf %304, %309 : vector<1x192xf32>
    %c1_408 = arith.constant 1 : index
    %c2_409 = arith.constant 2 : index
    %c0_410 = arith.constant 0 : index
    %311 = vector.load %arg23[%c1_408, %c2_409, %c0_410] : memref<4x4x24xf32, #tpu.memory_space<vmem>>, vector<1x1x24xf32>
    %312 = vector.shape_cast %311 : vector<1x1x24xf32> to vector<1x24xf32>
    %c6 = arith.constant 6 : index
    %c0_411 = arith.constant 0 : index
    %c0_412 = arith.constant 0 : index
    %313 = vector.load %arg11[%c6, %c0_411, %c0_412] : memref<16x24x192xf32, #tpu.memory_space<vmem>>, vector<1x24x192xf32>
    %314 = vector.shape_cast %313 : vector<1x24x192xf32> to vector<24x192xf32>
    %cst_413 = arith.constant dense<0.000000e+00> : vector<1x192xf32>
    %315 = tpu.matmul %312, %314, %cst_413 {dimension_numbers = #tpu.dot_dimension_numbers<[1], [0], [0], [1], [0, 0, 1, 1], [], []>} : vector<1x24xf32>, vector<24x192xf32>, vector<1x192xf32> -> vector<1x192xf32>
    %316 = arith.addf %310, %315 : vector<1x192xf32>
    %c1_414 = arith.constant 1 : index
    %c3_415 = arith.constant 3 : index
    %c0_416 = arith.constant 0 : index
    %317 = vector.load %arg23[%c1_414, %c3_415, %c0_416] : memref<4x4x24xf32, #tpu.memory_space<vmem>>, vector<1x1x24xf32>
    %318 = vector.shape_cast %317 : vector<1x1x24xf32> to vector<1x24xf32>
    %c7 = arith.constant 7 : index
    %c0_417 = arith.constant 0 : index
    %c0_418 = arith.constant 0 : index
    %319 = vector.load %arg11[%c7, %c0_417, %c0_418] : memref<16x24x192xf32, #tpu.memory_space<vmem>>, vector<1x24x192xf32>
    %320 = vector.shape_cast %319 : vector<1x24x192xf32> to vector<24x192xf32>
    %cst_419 = arith.constant dense<0.000000e+00> : vector<1x192xf32>
    %321 = tpu.matmul %318, %320, %cst_419 {dimension_numbers = #tpu.dot_dimension_numbers<[1], [0], [0], [1], [0, 0, 1, 1], [], []>} : vector<1x24xf32>, vector<24x192xf32>, vector<1x192xf32> -> vector<1x192xf32>
    %322 = arith.addf %316, %321 : vector<1x192xf32>
    %c2_420 = arith.constant 2 : index
    %c0_421 = arith.constant 0 : index
    %c0_422 = arith.constant 0 : index
    %323 = vector.load %arg23[%c2_420, %c0_421, %c0_422] : memref<4x4x24xf32, #tpu.memory_space<vmem>>, vector<1x1x24xf32>
    %324 = vector.shape_cast %323 : vector<1x1x24xf32> to vector<1x24xf32>
    %c8 = arith.constant 8 : index
    %c0_423 = arith.constant 0 : index
    %c0_424 = arith.constant 0 : index
    %325 = vector.load %arg11[%c8, %c0_423, %c0_424] : memref<16x24x192xf32, #tpu.memory_space<vmem>>, vector<1x24x192xf32>
    %326 = vector.shape_cast %325 : vector<1x24x192xf32> to vector<24x192xf32>
    %cst_425 = arith.constant dense<0.000000e+00> : vector<1x192xf32>
    %327 = tpu.matmul %324, %326, %cst_425 {dimension_numbers = #tpu.dot_dimension_numbers<[1], [0], [0], [1], [0, 0, 1, 1], [], []>} : vector<1x24xf32>, vector<24x192xf32>, vector<1x192xf32> -> vector<1x192xf32>
    %328 = arith.addf %322, %327 : vector<1x192xf32>
    %c2_426 = arith.constant 2 : index
    %c1_427 = arith.constant 1 : index
    %c0_428 = arith.constant 0 : index
    %329 = vector.load %arg23[%c2_426, %c1_427, %c0_428] : memref<4x4x24xf32, #tpu.memory_space<vmem>>, vector<1x1x24xf32>
    %330 = vector.shape_cast %329 : vector<1x1x24xf32> to vector<1x24xf32>
    %c9 = arith.constant 9 : index
    %c0_429 = arith.constant 0 : index
    %c0_430 = arith.constant 0 : index
    %331 = vector.load %arg11[%c9, %c0_429, %c0_430] : memref<16x24x192xf32, #tpu.memory_space<vmem>>, vector<1x24x192xf32>
    %332 = vector.shape_cast %331 : vector<1x24x192xf32> to vector<24x192xf32>
    %cst_431 = arith.constant dense<0.000000e+00> : vector<1x192xf32>
    %333 = tpu.matmul %330, %332, %cst_431 {dimension_numbers = #tpu.dot_dimension_numbers<[1], [0], [0], [1], [0, 0, 1, 1], [], []>} : vector<1x24xf32>, vector<24x192xf32>, vector<1x192xf32> -> vector<1x192xf32>
    %334 = arith.addf %328, %333 : vector<1x192xf32>
    %c2_432 = arith.constant 2 : index
    %c2_433 = arith.constant 2 : index
    %c0_434 = arith.constant 0 : index
    %335 = vector.load %arg23[%c2_432, %c2_433, %c0_434] : memref<4x4x24xf32, #tpu.memory_space<vmem>>, vector<1x1x24xf32>
    %336 = vector.shape_cast %335 : vector<1x1x24xf32> to vector<1x24xf32>
    %c10 = arith.constant 10 : index
    %c0_435 = arith.constant 0 : index
    %c0_436 = arith.constant 0 : index
    %337 = vector.load %arg11[%c10, %c0_435, %c0_436] : memref<16x24x192xf32, #tpu.memory_space<vmem>>, vector<1x24x192xf32>
    %338 = vector.shape_cast %337 : vector<1x24x192xf32> to vector<24x192xf32>
    %cst_437 = arith.constant dense<0.000000e+00> : vector<1x192xf32>
    %339 = tpu.matmul %336, %338, %cst_437 {dimension_numbers = #tpu.dot_dimension_numbers<[1], [0], [0], [1], [0, 0, 1, 1], [], []>} : vector<1x24xf32>, vector<24x192xf32>, vector<1x192xf32> -> vector<1x192xf32>
    %340 = arith.addf %334, %339 : vector<1x192xf32>
    %c2_438 = arith.constant 2 : index
    %c3_439 = arith.constant 3 : index
    %c0_440 = arith.constant 0 : index
    %341 = vector.load %arg23[%c2_438, %c3_439, %c0_440] : memref<4x4x24xf32, #tpu.memory_space<vmem>>, vector<1x1x24xf32>
    %342 = vector.shape_cast %341 : vector<1x1x24xf32> to vector<1x24xf32>
    %c11 = arith.constant 11 : index
    %c0_441 = arith.constant 0 : index
    %c0_442 = arith.constant 0 : index
    %343 = vector.load %arg11[%c11, %c0_441, %c0_442] : memref<16x24x192xf32, #tpu.memory_space<vmem>>, vector<1x24x192xf32>
    %344 = vector.shape_cast %343 : vector<1x24x192xf32> to vector<24x192xf32>
    %cst_443 = arith.constant dense<0.000000e+00> : vector<1x192xf32>
    %345 = tpu.matmul %342, %344, %cst_443 {dimension_numbers = #tpu.dot_dimension_numbers<[1], [0], [0], [1], [0, 0, 1, 1], [], []>} : vector<1x24xf32>, vector<24x192xf32>, vector<1x192xf32> -> vector<1x192xf32>
    %346 = arith.addf %340, %345 : vector<1x192xf32>
    %c3_444 = arith.constant 3 : index
    %c0_445 = arith.constant 0 : index
    %c0_446 = arith.constant 0 : index
    %347 = vector.load %arg23[%c3_444, %c0_445, %c0_446] : memref<4x4x24xf32, #tpu.memory_space<vmem>>, vector<1x1x24xf32>
    %348 = vector.shape_cast %347 : vector<1x1x24xf32> to vector<1x24xf32>
    %c12 = arith.constant 12 : index
    %c0_447 = arith.constant 0 : index
    %c0_448 = arith.constant 0 : index
    %349 = vector.load %arg11[%c12, %c0_447, %c0_448] : memref<16x24x192xf32, #tpu.memory_space<vmem>>, vector<1x24x192xf32>
    %350 = vector.shape_cast %349 : vector<1x24x192xf32> to vector<24x192xf32>
    %cst_449 = arith.constant dense<0.000000e+00> : vector<1x192xf32>
    %351 = tpu.matmul %348, %350, %cst_449 {dimension_numbers = #tpu.dot_dimension_numbers<[1], [0], [0], [1], [0, 0, 1, 1], [], []>} : vector<1x24xf32>, vector<24x192xf32>, vector<1x192xf32> -> vector<1x192xf32>
    %352 = arith.addf %346, %351 : vector<1x192xf32>
    %c3_450 = arith.constant 3 : index
    %c1_451 = arith.constant 1 : index
    %c0_452 = arith.constant 0 : index
    %353 = vector.load %arg23[%c3_450, %c1_451, %c0_452] : memref<4x4x24xf32, #tpu.memory_space<vmem>>, vector<1x1x24xf32>
    %354 = vector.shape_cast %353 : vector<1x1x24xf32> to vector<1x24xf32>
    %c13 = arith.constant 13 : index
    %c0_453 = arith.constant 0 : index
    %c0_454 = arith.constant 0 : index
    %355 = vector.load %arg11[%c13, %c0_453, %c0_454] : memref<16x24x192xf32, #tpu.memory_space<vmem>>, vector<1x24x192xf32>
    %356 = vector.shape_cast %355 : vector<1x24x192xf32> to vector<24x192xf32>
    %cst_455 = arith.constant dense<0.000000e+00> : vector<1x192xf32>
    %357 = tpu.matmul %354, %356, %cst_455 {dimension_numbers = #tpu.dot_dimension_numbers<[1], [0], [0], [1], [0, 0, 1, 1], [], []>} : vector<1x24xf32>, vector<24x192xf32>, vector<1x192xf32> -> vector<1x192xf32>
    %358 = arith.addf %352, %357 : vector<1x192xf32>
    %c3_456 = arith.constant 3 : index
    %c2_457 = arith.constant 2 : index
    %c0_458 = arith.constant 0 : index
    %359 = vector.load %arg23[%c3_456, %c2_457, %c0_458] : memref<4x4x24xf32, #tpu.memory_space<vmem>>, vector<1x1x24xf32>
    %360 = vector.shape_cast %359 : vector<1x1x24xf32> to vector<1x24xf32>
    %c14 = arith.constant 14 : index
    %c0_459 = arith.constant 0 : index
    %c0_460 = arith.constant 0 : index
    %361 = vector.load %arg11[%c14, %c0_459, %c0_460] : memref<16x24x192xf32, #tpu.memory_space<vmem>>, vector<1x24x192xf32>
    %362 = vector.shape_cast %361 : vector<1x24x192xf32> to vector<24x192xf32>
    %cst_461 = arith.constant dense<0.000000e+00> : vector<1x192xf32>
    %363 = tpu.matmul %360, %362, %cst_461 {dimension_numbers = #tpu.dot_dimension_numbers<[1], [0], [0], [1], [0, 0, 1, 1], [], []>} : vector<1x24xf32>, vector<24x192xf32>, vector<1x192xf32> -> vector<1x192xf32>
    %364 = arith.addf %358, %363 : vector<1x192xf32>
    %c3_462 = arith.constant 3 : index
    %c3_463 = arith.constant 3 : index
    %c0_464 = arith.constant 0 : index
    %365 = vector.load %arg23[%c3_462, %c3_463, %c0_464] : memref<4x4x24xf32, #tpu.memory_space<vmem>>, vector<1x1x24xf32>
    %366 = vector.shape_cast %365 : vector<1x1x24xf32> to vector<1x24xf32>
    %c15 = arith.constant 15 : index
    %c0_465 = arith.constant 0 : index
    %c0_466 = arith.constant 0 : index
    %367 = vector.load %arg11[%c15, %c0_465, %c0_466] : memref<16x24x192xf32, #tpu.memory_space<vmem>>, vector<1x24x192xf32>
    %368 = vector.shape_cast %367 : vector<1x24x192xf32> to vector<24x192xf32>
    %cst_467 = arith.constant dense<0.000000e+00> : vector<1x192xf32>
    %369 = tpu.matmul %366, %368, %cst_467 {dimension_numbers = #tpu.dot_dimension_numbers<[1], [0], [0], [1], [0, 0, 1, 1], [], []>} : vector<1x24xf32>, vector<24x192xf32>, vector<1x192xf32> -> vector<1x192xf32>
    %370 = arith.addf %364, %369 : vector<1x192xf32>
    %cst_468 = arith.constant 0.000000e+00 : f32
    %371 = vector.broadcast %cst_468 : f32 to vector<1x192xf32>
    %372 = arith.maximumf %370, %371 : vector<1x192xf32>
    %c0_469 = arith.constant 0 : index
    %c0_470 = arith.constant 0 : index
    %373 = vector.load %arg13[%c0_469, %c0_470] : memref<192x128xf32, #tpu.memory_space<vmem>>, vector<192x128xf32>
    %cst_471 = arith.constant dense<0.000000e+00> : vector<1x128xf32>
    %374 = tpu.matmul %372, %373, %cst_471 {dimension_numbers = #tpu.dot_dimension_numbers<[1], [0], [0], [1], [0, 0, 1, 1], [], []>} : vector<1x192xf32>, vector<192x128xf32>, vector<1x128xf32> -> vector<1x128xf32>
    %c0_472 = arith.constant 0 : index
    %c0_473 = arith.constant 0 : index
    %375 = vector.load %arg14[%c0_472, %c0_473] : memref<1x128xf32, #tpu.memory_space<vmem>>, vector<1x128xf32>
    %376 = arith.addf %374, %375 : vector<1x128xf32>
    %c0_474 = arith.constant 0 : index
    %c0_475 = arith.constant 0 : index
    %c0_476 = arith.constant 0 : index
    %377 = vector.load %arg15[%c0_474, %c0_475, %c0_476] : memref<1x1x128xf32, #tpu.memory_space<vmem>>, vector<1x1x128xf32>
    %378 = vector.shape_cast %377 : vector<1x1x128xf32> to vector<1x128xf32>
    %379 = vector.shape_cast %376 : vector<1x128xf32> to vector<1x1x128xf32>
    tpu.vector_store %arg15[%c0_474, %c0_475, %c0_476], %379 {strides = array<i32>} : memref<1x1x128xf32, #tpu.memory_space<vmem>>, vector<1x1x128xf32>,
    return
  }
  func.func @transform_0(%arg0: i32) -> (i32, i32, i32, i32) {
    %c0_i32 = arith.constant 0 : i32
    %c0_i32_0 = arith.constant 0 : i32
    %c0_i32_1 = arith.constant 0 : i32
    %c0_i32_2 = arith.constant 0 : i32
    return %arg0, %c0_i32, %c0_i32_0, %c0_i32_1 : i32, i32, i32, i32
  }
  func.func @transform_1(%arg0: i32) -> (i32, i32, i32, i32) {
    %c0_i32 = arith.constant 0 : i32
    %c0_i32_0 = arith.constant 0 : i32
    %c0_i32_1 = arith.constant 0 : i32
    %c0_i32_2 = arith.constant 0 : i32
    %c0_i32_3 = arith.constant 0 : i32
    return %c0_i32, %c0_i32_0, %c0_i32_1, %c0_i32_2 : i32, i32, i32, i32
  }
  func.func @transform_2(%arg0: i32) -> (i32, i32) {
    %c0_i32 = arith.constant 0 : i32
    %c0_i32_0 = arith.constant 0 : i32
    %c0_i32_1 = arith.constant 0 : i32
    return %c0_i32, %c0_i32_0 : i32, i32
  }
  func.func @transform_3(%arg0: i32) -> (i32, i32) {
    %c0_i32 = arith.constant 0 : i32
    %c0_i32_0 = arith.constant 0 : i32
    %c0_i32_1 = arith.constant 0 : i32
    return %c0_i32, %c0_i32_0 : i32, i32
  }
  func.func @transform_4(%arg0: i32) -> (i32, i32, i32, i32) {
    %c0_i32 = arith.constant 0 : i32
    %c0_i32_0 = arith.constant 0 : i32
    %c0_i32_1 = arith.constant 0 : i32
    %c0_i32_2 = arith.constant 0 : i32
    %c0_i32_3 = arith.constant 0 : i32
    return %c0_i32, %c0_i32_0, %c0_i32_1, %c0_i32_2 : i32, i32, i32, i32
  }
  func.func @transform_5(%arg0: i32) -> (i32, i32) {
    %c0_i32 = arith.constant 0 : i32
    %c0_i32_0 = arith.constant 0 : i32
    %c0_i32_1 = arith.constant 0 : i32
    return %c0_i32, %c0_i32_0 : i32, i32
  }
  func.func @transform_6(%arg0: i32) -> (i32, i32, i32, i32) {
    %c0_i32 = arith.constant 0 : i32
    %c0_i32_0 = arith.constant 0 : i32
    %c0_i32_1 = arith.constant 0 : i32
    %c0_i32_2 = arith.constant 0 : i32
    %c0_i32_3 = arith.constant 0 : i32
    return %c0_i32, %c0_i32_0, %c0_i32_1, %c0_i32_2 : i32, i32, i32, i32
  }
  func.func @transform_7(%arg0: i32) -> (i32, i32) {
    %c0_i32 = arith.constant 0 : i32
    %c0_i32_0 = arith.constant 0 : i32
    %c0_i32_1 = arith.constant 0 : i32
    return %c0_i32, %c0_i32_0 : i32, i32
  }
  func.func @transform_8(%arg0: i32) -> (i32, i32, i32, i32) {
    %c0_i32 = arith.constant 0 : i32
    %c0_i32_0 = arith.constant 0 : i32
    %c0_i32_1 = arith.constant 0 : i32
    %c0_i32_2 = arith.constant 0 : i32
    %c0_i32_3 = arith.constant 0 : i32
    return %c0_i32, %c0_i32_0, %c0_i32_1, %c0_i32_2 : i32, i32, i32, i32
  }
  func.func @transform_9(%arg0: i32) -> (i32, i32) {
    %c0_i32 = arith.constant 0 : i32
    %c0_i32_0 = arith.constant 0 : i32
    %c0_i32_1 = arith.constant 0 : i32
    return %c0_i32, %c0_i32_0 : i32, i32
  }
  func.func @transform_10(%arg0: i32) -> (i32, i32, i32) {
    %c0_i32 = arith.constant 0 : i32
    %c0_i32_0 = arith.constant 0 : i32
    %c0_i32_1 = arith.constant 0 : i32
    %c0_i32_2 = arith.constant 0 : i32
    return %c0_i32, %c0_i32_0, %c0_i32_1 : i32, i32, i32
  }
  func.func @transform_11(%arg0: i32) -> (i32, i32) {
    %c0_i32 = arith.constant 0 : i32
    %c0_i32_0 = arith.constant 0 : i32
    %c0_i32_1 = arith.constant 0 : i32
    return %c0_i32, %c0_i32_0 : i32, i32
  }
  func.func @transform_12(%arg0: i32) -> (i32, i32) {
    %c0_i32 = arith.constant 0 : i32
    %c0_i32_0 = arith.constant 0 : i32
    %c0_i32_1 = arith.constant 0 : i32
    return %c0_i32, %c0_i32_0 : i32, i32
  }
  func.func @transform_13(%arg0: i32) -> (i32, i32) {
    %c0_i32 = arith.constant 0 : i32
    %c0_i32_0 = arith.constant 0 : i32
    %c0_i32_1 = arith.constant 0 : i32
    return %c0_i32, %c0_i32_0 : i32, i32
  }
  func.func @transform_14(%arg0: i32) -> (i32, i32, i32) {
    %c0_i32 = arith.constant 0 : i32
    %c0_i32_0 = arith.constant 0 : i32
    %c0_i32_1 = arith.constant 0 : i32
    return %arg0, %c0_i32, %c0_i32_0 : i32, i32, i32
  }
}

</mosaic_0001>

<llo_original>
// kernel: mri_cnn_forward.1
$region0: #{mri_cnn_forward.1}
  #allocation0 [shape = 'u32[]', space=smem, size = 0x4, offset = 0x4, fixed_abs, tag = 'smem constant byte address 0x4 - core index']
  #allocation1 [shape = 'u32[72,128]{1,0:T(1,128)}', space=vmem, size = 0x9000, scoped, tag = 'internal scratch']
  #allocation2 [shape = 'f32[10,10,8]{2,1,0:T(8,128)}', space=vmem, size = 0x14000, scoped, tag = 'scratch operand']
  #allocation3 [shape = 'f32[10,10,16]{2,1,0:T(8,128)}', space=vmem, size = 0x14000, scoped, tag = 'scratch operand']
  #allocation4 [shape = 'f32[10,10,16]{2,1,0:T(8,128)}', space=vmem, size = 0x14000, scoped, tag = 'scratch operand']
  #allocation5 [shape = 'f32[16,16,8]{2,1,0:T(8,128)}', space=vmem, size = 0x20000, scoped, tag = 'scratch operand']
  #allocation6 [shape = 'f32[16,8,8]{2,1,0:T(8,128)}', space=vmem, size = 0x10000, scoped, tag = 'scratch operand']
  #allocation7 [shape = 'f32[8,8,24]{2,1,0:T(8,128)}', space=vmem, size = 0x8000, scoped, tag = 'scratch operand']
  #allocation8 [shape = 'f32[8,4,24]{2,1,0:T(4,128)}', space=vmem, size = 0x4000, scoped, tag = 'scratch operand']
  #allocation9 [shape = 'f32[4,4,24]{2,1,0:T(4,128)}', space=vmem, size = 0x2000, scoped, tag = 'scratch operand']
  %s0 = inlined_call_operand.vmem [shape: f32[2,18,18,4], index: 0, kind: input, shape index: {}]
  %s1 = inlined_call_operand.vmem [shape: f32[3,3,4,8], index: 1, kind: input, shape index: {}]
  %s2 = inlined_call_operand.vmem [shape: f32[1,8], index: 2, kind: input, shape index: {}]
  %s3 = inlined_call_operand.vmem [shape: f32[1,8], index: 3, kind: input, shape index: {}]
  %s4 = inlined_call_operand.vmem [shape: f32[3,3,8,16], index: 4, kind: input, shape index: {}]
  %s5 = inlined_call_operand.vmem [shape: f32[1,16], index: 5, kind: input, shape index: {}]
  %s6 = inlined_call_operand.vmem [shape: f32[3,3,16,16], index: 6, kind: input, shape index: {}]
  %s7 = inlined_call_operand.vmem [shape: f32[1,16], index: 7, kind: input, shape index: {}]
  %s8 = inlined_call_operand.vmem [shape: f32[3,3,16,24], index: 8, kind: input, shape index: {}]
  %s9 = inlined_call_operand.vmem [shape: f32[1,24], index: 9, kind: input, shape index: {}]
  %s10 = inlined_call_operand.vmem [shape: f32[16,24,192], index: 10, kind: input, shape index: {}]
  %s11 = inlined_call_operand.vmem [shape: f32[1,192], index: 11, kind: input, shape index: {}]
  %s12 = inlined_call_operand.vmem [shape: f32[192,128], index: 12, kind: input, shape index: {}]
  %s13 = inlined_call_operand.vmem [shape: f32[1,128], index: 13, kind: input, shape index: {}]
  %s14 = inlined_call_operand.hbm [shape: f32[2,1,128], index: 14, kind: output, shape index: {}]
  %s15 = sld [smem:[#allocation0]]
  $region89: #{mri_cnn_forward.1} parent=0
    _
  %s17 = ssub.s32 1, %s15
  %s18 = scalar_select 0, %s17, %s15
  $region1: #{mri_cnn_forward.1} parent=0
    #allocation10 [shape = 'u8[1024]{0}', space=vmem, size = 0x400, scoped, tag = 'output window, operand 0']
    #allocation11 [shape = 's32[2]{0}', space=sflag, size = 0x8, scoped, tag = 'scoped memory for mri_cnn_forward.1']
    %19 = vsyncpa [#allocation11], 0
    %s20 = scalar_lea.sflag [#allocation11], 1
    %21 = vsyncpa %s20, 0
    loop: start=0, step=1, limit=4
    $region2: #{mri_cnn_forward.1} parent=1 // loop_pre_header
      _
    $region3: #{mri_cnn_forward.1} parent=1 // loop_header
      %s23 = sphi 0, %s27
      %p24 = scmp.ge.s32.totalorder %s23, 4
      %s33 = sphi 0, %s35
      %s36 = sphi 0, %s33
      %s37 = sphi 0, %s36
      %s53 = sphi 0, %s37
      %s57 = sphi 0, %s57
      %s59 = sphi 0, %s57
      %s60 = sphi 0, %s59
      %s74 = sphi 0, %s60
      %s78 = sphi 0, %s78
      %s80 = sphi 0, %s78
      %s81 = sphi 0, %s80
      %s95 = sphi 0, %s81
      %s99 = sphi 0, %s99
      %s101 = sphi 0, %s99
      %s102 = sphi 0, %s101
      %s116 = sphi 0, %s102
      %s120 = sphi 0, %s120
      %s122 = sphi 0, %s120
      %s123 = sphi 0, %s122
      %s137 = sphi 0, %s123
      %s141 = sphi 0, %s141
      %s143 = sphi 0, %s141
      %s144 = sphi 0, %s143
      %s158 = sphi 0, %s144
      %s162 = sphi 0, %s162
      %s164 = sphi 0, %s162
      %s165 = sphi 0, %s164
      %s179 = sphi 0, %s165
      %s183 = sphi 0, %s183
      %s185 = sphi 0, %s183
      %s186 = sphi 0, %s185
      %s200 = sphi 0, %s186
      %s204 = sphi 0, %s204
      %s206 = sphi 0, %s204
      %s207 = sphi 0, %s206
      %s221 = sphi 0, %s207
      %s225 = sphi 0, %s225
      %s227 = sphi 0, %s225
      %s228 = sphi 0, %s227
      %s242 = sphi 0, %s228
      %s246 = sphi 0, %s246
      %s248 = sphi 0, %s246
      %s249 = sphi 0, %s248
      %s263 = sphi 0, %s249
      %s267 = sphi 0, %s267
      %s269 = sphi 0, %s267
      %s270 = sphi 0, %s269
      %s284 = sphi 0, %s270
      %s288 = sphi 0, %s288
      %s290 = sphi 0, %s288
      %s291 = sphi 0, %s290
      %s305 = sphi 0, %s291
      %s309 = sphi 0, %s309
      %s311 = sphi 0, %s309
      %s312 = sphi 0, %s311
      %s326 = sphi 0, %s312
      %s332 = sphi 0, %s334
      %s335 = sphi 0, %s332
      %s336 = sphi 0, %s335
      %s352 = sphi 0, %s336
    $region4: #{mri_cnn_forward.1} parent=1 // loop_header_branch
      %26 = sbr.rel (%p24) target = $region8
    $region5: #{mri_cnn_forward.1} parent=1 // loop_body
      %s28 = ssub.s32 %s23, 1
      %s29 = ssub.s32 %s23, 2
      %s30 = sadd.s32 %s23, 1
      %s31 = ssub.s32 %s23, %s30
      %p32 = scmp.eq.s32.totalorder %s31, 0
      %s34 = sadd.s32 %s33, 1
      %s35 = scalar_select %p32, %s33, %s34
      %p38 = pneg %p32
      %p39 = scmp.eq.s32.totalorder %s23, 1
      %p40 = por %p38, %p39
      %p41 = scmp.ne.s32.totalorder %s33, %s36
      %p42 = scmp.eq.s32.totalorder %s23, 0
      %p43 = por %p41, %p42
      %p44 = scmp.ne.s32.totalorder %s33, %s36
      %p45 = scmp.eq.s32.totalorder %s28, 1
      %p46 = por %p44, %p45
      %p47 = scmp.ne.s32.totalorder %s36, %s37
      %p48 = scmp.eq.s32.totalorder %s28, 0
      %p49 = por %p47, %p48
      %p50 = scmp.ne.s32.totalorder %s36, %s37
      %p51 = scmp.eq.s32.totalorder %s29, 1
      %p52 = por %p50, %p51
      %p54 = scmp.ne.s32.totalorder %s37, %s53
      %p55 = scmp.eq.s32.totalorder %s29, 0
      %p56 = por %p54, %p55
      %s58 = sadd.s32 %s57, 1
      %p61 = scmp.eq.s32.totalorder %s23, 1
      %p62 = scmp.ne.s32.totalorder %s57, %s59
      %p63 = scmp.eq.s32.totalorder %s23, 0
      %p64 = por %p62, %p63
      %p65 = scmp.ne.s32.totalorder %s57, %s59
      %p66 = scmp.eq.s32.totalorder %s28, 1
      %p67 = por %p65, %p66
      %p68 = scmp.ne.s32.totalorder %s59, %s60
      %p69 = scmp.eq.s32.totalorder %s28, 0
      %p70 = por %p68, %p69
      %p71 = scmp.ne.s32.totalorder %s59, %s60
      %p72 = scmp.eq.s32.totalorder %s29, 1
      %p73 = por %p71, %p72
      %p75 = scmp.ne.s32.totalorder %s60, %s74
      %p76 = scmp.eq.s32.totalorder %s29, 0
      %p77 = por %p75, %p76
      %s79 = sadd.s32 %s78, 1
      %p82 = scmp.eq.s32.totalorder %s23, 1
      %p83 = scmp.ne.s32.totalorder %s78, %s80
      %p84 = scmp.eq.s32.totalorder %s23, 0
      %p85 = por %p83, %p84
      %p86 = scmp.ne.s32.totalorder %s78, %s80
      %p87 = scmp.eq.s32.totalorder %s28, 1
      %p88 = por %p86, %p87
      %p89 = scmp.ne.s32.totalorder %s80, %s81
      %p90 = scmp.eq.s32.totalorder %s28, 0
      %p91 = por %p89, %p90
      %p92 = scmp.ne.s32.totalorder %s80, %s81
      %p93 = scmp.eq.s32.totalorder %s29, 1
      %p94 = por %p92, %p93
      %p96 = scmp.ne.s32.totalorder %s81, %s95
      %p97 = scmp.eq.s32.totalorder %s29, 0
      %p98 = por %p96, %p97
      %s100 = sadd.s32 %s99, 1
      %p103 = scmp.eq.s32.totalorder %s23, 1
      %p104 = scmp.ne.s32.totalorder %s99, %s101
      %p105 = scmp.eq.s32.totalorder %s23, 0
      %p106 = por %p104, %p105
      %p107 = scmp.ne.s32.totalorder %s99, %s101
      %p108 = scmp.eq.s32.totalorder %s28, 1
      %p109 = por %p107, %p108
      %p110 = scmp.ne.s32.totalorder %s101, %s102
      %p111 = scmp.eq.s32.totalorder %s28, 0
      %p112 = por %p110, %p111
      %p113 = scmp.ne.s32.totalorder %s101, %s102
      %p114 = scmp.eq.s32.totalorder %s29, 1
      %p115 = por %p113, %p114
      %p117 = scmp.ne.s32.totalorder %s102, %s116
      %p118 = scmp.eq.s32.totalorder %s29, 0
      %p119 = por %p117, %p118
      %s121 = sadd.s32 %s120, 1
      %p124 = scmp.eq.s32.totalorder %s23, 1
      %p125 = scmp.ne.s32.totalorder %s120, %s122
      %p126 = scmp.eq.s32.totalorder %s23, 0
      %p127 = por %p125, %p126
      %p128 = scmp.ne.s32.totalorder %s120, %s122
      %p129 = scmp.eq.s32.totalorder %s28, 1
      %p130 = por %p128, %p129
      %p131 = scmp.ne.s32.totalorder %s122, %s123
      %p132 = scmp.eq.s32.totalorder %s28, 0
      %p133 = por %p131, %p132
      %p134 = scmp.ne.s32.totalorder %s122, %s123
      %p135 = scmp.eq.s32.totalorder %s29, 1
      %p136 = por %p134, %p135
      %p138 = scmp.ne.s32.totalorder %s123, %s137
      %p139 = scmp.eq.s32.totalorder %s29, 0
      %p140 = por %p138, %p139
      %s142 = sadd.s32 %s141, 1
      %p145 = scmp.eq.s32.totalorder %s23, 1
      %p146 = scmp.ne.s32.totalorder %s141, %s143
      %p147 = scmp.eq.s32.totalorder %s23, 0
      %p148 = por %p146, %p147
      %p149 = scmp.ne.s32.totalorder %s141, %s143
      %p150 = scmp.eq.s32.totalorder %s28, 1
      %p151 = por %p149, %p150
      %p152 = scmp.ne.s32.totalorder %s143, %s144
      %p153 = scmp.eq.s32.totalorder %s28, 0
      %p154 = por %p152, %p153
      %p155 = scmp.ne.s32.totalorder %s143, %s144
      %p156 = scmp.eq.s32.totalorder %s29, 1
      %p157 = por %p155, %p156
      %p159 = scmp.ne.s32.totalorder %s144, %s158
      %p160 = scmp.eq.s32.totalorder %s29, 0
      %p161 = por %p159, %p160
      %s163 = sadd.s32 %s162, 1
      %p166 = scmp.eq.s32.totalorder %s23, 1
      %p167 = scmp.ne.s32.totalorder %s162, %s164
      %p168 = scmp.eq.s32.totalorder %s23, 0
      %p169 = por %p167, %p168
      %p170 = scmp.ne.s32.totalorder %s162, %s164
      %p171 = scmp.eq.s32.totalorder %s28, 1
      %p172 = por %p170, %p171
      %p173 = scmp.ne.s32.totalorder %s164, %s165
      %p174 = scmp.eq.s32.totalorder %s28, 0
      %p175 = por %p173, %p174
      %p176 = scmp.ne.s32.totalorder %s164, %s165
      %p177 = scmp.eq.s32.totalorder %s29, 1
      %p178 = por %p176, %p177
      %p180 = scmp.ne.s32.totalorder %s165, %s179
      %p181 = scmp.eq.s32.totalorder %s29, 0
      %p182 = por %p180, %p181
      %s184 = sadd.s32 %s183, 1
      %p187 = scmp.eq.s32.totalorder %s23, 1
      %p188 = scmp.ne.s32.totalorder %s183, %s185
      %p189 = scmp.eq.s32.totalorder %s23, 0
      %p190 = por %p188, %p189
      %p191 = scmp.ne.s32.totalorder %s183, %s185
      %p192 = scmp.eq.s32.totalorder %s28, 1
      %p193 = por %p191, %p192
      %p194 = scmp.ne.s32.totalorder %s185, %s186
      %p195 = scmp.eq.s32.totalorder %s28, 0
      %p196 = por %p194, %p195
      %p197 = scmp.ne.s32.totalorder %s185, %s186
      %p198 = scmp.eq.s32.totalorder %s29, 1
      %p199 = por %p197, %p198
      %p201 = scmp.ne.s32.totalorder %s186, %s200
      %p202 = scmp.eq.s32.totalorder %s29, 0
      %p203 = por %p201, %p202
      %s205 = sadd.s32 %s204, 1
      %p208 = scmp.eq.s32.totalorder %s23, 1
      %p209 = scmp.ne.s32.totalorder %s204, %s206
      %p210 = scmp.eq.s32.totalorder %s23, 0
      %p211 = por %p209, %p210
      %p212 = scmp.ne.s32.totalorder %s204, %s206
      %p213 = scmp.eq.s32.totalorder %s28, 1
      %p214 = por %p212, %p213
      %p215 = scmp.ne.s32.totalorder %s206, %s207
      %p216 = scmp.eq.s32.totalorder %s28, 0
      %p217 = por %p215, %p216
      %p218 = scmp.ne.s32.totalorder %s206, %s207
      %p219 = scmp.eq.s32.totalorder %s29, 1
      %p220 = por %p218, %p219
      %p222 = scmp.ne.s32.totalorder %s207, %s221
      %p223 = scmp.eq.s32.totalorder %s29, 0
      %p224 = por %p222, %p223
      %s226 = sadd.s32 %s225, 1
      %p229 = scmp.eq.s32.totalorder %s23, 1
      %p230 = scmp.ne.s32.totalorder %s225, %s227
      %p231 = scmp.eq.s32.totalorder %s23, 0
      %p232 = por %p230, %p231
      %p233 = scmp.ne.s32.totalorder %s225, %s227
      %p234 = scmp.eq.s32.totalorder %s28, 1
      %p235 = por %p233, %p234
      %p236 = scmp.ne.s32.totalorder %s227, %s228
      %p237 = scmp.eq.s32.totalorder %s28, 0
      %p238 = por %p236, %p237
      %p239 = scmp.ne.s32.totalorder %s227, %s228
      %p240 = scmp.eq.s32.totalorder %s29, 1
      %p241 = por %p239, %p240
      %p243 = scmp.ne.s32.totalorder %s228, %s242
      %p244 = scmp.eq.s32.totalorder %s29, 0
      %p245 = por %p243, %p244
      %s247 = sadd.s32 %s246, 1
      %p250 = scmp.eq.s32.totalorder %s23, 1
      %p251 = scmp.ne.s32.totalorder %s246, %s248
      %p252 = scmp.eq.s32.totalorder %s23, 0
      %p253 = por %p251, %p252
      %p254 = scmp.ne.s32.totalorder %s246, %s248
      %p255 = scmp.eq.s32.totalorder %s28, 1
      %p256 = por %p254, %p255
      %p257 = scmp.ne.s32.totalorder %s248, %s249
      %p258 = scmp.eq.s32.totalorder %s28, 0
      %p259 = por %p257, %p258
      %p260 = scmp.ne.s32.totalorder %s248, %s249
      %p261 = scmp.eq.s32.totalorder %s29, 1
      %p262 = por %p260, %p261
      %p264 = scmp.ne.s32.totalorder %s249, %s263
      %p265 = scmp.eq.s32.totalorder %s29, 0
      %p266 = por %p264, %p265
      %s268 = sadd.s32 %s267, 1
      %p271 = scmp.eq.s32.totalorder %s23, 1
      %p272 = scmp.ne.s32.totalorder %s267, %s269
      %p273 = scmp.eq.s32.totalorder %s23, 0
      %p274 = por %p272, %p273
      %p275 = scmp.ne.s32.totalorder %s267, %s269
      %p276 = scmp.eq.s32.totalorder %s28, 1
      %p277 = por %p275, %p276
      %p278 = scmp.ne.s32.totalorder %s269, %s270
      %p279 = scmp.eq.s32.totalorder %s28, 0
      %p280 = por %p278, %p279
      %p281 = scmp.ne.s32.totalorder %s269, %s270
      %p282 = scmp.eq.s32.totalorder %s29, 1
      %p283 = por %p281, %p282
      %p285 = scmp.ne.s32.totalorder %s270, %s284
      %p286 = scmp.eq.s32.totalorder %s29, 0
      %p287 = por %p285, %p286
      %s289 = sadd.s32 %s288, 1
      %p292 = scmp.eq.s32.totalorder %s23, 1
      %p293 = scmp.ne.s32.totalorder %s288, %s290
      %p294 = scmp.eq.s32.totalorder %s23, 0
      %p295 = por %p293, %p294
      %p296 = scmp.ne.s32.totalorder %s288, %s290
      %p297 = scmp.eq.s32.totalorder %s28, 1
      %p298 = por %p296, %p297
      %p299 = scmp.ne.s32.totalorder %s290, %s291
      %p300 = scmp.eq.s32.totalorder %s28, 0
      %p301 = por %p299, %p300
      %p302 = scmp.ne.s32.totalorder %s290, %s291
      %p303 = scmp.eq.s32.totalorder %s29, 1
      %p304 = por %p302, %p303
      %p306 = scmp.ne.s32.totalorder %s291, %s305
      %p307 = scmp.eq.s32.totalorder %s29, 0
      %p308 = por %p306, %p307
      %s310 = sadd.s32 %s309, 1
      %p313 = scmp.eq.s32.totalorder %s23, 1
      %p314 = scmp.ne.s32.totalorder %s309, %s311
      %p315 = scmp.eq.s32.totalorder %s23, 0
      %p316 = por %p314, %p315
      %p317 = scmp.ne.s32.totalorder %s309, %s311
      %p318 = scmp.eq.s32.totalorder %s28, 1
      %p319 = por %p317, %p318
      %p320 = scmp.ne.s32.totalorder %s311, %s312
      %p321 = scmp.eq.s32.totalorder %s28, 0
      %p322 = por %p320, %p321
      %p323 = scmp.ne.s32.totalorder %s311, %s312
      %p324 = scmp.eq.s32.totalorder %s29, 1
      %p325 = por %p323, %p324
      %p327 = scmp.ne.s32.totalorder %s312, %s326
      %p328 = scmp.eq.s32.totalorder %s29, 0
      %p329 = por %p327, %p328
      %s330 = ssub.s32 %s23, %s30
      %p331 = scmp.eq.s32.totalorder %s330, 0
      %s333 = sadd.s32 %s332, 1
      %s334 = scalar_select %p331, %s332, %s333
      %p337 = pneg %p331
      %p338 = scmp.eq.s32.totalorder %s23, 1
      %p339 = por %p337, %p338
      %p340 = scmp.ne.s32.totalorder %s332, %s335
      %p341 = scmp.eq.s32.totalorder %s23, 0
      %p342 = por %p340, %p341
      %p343 = scmp.ne.s32.totalorder %s332, %s335
      %p344 = scmp.eq.s32.totalorder %s28, 1
      %p345 = por %p343, %p344
      %p346 = scmp.ne.s32.totalorder %s335, %s336
      %p347 = scmp.eq.s32.totalorder %s28, 0
      %p348 = por %p346, %p347
      %p349 = scmp.ne.s32.totalorder %s335, %s336
      %p350 = scmp.eq.s32.totalorder %s29, 1
      %p351 = por %p349, %p350
      %p353 = scmp.ne.s32.totalorder %s336, %s352
      %p354 = scmp.eq.s32.totalorder %s29, 0
      %p355 = por %p353, %p354
      %p356 = scmp.le.s32.totalorder 1, %s23
      %p357 = scmp.lt.s32.totalorder %s23, 3
      %p358 = pnand %p356, %p357
      %p359 = pneg %p358
      // Predicated region
      $region9: #{mri_cnn_forward.1} parent=5 // pred_check
        _
      $region10: #{mri_cnn_forward.1} parent=5 // pred_check_branch
        %361 = sbr.rel (%p358) target = $region12
      $region11: #{mri_cnn_forward.1} parent=5 // pred_region
        %s362 = ssub.s32 %s23, 1
        // Predicated region
        $region13: #{mri_cnn_forward.1} parent=11 // pred_check
          %p363 = pneg %p70
        $region14: #{mri_cnn_forward.1} parent=11 // pred_check_branch
          %365 = sbr.rel (%p363) target = $region16
        $region15: #{mri_cnn_forward.1} parent=11 // pred_region
          _
        $region16: #{mri_cnn_forward.1} parent=11 // pred_fallthru
          _
        // Predicated region
        $region17: #{mri_cnn_forward.1} parent=11 // pred_check
          %p366 = pneg %p91
        $region18: #{mri_cnn_forward.1} parent=11 // pred_check_branch
          %368 = sbr.rel (%p366) target = $region20
        $region19: #{mri_cnn_forward.1} parent=11 // pred_region
          _
        $region20: #{mri_cnn_forward.1} parent=11 // pred_fallthru
          _
        // Predicated region
        $region21: #{mri_cnn_forward.1} parent=11 // pred_check
          %p369 = pneg %p112
        $region22: #{mri_cnn_forward.1} parent=11 // pred_check_branch
          %371 = sbr.rel (%p369) target = $region24
        $region23: #{mri_cnn_forward.1} parent=11 // pred_region
          _
        $region24: #{mri_cnn_forward.1} parent=11 // pred_fallthru
          _
        // Predicated region
        $region25: #{mri_cnn_forward.1} parent=11 // pred_check
          %p372 = pneg %p133
        $region26: #{mri_cnn_forward.1} parent=11 // pred_check_branch
          %374 = sbr.rel (%p372) target = $region28
        $region27: #{mri_cnn_forward.1} parent=11 // pred_region
          _
        $region28: #{mri_cnn_forward.1} parent=11 // pred_fallthru
          _
        // Predicated region
        $region29: #{mri_cnn_forward.1} parent=11 // pred_check
          %p375 = pneg %p154
        $region30: #{mri_cnn_forward.1} parent=11 // pred_check_branch
          %377 = sbr.rel (%p375) target = $region32
        $region31: #{mri_cnn_forward.1} parent=11 // pred_region
          _
        $region32: #{mri_cnn_forward.1} parent=11 // pred_fallthru
          _
        // Predicated region
        $region33: #{mri_cnn_forward.1} parent=11 // pred_check
          %p378 = pneg %p175
        $region34: #{mri_cnn_forward.1} parent=11 // pred_check_branch
          %380 = sbr.rel (%p378) target = $region36
        $region35: #{mri_cnn_forward.1} parent=11 // pred_region
          _
        $region36: #{mri_cnn_forward.1} parent=11 // pred_fallthru
          _
        // Predicated region
        $region37: #{mri_cnn_forward.1} parent=11 // pred_check
          %p381 = pneg %p196
        $region38: #{mri_cnn_forward.1} parent=11 // pred_check_branch
          %383 = sbr.rel (%p381) target = $region40
        $region39: #{mri_cnn_forward.1} parent=11 // pred_region
          _
        $region40: #{mri_cnn_forward.1} parent=11 // pred_fallthru
          _
        // Predicated region
        $region41: #{mri_cnn_forward.1} parent=11 // pred_check
          %p384 = pneg %p217
        $region42: #{mri_cnn_forward.1} parent=11 // pred_check_branch
          %386 = sbr.rel (%p384) target = $region44
        $region43: #{mri_cnn_forward.1} parent=11 // pred_region
          _
        $region44: #{mri_cnn_forward.1} parent=11 // pred_fallthru
          _
        // Predicated region
        $region45: #{mri_cnn_forward.1} parent=11 // pred_check
          %p387 = pneg %p238
        $region46: #{mri_cnn_forward.1} parent=11 // pred_check_branch
          %389 = sbr.rel (%p387) target = $region48
        $region47: #{mri_cnn_forward.1} parent=11 // pred_region
          _
        $region48: #{mri_cnn_forward.1} parent=11 // pred_fallthru
          _
        // Predicated region
        $region49: #{mri_cnn_forward.1} parent=11 // pred_check
          %p390 = pneg %p259
        $region50: #{mri_cnn_forward.1} parent=11 // pred_check_branch
          %392 = sbr.rel (%p390) target = $region52
        $region51: #{mri_cnn_forward.1} parent=11 // pred_region
          _
        $region52: #{mri_cnn_forward.1} parent=11 // pred_fallthru
          _
        // Predicated region
        $region53: #{mri_cnn_forward.1} parent=11 // pred_check
          %p393 = pneg %p280
        $region54: #{mri_cnn_forward.1} parent=11 // pred_check_branch
          %395 = sbr.rel (%p393) target = $region56
        $region55: #{mri_cnn_forward.1} parent=11 // pred_region
          _
        $region56: #{mri_cnn_forward.1} parent=11 // pred_fallthru
          _
        // Predicated region
        $region57: #{mri_cnn_forward.1} parent=11 // pred_check
          %p396 = pneg %p301
        $region58: #{mri_cnn_forward.1} parent=11 // pred_check_branch
          %398 = sbr.rel (%p396) target = $region60
        $region59: #{mri_cnn_forward.1} parent=11 // pred_region
          _
        $region60: #{mri_cnn_forward.1} parent=11 // pred_fallthru
          _
        // Predicated region
        $region61: #{mri_cnn_forward.1} parent=11 // pred_check
          %p399 = pneg %p322
        $region62: #{mri_cnn_forward.1} parent=11 // pred_check_branch
          %401 = sbr.rel (%p399) target = $region64
        $region63: #{mri_cnn_forward.1} parent=11 // pred_region
          _
        $region64: #{mri_cnn_forward.1} parent=11 // pred_fallthru
          _
      $region12: #{mri_cnn_forward.1} parent=5 // pred_fallthru
        _
      %p402 = scmp.lt.s32.totalorder %s23, 2
      // Predicated region
      $region65: #{mri_cnn_forward.1} parent=5 // pred_check
        %p403 = pneg %p402
      $region66: #{mri_cnn_forward.1} parent=5 // pred_check_branch
        %405 = sbr.rel (%p403) target = $region68
      $region67: #{mri_cnn_forward.1} parent=5 // pred_region
        // Predicated region
        $region69: #{mri_cnn_forward.1} parent=67 // pred_check
          %p406 = pneg %p43
        $region70: #{mri_cnn_forward.1} parent=67 // pred_check_branch
          %408 = sbr.rel (%p406) target = $region72
        $region71: #{mri_cnn_forward.1} parent=67 // pred_region
          %p409 = scmp.lt.s32.totalorder %s23, 1
          %s410 = scalar_select %p409, %s23, 1
          %s411 = smul.addr %s410, 54
          %s412 = smul.addr %s411, 8
          %s413 = scalar_lea.vmem %s0, %s412
        $region72: #{mri_cnn_forward.1} parent=67 // pred_fallthru
          _
      $region68: #{mri_cnn_forward.1} parent=5 // pred_fallthru
        _
      %p414 = scmp.le.s32.totalorder 1, %s23
      %p415 = scmp.lt.s32.totalorder %s23, 3
      %p416 = pnand %p414, %p415
      %p417 = pneg %p416
      // Predicated region
      $region73: #{mri_cnn_forward.1} parent=5 // pred_check
        _
      $region74: #{mri_cnn_forward.1} parent=5 // pred_check_branch
        %419 = sbr.rel (%p416) target = $region76
      $region75: #{mri_cnn_forward.1} parent=5 // pred_region
        %s420 = ssub.s32 %s23, 1
        %p421 = scmp.lt.s32.totalorder %s28, 1
        %s422 = scalar_select %p421, %s28, 1
        %s423 = smul.addr %s422, 54
        %s424 = smul.addr %s423, 8
        %s425 = scalar_lea.vmem %s0, %s424
        %p426 = pneg %p49
        %p427 = pneg %p46
        %p428 = pneg %p70
        %p429 = pneg %p67
        %p430 = pneg %p91
        %p431 = pneg %p88
        %p432 = pneg %p112
        %p433 = pneg %p109
        %p434 = pneg %p133
        %p435 = pneg %p130
        %p436 = pneg %p154
        %p437 = pneg %p151
        %p438 = pneg %p175
        %p439 = pneg %p172
        %p440 = pneg %p196
        %p441 = pneg %p193
        %p442 = pneg %p217
        %p443 = pneg %p214
        %p444 = pneg %p238
        %p445 = pneg %p235
        %p446 = pneg %p259
        %p447 = pneg %p256
        %p448 = pneg %p280
        %p449 = pneg %p277
        %p450 = pneg %p301
        %p451 = pneg %p298
        %p452 = pneg %p322
        %p453 = pneg %p319
        %p454 = pneg %p348
        %p455 = pneg %p345
        %s456 = sand.u32 %s335, 1
        %s457 = scalar_lea.sflag [#allocation11], %s456
        %s458 = sand.u32 %s335, 1
        %s459 = scalar_lea.vmem [#allocation10], %s458
        %p460 = scmp.lt.s32.totalorder %s28, 1
        %s461 = scalar_select %p460, %s28, 1
        %s462 = smul.addr %s461, 54
        %s463 = smul.addr %s462, 8
        %s464 = scalar_lea.vmem %s0, %s463
        %vm465 = vcmask 64512
        %466 = vst.msk [vmem:[#allocation2] sm:$0xff] %vm465, 0.0
        %vm467 = vcmask 58368
        %468 = vst.msk [vmem:[#allocation2 + $0x8] sm:$0x3] %vm467, 0.0
        %469 = vst.msk [vmem:[#allocation2 + $0x10] sm:$0xff] %vm465, 0.0
        %470 = vst.msk [vmem:[#allocation2 + $0x18] sm:$0x3] %vm467, 0.0
        %471 = vst.msk [vmem:[#allocation2 + $0x20] sm:$0xff] %vm465, 0.0
        %472 = vst.msk [vmem:[#allocation2 + $0x28] sm:$0x3] %vm467, 0.0
        %473 = vst.msk [vmem:[#allocation2 + $0x30] sm:$0xff] %vm465, 0.0
        %474 = vst.msk [vmem:[#allocation2 + $0x38] sm:$0x3] %vm467, 0.0
        %475 = vst.msk [vmem:[#allocation2 + $0x40] sm:$0xff] %vm465, 0.0
        %476 = vst.msk [vmem:[#allocation2 + $0x48] sm:$0x3] %vm467, 0.0
        %477 = vst.msk [vmem:[#allocation2 + $0x50] sm:$0xff] %vm465, 0.0
        %478 = vst.msk [vmem:[#allocation2 + $0x58] sm:$0x3] %vm467, 0.0
        %479 = vst.msk [vmem:[#allocation2 + $0x60] sm:$0xff] %vm465, 0.0
        %480 = vst.msk [vmem:[#allocation2 + $0x68] sm:$0x3] %vm467, 0.0
        %481 = vst.msk [vmem:[#allocation2 + $0x70] sm:$0xff] %vm465, 0.0
        %482 = vst.msk [vmem:[#allocation2 + $0x78] sm:$0x3] %vm467, 0.0
        %483 = vst.msk [vmem:[#allocation2 + $0x80] sm:$0xff] %vm465, 0.0
        %484 = vst.msk [vmem:[#allocation2 + $0x88] sm:$0x3] %vm467, 0.0
        %485 = vst.msk [vmem:[#allocation2 + $0x90] sm:$0xff] %vm465, 0.0
        %486 = vst.msk [vmem:[#allocation2 + $0x98] sm:$0x3] %vm467, 0.0
        %vm487 = vcmask 130048
        %488 = vst.msk [vmem:[#allocation3] sm:$0xff] %vm487, 0.0
        %vm489 = vcmask 123904
        %490 = vst.msk [vmem:[#allocation3 + $0x8] sm:$0x3] %vm489, 0.0
        %491 = vst.msk [vmem:[#allocation3 + $0x10] sm:$0xff] %vm487, 0.0
        %492 = vst.msk [vmem:[#allocation3 + $0x18] sm:$0x3] %vm489, 0.0
        %493 = vst.msk [vmem:[#allocation3 + $0x20] sm:$0xff] %vm487, 0.0
        %494 = vst.msk [vmem:[#allocation3 + $0x28] sm:$0x3] %vm489, 0.0
        %495 = vst.msk [vmem:[#allocation3 + $0x30] sm:$0xff] %vm487, 0.0
        %496 = vst.msk [vmem:[#allocation3 + $0x38] sm:$0x3] %vm489, 0.0
        %497 = vst.msk [vmem:[#allocation3 + $0x40] sm:$0xff] %vm487, 0.0
        %498 = vst.msk [vmem:[#allocation3 + $0x48] sm:$0x3] %vm489, 0.0
        %499 = vst.msk [vmem:[#allocation3 + $0x50] sm:$0xff] %vm487, 0.0
        %500 = vst.msk [vmem:[#allocation3 + $0x58] sm:$0x3] %vm489, 0.0
        %501 = vst.msk [vmem:[#allocation3 + $0x60] sm:$0xff] %vm487, 0.0
        %502 = vst.msk [vmem:[#allocation3 + $0x68] sm:$0x3] %vm489, 0.0
        %503 = vst.msk [vmem:[#allocation3 + $0x70] sm:$0xff] %vm487, 0.0
        %504 = vst.msk [vmem:[#allocation3 + $0x78] sm:$0x3] %vm489, 0.0
        %505 = vst.msk [vmem:[#allocation3 + $0x80] sm:$0xff] %vm487, 0.0
        %506 = vst.msk [vmem:[#allocation3 + $0x88] sm:$0x3] %vm489, 0.0
        %507 = vst.msk [vmem:[#allocation3 + $0x90] sm:$0xff] %vm487, 0.0
        %508 = vst.msk [vmem:[#allocation3 + $0x98] sm:$0x3] %vm489, 0.0
        %509 = vst.msk [vmem:[#allocation4] sm:$0xff] %vm487, 0.0
        %510 = vst.msk [vmem:[#allocation4 + $0x8] sm:$0x3] %vm489, 0.0
        %511 = vst.msk [vmem:[#allocation4 + $0x10] sm:$0xff] %vm487, 0.0
        %512 = vst.msk [vmem:[#allocation4 + $0x18] sm:$0x3] %vm489, 0.0
        %513 = vst.msk [vmem:[#allocation4 + $0x20] sm:$0xff] %vm487, 0.0
        %514 = vst.msk [vmem:[#allocation4 + $0x28] sm:$0x3] %vm489, 0.0
        %515 = vst.msk [vmem:[#allocation4 + $0x30] sm:$0xff] %vm487, 0.0
        %516 = vst.msk [vmem:[#allocation4 + $0x38] sm:$0x3] %vm489, 0.0
        %517 = vst.msk [vmem:[#allocation4 + $0x40] sm:$0xff] %vm487, 0.0
        %518 = vst.msk [vmem:[#allocation4 + $0x48] sm:$0x3] %vm489, 0.0
        %519 = vst.msk [vmem:[#allocation4 + $0x50] sm:$0xff] %vm487, 0.0
        %520 = vst.msk [vmem:[#allocation4 + $0x58] sm:$0x3] %vm489, 0.0
        %521 = vst.msk [vmem:[#allocation4 + $0x60] sm:$0xff] %vm487, 0.0
        %522 = vst.msk [vmem:[#allocation4 + $0x68] sm:$0x3] %vm489, 0.0
        %523 = vst.msk [vmem:[#allocation4 + $0x70] sm:$0xff] %vm487, 0.0
        %524 = vst.msk [vmem:[#allocation4 + $0x78] sm:$0x3] %vm489, 0.0
        %525 = vst.msk [vmem:[#allocation4 + $0x80] sm:$0xff] %vm487, 0.0
        %526 = vst.msk [vmem:[#allocation4 + $0x88] sm:$0x3] %vm489, 0.0
        %527 = vst.msk [vmem:[#allocation4 + $0x90] sm:$0xff] %vm487, 0.0
        %528 = vst.msk [vmem:[#allocation4 + $0x98] sm:$0x3] %vm489, 0.0
        %v529 = vld [vmem:[%s3] sm:$0x1]
        %v530 = vld [vmem:[%s2] sm:$0x1]
        %v531 = vld [vmem:[%s464] sm:$0xff]
        %v532 = vld [vmem:[%s464 + $0x8] sm:$0xff]
        %v533 = vld [vmem:[%s464 + $0x18] sm:$0xff]
        %v534 = vld [vmem:[%s464 + $0x20] sm:$0xff]
        %v535 = vld [vmem:[%s464 + $0x30] sm:$0xff]
        %v536 = vld [vmem:[%s464 + $0x38] sm:$0xff]
        %v537 = vld [vmem:[%s464 + $0x48] sm:$0xff]
        %v538 = vld [vmem:[%s464 + $0x50] sm:$0xff]
        %v539 = vld [vmem:[%s464 + $0x60] sm:$0xff]
        %v540 = vld [vmem:[%s464 + $0x68] sm:$0xff]
        %v541 = vld [vmem:[%s464 + $0x78] sm:$0xff]
        %v542 = vld [vmem:[%s464 + $0x80] sm:$0xff]
        %v543 = vld [vmem:[%s464 + $0x90] sm:$0xff]
        %v544 = vld [vmem:[%s464 + $0x98] sm:$0xff]
        %v545 = vld [vmem:[%s464 + $0xa8] sm:$0xff]
        %v546 = vld [vmem:[%s464 + $0xb0] sm:$0xff]
        %v547 = vld [vmem:[%s464 + $0xc0] sm:$0xff]
        %v548 = vld [vmem:[%s464 + $0xc8] sm:$0xff]
        %v549 = vld [vmem:[%s464 + $0xd8] sm:$0xff]
        %v550 = vld [vmem:[%s464 + $0xe0] sm:$0xff]
        %v551 = vld [vmem:[%s464 + $0xf0] sm:$0xff]
        %v552 = vld [vmem:[%s464 + $0xf8] sm:$0xff]
        %v553 = vld [vmem:[%s464 + $0x108] sm:$0xff]
        %v554 = vld [vmem:[%s464 + $0x110] sm:$0xff]
        %v555 = vld [vmem:[%s464 + $0x120] sm:$0xff]
        %v556 = vld [vmem:[%s464 + $0x128] sm:$0xff]
        %v557 = vld [vmem:[%s464 + $0x138] sm:$0xff]
        %v558 = vld [vmem:[%s464 + $0x140] sm:$0xff]
        %v559 = vld [vmem:[%s464 + $0x150] sm:$0xff]
        %v560 = vld [vmem:[%s464 + $0x158] sm:$0xff]
        %v561 = vld [vmem:[%s464 + $0x168] sm:$0xff]
        %v562 = vld [vmem:[%s464 + $0x170] sm:$0xff]
        %v563 = vld [vmem:[%s1] sm:$0xf]
        %v564 = vld [vmem:[%s464 + $0x1] sm:$0xff]
        %v565 = vld [vmem:[%s464 + $0x9] sm:$0xff]
        %v566 = vld [vmem:[%s464 + $0x19] sm:$0xff]
        %v567 = vld [vmem:[%s464 + $0x21] sm:$0xff]
        %v568 = vld [vmem:[%s464 + $0x31] sm:$0xff]
        %v569 = vld [vmem:[%s464 + $0x39] sm:$0xff]
        %v570 = vld [vmem:[%s464 + $0x49] sm:$0xff]
        %v571 = vld [vmem:[%s464 + $0x51] sm:$0xff]
        %v572 = vld [vmem:[%s464 + $0x61] sm:$0xff]
        %v573 = vld [vmem:[%s464 + $0x69] sm:$0xff]
        %v574 = vld [vmem:[%s464 + $0x79] sm:$0xff]
        %v575 = vld [vmem:[%s464 + $0x81] sm:$0xff]
        %v576 = vld [vmem:[%s464 + $0x91] sm:$0xff]
        %v577 = vld [vmem:[%s464 + $0x99] sm:$0xff]
        %v578 = vld [vmem:[%s464 + $0xa9] sm:$0xff]
        %v579 = vld [vmem:[%s464 + $0xb1] sm:$0xff]
        %v580 = vld [vmem:[%s464 + $0xc1] sm:$0xff]
        %v581 = vld [vmem:[%s464 + $0xc9] sm:$0xff]
        %v582 = vld [vmem:[%s464 + $0xd9] sm:$0xff]
        %v583 = vld [vmem:[%s464 + $0xe1] sm:$0xff]
        %v584 = vld [vmem:[%s464 + $0xf1] sm:$0xff]
        %v585 = vld [vmem:[%s464 + $0xf9] sm:$0xff]
        %v586 = vld [vmem:[%s464 + $0x109] sm:$0xff]
        %v587 = vld [vmem:[%s464 + $0x111] sm:$0xff]
        %v588 = vld [vmem:[%s464 + $0x121] sm:$0xff]
        %v589 = vld [vmem:[%s464 + $0x129] sm:$0xff]
        %v590 = vld [vmem:[%s464 + $0x139] sm:$0xff]
        %v591 = vld [vmem:[%s464 + $0x141] sm:$0xff]
        %v592 = vld [vmem:[%s464 + $0x151] sm:$0xff]
        %v593 = vld [vmem:[%s464 + $0x159] sm:$0xff]
        %v594 = vld [vmem:[%s464 + $0x169] sm:$0xff]
        %v595 = vld [vmem:[%s464 + $0x171] sm:$0xff]
        %s596 = scalar_lea.vmem %s1, 4
        %v597 = vld [vmem:[%s596] sm:$0xf]
        %vm598 = vcmask 31744
        %v600 = vsel %vm598, %v564, 0
        %v603 = vsel %vm598, %v565, 0
        %v606 = vsel %vm598, %v566, 0
        %v609 = vsel %vm598, %v567, 0
        %v612 = vsel %vm598, %v568, 0
        %v615 = vsel %vm598, %v569, 0
        %v618 = vsel %vm598, %v570, 0
        %v621 = vsel %vm598, %v571, 0
        %v624 = vsel %vm598, %v572, 0
        %v627 = vsel %vm598, %v573, 0
        %v630 = vsel %vm598, %v574, 0
        %v633 = vsel %vm598, %v575, 0
        %v636 = vsel %vm598, %v576, 0
        %v639 = vsel %vm598, %v577, 0
        %v642 = vsel %vm598, %v578, 0
        %v645 = vsel %vm598, %v579, 0
        %v648 = vsel %vm598, %v580, 0
        %v651 = vsel %vm598, %v581, 0
        %v654 = vsel %vm598, %v582, 0
        %v657 = vsel %vm598, %v583, 0
        %v660 = vsel %vm598, %v584, 0
        %v663 = vsel %vm598, %v585, 0
        %v666 = vsel %vm598, %v586, 0
        %v669 = vsel %vm598, %v587, 0
        %v672 = vsel %vm598, %v588, 0
        %v675 = vsel %vm598, %v589, 0
        %v678 = vsel %vm598, %v590, 0
        %v681 = vsel %vm598, %v591, 0
        %v684 = vsel %vm598, %v592, 0
        %v687 = vsel %vm598, %v593, 0
        %v690 = vsel %vm598, %v594, 0
        %v693 = vsel %vm598, %v595, 0
        %vm695 = vcmask 1043456
        %v697 = vsel %vm695, %v597, 0
        %699 = vmatpush.msra.mxu0 0.0
        %700 = vmatpush.msra.mxu0 0.0
        %701 = vmatpush.msra.mxu0 0.0
        %702 = vmatpush.msra.mxu0 0.0
        %703 = vmatpush.msra.mxu0 0.0
        %704 = vmatpush.msra.mxu0 0.0
        %705 = vmatpush.msra.mxu0 0.0
        %706 = vmatpush.msra.mxu0 0.0
        %707 = vmatpush.msra.mxu0 0.0
        %708 = vmatpush.msra.mxu0 0.0
        %709 = vmatpush.msra.mxu0 0.0
        %710 = vmatpush.msra.mxu0 0.0
        %711 = vmatpush.msra.mxu0 0.0
        %712 = vmatpush.msra.mxu0 0.0
        %713 = vmatpush.msra.mxu0 0.0
        %714 = vmatpush.msra.mxu0 %v697
        %715 = vmatmul.f32.gmra.mxu0 %v600
        %v716 = vpop.f32.mrf.mxu0
        %v717 = vadd.f32 0.0, %v716
        %718 = vmatmul.f32.gmra.mxu0 %v603
        %v719 = vpop.f32.mrf.mxu0
        %v720 = vadd.f32 0.0, %v719
        %721 = vmatmul.f32.gmra.mxu0 %v606
        %v722 = vpop.f32.mrf.mxu0
        %v723 = vadd.f32 0.0, %v722
        %724 = vmatmul.f32.gmra.mxu0 %v609
        %v725 = vpop.f32.mrf.mxu0
        %v726 = vadd.f32 0.0, %v725
        %727 = vmatmul.f32.gmra.mxu0 %v612
        %v728 = vpop.f32.mrf.mxu0
        %v729 = vadd.f32 0.0, %v728
        %730 = vmatmul.f32.gmra.mxu0 %v615
        %v731 = vpop.f32.mrf.mxu0
        %v732 = vadd.f32 0.0, %v731
        %733 = vmatmul.f32.gmra.mxu0 %v618
        %v734 = vpop.f32.mrf.mxu0
        %v735 = vadd.f32 0.0, %v734
        %736 = vmatmul.f32.gmra.mxu0 %v621
        %v737 = vpop.f32.mrf.mxu0
        %v738 = vadd.f32 0.0, %v737
        %739 = vmatmul.f32.gmra.mxu0 %v624
        %v740 = vpop.f32.mrf.mxu0
        %v741 = vadd.f32 0.0, %v740
        %742 = vmatmul.f32.gmra.mxu0 %v627
        %v743 = vpop.f32.mrf.mxu0
        %v744 = vadd.f32 0.0, %v743
        %745 = vmatmul.f32.gmra.mxu0 %v630
        %v746 = vpop.f32.mrf.mxu0
        %v747 = vadd.f32 0.0, %v746
        %748 = vmatmul.f32.gmra.mxu0 %v633
        %v749 = vpop.f32.mrf.mxu0
        %v750 = vadd.f32 0.0, %v749
        %751 = vmatmul.f32.gmra.mxu0 %v636
        %v752 = vpop.f32.mrf.mxu0
        %v753 = vadd.f32 0.0, %v752
        %754 = vmatmul.f32.gmra.mxu0 %v639
        %v755 = vpop.f32.mrf.mxu0
        %v756 = vadd.f32 0.0, %v755
        %757 = vmatmul.f32.gmra.mxu0 %v642
        %v758 = vpop.f32.mrf.mxu0
        %v759 = vadd.f32 0.0, %v758
        %760 = vmatmul.f32.gmra.mxu0 %v645
        %v761 = vpop.f32.mrf.mxu0
        %v762 = vadd.f32 0.0, %v761
        %763 = vmatmul.f32.gmra.mxu0 %v648
        %v764 = vpop.f32.mrf.mxu0
        %v765 = vadd.f32 0.0, %v764
        %766 = vmatmul.f32.gmra.mxu0 %v651
        %v767 = vpop.f32.mrf.mxu0
        %v768 = vadd.f32 0.0, %v767
        %769 = vmatmul.f32.gmra.mxu0 %v654
        %v770 = vpop.f32.mrf.mxu0
        %v771 = vadd.f32 0.0, %v770
        %772 = vmatmul.f32.gmra.mxu0 %v657
        %v773 = vpop.f32.mrf.mxu0
        %v774 = vadd.f32 0.0, %v773
        %775 = vmatmul.f32.gmra.mxu0 %v660
        %v776 = vpop.f32.mrf.mxu0
        %v777 = vadd.f32 0.0, %v776
        %778 = vmatmul.f32.gmra.mxu0 %v663
        %v779 = vpop.f32.mrf.mxu0
        %v780 = vadd.f32 0.0, %v779
        %781 = vmatmul.f32.gmra.mxu0 %v666
        %v782 = vpop.f32.mrf.mxu0
        %v783 = vadd.f32 0.0, %v782
        %784 = vmatmul.f32.gmra.mxu0 %v669
        %v785 = vpop.f32.mrf.mxu0
        %v786 = vadd.f32 0.0, %v785
        %787 = vmatmul.f32.gmra.mxu0 %v672
        %v788 = vpop.f32.mrf.mxu0
        %v789 = vadd.f32 0.0, %v788
        %790 = vmatmul.f32.gmra.mxu0 %v675
        %v791 = vpop.f32.mrf.mxu0
        %v792 = vadd.f32 0.0, %v791
        %793 = vmatmul.f32.gmra.mxu0 %v678
        %v794 = vpop.f32.mrf.mxu0
        %v795 = vadd.f32 0.0, %v794
        %796 = vmatmul.f32.gmra.mxu0 %v681
        %v797 = vpop.f32.mrf.mxu0
        %v798 = vadd.f32 0.0, %v797
        %799 = vmatmul.f32.gmra.mxu0 %v684
        %v800 = vpop.f32.mrf.mxu0
        %v801 = vadd.f32 0.0, %v800
        %802 = vmatmul.f32.gmra.mxu0 %v687
        %v803 = vpop.f32.mrf.mxu0
        %v804 = vadd.f32 0.0, %v803
        %805 = vmatmul.f32.gmra.mxu0 %v690
        %v806 = vpop.f32.mrf.mxu0
        %v807 = vadd.f32 0.0, %v806
        %808 = vmatmul.f32.gmra.mxu0 %v693
        %v809 = vpop.f32.mrf.mxu0
        %v810 = vadd.f32 0.0, %v809
        %811 = vdwg.mxu0
        %v813 = vsel %vm598, %v531, 0
        %v816 = vsel %vm598, %v532, 0
        %v819 = vsel %vm598, %v533, 0
        %v822 = vsel %vm598, %v534, 0
        %v825 = vsel %vm598, %v535, 0
        %v828 = vsel %vm598, %v536, 0
        %v831 = vsel %vm598, %v537, 0
        %v834 = vsel %vm598, %v538, 0
        %v837 = vsel %vm598, %v539, 0
        %v840 = vsel %vm598, %v540, 0
        %v843 = vsel %vm598, %v541, 0
        %v846 = vsel %vm598, %v542, 0
        %v849 = vsel %vm598, %v543, 0
        %v852 = vsel %vm598, %v544, 0
        %v855 = vsel %vm598, %v545, 0
        %v858 = vsel %vm598, %v546, 0
        %v861 = vsel %vm598, %v547, 0
        %v864 = vsel %vm598, %v548, 0
        %v867 = vsel %vm598, %v549, 0
        %v870 = vsel %vm598, %v550, 0
        %v873 = vsel %vm598, %v551, 0
        %v876 = vsel %vm598, %v552, 0
        %v879 = vsel %vm598, %v553, 0
        %v882 = vsel %vm598, %v554, 0
        %v885 = vsel %vm598, %v555, 0
        %v888 = vsel %vm598, %v556, 0
        %v891 = vsel %vm598, %v557, 0
        %v894 = vsel %vm598, %v558, 0
        %v897 = vsel %vm598, %v559, 0
        %v900 = vsel %vm598, %v560, 0
        %v903 = vsel %vm598, %v561, 0
        %v906 = vsel %vm598, %v562, 0
        %v909 = vsel %vm695, %v563, 0
        %911 = vmatpush.msra.mxu0 0.0
        %912 = vmatpush.msra.mxu0 0.0
        %913 = vmatpush.msra.mxu0 0.0
        %914 = vmatpush.msra.mxu0 0.0
        %915 = vmatpush.msra.mxu0 0.0
        %916 = vmatpush.msra.mxu0 0.0
        %917 = vmatpush.msra.mxu0 0.0
        %918 = vmatpush.msra.mxu0 0.0
        %919 = vmatpush.msra.mxu0 0.0
        %920 = vmatpush.msra.mxu0 0.0
        %921 = vmatpush.msra.mxu0 0.0
        %922 = vmatpush.msra.mxu0 0.0
        %923 = vmatpush.msra.mxu0 0.0
        %924 = vmatpush.msra.mxu0 0.0
        %925 = vmatpush.msra.mxu0 0.0
        %926 = vmatpush.msra.mxu0 %v909
        %927 = vmatmul.f32.gmra.mxu0 %v813
        %v928 = vpop.f32.mrf.mxu0
        %v929 = vadd.f32 %v717, %v928
        %930 = vmatmul.f32.gmra.mxu0 %v816
        %v931 = vpop.f32.mrf.mxu0
        %v932 = vadd.f32 %v720, %v931
        %933 = vmatmul.f32.gmra.mxu0 %v819
        %v934 = vpop.f32.mrf.mxu0
        %v935 = vadd.f32 %v723, %v934
        %936 = vmatmul.f32.gmra.mxu0 %v822
        %v937 = vpop.f32.mrf.mxu0
        %v938 = vadd.f32 %v726, %v937
        %939 = vmatmul.f32.gmra.mxu0 %v825
        %v940 = vpop.f32.mrf.mxu0
        %v941 = vadd.f32 %v729, %v940
        %942 = vmatmul.f32.gmra.mxu0 %v828
        %v943 = vpop.f32.mrf.mxu0
        %v944 = vadd.f32 %v732, %v943
        %945 = vmatmul.f32.gmra.mxu0 %v831
        %v946 = vpop.f32.mrf.mxu0
        %v947 = vadd.f32 %v735, %v946
        %948 = vmatmul.f32.gmra.mxu0 %v834
        %v949 = vpop.f32.mrf.mxu0
        %v950 = vadd.f32 %v738, %v949
        %951 = vmatmul.f32.gmra.mxu0 %v837
        %v952 = vpop.f32.mrf.mxu0
        %v953 = vadd.f32 %v741, %v952
        %954 = vmatmul.f32.gmra.mxu0 %v840
        %v955 = vpop.f32.mrf.mxu0
        %v956 = vadd.f32 %v744, %v955
        %957 = vmatmul.f32.gmra.mxu0 %v843
        %v958 = vpop.f32.mrf.mxu0
        %v959 = vadd.f32 %v747, %v958
        %960 = vmatmul.f32.gmra.mxu0 %v846
        %v961 = vpop.f32.mrf.mxu0
        %v962 = vadd.f32 %v750, %v961
        %963 = vmatmul.f32.gmra.mxu0 %v849
        %v964 = vpop.f32.mrf.mxu0
        %v965 = vadd.f32 %v753, %v964
        %966 = vmatmul.f32.gmra.mxu0 %v852
        %v967 = vpop.f32.mrf.mxu0
        %v968 = vadd.f32 %v756, %v967
        %969 = vmatmul.f32.gmra.mxu0 %v855
        %v970 = vpop.f32.mrf.mxu0
        %v971 = vadd.f32 %v759, %v970
        %972 = vmatmul.f32.gmra.mxu0 %v858
        %v973 = vpop.f32.mrf.mxu0
        %v974 = vadd.f32 %v762, %v973
        %975 = vmatmul.f32.gmra.mxu0 %v861
        %v976 = vpop.f32.mrf.mxu0
        %v977 = vadd.f32 %v765, %v976
        %978 = vmatmul.f32.gmra.mxu0 %v864
        %v979 = vpop.f32.mrf.mxu0
        %v980 = vadd.f32 %v768, %v979
        %981 = vmatmul.f32.gmra.mxu0 %v867
        %v982 = vpop.f32.mrf.mxu0
        %v983 = vadd.f32 %v771, %v982
        %984 = vmatmul.f32.gmra.mxu0 %v870
        %v985 = vpop.f32.mrf.mxu0
        %v986 = vadd.f32 %v774, %v985
        %987 = vmatmul.f32.gmra.mxu0 %v873
        %v988 = vpop.f32.mrf.mxu0
        %v989 = vadd.f32 %v777, %v988
        %990 = vmatmul.f32.gmra.mxu0 %v876
        %v991 = vpop.f32.mrf.mxu0
        %v992 = vadd.f32 %v780, %v991
        %993 = vmatmul.f32.gmra.mxu0 %v879
        %v994 = vpop.f32.mrf.mxu0
        %v995 = vadd.f32 %v783, %v994
        %996 = vmatmul.f32.gmra.mxu0 %v882
        %v997 = vpop.f32.mrf.mxu0
        %v998 = vadd.f32 %v786, %v997
        %999 = vmatmul.f32.gmra.mxu0 %v885
        %v1000 = vpop.f32.mrf.mxu0
        %v1001 = vadd.f32 %v789, %v1000
        %1002 = vmatmul.f32.gmra.mxu0 %v888
        %v1003 = vpop.f32.mrf.mxu0
        %v1004 = vadd.f32 %v792, %v1003
        %1005 = vmatmul.f32.gmra.mxu0 %v891
        %v1006 = vpop.f32.mrf.mxu0
        %v1007 = vadd.f32 %v795, %v1006
        %1008 = vmatmul.f32.gmra.mxu0 %v894
        %v1009 = vpop.f32.mrf.mxu0
        %v1010 = vadd.f32 %v798, %v1009
        %1011 = vmatmul.f32.gmra.mxu0 %v897
        %v1012 = vpop.f32.mrf.mxu0
        %v1013 = vadd.f32 %v801, %v1012
        %1014 = vmatmul.f32.gmra.mxu0 %v900
        %v1015 = vpop.f32.mrf.mxu0
        %v1016 = vadd.f32 %v804, %v1015
        %1017 = vmatmul.f32.gmra.mxu0 %v903
        %v1018 = vpop.f32.mrf.mxu0
        %v1019 = vadd.f32 %v807, %v1018
        %1020 = vmatmul.f32.gmra.mxu0 %v906
        %v1021 = vpop.f32.mrf.mxu0
        %v1022 = vadd.f32 %v810, %v1021
        %1023 = vdwg.mxu0
        %v1024 = vld [vmem:[%s464 + $0x2] sm:$0xff]
        %v1025 = vld [vmem:[%s464 + $0xa] sm:$0xff]
        %v1026 = vld [vmem:[%s464 + $0x1a] sm:$0xff]
        %v1027 = vld [vmem:[%s464 + $0x22] sm:$0xff]
        %v1028 = vld [vmem:[%s464 + $0x32] sm:$0xff]
        %v1029 = vld [vmem:[%s464 + $0x3a] sm:$0xff]
        %v1030 = vld [vmem:[%s464 + $0x4a] sm:$0xff]
        %v1031 = vld [vmem:[%s464 + $0x52] sm:$0xff]
        %v1032 = vld [vmem:[%s464 + $0x62] sm:$0xff]
        %v1033 = vld [vmem:[%s464 + $0x6a] sm:$0xff]
        %v1034 = vld [vmem:[%s464 + $0x7a] sm:$0xff]
        %v1035 = vld [vmem:[%s464 + $0x82] sm:$0xff]
        %v1036 = vld [vmem:[%s464 + $0x92] sm:$0xff]
        %v1037 = vld [vmem:[%s464 + $0x9a] sm:$0xff]
        %v1038 = vld [vmem:[%s464 + $0xaa] sm:$0xff]
        %v1039 = vld [vmem:[%s464 + $0xb2] sm:$0xff]
        %v1040 = vld [vmem:[%s464 + $0xc2] sm:$0xff]
        %v1041 = vld [vmem:[%s464 + $0xca] sm:$0xff]
        %v1042 = vld [vmem:[%s464 + $0xda] sm:$0xff]
        %v1043 = vld [vmem:[%s464 + $0xe2] sm:$0xff]
        %v1044 = vld [vmem:[%s464 + $0xf2] sm:$0xff]
        %v1045 = vld [vmem:[%s464 + $0xfa] sm:$0xff]
        %v1046 = vld [vmem:[%s464 + $0x10a] sm:$0xff]
        %v1047 = vld [vmem:[%s464 + $0x112] sm:$0xff]
        %v1048 = vld [vmem:[%s464 + $0x122] sm:$0xff]
        %v1049 = vld [vmem:[%s464 + $0x12a] sm:$0xff]
        %v1050 = vld [vmem:[%s464 + $0x13a] sm:$0xff]
        %v1051 = vld [vmem:[%s464 + $0x142] sm:$0xff]
        %v1052 = vld [vmem:[%s464 + $0x152] sm:$0xff]
        %v1053 = vld [vmem:[%s464 + $0x15a] sm:$0xff]
        %v1054 = vld [vmem:[%s464 + $0x16a] sm:$0xff]
        %v1055 = vld [vmem:[%s464 + $0x172] sm:$0xff]
        %s1056 = scalar_lea.vmem %s1, 8
        %v1057 = vld [vmem:[%s1056] sm:$0xf]
        %v1059 = vsel %vm598, %v1024, 0
        %v1062 = vsel %vm598, %v1025, 0
        %v1065 = vsel %vm598, %v1026, 0
        %v1068 = vsel %vm598, %v1027, 0
        %v1071 = vsel %vm598, %v1028, 0
        %v1074 = vsel %vm598, %v1029, 0
        %v1077 = vsel %vm598, %v1030, 0
        %v1080 = vsel %vm598, %v1031, 0
        %v1083 = vsel %vm598, %v1032, 0
        %v1086 = vsel %vm598, %v1033, 0
        %v1089 = vsel %vm598, %v1034, 0
        %v1092 = vsel %vm598, %v1035, 0
        %v1095 = vsel %vm598, %v1036, 0
        %v1098 = vsel %vm598, %v1037, 0
        %v1101 = vsel %vm598, %v1038, 0
        %v1104 = vsel %vm598, %v1039, 0
        %v1107 = vsel %vm598, %v1040, 0
        %v1110 = vsel %vm598, %v1041, 0
        %v1113 = vsel %vm598, %v1042, 0
        %v1116 = vsel %vm598, %v1043, 0
        %v1119 = vsel %vm598, %v1044, 0
        %v1122 = vsel %vm598, %v1045, 0
        %v1125 = vsel %vm598, %v1046, 0
        %v1128 = vsel %vm598, %v1047, 0
        %v1131 = vsel %vm598, %v1048, 0
        %v1134 = vsel %vm598, %v1049, 0
        %v1137 = vsel %vm598, %v1050, 0
        %v1140 = vsel %vm598, %v1051, 0
        %v1143 = vsel %vm598, %v1052, 0
        %v1146 = vsel %vm598, %v1053, 0
        %v1149 = vsel %vm598, %v1054, 0
        %v1152 = vsel %vm598, %v1055, 0
        %v1155 = vsel %vm695, %v1057, 0
        %1157 = vmatpush.msra.mxu0 0.0
        %1158 = vmatpush.msra.mxu0 0.0
        %1159 = vmatpush.msra.mxu0 0.0
        %1160 = vmatpush.msra.mxu0 0.0
        %1161 = vmatpush.msra.mxu0 0.0
        %1162 = vmatpush.msra.mxu0 0.0
        %1163 = vmatpush.msra.mxu0 0.0
        %1164 = vmatpush.msra.mxu0 0.0
        %1165 = vmatpush.msra.mxu0 0.0
        %1166 = vmatpush.msra.mxu0 0.0
        %1167 = vmatpush.msra.mxu0 0.0
        %1168 = vmatpush.msra.mxu0 0.0
        %1169 = vmatpush.msra.mxu0 0.0
        %1170 = vmatpush.msra.mxu0 0.0
        %1171 = vmatpush.msra.mxu0 0.0
        %1172 = vmatpush.msra.mxu0 %v1155
        %1173 = vmatmul.f32.gmra.mxu0 %v1059
        %v1174 = vpop.f32.mrf.mxu0
        %v1175 = vadd.f32 0.0, %v1174
        %1176 = vmatmul.f32.gmra.mxu0 %v1062
        %v1177 = vpop.f32.mrf.mxu0
        %v1178 = vadd.f32 0.0, %v1177
        %1179 = vmatmul.f32.gmra.mxu0 %v1065
        %v1180 = vpop.f32.mrf.mxu0
        %v1181 = vadd.f32 0.0, %v1180
        %1182 = vmatmul.f32.gmra.mxu0 %v1068
        %v1183 = vpop.f32.mrf.mxu0
        %v1184 = vadd.f32 0.0, %v1183
        %1185 = vmatmul.f32.gmra.mxu0 %v1071
        %v1186 = vpop.f32.mrf.mxu0
        %v1187 = vadd.f32 0.0, %v1186
        %1188 = vmatmul.f32.gmra.mxu0 %v1074
        %v1189 = vpop.f32.mrf.mxu0
        %v1190 = vadd.f32 0.0, %v1189
        %1191 = vmatmul.f32.gmra.mxu0 %v1077
        %v1192 = vpop.f32.mrf.mxu0
        %v1193 = vadd.f32 0.0, %v1192
        %1194 = vmatmul.f32.gmra.mxu0 %v1080
        %v1195 = vpop.f32.mrf.mxu0
        %v1196 = vadd.f32 0.0, %v1195
        %1197 = vmatmul.f32.gmra.mxu0 %v1083
        %v1198 = vpop.f32.mrf.mxu0
        %v1199 = vadd.f32 0.0, %v1198
        %1200 = vmatmul.f32.gmra.mxu0 %v1086
        %v1201 = vpop.f32.mrf.mxu0
        %v1202 = vadd.f32 0.0, %v1201
        %1203 = vmatmul.f32.gmra.mxu0 %v1089
        %v1204 = vpop.f32.mrf.mxu0
        %v1205 = vadd.f32 0.0, %v1204
        %1206 = vmatmul.f32.gmra.mxu0 %v1092
        %v1207 = vpop.f32.mrf.mxu0
        %v1208 = vadd.f32 0.0, %v1207
        %1209 = vmatmul.f32.gmra.mxu0 %v1095
        %v1210 = vpop.f32.mrf.mxu0
        %v1211 = vadd.f32 0.0, %v1210
        %1212 = vmatmul.f32.gmra.mxu0 %v1098
        %v1213 = vpop.f32.mrf.mxu0
        %v1214 = vadd.f32 0.0, %v1213
        %1215 = vmatmul.f32.gmra.mxu0 %v1101
        %v1216 = vpop.f32.mrf.mxu0
        %v1217 = vadd.f32 0.0, %v1216
        %1218 = vmatmul.f32.gmra.mxu0 %v1104
        %v1219 = vpop.f32.mrf.mxu0
        %v1220 = vadd.f32 0.0, %v1219
        %1221 = vmatmul.f32.gmra.mxu0 %v1107
        %v1222 = vpop.f32.mrf.mxu0
        %v1223 = vadd.f32 0.0, %v1222
        %1224 = vmatmul.f32.gmra.mxu0 %v1110
        %v1225 = vpop.f32.mrf.mxu0
        %v1226 = vadd.f32 0.0, %v1225
        %1227 = vmatmul.f32.gmra.mxu0 %v1113
        %v1228 = vpop.f32.mrf.mxu0
        %v1229 = vadd.f32 0.0, %v1228
        %1230 = vmatmul.f32.gmra.mxu0 %v1116
        %v1231 = vpop.f32.mrf.mxu0
        %v1232 = vadd.f32 0.0, %v1231
        %1233 = vmatmul.f32.gmra.mxu0 %v1119
        %v1234 = vpop.f32.mrf.mxu0
        %v1235 = vadd.f32 0.0, %v1234
        %1236 = vmatmul.f32.gmra.mxu0 %v1122
        %v1237 = vpop.f32.mrf.mxu0
        %v1238 = vadd.f32 0.0, %v1237
        %1239 = vmatmul.f32.gmra.mxu0 %v1125
        %v1240 = vpop.f32.mrf.mxu0
        %v1241 = vadd.f32 0.0, %v1240
        %1242 = vmatmul.f32.gmra.mxu0 %v1128
        %v1243 = vpop.f32.mrf.mxu0
        %v1244 = vadd.f32 0.0, %v1243
        %1245 = vmatmul.f32.gmra.mxu0 %v1131
        %v1246 = vpop.f32.mrf.mxu0
        %v1247 = vadd.f32 0.0, %v1246
        %1248 = vmatmul.f32.gmra.mxu0 %v1134
        %v1249 = vpop.f32.mrf.mxu0
        %v1250 = vadd.f32 0.0, %v1249
        %1251 = vmatmul.f32.gmra.mxu0 %v1137
        %v1252 = vpop.f32.mrf.mxu0
        %v1253 = vadd.f32 0.0, %v1252
        %1254 = vmatmul.f32.gmra.mxu0 %v1140
        %v1255 = vpop.f32.mrf.mxu0
        %v1256 = vadd.f32 0.0, %v1255
        %1257 = vmatmul.f32.gmra.mxu0 %v1143
        %v1258 = vpop.f32.mrf.mxu0
        %v1259 = vadd.f32 0.0, %v1258
        %1260 = vmatmul.f32.gmra.mxu0 %v1146
        %v1261 = vpop.f32.mrf.mxu0
        %v1262 = vadd.f32 0.0, %v1261
        %1263 = vmatmul.f32.gmra.mxu0 %v1149
        %v1264 = vpop.f32.mrf.mxu0
        %v1265 = vadd.f32 0.0, %v1264
        %1266 = vmatmul.f32.gmra.mxu0 %v1152
        %v1267 = vpop.f32.mrf.mxu0
        %v1268 = vadd.f32 0.0, %v1267
        %1269 = vdwg.mxu0
        %v1270 = vadd.f32 %v929, %v1175
        %v1271 = vadd.f32 %v932, %v1178
        %v1272 = vadd.f32 %v935, %v1181
        %v1273 = vadd.f32 %v938, %v1184
        %v1274 = vadd.f32 %v941, %v1187
        %v1275 = vadd.f32 %v944, %v1190
        %v1276 = vadd.f32 %v947, %v1193
        %v1277 = vadd.f32 %v950, %v1196
        %v1278 = vadd.f32 %v953, %v1199
        %v1279 = vadd.f32 %v956, %v1202
        %v1280 = vadd.f32 %v959, %v1205
        %v1281 = vadd.f32 %v962, %v1208
        %v1282 = vadd.f32 %v965, %v1211
        %v1283 = vadd.f32 %v968, %v1214
        %v1284 = vadd.f32 %v971, %v1217
        %v1285 = vadd.f32 %v974, %v1220
        %v1286 = vadd.f32 %v977, %v1223
        %v1287 = vadd.f32 %v980, %v1226
        %v1288 = vadd.f32 %v983, %v1229
        %v1289 = vadd.f32 %v986, %v1232
        %v1290 = vadd.f32 %v989, %v1235
        %v1291 = vadd.f32 %v992, %v1238
        %v1292 = vadd.f32 %v995, %v1241
        %v1293 = vadd.f32 %v998, %v1244
        %v1294 = vadd.f32 %v1001, %v1247
        %v1295 = vadd.f32 %v1004, %v1250
        %v1296 = vadd.f32 %v1007, %v1253
        %v1297 = vadd.f32 %v1010, %v1256
        %v1298 = vadd.f32 %v1013, %v1259
        %v1299 = vadd.f32 %v1016, %v1262
        %v1300 = vadd.f32 %v1019, %v1265
        %v1301 = vadd.f32 %v1022, %v1268
        %s1302 = scalar_lea.vmem %s464, 24
        %v1303 = vld [vmem:[%s1302] sm:$0xff]
        %v1304 = vld [vmem:[%s1302 + $0x8] sm:$0xff]
        %v1305 = vld [vmem:[%s1302 + $0x18] sm:$0xff]
        %v1306 = vld [vmem:[%s1302 + $0x20] sm:$0xff]
        %v1307 = vld [vmem:[%s1302 + $0x30] sm:$0xff]
        %v1308 = vld [vmem:[%s1302 + $0x38] sm:$0xff]
        %v1309 = vld [vmem:[%s1302 + $0x48] sm:$0xff]
        %v1310 = vld [vmem:[%s1302 + $0x50] sm:$0xff]
        %v1311 = vld [vmem:[%s1302 + $0x60] sm:$0xff]
        %v1312 = vld [vmem:[%s1302 + $0x68] sm:$0xff]
        %v1313 = vld [vmem:[%s1302 + $0x78] sm:$0xff]
        %v1314 = vld [vmem:[%s1302 + $0x80] sm:$0xff]
        %v1315 = vld [vmem:[%s1302 + $0x90] sm:$0xff]
        %v1316 = vld [vmem:[%s1302 + $0x98] sm:$0xff]
        %v1317 = vld [vmem:[%s1302 + $0xa8] sm:$0xff]
        %v1318 = vld [vmem:[%s1302 + $0xb0] sm:$0xff]
        %v1319 = vld [vmem:[%s1302 + $0xc0] sm:$0xff]
        %v1320 = vld [vmem:[%s1302 + $0xc8] sm:$0xff]
        %v1321 = vld [vmem:[%s1302 + $0xd8] sm:$0xff]
        %v1322 = vld [vmem:[%s1302 + $0xe0] sm:$0xff]
        %v1323 = vld [vmem:[%s1302 + $0xf0] sm:$0xff]
        %v1324 = vld [vmem:[%s1302 + $0xf8] sm:$0xff]
        %v1325 = vld [vmem:[%s1302 + $0x108] sm:$0xff]
        %v1326 = vld [vmem:[%s1302 + $0x110] sm:$0xff]
        %v1327 = vld [vmem:[%s1302 + $0x120] sm:$0xff]
        %v1328 = vld [vmem:[%s1302 + $0x128] sm:$0xff]
        %v1329 = vld [vmem:[%s1302 + $0x138] sm:$0xff]
        %v1330 = vld [vmem:[%s1302 + $0x140] sm:$0xff]
        %v1331 = vld [vmem:[%s1302 + $0x150] sm:$0xff]
        %v1332 = vld [vmem:[%s1302 + $0x158] sm:$0xff]
        %v1333 = vld [vmem:[%s1302 + $0x168] sm:$0xff]
        %v1334 = vld [vmem:[%s1302 + $0x170] sm:$0xff]
        %s1335 = scalar_lea.vmem %s1, 12
        %v1336 = vld [vmem:[%s1335] sm:$0xf]
        %v1338 = vsel %vm598, %v1303, 0
        %v1341 = vsel %vm598, %v1304, 0
        %v1344 = vsel %vm598, %v1305, 0
        %v1347 = vsel %vm598, %v1306, 0
        %v1350 = vsel %vm598, %v1307, 0
        %v1353 = vsel %vm598, %v1308, 0
        %v1356 = vsel %vm598, %v1309, 0
        %v1359 = vsel %vm598, %v1310, 0
        %v1362 = vsel %vm598, %v1311, 0
        %v1365 = vsel %vm598, %v1312, 0
        %v1368 = vsel %vm598, %v1313, 0
        %v1371 = vsel %vm598, %v1314, 0
        %v1374 = vsel %vm598, %v1315, 0
        %v1377 = vsel %vm598, %v1316, 0
        %v1380 = vsel %vm598, %v1317, 0
        %v1383 = vsel %vm598, %v1318, 0
        %v1386 = vsel %vm598, %v1319, 0
        %v1389 = vsel %vm598, %v1320, 0
        %v1392 = vsel %vm598, %v1321, 0
        %v1395 = vsel %vm598, %v1322, 0
        %v1398 = vsel %vm598, %v1323, 0
        %v1401 = vsel %vm598, %v1324, 0
        %v1404 = vsel %vm598, %v1325, 0
        %v1407 = vsel %vm598, %v1326, 0
        %v1410 = vsel %vm598, %v1327, 0
        %v1413 = vsel %vm598, %v1328, 0
        %v1416 = vsel %vm598, %v1329, 0
        %v1419 = vsel %vm598, %v1330, 0
        %v1422 = vsel %vm598, %v1331, 0
        %v1425 = vsel %vm598, %v1332, 0
        %v1428 = vsel %vm598, %v1333, 0
        %v1431 = vsel %vm598, %v1334, 0
        %v1434 = vsel %vm695, %v1336, 0
        %1436 = vmatpush.msra.mxu0 0.0
        %1437 = vmatpush.msra.mxu0 0.0
        %1438 = vmatpush.msra.mxu0 0.0
        %1439 = vmatpush.msra.mxu0 0.0
        %1440 = vmatpush.msra.mxu0 0.0
        %1441 = vmatpush.msra.mxu0 0.0
        %1442 = vmatpush.msra.mxu0 0.0
        %1443 = vmatpush.msra.mxu0 0.0
        %1444 = vmatpush.msra.mxu0 0.0
        %1445 = vmatpush.msra.mxu0 0.0
        %1446 = vmatpush.msra.mxu0 0.0
        %1447 = vmatpush.msra.mxu0 0.0
        %1448 = vmatpush.msra.mxu0 0.0
        %1449 = vmatpush.msra.mxu0 0.0
        %1450 = vmatpush.msra.mxu0 0.0
        %1451 = vmatpush.msra.mxu0 %v1434
        %1452 = vmatmul.f32.gmra.mxu0 %v1338
        %v1453 = vpop.f32.mrf.mxu0
        %v1454 = vadd.f32 0.0, %v1453
        %1455 = vmatmul.f32.gmra.mxu0 %v1341
        %v1456 = vpop.f32.mrf.mxu0
        %v1457 = vadd.f32 0.0, %v1456
        %1458 = vmatmul.f32.gmra.mxu0 %v1344
        %v1459 = vpop.f32.mrf.mxu0
        %v1460 = vadd.f32 0.0, %v1459
        %1461 = vmatmul.f32.gmra.mxu0 %v1347
        %v1462 = vpop.f32.mrf.mxu0
        %v1463 = vadd.f32 0.0, %v1462
        %1464 = vmatmul.f32.gmra.mxu0 %v1350
        %v1465 = vpop.f32.mrf.mxu0
        %v1466 = vadd.f32 0.0, %v1465
        %1467 = vmatmul.f32.gmra.mxu0 %v1353
        %v1468 = vpop.f32.mrf.mxu0
        %v1469 = vadd.f32 0.0, %v1468
        %1470 = vmatmul.f32.gmra.mxu0 %v1356
        %v1471 = vpop.f32.mrf.mxu0
        %v1472 = vadd.f32 0.0, %v1471
        %1473 = vmatmul.f32.gmra.mxu0 %v1359
        %v1474 = vpop.f32.mrf.mxu0
        %v1475 = vadd.f32 0.0, %v1474
        %1476 = vmatmul.f32.gmra.mxu0 %v1362
        %v1477 = vpop.f32.mrf.mxu0
        %v1478 = vadd.f32 0.0, %v1477
        %1479 = vmatmul.f32.gmra.mxu0 %v1365
        %v1480 = vpop.f32.mrf.mxu0
        %v1481 = vadd.f32 0.0, %v1480
        %1482 = vmatmul.f32.gmra.mxu0 %v1368
        %v1483 = vpop.f32.mrf.mxu0
        %v1484 = vadd.f32 0.0, %v1483
        %1485 = vmatmul.f32.gmra.mxu0 %v1371
        %v1486 = vpop.f32.mrf.mxu0
        %v1487 = vadd.f32 0.0, %v1486
        %1488 = vmatmul.f32.gmra.mxu0 %v1374
        %v1489 = vpop.f32.mrf.mxu0
        %v1490 = vadd.f32 0.0, %v1489
        %1491 = vmatmul.f32.gmra.mxu0 %v1377
        %v1492 = vpop.f32.mrf.mxu0
        %v1493 = vadd.f32 0.0, %v1492
        %1494 = vmatmul.f32.gmra.mxu0 %v1380
        %v1495 = vpop.f32.mrf.mxu0
        %v1496 = vadd.f32 0.0, %v1495
        %1497 = vmatmul.f32.gmra.mxu0 %v1383
        %v1498 = vpop.f32.mrf.mxu0
        %v1499 = vadd.f32 0.0, %v1498
        %1500 = vmatmul.f32.gmra.mxu0 %v1386
        %v1501 = vpop.f32.mrf.mxu0
        %v1502 = vadd.f32 0.0, %v1501
        %1503 = vmatmul.f32.gmra.mxu0 %v1389
        %v1504 = vpop.f32.mrf.mxu0
        %v1505 = vadd.f32 0.0, %v1504
        %1506 = vmatmul.f32.gmra.mxu0 %v1392
        %v1507 = vpop.f32.mrf.mxu0
        %v1508 = vadd.f32 0.0, %v1507
        %1509 = vmatmul.f32.gmra.mxu0 %v1395
        %v1510 = vpop.f32.mrf.mxu0
        %v1511 = vadd.f32 0.0, %v1510
        %1512 = vmatmul.f32.gmra.mxu0 %v1398
        %v1513 = vpop.f32.mrf.mxu0
        %v1514 = vadd.f32 0.0, %v1513
        %1515 = vmatmul.f32.gmra.mxu0 %v1401
        %v1516 = vpop.f32.mrf.mxu0
        %v1517 = vadd.f32 0.0, %v1516
        %1518 = vmatmul.f32.gmra.mxu0 %v1404
        %v1519 = vpop.f32.mrf.mxu0
        %v1520 = vadd.f32 0.0, %v1519
        %1521 = vmatmul.f32.gmra.mxu0 %v1407
        %v1522 = vpop.f32.mrf.mxu0
        %v1523 = vadd.f32 0.0, %v1522
        %1524 = vmatmul.f32.gmra.mxu0 %v1410
        %v1525 = vpop.f32.mrf.mxu0
        %v1526 = vadd.f32 0.0, %v1525
        %1527 = vmatmul.f32.gmra.mxu0 %v1413
        %v1528 = vpop.f32.mrf.mxu0
        %v1529 = vadd.f32 0.0, %v1528
        %1530 = vmatmul.f32.gmra.mxu0 %v1416
        %v1531 = vpop.f32.mrf.mxu0
        %v1532 = vadd.f32 0.0, %v1531
        %1533 = vmatmul.f32.gmra.mxu0 %v1419
        %v1534 = vpop.f32.mrf.mxu0
        %v1535 = vadd.f32 0.0, %v1534
        %1536 = vmatmul.f32.gmra.mxu0 %v1422
        %v1537 = vpop.f32.mrf.mxu0
        %v1538 = vadd.f32 0.0, %v1537
        %1539 = vmatmul.f32.gmra.mxu0 %v1425
        %v1540 = vpop.f32.mrf.mxu0
        %v1541 = vadd.f32 0.0, %v1540
        %1542 = vmatmul.f32.gmra.mxu0 %v1428
        %v1543 = vpop.f32.mrf.mxu0
        %v1544 = vadd.f32 0.0, %v1543
        %1545 = vmatmul.f32.gmra.mxu0 %v1431
        %v1546 = vpop.f32.mrf.mxu0
        %v1547 = vadd.f32 0.0, %v1546
        %1548 = vdwg.mxu0
        %v1549 = vadd.f32 %v1270, %v1454
        %v1550 = vadd.f32 %v1271, %v1457
        %v1551 = vadd.f32 %v1272, %v1460
        %v1552 = vadd.f32 %v1273, %v1463
        %v1553 = vadd.f32 %v1274, %v1466
        %v1554 = vadd.f32 %v1275, %v1469
        %v1555 = vadd.f32 %v1276, %v1472
        %v1556 = vadd.f32 %v1277, %v1475
        %v1557 = vadd.f32 %v1278, %v1478
        %v1558 = vadd.f32 %v1279, %v1481
        %v1559 = vadd.f32 %v1280, %v1484
        %v1560 = vadd.f32 %v1281, %v1487
        %v1561 = vadd.f32 %v1282, %v1490
        %v1562 = vadd.f32 %v1283, %v1493
        %v1563 = vadd.f32 %v1284, %v1496
        %v1564 = vadd.f32 %v1285, %v1499
        %v1565 = vadd.f32 %v1286, %v1502
        %v1566 = vadd.f32 %v1287, %v1505
        %v1567 = vadd.f32 %v1288, %v1508
        %v1568 = vadd.f32 %v1289, %v1511
        %v1569 = vadd.f32 %v1290, %v1514
        %v1570 = vadd.f32 %v1291, %v1517
        %v1571 = vadd.f32 %v1292, %v1520
        %v1572 = vadd.f32 %v1293, %v1523
        %v1573 = vadd.f32 %v1294, %v1526
        %v1574 = vadd.f32 %v1295, %v1529
        %v1575 = vadd.f32 %v1296, %v1532
        %v1576 = vadd.f32 %v1297, %v1535
        %v1577 = vadd.f32 %v1298, %v1538
        %v1578 = vadd.f32 %v1299, %v1541
        %v1579 = vadd.f32 %v1300, %v1544
        %v1580 = vadd.f32 %v1301, %v1547
        %v1581 = vld [vmem:[%s1302 + $0x1] sm:$0xff]
        %v1582 = vld [vmem:[%s1302 + $0x9] sm:$0xff]
        %v1583 = vld [vmem:[%s1302 + $0x19] sm:$0xff]
        %v1584 = vld [vmem:[%s1302 + $0x21] sm:$0xff]
        %v1585 = vld [vmem:[%s1302 + $0x31] sm:$0xff]
        %v1586 = vld [vmem:[%s1302 + $0x39] sm:$0xff]
        %v1587 = vld [vmem:[%s1302 + $0x49] sm:$0xff]
        %v1588 = vld [vmem:[%s1302 + $0x51] sm:$0xff]
        %v1589 = vld [vmem:[%s1302 + $0x61] sm:$0xff]
        %v1590 = vld [vmem:[%s1302 + $0x69] sm:$0xff]
        %v1591 = vld [vmem:[%s1302 + $0x79] sm:$0xff]
        %v1592 = vld [vmem:[%s1302 + $0x81] sm:$0xff]
        %v1593 = vld [vmem:[%s1302 + $0x91] sm:$0xff]
        %v1594 = vld [vmem:[%s1302 + $0x99] sm:$0xff]
        %v1595 = vld [vmem:[%s1302 + $0xa9] sm:$0xff]
        %v1596 = vld [vmem:[%s1302 + $0xb1] sm:$0xff]
        %v1597 = vld [vmem:[%s1302 + $0xc1] sm:$0xff]
        %v1598 = vld [vmem:[%s1302 + $0xc9] sm:$0xff]
        %v1599 = vld [vmem:[%s1302 + $0xd9] sm:$0xff]
        %v1600 = vld [vmem:[%s1302 + $0xe1] sm:$0xff]
        %v1601 = vld [vmem:[%s1302 + $0xf1] sm:$0xff]
        %v1602 = vld [vmem:[%s1302 + $0xf9] sm:$0xff]
        %v1603 = vld [vmem:[%s1302 + $0x109] sm:$0xff]
        %v1604 = vld [vmem:[%s1302 + $0x111] sm:$0xff]
        %v1605 = vld [vmem:[%s1302 + $0x121] sm:$0xff]
        %v1606 = vld [vmem:[%s1302 + $0x129] sm:$0xff]
        %v1607 = vld [vmem:[%s1302 + $0x139] sm:$0xff]
        %v1608 = vld [vmem:[%s1302 + $0x141] sm:$0xff]
        %v1609 = vld [vmem:[%s1302 + $0x151] sm:$0xff]
        %v1610 = vld [vmem:[%s1302 + $0x159] sm:$0xff]
        %v1611 = vld [vmem:[%s1302 + $0x169] sm:$0xff]
        %v1612 = vld [vmem:[%s1302 + $0x171] sm:$0xff]
        %s1613 = scalar_lea.vmem %s1, 16
        %v1614 = vld [vmem:[%s1613] sm:$0xf]
        %v1616 = vsel %vm598, %v1581, 0
        %v1619 = vsel %vm598, %v1582, 0
        %v1622 = vsel %vm598, %v1583, 0
        %v1625 = vsel %vm598, %v1584, 0
        %v1628 = vsel %vm598, %v1585, 0
        %v1631 = vsel %vm598, %v1586, 0
        %v1634 = vsel %vm598, %v1587, 0
        %v1637 = vsel %vm598, %v1588, 0
        %v1640 = vsel %vm598, %v1589, 0
        %v1643 = vsel %vm598, %v1590, 0
        %v1646 = vsel %vm598, %v1591, 0
        %v1649 = vsel %vm598, %v1592, 0
        %v1652 = vsel %vm598, %v1593, 0
        %v1655 = vsel %vm598, %v1594, 0
        %v1658 = vsel %vm598, %v1595, 0
        %v1661 = vsel %vm598, %v1596, 0
        %v1664 = vsel %vm598, %v1597, 0
        %v1667 = vsel %vm598, %v1598, 0
        %v1670 = vsel %vm598, %v1599, 0
        %v1673 = vsel %vm598, %v1600, 0
        %v1676 = vsel %vm598, %v1601, 0
        %v1679 = vsel %vm598, %v1602, 0
        %v1682 = vsel %vm598, %v1603, 0
        %v1685 = vsel %vm598, %v1604, 0
        %v1688 = vsel %vm598, %v1605, 0
        %v1691 = vsel %vm598, %v1606, 0
        %v1694 = vsel %vm598, %v1607, 0
        %v1697 = vsel %vm598, %v1608, 0
        %v1700 = vsel %vm598, %v1609, 0
        %v1703 = vsel %vm598, %v1610, 0
        %v1706 = vsel %vm598, %v1611, 0
        %v1709 = vsel %vm598, %v1612, 0
        %v1712 = vsel %vm695, %v1614, 0
        %1714 = vmatpush.msra.mxu0 0.0
        %1715 = vmatpush.msra.mxu0 0.0
        %1716 = vmatpush.msra.mxu0 0.0
        %1717 = vmatpush.msra.mxu0 0.0
        %1718 = vmatpush.msra.mxu0 0.0
        %1719 = vmatpush.msra.mxu0 0.0
        %1720 = vmatpush.msra.mxu0 0.0
        %1721 = vmatpush.msra.mxu0 0.0
        %1722 = vmatpush.msra.mxu0 0.0
        %1723 = vmatpush.msra.mxu0 0.0
        %1724 = vmatpush.msra.mxu0 0.0
        %1725 = vmatpush.msra.mxu0 0.0
        %1726 = vmatpush.msra.mxu0 0.0
        %1727 = vmatpush.msra.mxu0 0.0
        %1728 = vmatpush.msra.mxu0 0.0
        %1729 = vmatpush.msra.mxu0 %v1712
        %1730 = vmatmul.f32.gmra.mxu0 %v1616
        %v1731 = vpop.f32.mrf.mxu0
        %v1732 = vadd.f32 0.0, %v1731
        %1733 = vmatmul.f32.gmra.mxu0 %v1619
        %v1734 = vpop.f32.mrf.mxu0
        %v1735 = vadd.f32 0.0, %v1734
        %1736 = vmatmul.f32.gmra.mxu0 %v1622
        %v1737 = vpop.f32.mrf.mxu0
        %v1738 = vadd.f32 0.0, %v1737
        %1739 = vmatmul.f32.gmra.mxu0 %v1625
        %v1740 = vpop.f32.mrf.mxu0
        %v1741 = vadd.f32 0.0, %v1740
        %1742 = vmatmul.f32.gmra.mxu0 %v1628
        %v1743 = vpop.f32.mrf.mxu0
        %v1744 = vadd.f32 0.0, %v1743
        %1745 = vmatmul.f32.gmra.mxu0 %v1631
        %v1746 = vpop.f32.mrf.mxu0
        %v1747 = vadd.f32 0.0, %v1746
        %1748 = vmatmul.f32.gmra.mxu0 %v1634
        %v1749 = vpop.f32.mrf.mxu0
        %v1750 = vadd.f32 0.0, %v1749
        %1751 = vmatmul.f32.gmra.mxu0 %v1637
        %v1752 = vpop.f32.mrf.mxu0
        %v1753 = vadd.f32 0.0, %v1752
        %1754 = vmatmul.f32.gmra.mxu0 %v1640
        %v1755 = vpop.f32.mrf.mxu0
        %v1756 = vadd.f32 0.0, %v1755
        %1757 = vmatmul.f32.gmra.mxu0 %v1643
        %v1758 = vpop.f32.mrf.mxu0
        %v1759 = vadd.f32 0.0, %v1758
        %1760 = vmatmul.f32.gmra.mxu0 %v1646
        %v1761 = vpop.f32.mrf.mxu0
        %v1762 = vadd.f32 0.0, %v1761
        %1763 = vmatmul.f32.gmra.mxu0 %v1649
        %v1764 = vpop.f32.mrf.mxu0
        %v1765 = vadd.f32 0.0, %v1764
        %1766 = vmatmul.f32.gmra.mxu0 %v1652
        %v1767 = vpop.f32.mrf.mxu0
        %v1768 = vadd.f32 0.0, %v1767
        %1769 = vmatmul.f32.gmra.mxu0 %v1655
        %v1770 = vpop.f32.mrf.mxu0
        %v1771 = vadd.f32 0.0, %v1770
        %1772 = vmatmul.f32.gmra.mxu0 %v1658
        %v1773 = vpop.f32.mrf.mxu0
        %v1774 = vadd.f32 0.0, %v1773
        %1775 = vmatmul.f32.gmra.mxu0 %v1661
        %v1776 = vpop.f32.mrf.mxu0
        %v1777 = vadd.f32 0.0, %v1776
        %1778 = vmatmul.f32.gmra.mxu0 %v1664
        %v1779 = vpop.f32.mrf.mxu0
        %v1780 = vadd.f32 0.0, %v1779
        %1781 = vmatmul.f32.gmra.mxu0 %v1667
        %v1782 = vpop.f32.mrf.mxu0
        %v1783 = vadd.f32 0.0, %v1782
        %1784 = vmatmul.f32.gmra.mxu0 %v1670
        %v1785 = vpop.f32.mrf.mxu0
        %v1786 = vadd.f32 0.0, %v1785
        %1787 = vmatmul.f32.gmra.mxu0 %v1673
        %v1788 = vpop.f32.mrf.mxu0
        %v1789 = vadd.f32 0.0, %v1788
        %1790 = vmatmul.f32.gmra.mxu0 %v1676
        %v1791 = vpop.f32.mrf.mxu0
        %v1792 = vadd.f32 0.0, %v1791
        %1793 = vmatmul.f32.gmra.mxu0 %v1679
        %v1794 = vpop.f32.mrf.mxu0
        %v1795 = vadd.f32 0.0, %v1794
        %1796 = vmatmul.f32.gmra.mxu0 %v1682
        %v1797 = vpop.f32.mrf.mxu0
        %v1798 = vadd.f32 0.0, %v1797
        %1799 = vmatmul.f32.gmra.mxu0 %v1685
        %v1800 = vpop.f32.mrf.mxu0
        %v1801 = vadd.f32 0.0, %v1800
        %1802 = vmatmul.f32.gmra.mxu0 %v1688
        %v1803 = vpop.f32.mrf.mxu0
        %v1804 = vadd.f32 0.0, %v1803
        %1805 = vmatmul.f32.gmra.mxu0 %v1691
        %v1806 = vpop.f32.mrf.mxu0
        %v1807 = vadd.f32 0.0, %v1806
        %1808 = vmatmul.f32.gmra.mxu0 %v1694
        %v1809 = vpop.f32.mrf.mxu0
        %v1810 = vadd.f32 0.0, %v1809
        %1811 = vmatmul.f32.gmra.mxu0 %v1697
        %v1812 = vpop.f32.mrf.mxu0
        %v1813 = vadd.f32 0.0, %v1812
        %1814 = vmatmul.f32.gmra.mxu0 %v1700
        %v1815 = vpop.f32.mrf.mxu0
        %v1816 = vadd.f32 0.0, %v1815
        %1817 = vmatmul.f32.gmra.mxu0 %v1703
        %v1818 = vpop.f32.mrf.mxu0
        %v1819 = vadd.f32 0.0, %v1818
        %1820 = vmatmul.f32.gmra.mxu0 %v1706
        %v1821 = vpop.f32.mrf.mxu0
        %v1822 = vadd.f32 0.0, %v1821
        %1823 = vmatmul.f32.gmra.mxu0 %v1709
        %v1824 = vpop.f32.mrf.mxu0
        %v1825 = vadd.f32 0.0, %v1824
        %1826 = vdwg.mxu0
        %v1827 = vadd.f32 %v1549, %v1732
        %v1828 = vadd.f32 %v1550, %v1735
        %v1829 = vadd.f32 %v1551, %v1738
        %v1830 = vadd.f32 %v1552, %v1741
        %v1831 = vadd.f32 %v1553, %v1744
        %v1832 = vadd.f32 %v1554, %v1747
        %v1833 = vadd.f32 %v1555, %v1750
        %v1834 = vadd.f32 %v1556, %v1753
        %v1835 = vadd.f32 %v1557, %v1756
        %v1836 = vadd.f32 %v1558, %v1759
        %v1837 = vadd.f32 %v1559, %v1762
        %v1838 = vadd.f32 %v1560, %v1765
        %v1839 = vadd.f32 %v1561, %v1768
        %v1840 = vadd.f32 %v1562, %v1771
        %v1841 = vadd.f32 %v1563, %v1774
        %v1842 = vadd.f32 %v1564, %v1777
        %v1843 = vadd.f32 %v1565, %v1780
        %v1844 = vadd.f32 %v1566, %v1783
        %v1845 = vadd.f32 %v1567, %v1786
        %v1846 = vadd.f32 %v1568, %v1789
        %v1847 = vadd.f32 %v1569, %v1792
        %v1848 = vadd.f32 %v1570, %v1795
        %v1849 = vadd.f32 %v1571, %v1798
        %v1850 = vadd.f32 %v1572, %v1801
        %v1851 = vadd.f32 %v1573, %v1804
        %v1852 = vadd.f32 %v1574, %v1807
        %v1853 = vadd.f32 %v1575, %v1810
        %v1854 = vadd.f32 %v1576, %v1813
        %v1855 = vadd.f32 %v1577, %v1816
        %v1856 = vadd.f32 %v1578, %v1819
        %v1857 = vadd.f32 %v1579, %v1822
        %v1858 = vadd.f32 %v1580, %v1825
        %v1859 = vld [vmem:[%s1302 + $0x2] sm:$0xff]
        %v1860 = vld [vmem:[%s1302 + $0xa] sm:$0xff]
        %v1861 = vld [vmem:[%s1302 + $0x1a] sm:$0xff]
        %v1862 = vld [vmem:[%s1302 + $0x22] sm:$0xff]
        %v1863 = vld [vmem:[%s1302 + $0x32] sm:$0xff]
        %v1864 = vld [vmem:[%s1302 + $0x3a] sm:$0xff]
        %v1865 = vld [vmem:[%s1302 + $0x4a] sm:$0xff]
        %v1866 = vld [vmem:[%s1302 + $0x52] sm:$0xff]
        %v1867 = vld [vmem:[%s1302 + $0x62] sm:$0xff]
        %v1868 = vld [vmem:[%s1302 + $0x6a] sm:$0xff]
        %v1869 = vld [vmem:[%s1302 + $0x7a] sm:$0xff]
        %v1870 = vld [vmem:[%s1302 + $0x82] sm:$0xff]
        %v1871 = vld [vmem:[%s1302 + $0x92] sm:$0xff]
        %v1872 = vld [vmem:[%s1302 + $0x9a] sm:$0xff]
        %v1873 = vld [vmem:[%s1302 + $0xaa] sm:$0xff]
        %v1874 = vld [vmem:[%s1302 + $0xb2] sm:$0xff]
        %v1875 = vld [vmem:[%s1302 + $0xc2] sm:$0xff]
        %v1876 = vld [vmem:[%s1302 + $0xca] sm:$0xff]
        %v1877 = vld [vmem:[%s1302 + $0xda] sm:$0xff]
        %v1878 = vld [vmem:[%s1302 + $0xe2] sm:$0xff]
        %v1879 = vld [vmem:[%s1302 + $0xf2] sm:$0xff]
        %v1880 = vld [vmem:[%s1302 + $0xfa] sm:$0xff]
        %v1881 = vld [vmem:[%s1302 + $0x10a] sm:$0xff]
        %v1882 = vld [vmem:[%s1302 + $0x112] sm:$0xff]
        %v1883 = vld [vmem:[%s1302 + $0x122] sm:$0xff]
        %v1884 = vld [vmem:[%s1302 + $0x12a] sm:$0xff]
        %v1885 = vld [vmem:[%s1302 + $0x13a] sm:$0xff]
        %v1886 = vld [vmem:[%s1302 + $0x142] sm:$0xff]
        %v1887 = vld [vmem:[%s1302 + $0x152] sm:$0xff]
        %v1888 = vld [vmem:[%s1302 + $0x15a] sm:$0xff]
        %v1889 = vld [vmem:[%s1302 + $0x16a] sm:$0xff]
        %v1890 = vld [vmem:[%s1302 + $0x172] sm:$0xff]
        %s1891 = scalar_lea.vmem %s1, 20
        %v1892 = vld [vmem:[%s1891] sm:$0xf]
        %v1894 = vsel %vm598, %v1859, 0
        %v1897 = vsel %vm598, %v1860, 0
        %v1900 = vsel %vm598, %v1861, 0
        %v1903 = vsel %vm598, %v1862, 0
        %v1906 = vsel %vm598, %v1863, 0
        %v1909 = vsel %vm598, %v1864, 0
        %v1912 = vsel %vm598, %v1865, 0
        %v1915 = vsel %vm598, %v1866, 0
        %v1918 = vsel %vm598, %v1867, 0
        %v1921 = vsel %vm598, %v1868, 0
        %v1924 = vsel %vm598, %v1869, 0
        %v1927 = vsel %vm598, %v1870, 0
        %v1930 = vsel %vm598, %v1871, 0
        %v1933 = vsel %vm598, %v1872, 0
        %v1936 = vsel %vm598, %v1873, 0
        %v1939 = vsel %vm598, %v1874, 0
        %v1942 = vsel %vm598, %v1875, 0
        %v1945 = vsel %vm598, %v1876, 0
        %v1948 = vsel %vm598, %v1877, 0
        %v1951 = vsel %vm598, %v1878, 0
        %v1954 = vsel %vm598, %v1879, 0
        %v1957 = vsel %vm598, %v1880, 0
        %v1960 = vsel %vm598, %v1881, 0
        %v1963 = vsel %vm598, %v1882, 0
        %v1966 = vsel %vm598, %v1883, 0
        %v1969 = vsel %vm598, %v1884, 0
        %v1972 = vsel %vm598, %v1885, 0
        %v1975 = vsel %vm598, %v1886, 0
        %v1978 = vsel %vm598, %v1887, 0
        %v1981 = vsel %vm598, %v1888, 0
        %v1984 = vsel %vm598, %v1889, 0
        %v1987 = vsel %vm598, %v1890, 0
        %v1990 = vsel %vm695, %v1892, 0
        %1992 = vmatpush.msra.mxu0 0.0
        %1993 = vmatpush.msra.mxu0 0.0
        %1994 = vmatpush.msra.mxu0 0.0
        %1995 = vmatpush.msra.mxu0 0.0
        %1996 = vmatpush.msra.mxu0 0.0
        %1997 = vmatpush.msra.mxu0 0.0
        %1998 = vmatpush.msra.mxu0 0.0
        %1999 = vmatpush.msra.mxu0 0.0
        %2000 = vmatpush.msra.mxu0 0.0
        %2001 = vmatpush.msra.mxu0 0.0
        %2002 = vmatpush.msra.mxu0 0.0
        %2003 = vmatpush.msra.mxu0 0.0
        %2004 = vmatpush.msra.mxu0 0.0
        %2005 = vmatpush.msra.mxu0 0.0
        %2006 = vmatpush.msra.mxu0 0.0
        %2007 = vmatpush.msra.mxu0 %v1990
        %2008 = vmatmul.f32.gmra.mxu0 %v1894
        %v2009 = vpop.f32.mrf.mxu0
        %v2010 = vadd.f32 0.0, %v2009
        %2011 = vmatmul.f32.gmra.mxu0 %v1897
        %v2012 = vpop.f32.mrf.mxu0
        %v2013 = vadd.f32 0.0, %v2012
        %2014 = vmatmul.f32.gmra.mxu0 %v1900
        %v2015 = vpop.f32.mrf.mxu0
        %v2016 = vadd.f32 0.0, %v2015
        %2017 = vmatmul.f32.gmra.mxu0 %v1903
        %v2018 = vpop.f32.mrf.mxu0
        %v2019 = vadd.f32 0.0, %v2018
        %2020 = vmatmul.f32.gmra.mxu0 %v1906
        %v2021 = vpop.f32.mrf.mxu0
        %v2022 = vadd.f32 0.0, %v2021
        %2023 = vmatmul.f32.gmra.mxu0 %v1909
        %v2024 = vpop.f32.mrf.mxu0
        %v2025 = vadd.f32 0.0, %v2024
        %2026 = vmatmul.f32.gmra.mxu0 %v1912
        %v2027 = vpop.f32.mrf.mxu0
        %v2028 = vadd.f32 0.0, %v2027
        %2029 = vmatmul.f32.gmra.mxu0 %v1915
        %v2030 = vpop.f32.mrf.mxu0
        %v2031 = vadd.f32 0.0, %v2030
        %2032 = vmatmul.f32.gmra.mxu0 %v1918
        %v2033 = vpop.f32.mrf.mxu0
        %v2034 = vadd.f32 0.0, %v2033
        %2035 = vmatmul.f32.gmra.mxu0 %v1921
        %v2036 = vpop.f32.mrf.mxu0
        %v2037 = vadd.f32 0.0, %v2036
        %2038 = vmatmul.f32.gmra.mxu0 %v1924
        %v2039 = vpop.f32.mrf.mxu0
        %v2040 = vadd.f32 0.0, %v2039
        %2041 = vmatmul.f32.gmra.mxu0 %v1927
        %v2042 = vpop.f32.mrf.mxu0
        %v2043 = vadd.f32 0.0, %v2042
        %2044 = vmatmul.f32.gmra.mxu0 %v1930
        %v2045 = vpop.f32.mrf.mxu0
        %v2046 = vadd.f32 0.0, %v2045
        %2047 = vmatmul.f32.gmra.mxu0 %v1933
        %v2048 = vpop.f32.mrf.mxu0
        %v2049 = vadd.f32 0.0, %v2048
        %2050 = vmatmul.f32.gmra.mxu0 %v1936
        %v2051 = vpop.f32.mrf.mxu0
        %v2052 = vadd.f32 0.0, %v2051
        %2053 = vmatmul.f32.gmra.mxu0 %v1939
        %v2054 = vpop.f32.mrf.mxu0
        %v2055 = vadd.f32 0.0, %v2054
        %2056 = vmatmul.f32.gmra.mxu0 %v1942
        %v2057 = vpop.f32.mrf.mxu0
        %v2058 = vadd.f32 0.0, %v2057
        %2059 = vmatmul.f32.gmra.mxu0 %v1945
        %v2060 = vpop.f32.mrf.mxu0
        %v2061 = vadd.f32 0.0, %v2060
        %2062 = vmatmul.f32.gmra.mxu0 %v1948
        %v2063 = vpop.f32.mrf.mxu0
        %v2064 = vadd.f32 0.0, %v2063
        %2065 = vmatmul.f32.gmra.mxu0 %v1951
        %v2066 = vpop.f32.mrf.mxu0
        %v2067 = vadd.f32 0.0, %v2066
        %2068 = vmatmul.f32.gmra.mxu0 %v1954
        %v2069 = vpop.f32.mrf.mxu0
        %v2070 = vadd.f32 0.0, %v2069
        %2071 = vmatmul.f32.gmra.mxu0 %v1957
        %v2072 = vpop.f32.mrf.mxu0
        %v2073 = vadd.f32 0.0, %v2072
        %2074 = vmatmul.f32.gmra.mxu0 %v1960
        %v2075 = vpop.f32.mrf.mxu0
        %v2076 = vadd.f32 0.0, %v2075
        %2077 = vmatmul.f32.gmra.mxu0 %v1963
        %v2078 = vpop.f32.mrf.mxu0
        %v2079 = vadd.f32 0.0, %v2078
        %2080 = vmatmul.f32.gmra.mxu0 %v1966
        %v2081 = vpop.f32.mrf.mxu0
        %v2082 = vadd.f32 0.0, %v2081
        %2083 = vmatmul.f32.gmra.mxu0 %v1969
        %v2084 = vpop.f32.mrf.mxu0
        %v2085 = vadd.f32 0.0, %v2084
        %2086 = vmatmul.f32.gmra.mxu0 %v1972
        %v2087 = vpop.f32.mrf.mxu0
        %v2088 = vadd.f32 0.0, %v2087
        %2089 = vmatmul.f32.gmra.mxu0 %v1975
        %v2090 = vpop.f32.mrf.mxu0
        %v2091 = vadd.f32 0.0, %v2090
        %2092 = vmatmul.f32.gmra.mxu0 %v1978
        %v2093 = vpop.f32.mrf.mxu0
        %v2094 = vadd.f32 0.0, %v2093
        %2095 = vmatmul.f32.gmra.mxu0 %v1981
        %v2096 = vpop.f32.mrf.mxu0
        %v2097 = vadd.f32 0.0, %v2096
        %2098 = vmatmul.f32.gmra.mxu0 %v1984
        %v2099 = vpop.f32.mrf.mxu0
        %v2100 = vadd.f32 0.0, %v2099
        %2101 = vmatmul.f32.gmra.mxu0 %v1987
        %v2102 = vpop.f32.mrf.mxu0
        %v2103 = vadd.f32 0.0, %v2102
        %2104 = vdwg.mxu0
        %v2105 = vadd.f32 %v1827, %v2010
        %v2106 = vadd.f32 %v1828, %v2013
        %v2107 = vadd.f32 %v1829, %v2016
        %v2108 = vadd.f32 %v1830, %v2019
        %v2109 = vadd.f32 %v1831, %v2022
        %v2110 = vadd.f32 %v1832, %v2025
        %v2111 = vadd.f32 %v1833, %v2028
        %v2112 = vadd.f32 %v1834, %v2031
        %v2113 = vadd.f32 %v1835, %v2034
        %v2114 = vadd.f32 %v1836, %v2037
        %v2115 = vadd.f32 %v1837, %v2040
        %v2116 = vadd.f32 %v1838, %v2043
        %v2117 = vadd.f32 %v1839, %v2046
        %v2118 = vadd.f32 %v1840, %v2049
        %v2119 = vadd.f32 %v1841, %v2052
        %v2120 = vadd.f32 %v1842, %v2055
        %v2121 = vadd.f32 %v1843, %v2058
        %v2122 = vadd.f32 %v1844, %v2061
        %v2123 = vadd.f32 %v1845, %v2064
        %v2124 = vadd.f32 %v1846, %v2067
        %v2125 = vadd.f32 %v1847, %v2070
        %v2126 = vadd.f32 %v1848, %v2073
        %v2127 = vadd.f32 %v1849, %v2076
        %v2128 = vadd.f32 %v1850, %v2079
        %v2129 = vadd.f32 %v1851, %v2082
        %v2130 = vadd.f32 %v1852, %v2085
        %v2131 = vadd.f32 %v1853, %v2088
        %v2132 = vadd.f32 %v1854, %v2091
        %v2133 = vadd.f32 %v1855, %v2094
        %v2134 = vadd.f32 %v1856, %v2097
        %v2135 = vadd.f32 %v1857, %v2100
        %v2136 = vadd.f32 %v1858, %v2103
        %s2137 = scalar_lea.vmem %s464, 48
        %v2138 = vld [vmem:[%s2137] sm:$0xff]
        %v2139 = vld [vmem:[%s2137 + $0x8] sm:$0xff]
        %v2140 = vld [vmem:[%s2137 + $0x18] sm:$0xff]
        %v2141 = vld [vmem:[%s2137 + $0x20] sm:$0xff]
        %v2142 = vld [vmem:[%s2137 + $0x30] sm:$0xff]
        %v2143 = vld [vmem:[%s2137 + $0x38] sm:$0xff]
        %v2144 = vld [vmem:[%s2137 + $0x48] sm:$0xff]
        %v2145 = vld [vmem:[%s2137 + $0x50] sm:$0xff]
        %v2146 = vld [vmem:[%s2137 + $0x60] sm:$0xff]
        %v2147 = vld [vmem:[%s2137 + $0x68] sm:$0xff]
        %v2148 = vld [vmem:[%s2137 + $0x78] sm:$0xff]
        %v2149 = vld [vmem:[%s2137 + $0x80] sm:$0xff]
        %v2150 = vld [vmem:[%s2137 + $0x90] sm:$0xff]
        %v2151 = vld [vmem:[%s2137 + $0x98] sm:$0xff]
        %v2152 = vld [vmem:[%s2137 + $0xa8] sm:$0xff]
        %v2153 = vld [vmem:[%s2137 + $0xb0] sm:$0xff]
        %v2154 = vld [vmem:[%s2137 + $0xc0] sm:$0xff]
        %v2155 = vld [vmem:[%s2137 + $0xc8] sm:$0xff]
        %v2156 = vld [vmem:[%s2137 + $0xd8] sm:$0xff]
        %v2157 = vld [vmem:[%s2137 + $0xe0] sm:$0xff]
        %v2158 = vld [vmem:[%s2137 + $0xf0] sm:$0xff]
        %v2159 = vld [vmem:[%s2137 + $0xf8] sm:$0xff]
        %v2160 = vld [vmem:[%s2137 + $0x108] sm:$0xff]
        %v2161 = vld [vmem:[%s2137 + $0x110] sm:$0xff]
        %v2162 = vld [vmem:[%s2137 + $0x120] sm:$0xff]
        %v2163 = vld [vmem:[%s2137 + $0x128] sm:$0xff]
        %v2164 = vld [vmem:[%s2137 + $0x138] sm:$0xff]
        %v2165 = vld [vmem:[%s2137 + $0x140] sm:$0xff]
        %v2166 = vld [vmem:[%s2137 + $0x150] sm:$0xff]
        %v2167 = vld [vmem:[%s2137 + $0x158] sm:$0xff]
        %v2168 = vld [vmem:[%s2137 + $0x168] sm:$0xff]
        %v2169 = vld [vmem:[%s2137 + $0x170] sm:$0xff]
        %s2170 = scalar_lea.vmem %s1, 24
        %v2171 = vld [vmem:[%s2170] sm:$0xf]
        %v2173 = vsel %vm598, %v2138, 0
        %v2176 = vsel %vm598, %v2139, 0
        %v2179 = vsel %vm598, %v2140, 0
        %v2182 = vsel %vm598, %v2141, 0
        %v2185 = vsel %vm598, %v2142, 0
        %v2188 = vsel %vm598, %v2143, 0
        %v2191 = vsel %vm598, %v2144, 0
        %v2194 = vsel %vm598, %v2145, 0
        %v2197 = vsel %vm598, %v2146, 0
        %v2200 = vsel %vm598, %v2147, 0
        %v2203 = vsel %vm598, %v2148, 0
        %v2206 = vsel %vm598, %v2149, 0
        %v2209 = vsel %vm598, %v2150, 0
        %v2212 = vsel %vm598, %v2151, 0
        %v2215 = vsel %vm598, %v2152, 0
        %v2218 = vsel %vm598, %v2153, 0
        %v2221 = vsel %vm598, %v2154, 0
        %v2224 = vsel %vm598, %v2155, 0
        %v2227 = vsel %vm598, %v2156, 0
        %v2230 = vsel %vm598, %v2157, 0
        %v2233 = vsel %vm598, %v2158, 0
        %v2236 = vsel %vm598, %v2159, 0
        %v2239 = vsel %vm598, %v2160, 0
        %v2242 = vsel %vm598, %v2161, 0
        %v2245 = vsel %vm598, %v2162, 0
        %v2248 = vsel %vm598, %v2163, 0
        %v2251 = vsel %vm598, %v2164, 0
        %v2254 = vsel %vm598, %v2165, 0
        %v2257 = vsel %vm598, %v2166, 0
        %v2260 = vsel %vm598, %v2167, 0
        %v2263 = vsel %vm598, %v2168, 0
        %v2266 = vsel %vm598, %v2169, 0
        %v2269 = vsel %vm695, %v2171, 0
        %2271 = vmatpush.msra.mxu0 0.0
        %2272 = vmatpush.msra.mxu0 0.0
        %2273 = vmatpush.msra.mxu0 0.0
        %2274 = vmatpush.msra.mxu0 0.0
        %2275 = vmatpush.msra.mxu0 0.0
        %2276 = vmatpush.msra.mxu0 0.0
        %2277 = vmatpush.msra.mxu0 0.0
        %2278 = vmatpush.msra.mxu0 0.0
        %2279 = vmatpush.msra.mxu0 0.0
        %2280 = vmatpush.msra.mxu0 0.0
        %2281 = vmatpush.msra.mxu0 0.0
        %2282 = vmatpush.msra.mxu0 0.0
        %2283 = vmatpush.msra.mxu0 0.0
        %2284 = vmatpush.msra.mxu0 0.0
        %2285 = vmatpush.msra.mxu0 0.0
        %2286 = vmatpush.msra.mxu0 %v2269
        %2287 = vmatmul.f32.gmra.mxu0 %v2173
        %v2288 = vpop.f32.mrf.mxu0
        %v2289 = vadd.f32 0.0, %v2288
        %2290 = vmatmul.f32.gmra.mxu0 %v2176
        %v2291 = vpop.f32.mrf.mxu0
        %v2292 = vadd.f32 0.0, %v2291
        %2293 = vmatmul.f32.gmra.mxu0 %v2179
        %v2294 = vpop.f32.mrf.mxu0
        %v2295 = vadd.f32 0.0, %v2294
        %2296 = vmatmul.f32.gmra.mxu0 %v2182
        %v2297 = vpop.f32.mrf.mxu0
        %v2298 = vadd.f32 0.0, %v2297
        %2299 = vmatmul.f32.gmra.mxu0 %v2185
        %v2300 = vpop.f32.mrf.mxu0
        %v2301 = vadd.f32 0.0, %v2300
        %2302 = vmatmul.f32.gmra.mxu0 %v2188
        %v2303 = vpop.f32.mrf.mxu0
        %v2304 = vadd.f32 0.0, %v2303
        %2305 = vmatmul.f32.gmra.mxu0 %v2191
        %v2306 = vpop.f32.mrf.mxu0
        %v2307 = vadd.f32 0.0, %v2306
        %2308 = vmatmul.f32.gmra.mxu0 %v2194
        %v2309 = vpop.f32.mrf.mxu0
        %v2310 = vadd.f32 0.0, %v2309
        %2311 = vmatmul.f32.gmra.mxu0 %v2197
        %v2312 = vpop.f32.mrf.mxu0
        %v2313 = vadd.f32 0.0, %v2312
        %2314 = vmatmul.f32.gmra.mxu0 %v2200
        %v2315 = vpop.f32.mrf.mxu0
        %v2316 = vadd.f32 0.0, %v2315
        %2317 = vmatmul.f32.gmra.mxu0 %v2203
        %v2318 = vpop.f32.mrf.mxu0
        %v2319 = vadd.f32 0.0, %v2318
        %2320 = vmatmul.f32.gmra.mxu0 %v2206
        %v2321 = vpop.f32.mrf.mxu0
        %v2322 = vadd.f32 0.0, %v2321
        %2323 = vmatmul.f32.gmra.mxu0 %v2209
        %v2324 = vpop.f32.mrf.mxu0
        %v2325 = vadd.f32 0.0, %v2324
        %2326 = vmatmul.f32.gmra.mxu0 %v2212
        %v2327 = vpop.f32.mrf.mxu0
        %v2328 = vadd.f32 0.0, %v2327
        %2329 = vmatmul.f32.gmra.mxu0 %v2215
        %v2330 = vpop.f32.mrf.mxu0
        %v2331 = vadd.f32 0.0, %v2330
        %2332 = vmatmul.f32.gmra.mxu0 %v2218
        %v2333 = vpop.f32.mrf.mxu0
        %v2334 = vadd.f32 0.0, %v2333
        %2335 = vmatmul.f32.gmra.mxu0 %v2221
        %v2336 = vpop.f32.mrf.mxu0
        %v2337 = vadd.f32 0.0, %v2336
        %2338 = vmatmul.f32.gmra.mxu0 %v2224
        %v2339 = vpop.f32.mrf.mxu0
        %v2340 = vadd.f32 0.0, %v2339
        %2341 = vmatmul.f32.gmra.mxu0 %v2227
        %v2342 = vpop.f32.mrf.mxu0
        %v2343 = vadd.f32 0.0, %v2342
        %2344 = vmatmul.f32.gmra.mxu0 %v2230
        %v2345 = vpop.f32.mrf.mxu0
        %v2346 = vadd.f32 0.0, %v2345
        %2347 = vmatmul.f32.gmra.mxu0 %v2233
        %v2348 = vpop.f32.mrf.mxu0
        %v2349 = vadd.f32 0.0, %v2348
        %2350 = vmatmul.f32.gmra.mxu0 %v2236
        %v2351 = vpop.f32.mrf.mxu0
        %v2352 = vadd.f32 0.0, %v2351
        %2353 = vmatmul.f32.gmra.mxu0 %v2239
        %v2354 = vpop.f32.mrf.mxu0
        %v2355 = vadd.f32 0.0, %v2354
        %2356 = vmatmul.f32.gmra.mxu0 %v2242
        %v2357 = vpop.f32.mrf.mxu0
        %v2358 = vadd.f32 0.0, %v2357
        %2359 = vmatmul.f32.gmra.mxu0 %v2245
        %v2360 = vpop.f32.mrf.mxu0
        %v2361 = vadd.f32 0.0, %v2360
        %2362 = vmatmul.f32.gmra.mxu0 %v2248
        %v2363 = vpop.f32.mrf.mxu0
        %v2364 = vadd.f32 0.0, %v2363
        %2365 = vmatmul.f32.gmra.mxu0 %v2251
        %v2366 = vpop.f32.mrf.mxu0
        %v2367 = vadd.f32 0.0, %v2366
        %2368 = vmatmul.f32.gmra.mxu0 %v2254
        %v2369 = vpop.f32.mrf.mxu0
        %v2370 = vadd.f32 0.0, %v2369
        %2371 = vmatmul.f32.gmra.mxu0 %v2257
        %v2372 = vpop.f32.mrf.mxu0
        %v2373 = vadd.f32 0.0, %v2372
        %2374 = vmatmul.f32.gmra.mxu0 %v2260
        %v2375 = vpop.f32.mrf.mxu0
        %v2376 = vadd.f32 0.0, %v2375
        %2377 = vmatmul.f32.gmra.mxu0 %v2263
        %v2378 = vpop.f32.mrf.mxu0
        %v2379 = vadd.f32 0.0, %v2378
        %2380 = vmatmul.f32.gmra.mxu0 %v2266
        %v2381 = vpop.f32.mrf.mxu0
        %v2382 = vadd.f32 0.0, %v2381
        %2383 = vdwg.mxu0
        %v2384 = vadd.f32 %v2105, %v2289
        %v2385 = vadd.f32 %v2106, %v2292
        %v2386 = vadd.f32 %v2107, %v2295
        %v2387 = vadd.f32 %v2108, %v2298
        %v2388 = vadd.f32 %v2109, %v2301
        %v2389 = vadd.f32 %v2110, %v2304
        %v2390 = vadd.f32 %v2111, %v2307
        %v2391 = vadd.f32 %v2112, %v2310
        %v2392 = vadd.f32 %v2113, %v2313
        %v2393 = vadd.f32 %v2114, %v2316
        %v2394 = vadd.f32 %v2115, %v2319
        %v2395 = vadd.f32 %v2116, %v2322
        %v2396 = vadd.f32 %v2117, %v2325
        %v2397 = vadd.f32 %v2118, %v2328
        %v2398 = vadd.f32 %v2119, %v2331
        %v2399 = vadd.f32 %v2120, %v2334
        %v2400 = vadd.f32 %v2121, %v2337
        %v2401 = vadd.f32 %v2122, %v2340
        %v2402 = vadd.f32 %v2123, %v2343
        %v2403 = vadd.f32 %v2124, %v2346
        %v2404 = vadd.f32 %v2125, %v2349
        %v2405 = vadd.f32 %v2126, %v2352
        %v2406 = vadd.f32 %v2127, %v2355
        %v2407 = vadd.f32 %v2128, %v2358
        %v2408 = vadd.f32 %v2129, %v2361
        %v2409 = vadd.f32 %v2130, %v2364
        %v2410 = vadd.f32 %v2131, %v2367
        %v2411 = vadd.f32 %v2132, %v2370
        %v2412 = vadd.f32 %v2133, %v2373
        %v2413 = vadd.f32 %v2134, %v2376
        %v2414 = vadd.f32 %v2135, %v2379
        %v2415 = vadd.f32 %v2136, %v2382
        %v2416 = vld [vmem:[%s2137 + $0x1] sm:$0xff]
        %v2417 = vld [vmem:[%s2137 + $0x9] sm:$0xff]
        %v2418 = vld [vmem:[%s2137 + $0x19] sm:$0xff]
        %v2419 = vld [vmem:[%s2137 + $0x21] sm:$0xff]
        %v2420 = vld [vmem:[%s2137 + $0x31] sm:$0xff]
        %v2421 = vld [vmem:[%s2137 + $0x39] sm:$0xff]
        %v2422 = vld [vmem:[%s2137 + $0x49] sm:$0xff]
        %v2423 = vld [vmem:[%s2137 + $0x51] sm:$0xff]
        %v2424 = vld [vmem:[%s2137 + $0x61] sm:$0xff]
        %v2425 = vld [vmem:[%s2137 + $0x69] sm:$0xff]
        %v2426 = vld [vmem:[%s2137 + $0x79] sm:$0xff]
        %v2427 = vld [vmem:[%s2137 + $0x81] sm:$0xff]
        %v2428 = vld [vmem:[%s2137 + $0x91] sm:$0xff]
        %v2429 = vld [vmem:[%s2137 + $0x99] sm:$0xff]
        %v2430 = vld [vmem:[%s2137 + $0xa9] sm:$0xff]
        %v2431 = vld [vmem:[%s2137 + $0xb1] sm:$0xff]
        %v2432 = vld [vmem:[%s2137 + $0xc1] sm:$0xff]
        %v2433 = vld [vmem:[%s2137 + $0xc9] sm:$0xff]
        %v2434 = vld [vmem:[%s2137 + $0xd9] sm:$0xff]
        %v2435 = vld [vmem:[%s2137 + $0xe1] sm:$0xff]
        %v2436 = vld [vmem:[%s2137 + $0xf1] sm:$0xff]
        %v2437 = vld [vmem:[%s2137 + $0xf9] sm:$0xff]
        %v2438 = vld [vmem:[%s2137 + $0x109] sm:$0xff]
        %v2439 = vld [vmem:[%s2137 + $0x111] sm:$0xff]
        %v2440 = vld [vmem:[%s2137 + $0x121] sm:$0xff]
        %v2441 = vld [vmem:[%s2137 + $0x129] sm:$0xff]
        %v2442 = vld [vmem:[%s2137 + $0x139] sm:$0xff]
        %v2443 = vld [vmem:[%s2137 + $0x141] sm:$0xff]
        %v2444 = vld [vmem:[%s2137 + $0x151] sm:$0xff]
        %v2445 = vld [vmem:[%s2137 + $0x159] sm:$0xff]
        %v2446 = vld [vmem:[%s2137 + $0x169] sm:$0xff]
        %v2447 = vld [vmem:[%s2137 + $0x171] sm:$0xff]
        %s2448 = scalar_lea.vmem %s1, 28
        %v2449 = vld [vmem:[%s2448] sm:$0xf]
        %v2451 = vsel %vm598, %v2416, 0
        %v2454 = vsel %vm598, %v2417, 0
        %v2457 = vsel %vm598, %v2418, 0
        %v2460 = vsel %vm598, %v2419, 0
        %v2463 = vsel %vm598, %v2420, 0
        %v2466 = vsel %vm598, %v2421, 0
        %v2469 = vsel %vm598, %v2422, 0
        %v2472 = vsel %vm598, %v2423, 0
        %v2475 = vsel %vm598, %v2424, 0
        %v2478 = vsel %vm598, %v2425, 0
        %v2481 = vsel %vm598, %v2426, 0
        %v2484 = vsel %vm598, %v2427, 0
        %v2487 = vsel %vm598, %v2428, 0
        %v2490 = vsel %vm598, %v2429, 0
        %v2493 = vsel %vm598, %v2430, 0
        %v2496 = vsel %vm598, %v2431, 0
        %v2499 = vsel %vm598, %v2432, 0
        %v2502 = vsel %vm598, %v2433, 0
        %v2505 = vsel %vm598, %v2434, 0
        %v2508 = vsel %vm598, %v2435, 0
        %v2511 = vsel %vm598, %v2436, 0
        %v2514 = vsel %vm598, %v2437, 0
        %v2517 = vsel %vm598, %v2438, 0
        %v2520 = vsel %vm598, %v2439, 0
        %v2523 = vsel %vm598, %v2440, 0
        %v2526 = vsel %vm598, %v2441, 0
        %v2529 = vsel %vm598, %v2442, 0
        %v2532 = vsel %vm598, %v2443, 0
        %v2535 = vsel %vm598, %v2444, 0
        %v2538 = vsel %vm598, %v2445, 0
        %v2541 = vsel %vm598, %v2446, 0
        %v2544 = vsel %vm598, %v2447, 0
        %v2547 = vsel %vm695, %v2449, 0
        %2549 = vmatpush.msra.mxu0 0.0
        %2550 = vmatpush.msra.mxu0 0.0
        %2551 = vmatpush.msra.mxu0 0.0
        %2552 = vmatpush.msra.mxu0 0.0
        %2553 = vmatpush.msra.mxu0 0.0
        %2554 = vmatpush.msra.mxu0 0.0
        %2555 = vmatpush.msra.mxu0 0.0
        %2556 = vmatpush.msra.mxu0 0.0
        %2557 = vmatpush.msra.mxu0 0.0
        %2558 = vmatpush.msra.mxu0 0.0
        %2559 = vmatpush.msra.mxu0 0.0
        %2560 = vmatpush.msra.mxu0 0.0
        %2561 = vmatpush.msra.mxu0 0.0
        %2562 = vmatpush.msra.mxu0 0.0
        %2563 = vmatpush.msra.mxu0 0.0
        %2564 = vmatpush.msra.mxu0 %v2547
        %2565 = vmatmul.f32.gmra.mxu0 %v2451
        %v2566 = vpop.f32.mrf.mxu0
        %v2567 = vadd.f32 0.0, %v2566
        %2568 = vmatmul.f32.gmra.mxu0 %v2454
        %v2569 = vpop.f32.mrf.mxu0
        %v2570 = vadd.f32 0.0, %v2569
        %2571 = vmatmul.f32.gmra.mxu0 %v2457
        %v2572 = vpop.f32.mrf.mxu0
        %v2573 = vadd.f32 0.0, %v2572
        %2574 = vmatmul.f32.gmra.mxu0 %v2460
        %v2575 = vpop.f32.mrf.mxu0
        %v2576 = vadd.f32 0.0, %v2575
        %2577 = vmatmul.f32.gmra.mxu0 %v2463
        %v2578 = vpop.f32.mrf.mxu0
        %v2579 = vadd.f32 0.0, %v2578
        %2580 = vmatmul.f32.gmra.mxu0 %v2466
        %v2581 = vpop.f32.mrf.mxu0
        %v2582 = vadd.f32 0.0, %v2581
        %2583 = vmatmul.f32.gmra.mxu0 %v2469
        %v2584 = vpop.f32.mrf.mxu0
        %v2585 = vadd.f32 0.0, %v2584
        %2586 = vmatmul.f32.gmra.mxu0 %v2472
        %v2587 = vpop.f32.mrf.mxu0
        %v2588 = vadd.f32 0.0, %v2587
        %2589 = vmatmul.f32.gmra.mxu0 %v2475
        %v2590 = vpop.f32.mrf.mxu0
        %v2591 = vadd.f32 0.0, %v2590
        %2592 = vmatmul.f32.gmra.mxu0 %v2478
        %v2593 = vpop.f32.mrf.mxu0
        %v2594 = vadd.f32 0.0, %v2593
        %2595 = vmatmul.f32.gmra.mxu0 %v2481
        %v2596 = vpop.f32.mrf.mxu0
        %v2597 = vadd.f32 0.0, %v2596
        %2598 = vmatmul.f32.gmra.mxu0 %v2484
        %v2599 = vpop.f32.mrf.mxu0
        %v2600 = vadd.f32 0.0, %v2599
        %2601 = vmatmul.f32.gmra.mxu0 %v2487
        %v2602 = vpop.f32.mrf.mxu0
        %v2603 = vadd.f32 0.0, %v2602
        %2604 = vmatmul.f32.gmra.mxu0 %v2490
        %v2605 = vpop.f32.mrf.mxu0
        %v2606 = vadd.f32 0.0, %v2605
        %2607 = vmatmul.f32.gmra.mxu0 %v2493
        %v2608 = vpop.f32.mrf.mxu0
        %v2609 = vadd.f32 0.0, %v2608
        %2610 = vmatmul.f32.gmra.mxu0 %v2496
        %v2611 = vpop.f32.mrf.mxu0
        %v2612 = vadd.f32 0.0, %v2611
        %2613 = vmatmul.f32.gmra.mxu0 %v2499
        %v2614 = vpop.f32.mrf.mxu0
        %v2615 = vadd.f32 0.0, %v2614
        %2616 = vmatmul.f32.gmra.mxu0 %v2502
        %v2617 = vpop.f32.mrf.mxu0
        %v2618 = vadd.f32 0.0, %v2617
        %2619 = vmatmul.f32.gmra.mxu0 %v2505
        %v2620 = vpop.f32.mrf.mxu0
        %v2621 = vadd.f32 0.0, %v2620
        %2622 = vmatmul.f32.gmra.mxu0 %v2508
        %v2623 = vpop.f32.mrf.mxu0
        %v2624 = vadd.f32 0.0, %v2623
        %2625 = vmatmul.f32.gmra.mxu0 %v2511
        %v2626 = vpop.f32.mrf.mxu0
        %v2627 = vadd.f32 0.0, %v2626
        %2628 = vmatmul.f32.gmra.mxu0 %v2514
        %v2629 = vpop.f32.mrf.mxu0
        %v2630 = vadd.f32 0.0, %v2629
        %2631 = vmatmul.f32.gmra.mxu0 %v2517
        %v2632 = vpop.f32.mrf.mxu0
        %v2633 = vadd.f32 0.0, %v2632
        %2634 = vmatmul.f32.gmra.mxu0 %v2520
        %v2635 = vpop.f32.mrf.mxu0
        %v2636 = vadd.f32 0.0, %v2635
        %2637 = vmatmul.f32.gmra.mxu0 %v2523
        %v2638 = vpop.f32.mrf.mxu0
        %v2639 = vadd.f32 0.0, %v2638
        %2640 = vmatmul.f32.gmra.mxu0 %v2526
        %v2641 = vpop.f32.mrf.mxu0
        %v2642 = vadd.f32 0.0, %v2641
        %2643 = vmatmul.f32.gmra.mxu0 %v2529
        %v2644 = vpop.f32.mrf.mxu0
        %v2645 = vadd.f32 0.0, %v2644
        %2646 = vmatmul.f32.gmra.mxu0 %v2532
        %v2647 = vpop.f32.mrf.mxu0
        %v2648 = vadd.f32 0.0, %v2647
        %2649 = vmatmul.f32.gmra.mxu0 %v2535
        %v2650 = vpop.f32.mrf.mxu0
        %v2651 = vadd.f32 0.0, %v2650
        %2652 = vmatmul.f32.gmra.mxu0 %v2538
        %v2653 = vpop.f32.mrf.mxu0
        %v2654 = vadd.f32 0.0, %v2653
        %2655 = vmatmul.f32.gmra.mxu0 %v2541
        %v2656 = vpop.f32.mrf.mxu0
        %v2657 = vadd.f32 0.0, %v2656
        %2658 = vmatmul.f32.gmra.mxu0 %v2544
        %v2659 = vpop.f32.mrf.mxu0
        %v2660 = vadd.f32 0.0, %v2659
        %2661 = vdwg.mxu0
        %v2662 = vadd.f32 %v2384, %v2567
        %v2663 = vadd.f32 %v2385, %v2570
        %v2664 = vadd.f32 %v2386, %v2573
        %v2665 = vadd.f32 %v2387, %v2576
        %v2666 = vadd.f32 %v2388, %v2579
        %v2667 = vadd.f32 %v2389, %v2582
        %v2668 = vadd.f32 %v2390, %v2585
        %v2669 = vadd.f32 %v2391, %v2588
        %v2670 = vadd.f32 %v2392, %v2591
        %v2671 = vadd.f32 %v2393, %v2594
        %v2672 = vadd.f32 %v2394, %v2597
        %v2673 = vadd.f32 %v2395, %v2600
        %v2674 = vadd.f32 %v2396, %v2603
        %v2675 = vadd.f32 %v2397, %v2606
        %v2676 = vadd.f32 %v2398, %v2609
        %v2677 = vadd.f32 %v2399, %v2612
        %v2678 = vadd.f32 %v2400, %v2615
        %v2679 = vadd.f32 %v2401, %v2618
        %v2680 = vadd.f32 %v2402, %v2621
        %v2681 = vadd.f32 %v2403, %v2624
        %v2682 = vadd.f32 %v2404, %v2627
        %v2683 = vadd.f32 %v2405, %v2630
        %v2684 = vadd.f32 %v2406, %v2633
        %v2685 = vadd.f32 %v2407, %v2636
        %v2686 = vadd.f32 %v2408, %v2639
        %v2687 = vadd.f32 %v2409, %v2642
        %v2688 = vadd.f32 %v2410, %v2645
        %v2689 = vadd.f32 %v2411, %v2648
        %v2690 = vadd.f32 %v2412, %v2651
        %v2691 = vadd.f32 %v2413, %v2654
        %v2692 = vadd.f32 %v2414, %v2657
        %v2693 = vadd.f32 %v2415, %v2660
        %v2694 = vld [vmem:[%s2137 + $0x2] sm:$0xff]
        %v2695 = vld [vmem:[%s2137 + $0xa] sm:$0xff]
        %v2696 = vld [vmem:[%s2137 + $0x1a] sm:$0xff]
        %v2697 = vld [vmem:[%s2137 + $0x22] sm:$0xff]
        %v2698 = vld [vmem:[%s2137 + $0x32] sm:$0xff]
        %v2699 = vld [vmem:[%s2137 + $0x3a] sm:$0xff]
        %v2700 = vld [vmem:[%s2137 + $0x4a] sm:$0xff]
        %v2701 = vld [vmem:[%s2137 + $0x52] sm:$0xff]
        %v2702 = vld [vmem:[%s2137 + $0x62] sm:$0xff]
        %v2703 = vld [vmem:[%s2137 + $0x6a] sm:$0xff]
        %v2704 = vld [vmem:[%s2137 + $0x7a] sm:$0xff]
        %v2705 = vld [vmem:[%s2137 + $0x82] sm:$0xff]
        %v2706 = vld [vmem:[%s2137 + $0x92] sm:$0xff]
        %v2707 = vld [vmem:[%s2137 + $0x9a] sm:$0xff]
        %v2708 = vld [vmem:[%s2137 + $0xaa] sm:$0xff]
        %v2709 = vld [vmem:[%s2137 + $0xb2] sm:$0xff]
        %v2710 = vld [vmem:[%s2137 + $0xc2] sm:$0xff]
        %v2711 = vld [vmem:[%s2137 + $0xca] sm:$0xff]
        %v2712 = vld [vmem:[%s2137 + $0xda] sm:$0xff]
        %v2713 = vld [vmem:[%s2137 + $0xe2] sm:$0xff]
        %v2714 = vld [vmem:[%s2137 + $0xf2] sm:$0xff]
        %v2715 = vld [vmem:[%s2137 + $0xfa] sm:$0xff]
        %v2716 = vld [vmem:[%s2137 + $0x10a] sm:$0xff]
        %v2717 = vld [vmem:[%s2137 + $0x112] sm:$0xff]
        %v2718 = vld [vmem:[%s2137 + $0x122] sm:$0xff]
        %v2719 = vld [vmem:[%s2137 + $0x12a] sm:$0xff]
        %v2720 = vld [vmem:[%s2137 + $0x13a] sm:$0xff]
        %v2721 = vld [vmem:[%s2137 + $0x142] sm:$0xff]
        %v2722 = vld [vmem:[%s2137 + $0x152] sm:$0xff]
        %v2723 = vld [vmem:[%s2137 + $0x15a] sm:$0xff]
        %v2724 = vld [vmem:[%s2137 + $0x16a] sm:$0xff]
        %v2725 = vld [vmem:[%s2137 + $0x172] sm:$0xff]
        %s2726 = scalar_lea.vmem %s1, 32
        %v2727 = vld [vmem:[%s2726] sm:$0xf]
        %v2729 = vsel %vm598, %v2694, 0
        %v2732 = vsel %vm598, %v2695, 0
        %v2735 = vsel %vm598, %v2696, 0
        %v2738 = vsel %vm598, %v2697, 0
        %v2741 = vsel %vm598, %v2698, 0
        %v2744 = vsel %vm598, %v2699, 0
        %v2747 = vsel %vm598, %v2700, 0
        %v2750 = vsel %vm598, %v2701, 0
        %v2753 = vsel %vm598, %v2702, 0
        %v2756 = vsel %vm598, %v2703, 0
        %v2759 = vsel %vm598, %v2704, 0
        %v2762 = vsel %vm598, %v2705, 0
        %v2765 = vsel %vm598, %v2706, 0
        %v2768 = vsel %vm598, %v2707, 0
        %v2771 = vsel %vm598, %v2708, 0
        %v2774 = vsel %vm598, %v2709, 0
        %v2777 = vsel %vm598, %v2710, 0
        %v2780 = vsel %vm598, %v2711, 0
        %v2783 = vsel %vm598, %v2712, 0
        %v2786 = vsel %vm598, %v2713, 0
        %v2789 = vsel %vm598, %v2714, 0
        %v2792 = vsel %vm598, %v2715, 0
        %v2795 = vsel %vm598, %v2716, 0
        %v2798 = vsel %vm598, %v2717, 0
        %v2801 = vsel %vm598, %v2718, 0
        %v2804 = vsel %vm598, %v2719, 0
        %v2807 = vsel %vm598, %v2720, 0
        %v2810 = vsel %vm598, %v2721, 0
        %v2813 = vsel %vm598, %v2722, 0
        %v2816 = vsel %vm598, %v2723, 0
        %v2819 = vsel %vm598, %v2724, 0
        %v2822 = vsel %vm598, %v2725, 0
        %v2825 = vsel %vm695, %v2727, 0
        %2827 = vmatpush.msra.mxu0 0.0
        %2828 = vmatpush.msra.mxu0 0.0
        %2829 = vmatpush.msra.mxu0 0.0
        %2830 = vmatpush.msra.mxu0 0.0
        %2831 = vmatpush.msra.mxu0 0.0
        %2832 = vmatpush.msra.mxu0 0.0
        %2833 = vmatpush.msra.mxu0 0.0
        %2834 = vmatpush.msra.mxu0 0.0
        %2835 = vmatpush.msra.mxu0 0.0
        %2836 = vmatpush.msra.mxu0 0.0
        %2837 = vmatpush.msra.mxu0 0.0
        %2838 = vmatpush.msra.mxu0 0.0
        %2839 = vmatpush.msra.mxu0 0.0
        %2840 = vmatpush.msra.mxu0 0.0
        %2841 = vmatpush.msra.mxu0 0.0
        %2842 = vmatpush.msra.mxu0 %v2825
        %2843 = vmatmul.f32.gmra.mxu0 %v2729
        %v2844 = vpop.f32.mrf.mxu0
        %v2845 = vadd.f32 0.0, %v2844
        %2846 = vmatmul.f32.gmra.mxu0 %v2732
        %v2847 = vpop.f32.mrf.mxu0
        %v2848 = vadd.f32 0.0, %v2847
        %2849 = vmatmul.f32.gmra.mxu0 %v2735
        %v2850 = vpop.f32.mrf.mxu0
        %v2851 = vadd.f32 0.0, %v2850
        %2852 = vmatmul.f32.gmra.mxu0 %v2738
        %v2853 = vpop.f32.mrf.mxu0
        %v2854 = vadd.f32 0.0, %v2853
        %2855 = vmatmul.f32.gmra.mxu0 %v2741
        %v2856 = vpop.f32.mrf.mxu0
        %v2857 = vadd.f32 0.0, %v2856
        %2858 = vmatmul.f32.gmra.mxu0 %v2744
        %v2859 = vpop.f32.mrf.mxu0
        %v2860 = vadd.f32 0.0, %v2859
        %2861 = vmatmul.f32.gmra.mxu0 %v2747
        %v2862 = vpop.f32.mrf.mxu0
        %v2863 = vadd.f32 0.0, %v2862
        %2864 = vmatmul.f32.gmra.mxu0 %v2750
        %v2865 = vpop.f32.mrf.mxu0
        %v2866 = vadd.f32 0.0, %v2865
        %2867 = vmatmul.f32.gmra.mxu0 %v2753
        %v2868 = vpop.f32.mrf.mxu0
        %v2869 = vadd.f32 0.0, %v2868
        %2870 = vmatmul.f32.gmra.mxu0 %v2756
        %v2871 = vpop.f32.mrf.mxu0
        %v2872 = vadd.f32 0.0, %v2871
        %2873 = vmatmul.f32.gmra.mxu0 %v2759
        %v2874 = vpop.f32.mrf.mxu0
        %v2875 = vadd.f32 0.0, %v2874
        %2876 = vmatmul.f32.gmra.mxu0 %v2762
        %v2877 = vpop.f32.mrf.mxu0
        %v2878 = vadd.f32 0.0, %v2877
        %2879 = vmatmul.f32.gmra.mxu0 %v2765
        %v2880 = vpop.f32.mrf.mxu0
        %v2881 = vadd.f32 0.0, %v2880
        %2882 = vmatmul.f32.gmra.mxu0 %v2768
        %v2883 = vpop.f32.mrf.mxu0
        %v2884 = vadd.f32 0.0, %v2883
        %2885 = vmatmul.f32.gmra.mxu0 %v2771
        %v2886 = vpop.f32.mrf.mxu0
        %v2887 = vadd.f32 0.0, %v2886
        %2888 = vmatmul.f32.gmra.mxu0 %v2774
        %v2889 = vpop.f32.mrf.mxu0
        %v2890 = vadd.f32 0.0, %v2889
        %2891 = vmatmul.f32.gmra.mxu0 %v2777
        %v2892 = vpop.f32.mrf.mxu0
        %v2893 = vadd.f32 0.0, %v2892
        %2894 = vmatmul.f32.gmra.mxu0 %v2780
        %v2895 = vpop.f32.mrf.mxu0
        %v2896 = vadd.f32 0.0, %v2895
        %2897 = vmatmul.f32.gmra.mxu0 %v2783
        %v2898 = vpop.f32.mrf.mxu0
        %v2899 = vadd.f32 0.0, %v2898
        %2900 = vmatmul.f32.gmra.mxu0 %v2786
        %v2901 = vpop.f32.mrf.mxu0
        %v2902 = vadd.f32 0.0, %v2901
        %2903 = vmatmul.f32.gmra.mxu0 %v2789
        %v2904 = vpop.f32.mrf.mxu0
        %v2905 = vadd.f32 0.0, %v2904
        %2906 = vmatmul.f32.gmra.mxu0 %v2792
        %v2907 = vpop.f32.mrf.mxu0
        %v2908 = vadd.f32 0.0, %v2907
        %2909 = vmatmul.f32.gmra.mxu0 %v2795
        %v2910 = vpop.f32.mrf.mxu0
        %v2911 = vadd.f32 0.0, %v2910
        %2912 = vmatmul.f32.gmra.mxu0 %v2798
        %v2913 = vpop.f32.mrf.mxu0
        %v2914 = vadd.f32 0.0, %v2913
        %2915 = vmatmul.f32.gmra.mxu0 %v2801
        %v2916 = vpop.f32.mrf.mxu0
        %v2917 = vadd.f32 0.0, %v2916
        %2918 = vmatmul.f32.gmra.mxu0 %v2804
        %v2919 = vpop.f32.mrf.mxu0
        %v2920 = vadd.f32 0.0, %v2919
        %2921 = vmatmul.f32.gmra.mxu0 %v2807
        %v2922 = vpop.f32.mrf.mxu0
        %v2923 = vadd.f32 0.0, %v2922
        %2924 = vmatmul.f32.gmra.mxu0 %v2810
        %v2925 = vpop.f32.mrf.mxu0
        %v2926 = vadd.f32 0.0, %v2925
        %2927 = vmatmul.f32.gmra.mxu0 %v2813
        %v2928 = vpop.f32.mrf.mxu0
        %v2929 = vadd.f32 0.0, %v2928
        %2930 = vmatmul.f32.gmra.mxu0 %v2816
        %v2931 = vpop.f32.mrf.mxu0
        %v2932 = vadd.f32 0.0, %v2931
        %2933 = vmatmul.f32.gmra.mxu0 %v2819
        %v2934 = vpop.f32.mrf.mxu0
        %v2935 = vadd.f32 0.0, %v2934
        %2936 = vmatmul.f32.gmra.mxu0 %v2822
        %v2937 = vpop.f32.mrf.mxu0
        %v2938 = vadd.f32 0.0, %v2937
        %2939 = vdwg.mxu0
        %v2940 = vadd.f32 %v2662, %v2845
        %v2941 = vadd.f32 %v2663, %v2848
        %v2942 = vadd.f32 %v2664, %v2851
        %v2943 = vadd.f32 %v2665, %v2854
        %v2944 = vadd.f32 %v2666, %v2857
        %v2945 = vadd.f32 %v2667, %v2860
        %v2946 = vadd.f32 %v2668, %v2863
        %v2947 = vadd.f32 %v2669, %v2866
        %v2948 = vadd.f32 %v2670, %v2869
        %v2949 = vadd.f32 %v2671, %v2872
        %v2950 = vadd.f32 %v2672, %v2875
        %v2951 = vadd.f32 %v2673, %v2878
        %v2952 = vadd.f32 %v2674, %v2881
        %v2953 = vadd.f32 %v2675, %v2884
        %v2954 = vadd.f32 %v2676, %v2887
        %v2955 = vadd.f32 %v2677, %v2890
        %v2956 = vadd.f32 %v2678, %v2893
        %v2957 = vadd.f32 %v2679, %v2896
        %v2958 = vadd.f32 %v2680, %v2899
        %v2959 = vadd.f32 %v2681, %v2902
        %v2960 = vadd.f32 %v2682, %v2905
        %v2961 = vadd.f32 %v2683, %v2908
        %v2962 = vadd.f32 %v2684, %v2911
        %v2963 = vadd.f32 %v2685, %v2914
        %v2964 = vadd.f32 %v2686, %v2917
        %v2965 = vadd.f32 %v2687, %v2920
        %v2966 = vadd.f32 %v2688, %v2923
        %v2967 = vadd.f32 %v2689, %v2926
        %v2968 = vadd.f32 %v2690, %v2929
        %v2969 = vadd.f32 %v2691, %v2932
        %v2970 = vadd.f32 %v2692, %v2935
        %v2971 = vadd.f32 %v2693, %v2938
        %v2973 = vperm.slane %v530, 0
        %v2975 = vmul.f32 %v2940, %v2973
        %v2976 = vmul.f32 %v2941, %v2973
        %v2977 = vmul.f32 %v2942, %v2973
        %v2978 = vmul.f32 %v2943, %v2973
        %v2979 = vmul.f32 %v2944, %v2973
        %v2980 = vmul.f32 %v2945, %v2973
        %v2981 = vmul.f32 %v2946, %v2973
        %v2982 = vmul.f32 %v2947, %v2973
        %v2983 = vmul.f32 %v2948, %v2973
        %v2984 = vmul.f32 %v2949, %v2973
        %v2985 = vmul.f32 %v2950, %v2973
        %v2986 = vmul.f32 %v2951, %v2973
        %v2987 = vmul.f32 %v2952, %v2973
        %v2988 = vmul.f32 %v2953, %v2973
        %v2989 = vmul.f32 %v2954, %v2973
        %v2990 = vmul.f32 %v2955, %v2973
        %v2991 = vmul.f32 %v2956, %v2973
        %v2992 = vmul.f32 %v2957, %v2973
        %v2993 = vmul.f32 %v2958, %v2973
        %v2994 = vmul.f32 %v2959, %v2973
        %v2995 = vmul.f32 %v2960, %v2973
        %v2996 = vmul.f32 %v2961, %v2973
        %v2997 = vmul.f32 %v2962, %v2973
        %v2998 = vmul.f32 %v2963, %v2973
        %v2999 = vmul.f32 %v2964, %v2973
        %v3000 = vmul.f32 %v2965, %v2973
        %v3001 = vmul.f32 %v2966, %v2973
        %v3002 = vmul.f32 %v2967, %v2973
        %v3003 = vmul.f32 %v2968, %v2973
        %v3004 = vmul.f32 %v2969, %v2973
        %v3005 = vmul.f32 %v2970, %v2973
        %v3006 = vmul.f32 %v2971, %v2973
        %v3008 = vperm.slane %v529, 0
        %v3010 = vadd.f32 %v2975, %v3008
        %v3011 = vadd.f32 %v2976, %v3008
        %v3012 = vadd.f32 %v2977, %v3008
        %v3013 = vadd.f32 %v2978, %v3008
        %v3014 = vadd.f32 %v2979, %v3008
        %v3015 = vadd.f32 %v2980, %v3008
        %v3016 = vadd.f32 %v2981, %v3008
        %v3017 = vadd.f32 %v2982, %v3008
        %v3018 = vadd.f32 %v2983, %v3008
        %v3019 = vadd.f32 %v2984, %v3008
        %v3020 = vadd.f32 %v2985, %v3008
        %v3021 = vadd.f32 %v2986, %v3008
        %v3022 = vadd.f32 %v2987, %v3008
        %v3023 = vadd.f32 %v2988, %v3008
        %v3024 = vadd.f32 %v2989, %v3008
        %v3025 = vadd.f32 %v2990, %v3008
        %v3026 = vadd.f32 %v2991, %v3008
        %v3027 = vadd.f32 %v2992, %v3008
        %v3028 = vadd.f32 %v2993, %v3008
        %v3029 = vadd.f32 %v2994, %v3008
        %v3030 = vadd.f32 %v2995, %v3008
        %v3031 = vadd.f32 %v2996, %v3008
        %v3032 = vadd.f32 %v2997, %v3008
        %v3033 = vadd.f32 %v2998, %v3008
        %v3034 = vadd.f32 %v2999, %v3008
        %v3035 = vadd.f32 %v3000, %v3008
        %v3036 = vadd.f32 %v3001, %v3008
        %v3037 = vadd.f32 %v3002, %v3008
        %v3038 = vadd.f32 %v3003, %v3008
        %v3039 = vadd.f32 %v3004, %v3008
        %v3040 = vadd.f32 %v3005, %v3008
        %v3041 = vadd.f32 %v3006, %v3008
        %v3042 = vmax.f32 %v3010, 0.0
        %v3043 = vmax.f32 %v3011, 0.0
        %v3044 = vmax.f32 %v3012, 0.0
        %v3045 = vmax.f32 %v3013, 0.0
        %v3046 = vmax.f32 %v3014, 0.0
        %v3047 = vmax.f32 %v3015, 0.0
        %v3048 = vmax.f32 %v3016, 0.0
        %v3049 = vmax.f32 %v3017, 0.0
        %v3050 = vmax.f32 %v3018, 0.0
        %v3051 = vmax.f32 %v3019, 0.0
        %v3052 = vmax.f32 %v3020, 0.0
        %v3053 = vmax.f32 %v3021, 0.0
        %v3054 = vmax.f32 %v3022, 0.0
        %v3055 = vmax.f32 %v3023, 0.0
        %v3056 = vmax.f32 %v3024, 0.0
        %v3057 = vmax.f32 %v3025, 0.0
        %v3058 = vmax.f32 %v3026, 0.0
        %v3059 = vmax.f32 %v3027, 0.0
        %v3060 = vmax.f32 %v3028, 0.0
        %v3061 = vmax.f32 %v3029, 0.0
        %v3062 = vmax.f32 %v3030, 0.0
        %v3063 = vmax.f32 %v3031, 0.0
        %v3064 = vmax.f32 %v3032, 0.0
        %v3065 = vmax.f32 %v3033, 0.0
        %v3066 = vmax.f32 %v3034, 0.0
        %v3067 = vmax.f32 %v3035, 0.0
        %v3068 = vmax.f32 %v3036, 0.0
        %v3069 = vmax.f32 %v3037, 0.0
        %v3070 = vmax.f32 %v3038, 0.0
        %v3071 = vmax.f32 %v3039, 0.0
        %v3072 = vmax.f32 %v3040, 0.0
        %v3073 = vmax.f32 %v3041, 0.0
        %3074 = vst.msk [vmem:[#allocation5] sm:$0xff] %vm465, %v3042
        %3075 = vst.msk [vmem:[#allocation5 + $0x8] sm:$0xff] %vm465, %v3043
        %3076 = vst.msk [vmem:[#allocation5 + $0x10] sm:$0xff] %vm465, %v3044
        %3077 = vst.msk [vmem:[#allocation5 + $0x18] sm:$0xff] %vm465, %v3045
        %3078 = vst.msk [vmem:[#allocation5 + $0x20] sm:$0xff] %vm465, %v3046
        %3079 = vst.msk [vmem:[#allocation5 + $0x28] sm:$0xff] %vm465, %v3047
        %3080 = vst.msk [vmem:[#allocation5 + $0x30] sm:$0xff] %vm465, %v3048
        %3081 = vst.msk [vmem:[#allocation5 + $0x38] sm:$0xff] %vm465, %v3049
        %3082 = vst.msk [vmem:[#allocation5 + $0x40] sm:$0xff] %vm465, %v3050
        %3083 = vst.msk [vmem:[#allocation5 + $0x48] sm:$0xff] %vm465, %v3051
        %3084 = vst.msk [vmem:[#allocation5 + $0x50] sm:$0xff] %vm465, %v3052
        %3085 = vst.msk [vmem:[#allocation5 + $0x58] sm:$0xff] %vm465, %v3053
        %3086 = vst.msk [vmem:[#allocation5 + $0x60] sm:$0xff] %vm465, %v3054
        %3087 = vst.msk [vmem:[#allocation5 + $0x68] sm:$0xff] %vm465, %v3055
        %3088 = vst.msk [vmem:[#allocation5 + $0x70] sm:$0xff] %vm465, %v3056
        %3089 = vst.msk [vmem:[#allocation5 + $0x78] sm:$0xff] %vm465, %v3057
        %3090 = vst.msk [vmem:[#allocation5 + $0x80] sm:$0xff] %vm465, %v3058
        %3091 = vst.msk [vmem:[#allocation5 + $0x88] sm:$0xff] %vm465, %v3059
        %3092 = vst.msk [vmem:[#allocation5 + $0x90] sm:$0xff] %vm465, %v3060
        %3093 = vst.msk [vmem:[#allocation5 + $0x98] sm:$0xff] %vm465, %v3061
        %3094 = vst.msk [vmem:[#allocation5 + $0xa0] sm:$0xff] %vm465, %v3062
        %3095 = vst.msk [vmem:[#allocation5 + $0xa8] sm:$0xff] %vm465, %v3063
        %3096 = vst.msk [vmem:[#allocation5 + $0xb0] sm:$0xff] %vm465, %v3064
        %3097 = vst.msk [vmem:[#allocation5 + $0xb8] sm:$0xff] %vm465, %v3065
        %3098 = vst.msk [vmem:[#allocation5 + $0xc0] sm:$0xff] %vm465, %v3066
        %3099 = vst.msk [vmem:[#allocation5 + $0xc8] sm:$0xff] %vm465, %v3067
        %3100 = vst.msk [vmem:[#allocation5 + $0xd0] sm:$0xff] %vm465, %v3068
        %3101 = vst.msk [vmem:[#allocation5 + $0xd8] sm:$0xff] %vm465, %v3069
        %3102 = vst.msk [vmem:[#allocation5 + $0xe0] sm:$0xff] %vm465, %v3070
        %3103 = vst.msk [vmem:[#allocation5 + $0xe8] sm:$0xff] %vm465, %v3071
        %3104 = vst.msk [vmem:[#allocation5 + $0xf0] sm:$0xff] %vm465, %v3072
        %3105 = vst.msk [vmem:[#allocation5 + $0xf8] sm:$0xff] %vm465, %v3073
        %v3106 = vld [vmem:[#allocation5] ss:$2 sm:$0xff]
        %s3107 = scalar_lea.vmem [#allocation5], 16
        %v3108 = vld [vmem:[%s3107] ss:$2 sm:$0xff]
        %s3109 = scalar_lea.vmem [#allocation5], 32
        %v3110 = vld [vmem:[%s3109] ss:$2 sm:$0xff]
        %s3111 = scalar_lea.vmem [#allocation5], 48
        %v3112 = vld [vmem:[%s3111] ss:$2 sm:$0xff]
        %s3113 = scalar_lea.vmem [#allocation5], 64
        %v3114 = vld [vmem:[%s3113] ss:$2 sm:$0xff]
        %s3115 = scalar_lea.vmem [#allocation5], 80
        %v3116 = vld [vmem:[%s3115] ss:$2 sm:$0xff]
        %s3117 = scalar_lea.vmem [#allocation5], 96
        %v3118 = vld [vmem:[%s3117] ss:$2 sm:$0xff]
        %s3119 = scalar_lea.vmem [#allocation5], 112
        %v3120 = vld [vmem:[%s3119] ss:$2 sm:$0xff]
        %s3121 = scalar_lea.vmem [#allocation5], 128
        %v3122 = vld [vmem:[%s3121] ss:$2 sm:$0xff]
        %s3123 = scalar_lea.vmem [#allocation5], 144
        %v3124 = vld [vmem:[%s3123] ss:$2 sm:$0xff]
        %s3125 = scalar_lea.vmem [#allocation5], 160
        %v3126 = vld [vmem:[%s3125] ss:$2 sm:$0xff]
        %s3127 = scalar_lea.vmem [#allocation5], 176
        %v3128 = vld [vmem:[%s3127] ss:$2 sm:$0xff]
        %s3129 = scalar_lea.vmem [#allocation5], 192
        %v3130 = vld [vmem:[%s3129] ss:$2 sm:$0xff]
        %s3131 = scalar_lea.vmem [#allocation5], 208
        %v3132 = vld [vmem:[%s3131] ss:$2 sm:$0xff]
        %s3133 = scalar_lea.vmem [#allocation5], 224
        %v3134 = vld [vmem:[%s3133] ss:$2 sm:$0xff]
        %s3135 = scalar_lea.vmem [#allocation5], 240
        %v3136 = vld [vmem:[%s3135] ss:$2 sm:$0xff]
        %s3137 = scalar_lea.vmem [#allocation5], 1
        %v3138 = vld [vmem:[%s3137] ss:$2 sm:$0xff]
        %s3139 = scalar_lea.vmem [#allocation5], 17
        %v3140 = vld [vmem:[%s3139] ss:$2 sm:$0xff]
        %s3141 = scalar_lea.vmem [#allocation5], 33
        %v3142 = vld [vmem:[%s3141] ss:$2 sm:$0xff]
        %s3143 = scalar_lea.vmem [#allocation5], 49
        %v3144 = vld [vmem:[%s3143] ss:$2 sm:$0xff]
        %s3145 = scalar_lea.vmem [#allocation5], 65
        %v3146 = vld [vmem:[%s3145] ss:$2 sm:$0xff]
        %s3147 = scalar_lea.vmem [#allocation5], 81
        %v3148 = vld [vmem:[%s3147] ss:$2 sm:$0xff]
        %s3149 = scalar_lea.vmem [#allocation5], 97
        %v3150 = vld [vmem:[%s3149] ss:$2 sm:$0xff]
        %s3151 = scalar_lea.vmem [#allocation5], 113
        %v3152 = vld [vmem:[%s3151] ss:$2 sm:$0xff]
        %s3153 = scalar_lea.vmem [#allocation5], 129
        %v3154 = vld [vmem:[%s3153] ss:$2 sm:$0xff]
        %s3155 = scalar_lea.vmem [#allocation5], 145
        %v3156 = vld [vmem:[%s3155] ss:$2 sm:$0xff]
        %s3157 = scalar_lea.vmem [#allocation5], 161
        %v3158 = vld [vmem:[%s3157] ss:$2 sm:$0xff]
        %s3159 = scalar_lea.vmem [#allocation5], 177
        %v3160 = vld [vmem:[%s3159] ss:$2 sm:$0xff]
        %s3161 = scalar_lea.vmem [#allocation5], 193
        %v3162 = vld [vmem:[%s3161] ss:$2 sm:$0xff]
        %s3163 = scalar_lea.vmem [#allocation5], 209
        %v3164 = vld [vmem:[%s3163] ss:$2 sm:$0xff]
        %s3165 = scalar_lea.vmem [#allocation5], 225
        %v3166 = vld [vmem:[%s3165] ss:$2 sm:$0xff]
        %s3167 = scalar_lea.vmem [#allocation5], 241
        %v3168 = vld [vmem:[%s3167] ss:$2 sm:$0xff]
        %v3169 = vmax.f32 %v3106, %v3138
        %v3170 = vmax.f32 %v3108, %v3140
        %v3171 = vmax.f32 %v3110, %v3142
        %v3172 = vmax.f32 %v3112, %v3144
        %v3173 = vmax.f32 %v3114, %v3146
        %v3174 = vmax.f32 %v3116, %v3148
        %v3175 = vmax.f32 %v3118, %v3150
        %v3176 = vmax.f32 %v3120, %v3152
        %v3177 = vmax.f32 %v3122, %v3154
        %v3178 = vmax.f32 %v3124, %v3156
        %v3179 = vmax.f32 %v3126, %v3158
        %v3180 = vmax.f32 %v3128, %v3160
        %v3181 = vmax.f32 %v3130, %v3162
        %v3182 = vmax.f32 %v3132, %v3164
        %v3183 = vmax.f32 %v3134, %v3166
        %v3184 = vmax.f32 %v3136, %v3168
        %3185 = vst.msk [vmem:[#allocation6] sm:$0xff] %vm465, %v3169
        %3186 = vst.msk [vmem:[#allocation6 + $0x8] sm:$0xff] %vm465, %v3170
        %3187 = vst.msk [vmem:[#allocation6 + $0x10] sm:$0xff] %vm465, %v3171
        %3188 = vst.msk [vmem:[#allocation6 + $0x18] sm:$0xff] %vm465, %v3172
        %3189 = vst.msk [vmem:[#allocation6 + $0x20] sm:$0xff] %vm465, %v3173
        %3190 = vst.msk [vmem:[#allocation6 + $0x28] sm:$0xff] %vm465, %v3174
        %3191 = vst.msk [vmem:[#allocation6 + $0x30] sm:$0xff] %vm465, %v3175
        %3192 = vst.msk [vmem:[#allocation6 + $0x38] sm:$0xff] %vm465, %v3176
        %3193 = vst.msk [vmem:[#allocation6 + $0x40] sm:$0xff] %vm465, %v3177
        %3194 = vst.msk [vmem:[#allocation6 + $0x48] sm:$0xff] %vm465, %v3178
        %3195 = vst.msk [vmem:[#allocation6 + $0x50] sm:$0xff] %vm465, %v3179
        %3196 = vst.msk [vmem:[#allocation6 + $0x58] sm:$0xff] %vm465, %v3180
        %3197 = vst.msk [vmem:[#allocation6 + $0x60] sm:$0xff] %vm465, %v3181
        %3198 = vst.msk [vmem:[#allocation6 + $0x68] sm:$0xff] %vm465, %v3182
        %3199 = vst.msk [vmem:[#allocation6 + $0x70] sm:$0xff] %vm465, %v3183
        %3200 = vst.msk [vmem:[#allocation6 + $0x78] sm:$0xff] %vm465, %v3184
        %v3201 = vld [vmem:[#allocation6] sm:$0xff]
        %v3202 = vld [vmem:[#allocation6 + $0x10] sm:$0xff]
        %v3203 = vld [vmem:[#allocation6 + $0x20] sm:$0xff]
        %v3204 = vld [vmem:[#allocation6 + $0x30] sm:$0xff]
        %v3205 = vld [vmem:[#allocation6 + $0x40] sm:$0xff]
        %v3206 = vld [vmem:[#allocation6 + $0x50] sm:$0xff]
        %v3207 = vld [vmem:[#allocation6 + $0x60] sm:$0xff]
        %v3208 = vld [vmem:[#allocation6 + $0x70] sm:$0xff]
        %s3209 = scalar_lea.vmem [#allocation6], 8
        %v3210 = vld [vmem:[%s3209] sm:$0xff]
        %v3211 = vld [vmem:[%s3209 + $0x10] sm:$0xff]
        %v3212 = vld [vmem:[%s3209 + $0x20] sm:$0xff]
        %v3213 = vld [vmem:[%s3209 + $0x30] sm:$0xff]
        %v3214 = vld [vmem:[%s3209 + $0x40] sm:$0xff]
        %v3215 = vld [vmem:[%s3209 + $0x50] sm:$0xff]
        %v3216 = vld [vmem:[%s3209 + $0x60] sm:$0xff]
        %v3217 = vld [vmem:[%s3209 + $0x70] sm:$0xff]
        %v3218 = vmax.f32 %v3201, %v3210
        %v3219 = vmax.f32 %v3202, %v3211
        %v3220 = vmax.f32 %v3203, %v3212
        %v3221 = vmax.f32 %v3204, %v3213
        %v3222 = vmax.f32 %v3205, %v3214
        %v3223 = vmax.f32 %v3206, %v3215
        %v3224 = vmax.f32 %v3207, %v3216
        %v3225 = vmax.f32 %v3208, %v3217
        %s3226 = scalar_lea.vmem [#allocation2], 16
        %3227 = vst.msk [vmem:[%s3226 + $0x1] sm:$0xff] %vm465, %v3218
        %3228 = vst.msk [vmem:[%s3226 + $0x11] sm:$0xff] %vm465, %v3219
        %3229 = vst.msk [vmem:[%s3226 + $0x21] sm:$0xff] %vm465, %v3220
        %3230 = vst.msk [vmem:[%s3226 + $0x31] sm:$0xff] %vm465, %v3221
        %3231 = vst.msk [vmem:[%s3226 + $0x41] sm:$0xff] %vm465, %v3222
        %3232 = vst.msk [vmem:[%s3226 + $0x51] sm:$0xff] %vm465, %v3223
        %3233 = vst.msk [vmem:[%s3226 + $0x61] sm:$0xff] %vm465, %v3224
        %3234 = vst.msk [vmem:[%s3226 + $0x71] sm:$0xff] %vm465, %v3225
        %v3235 = vld [vmem:[%s5] sm:$0x1]
        %v3236 = vld [vmem:[#allocation2] sm:$0xff]
        %v3237 = vld [vmem:[#allocation2 + $0x10] sm:$0xff]
        %v3238 = vld [vmem:[#allocation2 + $0x20] sm:$0xff]
        %v3239 = vld [vmem:[#allocation2 + $0x30] sm:$0xff]
        %v3240 = vld [vmem:[#allocation2 + $0x40] sm:$0xff]
        %v3241 = vld [vmem:[#allocation2 + $0x50] sm:$0xff]
        %v3242 = vld [vmem:[#allocation2 + $0x60] sm:$0xff]
        %v3243 = vld [vmem:[#allocation2 + $0x70] sm:$0xff]
        %v3244 = vld [vmem:[%s4] sm:$0xff]
        %v3245 = vld [vmem:[#allocation2 + $0x1] sm:$0xff]
        %v3246 = vld [vmem:[#allocation2 + $0x11] sm:$0xff]
        %v3247 = vld [vmem:[#allocation2 + $0x21] sm:$0xff]
        %v3248 = vld [vmem:[#allocation2 + $0x31] sm:$0xff]
        %v3249 = vld [vmem:[#allocation2 + $0x41] sm:$0xff]
        %v3250 = vld [vmem:[#allocation2 + $0x51] sm:$0xff]
        %v3251 = vld [vmem:[#allocation2 + $0x61] sm:$0xff]
        %v3252 = vld [vmem:[#allocation2 + $0x71] sm:$0xff]
        %s3253 = scalar_lea.vmem %s4, 8
        %v3254 = vld [vmem:[%s3253] sm:$0xff]
        %v3256 = vsel %vm465, %v3245, 0
        %v3259 = vsel %vm465, %v3246, 0
        %v3262 = vsel %vm465, %v3247, 0
        %v3265 = vsel %vm465, %v3248, 0
        %v3268 = vsel %vm465, %v3249, 0
        %v3271 = vsel %vm465, %v3250, 0
        %v3274 = vsel %vm465, %v3251, 0
        %v3277 = vsel %vm465, %v3252, 0
        %3279 = vmatpush.msra.mxu0 0.0
        %3280 = vmatpush.msra.mxu0 0.0
        %3281 = vmatpush.msra.mxu0 0.0
        %3282 = vmatpush.msra.mxu0 0.0
        %3283 = vmatpush.msra.mxu0 0.0
        %3284 = vmatpush.msra.mxu0 0.0
        %3285 = vmatpush.msra.mxu0 0.0
        %3286 = vmatpush.msra.mxu0 0.0
        %3287 = vmatpush.msra.mxu0 0.0
        %3288 = vmatpush.msra.mxu0 0.0
        %3289 = vmatpush.msra.mxu0 0.0
        %3290 = vmatpush.msra.mxu0 0.0
        %3291 = vmatpush.msra.mxu0 0.0
        %3292 = vmatpush.msra.mxu0 0.0
        %3293 = vmatpush.msra.mxu0 0.0
        %3294 = vmatpush.msra.mxu0 %v3254
        %3295 = vmatmul.f32.gmra.mxu0 %v3256
        %v3296 = vpop.f32.mrf.mxu0
        %v3297 = vadd.f32 0.0, %v3296
        %3298 = vmatmul.f32.gmra.mxu0 %v3259
        %v3299 = vpop.f32.mrf.mxu0
        %v3300 = vadd.f32 0.0, %v3299
        %3301 = vmatmul.f32.gmra.mxu0 %v3262
        %v3302 = vpop.f32.mrf.mxu0
        %v3303 = vadd.f32 0.0, %v3302
        %3304 = vmatmul.f32.gmra.mxu0 %v3265
        %v3305 = vpop.f32.mrf.mxu0
        %v3306 = vadd.f32 0.0, %v3305
        %3307 = vmatmul.f32.gmra.mxu0 %v3268
        %v3308 = vpop.f32.mrf.mxu0
        %v3309 = vadd.f32 0.0, %v3308
        %3310 = vmatmul.f32.gmra.mxu0 %v3271
        %v3311 = vpop.f32.mrf.mxu0
        %v3312 = vadd.f32 0.0, %v3311
        %3313 = vmatmul.f32.gmra.mxu0 %v3274
        %v3314 = vpop.f32.mrf.mxu0
        %v3315 = vadd.f32 0.0, %v3314
        %3316 = vmatmul.f32.gmra.mxu0 %v3277
        %v3317 = vpop.f32.mrf.mxu0
        %v3318 = vadd.f32 0.0, %v3317
        %3319 = vdwg.mxu0
        %v3321 = vsel %vm465, %v3236, 0
        %v3324 = vsel %vm465, %v3237, 0
        %v3327 = vsel %vm465, %v3238, 0
        %v3330 = vsel %vm465, %v3239, 0
        %v3333 = vsel %vm465, %v3240, 0
        %v3336 = vsel %vm465, %v3241, 0
        %v3339 = vsel %vm465, %v3242, 0
        %v3342 = vsel %vm465, %v3243, 0
        %3344 = vmatpush.msra.mxu0 0.0
        %3345 = vmatpush.msra.mxu0 0.0
        %3346 = vmatpush.msra.mxu0 0.0
        %3347 = vmatpush.msra.mxu0 0.0
        %3348 = vmatpush.msra.mxu0 0.0
        %3349 = vmatpush.msra.mxu0 0.0
        %3350 = vmatpush.msra.mxu0 0.0
        %3351 = vmatpush.msra.mxu0 0.0
        %3352 = vmatpush.msra.mxu0 0.0
        %3353 = vmatpush.msra.mxu0 0.0
        %3354 = vmatpush.msra.mxu0 0.0
        %3355 = vmatpush.msra.mxu0 0.0
        %3356 = vmatpush.msra.mxu0 0.0
        %3357 = vmatpush.msra.mxu0 0.0
        %3358 = vmatpush.msra.mxu0 0.0
        %3359 = vmatpush.msra.mxu0 %v3244
        %3360 = vmatmul.f32.gmra.mxu0 %v3321
        %v3361 = vpop.f32.mrf.mxu0
        %v3362 = vadd.f32 %v3297, %v3361
        %3363 = vmatmul.f32.gmra.mxu0 %v3324
        %v3364 = vpop.f32.mrf.mxu0
        %v3365 = vadd.f32 %v3300, %v3364
        %3366 = vmatmul.f32.gmra.mxu0 %v3327
        %v3367 = vpop.f32.mrf.mxu0
        %v3368 = vadd.f32 %v3303, %v3367
        %3369 = vmatmul.f32.gmra.mxu0 %v3330
        %v3370 = vpop.f32.mrf.mxu0
        %v3371 = vadd.f32 %v3306, %v3370
        %3372 = vmatmul.f32.gmra.mxu0 %v3333
        %v3373 = vpop.f32.mrf.mxu0
        %v3374 = vadd.f32 %v3309, %v3373
        %3375 = vmatmul.f32.gmra.mxu0 %v3336
        %v3376 = vpop.f32.mrf.mxu0
        %v3377 = vadd.f32 %v3312, %v3376
        %3378 = vmatmul.f32.gmra.mxu0 %v3339
        %v3379 = vpop.f32.mrf.mxu0
        %v3380 = vadd.f32 %v3315, %v3379
        %3381 = vmatmul.f32.gmra.mxu0 %v3342
        %v3382 = vpop.f32.mrf.mxu0
        %v3383 = vadd.f32 %v3318, %v3382
        %3384 = vdwg.mxu0
        %v3385 = vld [vmem:[#allocation2 + $0x2] sm:$0xff]
        %v3386 = vld [vmem:[#allocation2 + $0x12] sm:$0xff]
        %v3387 = vld [vmem:[#allocation2 + $0x22] sm:$0xff]
        %v3388 = vld [vmem:[#allocation2 + $0x32] sm:$0xff]
        %v3389 = vld [vmem:[#allocation2 + $0x42] sm:$0xff]
        %v3390 = vld [vmem:[#allocation2 + $0x52] sm:$0xff]
        %v3391 = vld [vmem:[#allocation2 + $0x62] sm:$0xff]
        %v3392 = vld [vmem:[#allocation2 + $0x72] sm:$0xff]
        %s3393 = scalar_lea.vmem %s4, 16
        %v3394 = vld [vmem:[%s3393] sm:$0xff]
        %v3396 = vsel %vm465, %v3385, 0
        %v3399 = vsel %vm465, %v3386, 0
        %v3402 = vsel %vm465, %v3387, 0
        %v3405 = vsel %vm465, %v3388, 0
        %v3408 = vsel %vm465, %v3389, 0
        %v3411 = vsel %vm465, %v3390, 0
        %v3414 = vsel %vm465, %v3391, 0
        %v3417 = vsel %vm465, %v3392, 0
        %3419 = vmatpush.msra.mxu0 0.0
        %3420 = vmatpush.msra.mxu0 0.0
        %3421 = vmatpush.msra.mxu0 0.0
        %3422 = vmatpush.msra.mxu0 0.0
        %3423 = vmatpush.msra.mxu0 0.0
        %3424 = vmatpush.msra.mxu0 0.0
        %3425 = vmatpush.msra.mxu0 0.0
        %3426 = vmatpush.msra.mxu0 0.0
        %3427 = vmatpush.msra.mxu0 0.0
        %3428 = vmatpush.msra.mxu0 0.0
        %3429 = vmatpush.msra.mxu0 0.0
        %3430 = vmatpush.msra.mxu0 0.0
        %3431 = vmatpush.msra.mxu0 0.0
        %3432 = vmatpush.msra.mxu0 0.0
        %3433 = vmatpush.msra.mxu0 0.0
        %3434 = vmatpush.msra.mxu0 %v3394
        %3435 = vmatmul.f32.gmra.mxu0 %v3396
        %v3436 = vpop.f32.mrf.mxu0
        %v3437 = vadd.f32 0.0, %v3436
        %3438 = vmatmul.f32.gmra.mxu0 %v3399
        %v3439 = vpop.f32.mrf.mxu0
        %v3440 = vadd.f32 0.0, %v3439
        %3441 = vmatmul.f32.gmra.mxu0 %v3402
        %v3442 = vpop.f32.mrf.mxu0
        %v3443 = vadd.f32 0.0, %v3442
        %3444 = vmatmul.f32.gmra.mxu0 %v3405
        %v3445 = vpop.f32.mrf.mxu0
        %v3446 = vadd.f32 0.0, %v3445
        %3447 = vmatmul.f32.gmra.mxu0 %v3408
        %v3448 = vpop.f32.mrf.mxu0
        %v3449 = vadd.f32 0.0, %v3448
        %3450 = vmatmul.f32.gmra.mxu0 %v3411
        %v3451 = vpop.f32.mrf.mxu0
        %v3452 = vadd.f32 0.0, %v3451
        %3453 = vmatmul.f32.gmra.mxu0 %v3414
        %v3454 = vpop.f32.mrf.mxu0
        %v3455 = vadd.f32 0.0, %v3454
        %3456 = vmatmul.f32.gmra.mxu0 %v3417
        %v3457 = vpop.f32.mrf.mxu0
        %v3458 = vadd.f32 0.0, %v3457
        %3459 = vdwg.mxu0
        %v3460 = vadd.f32 %v3362, %v3437
        %v3461 = vadd.f32 %v3365, %v3440
        %v3462 = vadd.f32 %v3368, %v3443
        %v3463 = vadd.f32 %v3371, %v3446
        %v3464 = vadd.f32 %v3374, %v3449
        %v3465 = vadd.f32 %v3377, %v3452
        %v3466 = vadd.f32 %v3380, %v3455
        %v3467 = vadd.f32 %v3383, %v3458
        %v3468 = vld [vmem:[%s3226] sm:$0xff]
        %v3469 = vld [vmem:[%s3226 + $0x10] sm:$0xff]
        %v3470 = vld [vmem:[%s3226 + $0x20] sm:$0xff]
        %v3471 = vld [vmem:[%s3226 + $0x30] sm:$0xff]
        %v3472 = vld [vmem:[%s3226 + $0x40] sm:$0xff]
        %v3473 = vld [vmem:[%s3226 + $0x50] sm:$0xff]
        %v3474 = vld [vmem:[%s3226 + $0x60] sm:$0xff]
        %v3475 = vld [vmem:[%s3226 + $0x70] sm:$0xff]
        %s3476 = scalar_lea.vmem %s4, 24
        %v3477 = vld [vmem:[%s3476] sm:$0xff]
        %v3479 = vsel %vm465, %v3468, 0
        %v3482 = vsel %vm465, %v3469, 0
        %v3485 = vsel %vm465, %v3470, 0
        %v3488 = vsel %vm465, %v3471, 0
        %v3491 = vsel %vm465, %v3472, 0
        %v3494 = vsel %vm465, %v3473, 0
        %v3497 = vsel %vm465, %v3474, 0
        %v3500 = vsel %vm465, %v3475, 0
        %3502 = vmatpush.msra.mxu0 0.0
        %3503 = vmatpush.msra.mxu0 0.0
        %3504 = vmatpush.msra.mxu0 0.0
        %3505 = vmatpush.msra.mxu0 0.0
        %3506 = vmatpush.msra.mxu0 0.0
        %3507 = vmatpush.msra.mxu0 0.0
        %3508 = vmatpush.msra.mxu0 0.0
        %3509 = vmatpush.msra.mxu0 0.0
        %3510 = vmatpush.msra.mxu0 0.0
        %3511 = vmatpush.msra.mxu0 0.0
        %3512 = vmatpush.msra.mxu0 0.0
        %3513 = vmatpush.msra.mxu0 0.0
        %3514 = vmatpush.msra.mxu0 0.0
        %3515 = vmatpush.msra.mxu0 0.0
        %3516 = vmatpush.msra.mxu0 0.0
        %3517 = vmatpush.msra.mxu0 %v3477
        %3518 = vmatmul.f32.gmra.mxu0 %v3479
        %v3519 = vpop.f32.mrf.mxu0
        %v3520 = vadd.f32 0.0, %v3519
        %3521 = vmatmul.f32.gmra.mxu0 %v3482
        %v3522 = vpop.f32.mrf.mxu0
        %v3523 = vadd.f32 0.0, %v3522
        %3524 = vmatmul.f32.gmra.mxu0 %v3485
        %v3525 = vpop.f32.mrf.mxu0
        %v3526 = vadd.f32 0.0, %v3525
        %3527 = vmatmul.f32.gmra.mxu0 %v3488
        %v3528 = vpop.f32.mrf.mxu0
        %v3529 = vadd.f32 0.0, %v3528
        %3530 = vmatmul.f32.gmra.mxu0 %v3491
        %v3531 = vpop.f32.mrf.mxu0
        %v3532 = vadd.f32 0.0, %v3531
        %3533 = vmatmul.f32.gmra.mxu0 %v3494
        %v3534 = vpop.f32.mrf.mxu0
        %v3535 = vadd.f32 0.0, %v3534
        %3536 = vmatmul.f32.gmra.mxu0 %v3497
        %v3537 = vpop.f32.mrf.mxu0
        %v3538 = vadd.f32 0.0, %v3537
        %3539 = vmatmul.f32.gmra.mxu0 %v3500
        %v3540 = vpop.f32.mrf.mxu0
        %v3541 = vadd.f32 0.0, %v3540
        %3542 = vdwg.mxu0
        %v3543 = vadd.f32 %v3460, %v3520
        %v3544 = vadd.f32 %v3461, %v3523
        %v3545 = vadd.f32 %v3462, %v3526
        %v3546 = vadd.f32 %v3463, %v3529
        %v3547 = vadd.f32 %v3464, %v3532
        %v3548 = vadd.f32 %v3465, %v3535
        %v3549 = vadd.f32 %v3466, %v3538
        %v3550 = vadd.f32 %v3467, %v3541
        %v3551 = vld [vmem:[%s3226 + $0x1] sm:$0xff]
        %v3552 = vld [vmem:[%s3226 + $0x11] sm:$0xff]
        %v3553 = vld [vmem:[%s3226 + $0x21] sm:$0xff]
        %v3554 = vld [vmem:[%s3226 + $0x31] sm:$0xff]
        %v3555 = vld [vmem:[%s3226 + $0x41] sm:$0xff]
        %v3556 = vld [vmem:[%s3226 + $0x51] sm:$0xff]
        %v3557 = vld [vmem:[%s3226 + $0x61] sm:$0xff]
        %v3558 = vld [vmem:[%s3226 + $0x71] sm:$0xff]
        %s3559 = scalar_lea.vmem %s4, 32
        %v3560 = vld [vmem:[%s3559] sm:$0xff]
        %v3562 = vsel %vm465, %v3551, 0
        %v3565 = vsel %vm465, %v3552, 0
        %v3568 = vsel %vm465, %v3553, 0
        %v3571 = vsel %vm465, %v3554, 0
        %v3574 = vsel %vm465, %v3555, 0
        %v3577 = vsel %vm465, %v3556, 0
        %v3580 = vsel %vm465, %v3557, 0
        %v3583 = vsel %vm465, %v3558, 0
        %3585 = vmatpush.msra.mxu0 0.0
        %3586 = vmatpush.msra.mxu0 0.0
        %3587 = vmatpush.msra.mxu0 0.0
        %3588 = vmatpush.msra.mxu0 0.0
        %3589 = vmatpush.msra.mxu0 0.0
        %3590 = vmatpush.msra.mxu0 0.0
        %3591 = vmatpush.msra.mxu0 0.0
        %3592 = vmatpush.msra.mxu0 0.0
        %3593 = vmatpush.msra.mxu0 0.0
        %3594 = vmatpush.msra.mxu0 0.0
        %3595 = vmatpush.msra.mxu0 0.0
        %3596 = vmatpush.msra.mxu0 0.0
        %3597 = vmatpush.msra.mxu0 0.0
        %3598 = vmatpush.msra.mxu0 0.0
        %3599 = vmatpush.msra.mxu0 0.0
        %3600 = vmatpush.msra.mxu0 %v3560
        %3601 = vmatmul.f32.gmra.mxu0 %v3562
        %v3602 = vpop.f32.mrf.mxu0
        %v3603 = vadd.f32 0.0, %v3602
        %3604 = vmatmul.f32.gmra.mxu0 %v3565
        %v3605 = vpop.f32.mrf.mxu0
        %v3606 = vadd.f32 0.0, %v3605
        %3607 = vmatmul.f32.gmra.mxu0 %v3568
        %v3608 = vpop.f32.mrf.mxu0
        %v3609 = vadd.f32 0.0, %v3608
        %3610 = vmatmul.f32.gmra.mxu0 %v3571
        %v3611 = vpop.f32.mrf.mxu0
        %v3612 = vadd.f32 0.0, %v3611
        %3613 = vmatmul.f32.gmra.mxu0 %v3574
        %v3614 = vpop.f32.mrf.mxu0
        %v3615 = vadd.f32 0.0, %v3614
        %3616 = vmatmul.f32.gmra.mxu0 %v3577
        %v3617 = vpop.f32.mrf.mxu0
        %v3618 = vadd.f32 0.0, %v3617
        %3619 = vmatmul.f32.gmra.mxu0 %v3580
        %v3620 = vpop.f32.mrf.mxu0
        %v3621 = vadd.f32 0.0, %v3620
        %3622 = vmatmul.f32.gmra.mxu0 %v3583
        %v3623 = vpop.f32.mrf.mxu0
        %v3624 = vadd.f32 0.0, %v3623
        %3625 = vdwg.mxu0
        %v3626 = vadd.f32 %v3543, %v3603
        %v3627 = vadd.f32 %v3544, %v3606
        %v3628 = vadd.f32 %v3545, %v3609
        %v3629 = vadd.f32 %v3546, %v3612
        %v3630 = vadd.f32 %v3547, %v3615
        %v3631 = vadd.f32 %v3548, %v3618
        %v3632 = vadd.f32 %v3549, %v3621
        %v3633 = vadd.f32 %v3550, %v3624
        %v3634 = vld [vmem:[%s3226 + $0x2] sm:$0xff]
        %v3635 = vld [vmem:[%s3226 + $0x12] sm:$0xff]
        %v3636 = vld [vmem:[%s3226 + $0x22] sm:$0xff]
        %v3637 = vld [vmem:[%s3226 + $0x32] sm:$0xff]
        %v3638 = vld [vmem:[%s3226 + $0x42] sm:$0xff]
        %v3639 = vld [vmem:[%s3226 + $0x52] sm:$0xff]
        %v3640 = vld [vmem:[%s3226 + $0x62] sm:$0xff]
        %v3641 = vld [vmem:[%s3226 + $0x72] sm:$0xff]
        %s3642 = scalar_lea.vmem %s4, 40
        %v3643 = vld [vmem:[%s3642] sm:$0xff]
        %v3645 = vsel %vm465, %v3634, 0
        %v3648 = vsel %vm465, %v3635, 0
        %v3651 = vsel %vm465, %v3636, 0
        %v3654 = vsel %vm465, %v3637, 0
        %v3657 = vsel %vm465, %v3638, 0
        %v3660 = vsel %vm465, %v3639, 0
        %v3663 = vsel %vm465, %v3640, 0
        %v3666 = vsel %vm465, %v3641, 0
        %3668 = vmatpush.msra.mxu0 0.0
        %3669 = vmatpush.msra.mxu0 0.0
        %3670 = vmatpush.msra.mxu0 0.0
        %3671 = vmatpush.msra.mxu0 0.0
        %3672 = vmatpush.msra.mxu0 0.0
        %3673 = vmatpush.msra.mxu0 0.0
        %3674 = vmatpush.msra.mxu0 0.0
        %3675 = vmatpush.msra.mxu0 0.0
        %3676 = vmatpush.msra.mxu0 0.0
        %3677 = vmatpush.msra.mxu0 0.0
        %3678 = vmatpush.msra.mxu0 0.0
        %3679 = vmatpush.msra.mxu0 0.0
        %3680 = vmatpush.msra.mxu0 0.0
        %3681 = vmatpush.msra.mxu0 0.0
        %3682 = vmatpush.msra.mxu0 0.0
        %3683 = vmatpush.msra.mxu0 %v3643
        %3684 = vmatmul.f32.gmra.mxu0 %v3645
        %v3685 = vpop.f32.mrf.mxu0
        %v3686 = vadd.f32 0.0, %v3685
        %3687 = vmatmul.f32.gmra.mxu0 %v3648
        %v3688 = vpop.f32.mrf.mxu0
        %v3689 = vadd.f32 0.0, %v3688
        %3690 = vmatmul.f32.gmra.mxu0 %v3651
        %v3691 = vpop.f32.mrf.mxu0
        %v3692 = vadd.f32 0.0, %v3691
        %3693 = vmatmul.f32.gmra.mxu0 %v3654
        %v3694 = vpop.f32.mrf.mxu0
        %v3695 = vadd.f32 0.0, %v3694
        %3696 = vmatmul.f32.gmra.mxu0 %v3657
        %v3697 = vpop.f32.mrf.mxu0
        %v3698 = vadd.f32 0.0, %v3697
        %3699 = vmatmul.f32.gmra.mxu0 %v3660
        %v3700 = vpop.f32.mrf.mxu0
        %v3701 = vadd.f32 0.0, %v3700
        %3702 = vmatmul.f32.gmra.mxu0 %v3663
        %v3703 = vpop.f32.mrf.mxu0
        %v3704 = vadd.f32 0.0, %v3703
        %3705 = vmatmul.f32.gmra.mxu0 %v3666
        %v3706 = vpop.f32.mrf.mxu0
        %v3707 = vadd.f32 0.0, %v3706
        %3708 = vdwg.mxu0
        %v3709 = vadd.f32 %v3626, %v3686
        %v3710 = vadd.f32 %v3627, %v3689
        %v3711 = vadd.f32 %v3628, %v3692
        %v3712 = vadd.f32 %v3629, %v3695
        %v3713 = vadd.f32 %v3630, %v3698
        %v3714 = vadd.f32 %v3631, %v3701
        %v3715 = vadd.f32 %v3632, %v3704
        %v3716 = vadd.f32 %v3633, %v3707
        %s3717 = scalar_lea.vmem [#allocation2], 32
        %v3718 = vld [vmem:[%s3717] sm:$0xff]
        %v3719 = vld [vmem:[%s3717 + $0x10] sm:$0xff]
        %v3720 = vld [vmem:[%s3717 + $0x20] sm:$0xff]
        %v3721 = vld [vmem:[%s3717 + $0x30] sm:$0xff]
        %v3722 = vld [vmem:[%s3717 + $0x40] sm:$0xff]
        %v3723 = vld [vmem:[%s3717 + $0x50] sm:$0xff]
        %v3724 = vld [vmem:[%s3717 + $0x60] sm:$0xff]
        %v3725 = vld [vmem:[%s3717 + $0x70] sm:$0xff]
        %s3726 = scalar_lea.vmem %s4, 48
        %v3727 = vld [vmem:[%s3726] sm:$0xff]
        %v3729 = vsel %vm465, %v3718, 0
        %v3732 = vsel %vm465, %v3719, 0
        %v3735 = vsel %vm465, %v3720, 0
        %v3738 = vsel %vm465, %v3721, 0
        %v3741 = vsel %vm465, %v3722, 0
        %v3744 = vsel %vm465, %v3723, 0
        %v3747 = vsel %vm465, %v3724, 0
        %v3750 = vsel %vm465, %v3725, 0
        %3752 = vmatpush.msra.mxu0 0.0
        %3753 = vmatpush.msra.mxu0 0.0
        %3754 = vmatpush.msra.mxu0 0.0
        %3755 = vmatpush.msra.mxu0 0.0
        %3756 = vmatpush.msra.mxu0 0.0
        %3757 = vmatpush.msra.mxu0 0.0
        %3758 = vmatpush.msra.mxu0 0.0
        %3759 = vmatpush.msra.mxu0 0.0
        %3760 = vmatpush.msra.mxu0 0.0
        %3761 = vmatpush.msra.mxu0 0.0
        %3762 = vmatpush.msra.mxu0 0.0
        %3763 = vmatpush.msra.mxu0 0.0
        %3764 = vmatpush.msra.mxu0 0.0
        %3765 = vmatpush.msra.mxu0 0.0
        %3766 = vmatpush.msra.mxu0 0.0
        %3767 = vmatpush.msra.mxu0 %v3727
        %3768 = vmatmul.f32.gmra.mxu0 %v3729
        %v3769 = vpop.f32.mrf.mxu0
        %v3770 = vadd.f32 0.0, %v3769
        %3771 = vmatmul.f32.gmra.mxu0 %v3732
        %v3772 = vpop.f32.mrf.mxu0
        %v3773 = vadd.f32 0.0, %v3772
        %3774 = vmatmul.f32.gmra.mxu0 %v3735
        %v3775 = vpop.f32.mrf.mxu0
        %v3776 = vadd.f32 0.0, %v3775
        %3777 = vmatmul.f32.gmra.mxu0 %v3738
        %v3778 = vpop.f32.mrf.mxu0
        %v3779 = vadd.f32 0.0, %v3778
        %3780 = vmatmul.f32.gmra.mxu0 %v3741
        %v3781 = vpop.f32.mrf.mxu0
        %v3782 = vadd.f32 0.0, %v3781
        %3783 = vmatmul.f32.gmra.mxu0 %v3744
        %v3784 = vpop.f32.mrf.mxu0
        %v3785 = vadd.f32 0.0, %v3784
        %3786 = vmatmul.f32.gmra.mxu0 %v3747
        %v3787 = vpop.f32.mrf.mxu0
        %v3788 = vadd.f32 0.0, %v3787
        %3789 = vmatmul.f32.gmra.mxu0 %v3750
        %v3790 = vpop.f32.mrf.mxu0
        %v3791 = vadd.f32 0.0, %v3790
        %3792 = vdwg.mxu0
        %v3793 = vadd.f32 %v3709, %v3770
        %v3794 = vadd.f32 %v3710, %v3773
        %v3795 = vadd.f32 %v3711, %v3776
        %v3796 = vadd.f32 %v3712, %v3779
        %v3797 = vadd.f32 %v3713, %v3782
        %v3798 = vadd.f32 %v3714, %v3785
        %v3799 = vadd.f32 %v3715, %v3788
        %v3800 = vadd.f32 %v3716, %v3791
        %v3801 = vld [vmem:[%s3717 + $0x1] sm:$0xff]
        %v3802 = vld [vmem:[%s3717 + $0x11] sm:$0xff]
        %v3803 = vld [vmem:[%s3717 + $0x21] sm:$0xff]
        %v3804 = vld [vmem:[%s3717 + $0x31] sm:$0xff]
        %v3805 = vld [vmem:[%s3717 + $0x41] sm:$0xff]
        %v3806 = vld [vmem:[%s3717 + $0x51] sm:$0xff]
        %v3807 = vld [vmem:[%s3717 + $0x61] sm:$0xff]
        %v3808 = vld [vmem:[%s3717 + $0x71] sm:$0xff]
        %s3809 = scalar_lea.vmem %s4, 56
        %v3810 = vld [vmem:[%s3809] sm:$0xff]
        %v3812 = vsel %vm465, %v3801, 0
        %v3815 = vsel %vm465, %v3802, 0
        %v3818 = vsel %vm465, %v3803, 0
        %v3821 = vsel %vm465, %v3804, 0
        %v3824 = vsel %vm465, %v3805, 0
        %v3827 = vsel %vm465, %v3806, 0
        %v3830 = vsel %vm465, %v3807, 0
        %v3833 = vsel %vm465, %v3808, 0
        %3835 = vmatpush.msra.mxu0 0.0
        %3836 = vmatpush.msra.mxu0 0.0
        %3837 = vmatpush.msra.mxu0 0.0
        %3838 = vmatpush.msra.mxu0 0.0
        %3839 = vmatpush.msra.mxu0 0.0
        %3840 = vmatpush.msra.mxu0 0.0
        %3841 = vmatpush.msra.mxu0 0.0
        %3842 = vmatpush.msra.mxu0 0.0
        %3843 = vmatpush.msra.mxu0 0.0
        %3844 = vmatpush.msra.mxu0 0.0
        %3845 = vmatpush.msra.mxu0 0.0
        %3846 = vmatpush.msra.mxu0 0.0
        %3847 = vmatpush.msra.mxu0 0.0
        %3848 = vmatpush.msra.mxu0 0.0
        %3849 = vmatpush.msra.mxu0 0.0
        %3850 = vmatpush.msra.mxu0 %v3810
        %3851 = vmatmul.f32.gmra.mxu0 %v3812
        %v3852 = vpop.f32.mrf.mxu0
        %v3853 = vadd.f32 0.0, %v3852
        %3854 = vmatmul.f32.gmra.mxu0 %v3815
        %v3855 = vpop.f32.mrf.mxu0
        %v3856 = vadd.f32 0.0, %v3855
        %3857 = vmatmul.f32.gmra.mxu0 %v3818
        %v3858 = vpop.f32.mrf.mxu0
        %v3859 = vadd.f32 0.0, %v3858
        %3860 = vmatmul.f32.gmra.mxu0 %v3821
        %v3861 = vpop.f32.mrf.mxu0
        %v3862 = vadd.f32 0.0, %v3861
        %3863 = vmatmul.f32.gmra.mxu0 %v3824
        %v3864 = vpop.f32.mrf.mxu0
        %v3865 = vadd.f32 0.0, %v3864
        %3866 = vmatmul.f32.gmra.mxu0 %v3827
        %v3867 = vpop.f32.mrf.mxu0
        %v3868 = vadd.f32 0.0, %v3867
        %3869 = vmatmul.f32.gmra.mxu0 %v3830
        %v3870 = vpop.f32.mrf.mxu0
        %v3871 = vadd.f32 0.0, %v3870
        %3872 = vmatmul.f32.gmra.mxu0 %v3833
        %v3873 = vpop.f32.mrf.mxu0
        %v3874 = vadd.f32 0.0, %v3873
        %3875 = vdwg.mxu0
        %v3876 = vadd.f32 %v3793, %v3853
        %v3877 = vadd.f32 %v3794, %v3856
        %v3878 = vadd.f32 %v3795, %v3859
        %v3879 = vadd.f32 %v3796, %v3862
        %v3880 = vadd.f32 %v3797, %v3865
        %v3881 = vadd.f32 %v3798, %v3868
        %v3882 = vadd.f32 %v3799, %v3871
        %v3883 = vadd.f32 %v3800, %v3874
        %v3884 = vld [vmem:[%s3717 + $0x2] sm:$0xff]
        %v3885 = vld [vmem:[%s3717 + $0x12] sm:$0xff]
        %v3886 = vld [vmem:[%s3717 + $0x22] sm:$0xff]
        %v3887 = vld [vmem:[%s3717 + $0x32] sm:$0xff]
        %v3888 = vld [vmem:[%s3717 + $0x42] sm:$0xff]
        %v3889 = vld [vmem:[%s3717 + $0x52] sm:$0xff]
        %v3890 = vld [vmem:[%s3717 + $0x62] sm:$0xff]
        %v3891 = vld [vmem:[%s3717 + $0x72] sm:$0xff]
        %s3892 = scalar_lea.vmem %s4, 64
        %v3893 = vld [vmem:[%s3892] sm:$0xff]
        %v3895 = vsel %vm465, %v3884, 0
        %v3898 = vsel %vm465, %v3885, 0
        %v3901 = vsel %vm465, %v3886, 0
        %v3904 = vsel %vm465, %v3887, 0
        %v3907 = vsel %vm465, %v3888, 0
        %v3910 = vsel %vm465, %v3889, 0
        %v3913 = vsel %vm465, %v3890, 0
        %v3916 = vsel %vm465, %v3891, 0
        %3918 = vmatpush.msra.mxu0 0.0
        %3919 = vmatpush.msra.mxu0 0.0
        %3920 = vmatpush.msra.mxu0 0.0
        %3921 = vmatpush.msra.mxu0 0.0
        %3922 = vmatpush.msra.mxu0 0.0
        %3923 = vmatpush.msra.mxu0 0.0
        %3924 = vmatpush.msra.mxu0 0.0
        %3925 = vmatpush.msra.mxu0 0.0
        %3926 = vmatpush.msra.mxu0 0.0
        %3927 = vmatpush.msra.mxu0 0.0
        %3928 = vmatpush.msra.mxu0 0.0
        %3929 = vmatpush.msra.mxu0 0.0
        %3930 = vmatpush.msra.mxu0 0.0
        %3931 = vmatpush.msra.mxu0 0.0
        %3932 = vmatpush.msra.mxu0 0.0
        %3933 = vmatpush.msra.mxu0 %v3893
        %3934 = vmatmul.f32.gmra.mxu0 %v3895
        %v3935 = vpop.f32.mrf.mxu0
        %v3936 = vadd.f32 0.0, %v3935
        %3937 = vmatmul.f32.gmra.mxu0 %v3898
        %v3938 = vpop.f32.mrf.mxu0
        %v3939 = vadd.f32 0.0, %v3938
        %3940 = vmatmul.f32.gmra.mxu0 %v3901
        %v3941 = vpop.f32.mrf.mxu0
        %v3942 = vadd.f32 0.0, %v3941
        %3943 = vmatmul.f32.gmra.mxu0 %v3904
        %v3944 = vpop.f32.mrf.mxu0
        %v3945 = vadd.f32 0.0, %v3944
        %3946 = vmatmul.f32.gmra.mxu0 %v3907
        %v3947 = vpop.f32.mrf.mxu0
        %v3948 = vadd.f32 0.0, %v3947
        %3949 = vmatmul.f32.gmra.mxu0 %v3910
        %v3950 = vpop.f32.mrf.mxu0
        %v3951 = vadd.f32 0.0, %v3950
        %3952 = vmatmul.f32.gmra.mxu0 %v3913
        %v3953 = vpop.f32.mrf.mxu0
        %v3954 = vadd.f32 0.0, %v3953
        %3955 = vmatmul.f32.gmra.mxu0 %v3916
        %v3956 = vpop.f32.mrf.mxu0
        %v3957 = vadd.f32 0.0, %v3956
        %3958 = vdwg.mxu0
        %v3959 = vadd.f32 %v3876, %v3936
        %v3960 = vadd.f32 %v3877, %v3939
        %v3961 = vadd.f32 %v3878, %v3942
        %v3962 = vadd.f32 %v3879, %v3945
        %v3963 = vadd.f32 %v3880, %v3948
        %v3964 = vadd.f32 %v3881, %v3951
        %v3965 = vadd.f32 %v3882, %v3954
        %v3966 = vadd.f32 %v3883, %v3957
        %v3968 = vperm.slane %v3235, 0
        %v3970 = vadd.f32 %v3959, %v3968
        %v3971 = vadd.f32 %v3960, %v3968
        %v3972 = vadd.f32 %v3961, %v3968
        %v3973 = vadd.f32 %v3962, %v3968
        %v3974 = vadd.f32 %v3963, %v3968
        %v3975 = vadd.f32 %v3964, %v3968
        %v3976 = vadd.f32 %v3965, %v3968
        %v3977 = vadd.f32 %v3966, %v3968
        %v3978 = vmax.f32 %v3970, 0.0
        %v3979 = vmax.f32 %v3971, 0.0
        %v3980 = vmax.f32 %v3972, 0.0
        %v3981 = vmax.f32 %v3973, 0.0
        %v3982 = vmax.f32 %v3974, 0.0
        %v3983 = vmax.f32 %v3975, 0.0
        %v3984 = vmax.f32 %v3976, 0.0
        %v3985 = vmax.f32 %v3977, 0.0
        %s3986 = scalar_lea.vmem [#allocation3], 16
        %3987 = vst.msk [vmem:[%s3986 + $0x1] sm:$0xff] %vm487, %v3978
        %3988 = vst.msk [vmem:[%s3986 + $0x11] sm:$0xff] %vm487, %v3979
        %3989 = vst.msk [vmem:[%s3986 + $0x21] sm:$0xff] %vm487, %v3980
        %3990 = vst.msk [vmem:[%s3986 + $0x31] sm:$0xff] %vm487, %v3981
        %3991 = vst.msk [vmem:[%s3986 + $0x41] sm:$0xff] %vm487, %v3982
        %3992 = vst.msk [vmem:[%s3986 + $0x51] sm:$0xff] %vm487, %v3983
        %3993 = vst.msk [vmem:[%s3986 + $0x61] sm:$0xff] %vm487, %v3984
        %3994 = vst.msk [vmem:[%s3986 + $0x71] sm:$0xff] %vm487, %v3985
        %v3995 = vld [vmem:[%s7] sm:$0x1]
        %v3996 = vld [vmem:[#allocation3] sm:$0xff]
        %v3997 = vld [vmem:[#allocation3 + $0x10] sm:$0xff]
        %v3998 = vld [vmem:[#allocation3 + $0x20] sm:$0xff]
        %v3999 = vld [vmem:[#allocation3 + $0x30] sm:$0xff]
        %v4000 = vld [vmem:[#allocation3 + $0x40] sm:$0xff]
        %v4001 = vld [vmem:[#allocation3 + $0x50] sm:$0xff]
        %v4002 = vld [vmem:[#allocation3 + $0x60] sm:$0xff]
        %v4003 = vld [vmem:[#allocation3 + $0x70] sm:$0xff]
        %v4004 = vld [vmem:[%s6] sm:$0xff]
        %v4005 = vld [vmem:[%s6 + $0x8] sm:$0xff]
        %v4006 = vld [vmem:[#allocation3 + $0x1] sm:$0xff]
        %v4007 = vld [vmem:[#allocation3 + $0x11] sm:$0xff]
        %v4008 = vld [vmem:[#allocation3 + $0x21] sm:$0xff]
        %v4009 = vld [vmem:[#allocation3 + $0x31] sm:$0xff]
        %v4010 = vld [vmem:[#allocation3 + $0x41] sm:$0xff]
        %v4011 = vld [vmem:[#allocation3 + $0x51] sm:$0xff]
        %v4012 = vld [vmem:[#allocation3 + $0x61] sm:$0xff]
        %v4013 = vld [vmem:[#allocation3 + $0x71] sm:$0xff]
        %s4014 = scalar_lea.vmem %s6, 16
        %v4015 = vld [vmem:[%s4014] sm:$0xff]
        %v4016 = vld [vmem:[%s4014 + $0x8] sm:$0xff]
        %v4018 = vsel %vm487, %v4006, 0
        %v4021 = vsel %vm487, %v4007, 0
        %v4024 = vsel %vm487, %v4008, 0
        %v4027 = vsel %vm487, %v4009, 0
        %v4030 = vsel %vm487, %v4010, 0
        %v4033 = vsel %vm487, %v4011, 0
        %v4036 = vsel %vm487, %v4012, 0
        %v4039 = vsel %vm487, %v4013, 0
        %4041 = vmatpush.msra.mxu0 0.0
        %4042 = vmatpush.msra.mxu0 0.0
        %4043 = vmatpush.msra.mxu0 0.0
        %4044 = vmatpush.msra.mxu0 0.0
        %4045 = vmatpush.msra.mxu0 0.0
        %4046 = vmatpush.msra.mxu0 0.0
        %4047 = vmatpush.msra.mxu0 0.0
        %4048 = vmatpush.msra.mxu0 0.0
        %4049 = vmatpush.msra.mxu0 0.0
        %4050 = vmatpush.msra.mxu0 0.0
        %4051 = vmatpush.msra.mxu0 0.0
        %4052 = vmatpush.msra.mxu0 0.0
        %4053 = vmatpush.msra.mxu0 0.0
        %4054 = vmatpush.msra.mxu0 0.0
        %4055 = vmatpush.msra.mxu0 %v4016
        %4056 = vmatpush.msra.mxu0 %v4015
        %4057 = vmatmul.f32.gmra.mxu0 %v4018
        %v4058 = vpop.f32.mrf.mxu0
        %v4059 = vadd.f32 0.0, %v4058
        %4060 = vmatmul.f32.gmra.mxu0 %v4021
        %v4061 = vpop.f32.mrf.mxu0
        %v4062 = vadd.f32 0.0, %v4061
        %4063 = vmatmul.f32.gmra.mxu0 %v4024
        %v4064 = vpop.f32.mrf.mxu0
        %v4065 = vadd.f32 0.0, %v4064
        %4066 = vmatmul.f32.gmra.mxu0 %v4027
        %v4067 = vpop.f32.mrf.mxu0
        %v4068 = vadd.f32 0.0, %v4067
        %4069 = vmatmul.f32.gmra.mxu0 %v4030
        %v4070 = vpop.f32.mrf.mxu0
        %v4071 = vadd.f32 0.0, %v4070
        %4072 = vmatmul.f32.gmra.mxu0 %v4033
        %v4073 = vpop.f32.mrf.mxu0
        %v4074 = vadd.f32 0.0, %v4073
        %4075 = vmatmul.f32.gmra.mxu0 %v4036
        %v4076 = vpop.f32.mrf.mxu0
        %v4077 = vadd.f32 0.0, %v4076
        %4078 = vmatmul.f32.gmra.mxu0 %v4039
        %v4079 = vpop.f32.mrf.mxu0
        %v4080 = vadd.f32 0.0, %v4079
        %4081 = vdwg.mxu0
        %v4083 = vsel %vm487, %v3996, 0
        %v4086 = vsel %vm487, %v3997, 0
        %v4089 = vsel %vm487, %v3998, 0
        %v4092 = vsel %vm487, %v3999, 0
        %v4095 = vsel %vm487, %v4000, 0
        %v4098 = vsel %vm487, %v4001, 0
        %v4101 = vsel %vm487, %v4002, 0
        %v4104 = vsel %vm487, %v4003, 0
        %4106 = vmatpush.msra.mxu0 0.0
        %4107 = vmatpush.msra.mxu0 0.0
        %4108 = vmatpush.msra.mxu0 0.0
        %4109 = vmatpush.msra.mxu0 0.0
        %4110 = vmatpush.msra.mxu0 0.0
        %4111 = vmatpush.msra.mxu0 0.0
        %4112 = vmatpush.msra.mxu0 0.0
        %4113 = vmatpush.msra.mxu0 0.0
        %4114 = vmatpush.msra.mxu0 0.0
        %4115 = vmatpush.msra.mxu0 0.0
        %4116 = vmatpush.msra.mxu0 0.0
        %4117 = vmatpush.msra.mxu0 0.0
        %4118 = vmatpush.msra.mxu0 0.0
        %4119 = vmatpush.msra.mxu0 0.0
        %4120 = vmatpush.msra.mxu0 %v4005
        %4121 = vmatpush.msra.mxu0 %v4004
        %4122 = vmatmul.f32.gmra.mxu0 %v4083
        %v4123 = vpop.f32.mrf.mxu0
        %v4124 = vadd.f32 %v4059, %v4123
        %4125 = vmatmul.f32.gmra.mxu0 %v4086
        %v4126 = vpop.f32.mrf.mxu0
        %v4127 = vadd.f32 %v4062, %v4126
        %4128 = vmatmul.f32.gmra.mxu0 %v4089
        %v4129 = vpop.f32.mrf.mxu0
        %v4130 = vadd.f32 %v4065, %v4129
        %4131 = vmatmul.f32.gmra.mxu0 %v4092
        %v4132 = vpop.f32.mrf.mxu0
        %v4133 = vadd.f32 %v4068, %v4132
        %4134 = vmatmul.f32.gmra.mxu0 %v4095
        %v4135 = vpop.f32.mrf.mxu0
        %v4136 = vadd.f32 %v4071, %v4135
        %4137 = vmatmul.f32.gmra.mxu0 %v4098
        %v4138 = vpop.f32.mrf.mxu0
        %v4139 = vadd.f32 %v4074, %v4138
        %4140 = vmatmul.f32.gmra.mxu0 %v4101
        %v4141 = vpop.f32.mrf.mxu0
        %v4142 = vadd.f32 %v4077, %v4141
        %4143 = vmatmul.f32.gmra.mxu0 %v4104
        %v4144 = vpop.f32.mrf.mxu0
        %v4145 = vadd.f32 %v4080, %v4144
        %4146 = vdwg.mxu0
        %v4147 = vld [vmem:[#allocation3 + $0x2] sm:$0xff]
        %v4148 = vld [vmem:[#allocation3 + $0x12] sm:$0xff]
        %v4149 = vld [vmem:[#allocation3 + $0x22] sm:$0xff]
        %v4150 = vld [vmem:[#allocation3 + $0x32] sm:$0xff]
        %v4151 = vld [vmem:[#allocation3 + $0x42] sm:$0xff]
        %v4152 = vld [vmem:[#allocation3 + $0x52] sm:$0xff]
        %v4153 = vld [vmem:[#allocation3 + $0x62] sm:$0xff]
        %v4154 = vld [vmem:[#allocation3 + $0x72] sm:$0xff]
        %s4155 = scalar_lea.vmem %s6, 32
        %v4156 = vld [vmem:[%s4155] sm:$0xff]
        %v4157 = vld [vmem:[%s4155 + $0x8] sm:$0xff]
        %v4159 = vsel %vm487, %v4147, 0
        %v4162 = vsel %vm487, %v4148, 0
        %v4165 = vsel %vm487, %v4149, 0
        %v4168 = vsel %vm487, %v4150, 0
        %v4171 = vsel %vm487, %v4151, 0
        %v4174 = vsel %vm487, %v4152, 0
        %v4177 = vsel %vm487, %v4153, 0
        %v4180 = vsel %vm487, %v4154, 0
        %4182 = vmatpush.msra.mxu0 0.0
        %4183 = vmatpush.msra.mxu0 0.0
        %4184 = vmatpush.msra.mxu0 0.0
        %4185 = vmatpush.msra.mxu0 0.0
        %4186 = vmatpush.msra.mxu0 0.0
        %4187 = vmatpush.msra.mxu0 0.0
        %4188 = vmatpush.msra.mxu0 0.0
        %4189 = vmatpush.msra.mxu0 0.0
        %4190 = vmatpush.msra.mxu0 0.0
        %4191 = vmatpush.msra.mxu0 0.0
        %4192 = vmatpush.msra.mxu0 0.0
        %4193 = vmatpush.msra.mxu0 0.0
        %4194 = vmatpush.msra.mxu0 0.0
        %4195 = vmatpush.msra.mxu0 0.0
        %4196 = vmatpush.msra.mxu0 %v4157
        %4197 = vmatpush.msra.mxu0 %v4156
        %4198 = vmatmul.f32.gmra.mxu0 %v4159
        %v4199 = vpop.f32.mrf.mxu0
        %v4200 = vadd.f32 0.0, %v4199
        %4201 = vmatmul.f32.gmra.mxu0 %v4162
        %v4202 = vpop.f32.mrf.mxu0
        %v4203 = vadd.f32 0.0, %v4202
        %4204 = vmatmul.f32.gmra.mxu0 %v4165
        %v4205 = vpop.f32.mrf.mxu0
        %v4206 = vadd.f32 0.0, %v4205
        %4207 = vmatmul.f32.gmra.mxu0 %v4168
        %v4208 = vpop.f32.mrf.mxu0
        %v4209 = vadd.f32 0.0, %v4208
        %4210 = vmatmul.f32.gmra.mxu0 %v4171
        %v4211 = vpop.f32.mrf.mxu0
        %v4212 = vadd.f32 0.0, %v4211
        %4213 = vmatmul.f32.gmra.mxu0 %v4174
        %v4214 = vpop.f32.mrf.mxu0
        %v4215 = vadd.f32 0.0, %v4214
        %4216 = vmatmul.f32.gmra.mxu0 %v4177
        %v4217 = vpop.f32.mrf.mxu0
        %v4218 = vadd.f32 0.0, %v4217
        %4219 = vmatmul.f32.gmra.mxu0 %v4180
        %v4220 = vpop.f32.mrf.mxu0
        %v4221 = vadd.f32 0.0, %v4220
        %4222 = vdwg.mxu0
        %v4223 = vadd.f32 %v4124, %v4200
        %v4224 = vadd.f32 %v4127, %v4203
        %v4225 = vadd.f32 %v4130, %v4206
        %v4226 = vadd.f32 %v4133, %v4209
        %v4227 = vadd.f32 %v4136, %v4212
        %v4228 = vadd.f32 %v4139, %v4215
        %v4229 = vadd.f32 %v4142, %v4218
        %v4230 = vadd.f32 %v4145, %v4221
        %v4231 = vld [vmem:[%s3986] sm:$0xff]
        %v4232 = vld [vmem:[%s3986 + $0x10] sm:$0xff]
        %v4233 = vld [vmem:[%s3986 + $0x20] sm:$0xff]
        %v4234 = vld [vmem:[%s3986 + $0x30] sm:$0xff]
        %v4235 = vld [vmem:[%s3986 + $0x40] sm:$0xff]
        %v4236 = vld [vmem:[%s3986 + $0x50] sm:$0xff]
        %v4237 = vld [vmem:[%s3986 + $0x60] sm:$0xff]
        %v4238 = vld [vmem:[%s3986 + $0x70] sm:$0xff]
        %s4239 = scalar_lea.vmem %s6, 48
        %v4240 = vld [vmem:[%s4239] sm:$0xff]
        %v4241 = vld [vmem:[%s4239 + $0x8] sm:$0xff]
        %v4243 = vsel %vm487, %v4231, 0
        %v4246 = vsel %vm487, %v4232, 0
        %v4249 = vsel %vm487, %v4233, 0
        %v4252 = vsel %vm487, %v4234, 0
        %v4255 = vsel %vm487, %v4235, 0
        %v4258 = vsel %vm487, %v4236, 0
        %v4261 = vsel %vm487, %v4237, 0
        %v4264 = vsel %vm487, %v4238, 0
        %4266 = vmatpush.msra.mxu0 0.0
        %4267 = vmatpush.msra.mxu0 0.0
        %4268 = vmatpush.msra.mxu0 0.0
        %4269 = vmatpush.msra.mxu0 0.0
        %4270 = vmatpush.msra.mxu0 0.0
        %4271 = vmatpush.msra.mxu0 0.0
        %4272 = vmatpush.msra.mxu0 0.0
        %4273 = vmatpush.msra.mxu0 0.0
        %4274 = vmatpush.msra.mxu0 0.0
        %4275 = vmatpush.msra.mxu0 0.0
        %4276 = vmatpush.msra.mxu0 0.0
        %4277 = vmatpush.msra.mxu0 0.0
        %4278 = vmatpush.msra.mxu0 0.0
        %4279 = vmatpush.msra.mxu0 0.0
        %4280 = vmatpush.msra.mxu0 %v4241
        %4281 = vmatpush.msra.mxu0 %v4240
        %4282 = vmatmul.f32.gmra.mxu0 %v4243
        %v4283 = vpop.f32.mrf.mxu0
        %v4284 = vadd.f32 0.0, %v4283
        %4285 = vmatmul.f32.gmra.mxu0 %v4246
        %v4286 = vpop.f32.mrf.mxu0
        %v4287 = vadd.f32 0.0, %v4286
        %4288 = vmatmul.f32.gmra.mxu0 %v4249
        %v4289 = vpop.f32.mrf.mxu0
        %v4290 = vadd.f32 0.0, %v4289
        %4291 = vmatmul.f32.gmra.mxu0 %v4252
        %v4292 = vpop.f32.mrf.mxu0
        %v4293 = vadd.f32 0.0, %v4292
        %4294 = vmatmul.f32.gmra.mxu0 %v4255
        %v4295 = vpop.f32.mrf.mxu0
        %v4296 = vadd.f32 0.0, %v4295
        %4297 = vmatmul.f32.gmra.mxu0 %v4258
        %v4298 = vpop.f32.mrf.mxu0
        %v4299 = vadd.f32 0.0, %v4298
        %4300 = vmatmul.f32.gmra.mxu0 %v4261
        %v4301 = vpop.f32.mrf.mxu0
        %v4302 = vadd.f32 0.0, %v4301
        %4303 = vmatmul.f32.gmra.mxu0 %v4264
        %v4304 = vpop.f32.mrf.mxu0
        %v4305 = vadd.f32 0.0, %v4304
        %4306 = vdwg.mxu0
        %v4307 = vadd.f32 %v4223, %v4284
        %v4308 = vadd.f32 %v4224, %v4287
        %v4309 = vadd.f32 %v4225, %v4290
        %v4310 = vadd.f32 %v4226, %v4293
        %v4311 = vadd.f32 %v4227, %v4296
        %v4312 = vadd.f32 %v4228, %v4299
        %v4313 = vadd.f32 %v4229, %v4302
        %v4314 = vadd.f32 %v4230, %v4305
        %v4315 = vld [vmem:[%s3986 + $0x1] sm:$0xff]
        %v4316 = vld [vmem:[%s3986 + $0x11] sm:$0xff]
        %v4317 = vld [vmem:[%s3986 + $0x21] sm:$0xff]
        %v4318 = vld [vmem:[%s3986 + $0x31] sm:$0xff]
        %v4319 = vld [vmem:[%s3986 + $0x41] sm:$0xff]
        %v4320 = vld [vmem:[%s3986 + $0x51] sm:$0xff]
        %v4321 = vld [vmem:[%s3986 + $0x61] sm:$0xff]
        %v4322 = vld [vmem:[%s3986 + $0x71] sm:$0xff]
        %s4323 = scalar_lea.vmem %s6, 64
        %v4324 = vld [vmem:[%s4323] sm:$0xff]
        %v4325 = vld [vmem:[%s4323 + $0x8] sm:$0xff]
        %v4327 = vsel %vm487, %v4315, 0
        %v4330 = vsel %vm487, %v4316, 0
        %v4333 = vsel %vm487, %v4317, 0
        %v4336 = vsel %vm487, %v4318, 0
        %v4339 = vsel %vm487, %v4319, 0
        %v4342 = vsel %vm487, %v4320, 0
        %v4345 = vsel %vm487, %v4321, 0
        %v4348 = vsel %vm487, %v4322, 0
        %4350 = vmatpush.msra.mxu0 0.0
        %4351 = vmatpush.msra.mxu0 0.0
        %4352 = vmatpush.msra.mxu0 0.0
        %4353 = vmatpush.msra.mxu0 0.0
        %4354 = vmatpush.msra.mxu0 0.0
        %4355 = vmatpush.msra.mxu0 0.0
        %4356 = vmatpush.msra.mxu0 0.0
        %4357 = vmatpush.msra.mxu0 0.0
        %4358 = vmatpush.msra.mxu0 0.0
        %4359 = vmatpush.msra.mxu0 0.0
        %4360 = vmatpush.msra.mxu0 0.0
        %4361 = vmatpush.msra.mxu0 0.0
        %4362 = vmatpush.msra.mxu0 0.0
        %4363 = vmatpush.msra.mxu0 0.0
        %4364 = vmatpush.msra.mxu0 %v4325
        %4365 = vmatpush.msra.mxu0 %v4324
        %4366 = vmatmul.f32.gmra.mxu0 %v4327
        %v4367 = vpop.f32.mrf.mxu0
        %v4368 = vadd.f32 0.0, %v4367
        %4369 = vmatmul.f32.gmra.mxu0 %v4330
        %v4370 = vpop.f32.mrf.mxu0
        %v4371 = vadd.f32 0.0, %v4370
        %4372 = vmatmul.f32.gmra.mxu0 %v4333
        %v4373 = vpop.f32.mrf.mxu0
        %v4374 = vadd.f32 0.0, %v4373
        %4375 = vmatmul.f32.gmra.mxu0 %v4336
        %v4376 = vpop.f32.mrf.mxu0
        %v4377 = vadd.f32 0.0, %v4376
        %4378 = vmatmul.f32.gmra.mxu0 %v4339
        %v4379 = vpop.f32.mrf.mxu0
        %v4380 = vadd.f32 0.0, %v4379
        %4381 = vmatmul.f32.gmra.mxu0 %v4342
        %v4382 = vpop.f32.mrf.mxu0
        %v4383 = vadd.f32 0.0, %v4382
        %4384 = vmatmul.f32.gmra.mxu0 %v4345
        %v4385 = vpop.f32.mrf.mxu0
        %v4386 = vadd.f32 0.0, %v4385
        %4387 = vmatmul.f32.gmra.mxu0 %v4348
        %v4388 = vpop.f32.mrf.mxu0
        %v4389 = vadd.f32 0.0, %v4388
        %4390 = vdwg.mxu0
        %v4391 = vadd.f32 %v4307, %v4368
        %v4392 = vadd.f32 %v4308, %v4371
        %v4393 = vadd.f32 %v4309, %v4374
        %v4394 = vadd.f32 %v4310, %v4377
        %v4395 = vadd.f32 %v4311, %v4380
        %v4396 = vadd.f32 %v4312, %v4383
        %v4397 = vadd.f32 %v4313, %v4386
        %v4398 = vadd.f32 %v4314, %v4389
        %v4399 = vld [vmem:[%s3986 + $0x2] sm:$0xff]
        %v4400 = vld [vmem:[%s3986 + $0x12] sm:$0xff]
        %v4401 = vld [vmem:[%s3986 + $0x22] sm:$0xff]
        %v4402 = vld [vmem:[%s3986 + $0x32] sm:$0xff]
        %v4403 = vld [vmem:[%s3986 + $0x42] sm:$0xff]
        %v4404 = vld [vmem:[%s3986 + $0x52] sm:$0xff]
        %v4405 = vld [vmem:[%s3986 + $0x62] sm:$0xff]
        %v4406 = vld [vmem:[%s3986 + $0x72] sm:$0xff]
        %s4407 = scalar_lea.vmem %s6, 80
        %v4408 = vld [vmem:[%s4407] sm:$0xff]
        %v4409 = vld [vmem:[%s4407 + $0x8] sm:$0xff]
        %v4411 = vsel %vm487, %v4399, 0
        %v4414 = vsel %vm487, %v4400, 0
        %v4417 = vsel %vm487, %v4401, 0
        %v4420 = vsel %vm487, %v4402, 0
        %v4423 = vsel %vm487, %v4403, 0
        %v4426 = vsel %vm487, %v4404, 0
        %v4429 = vsel %vm487, %v4405, 0
        %v4432 = vsel %vm487, %v4406, 0
        %4434 = vmatpush.msra.mxu0 0.0
        %4435 = vmatpush.msra.mxu0 0.0
        %4436 = vmatpush.msra.mxu0 0.0
        %4437 = vmatpush.msra.mxu0 0.0
        %4438 = vmatpush.msra.mxu0 0.0
        %4439 = vmatpush.msra.mxu0 0.0
        %4440 = vmatpush.msra.mxu0 0.0
        %4441 = vmatpush.msra.mxu0 0.0
        %4442 = vmatpush.msra.mxu0 0.0
        %4443 = vmatpush.msra.mxu0 0.0
        %4444 = vmatpush.msra.mxu0 0.0
        %4445 = vmatpush.msra.mxu0 0.0
        %4446 = vmatpush.msra.mxu0 0.0
        %4447 = vmatpush.msra.mxu0 0.0
        %4448 = vmatpush.msra.mxu0 %v4409
        %4449 = vmatpush.msra.mxu0 %v4408
        %4450 = vmatmul.f32.gmra.mxu0 %v4411
        %v4451 = vpop.f32.mrf.mxu0
        %v4452 = vadd.f32 0.0, %v4451
        %4453 = vmatmul.f32.gmra.mxu0 %v4414
        %v4454 = vpop.f32.mrf.mxu0
        %v4455 = vadd.f32 0.0, %v4454
        %4456 = vmatmul.f32.gmra.mxu0 %v4417
        %v4457 = vpop.f32.mrf.mxu0
        %v4458 = vadd.f32 0.0, %v4457
        %4459 = vmatmul.f32.gmra.mxu0 %v4420
        %v4460 = vpop.f32.mrf.mxu0
        %v4461 = vadd.f32 0.0, %v4460
        %4462 = vmatmul.f32.gmra.mxu0 %v4423
        %v4463 = vpop.f32.mrf.mxu0
        %v4464 = vadd.f32 0.0, %v4463
        %4465 = vmatmul.f32.gmra.mxu0 %v4426
        %v4466 = vpop.f32.mrf.mxu0
        %v4467 = vadd.f32 0.0, %v4466
        %4468 = vmatmul.f32.gmra.mxu0 %v4429
        %v4469 = vpop.f32.mrf.mxu0
        %v4470 = vadd.f32 0.0, %v4469
        %4471 = vmatmul.f32.gmra.mxu0 %v4432
        %v4472 = vpop.f32.mrf.mxu0
        %v4473 = vadd.f32 0.0, %v4472
        %4474 = vdwg.mxu0
        %v4475 = vadd.f32 %v4391, %v4452
        %v4476 = vadd.f32 %v4392, %v4455
        %v4477 = vadd.f32 %v4393, %v4458
        %v4478 = vadd.f32 %v4394, %v4461
        %v4479 = vadd.f32 %v4395, %v4464
        %v4480 = vadd.f32 %v4396, %v4467
        %v4481 = vadd.f32 %v4397, %v4470
        %v4482 = vadd.f32 %v4398, %v4473
        %s4483 = scalar_lea.vmem [#allocation3], 32
        %v4484 = vld [vmem:[%s4483] sm:$0xff]
        %v4485 = vld [vmem:[%s4483 + $0x10] sm:$0xff]
        %v4486 = vld [vmem:[%s4483 + $0x20] sm:$0xff]
        %v4487 = vld [vmem:[%s4483 + $0x30] sm:$0xff]
        %v4488 = vld [vmem:[%s4483 + $0x40] sm:$0xff]
        %v4489 = vld [vmem:[%s4483 + $0x50] sm:$0xff]
        %v4490 = vld [vmem:[%s4483 + $0x60] sm:$0xff]
        %v4491 = vld [vmem:[%s4483 + $0x70] sm:$0xff]
        %s4492 = scalar_lea.vmem %s6, 96
        %v4493 = vld [vmem:[%s4492] sm:$0xff]
        %v4494 = vld [vmem:[%s4492 + $0x8] sm:$0xff]
        %v4496 = vsel %vm487, %v4484, 0
        %v4499 = vsel %vm487, %v4485, 0
        %v4502 = vsel %vm487, %v4486, 0
        %v4505 = vsel %vm487, %v4487, 0
        %v4508 = vsel %vm487, %v4488, 0
        %v4511 = vsel %vm487, %v4489, 0
        %v4514 = vsel %vm487, %v4490, 0
        %v4517 = vsel %vm487, %v4491, 0
        %4519 = vmatpush.msra.mxu0 0.0
        %4520 = vmatpush.msra.mxu0 0.0
        %4521 = vmatpush.msra.mxu0 0.0
        %4522 = vmatpush.msra.mxu0 0.0
        %4523 = vmatpush.msra.mxu0 0.0
        %4524 = vmatpush.msra.mxu0 0.0
        %4525 = vmatpush.msra.mxu0 0.0
        %4526 = vmatpush.msra.mxu0 0.0
        %4527 = vmatpush.msra.mxu0 0.0
        %4528 = vmatpush.msra.mxu0 0.0
        %4529 = vmatpush.msra.mxu0 0.0
        %4530 = vmatpush.msra.mxu0 0.0
        %4531 = vmatpush.msra.mxu0 0.0
        %4532 = vmatpush.msra.mxu0 0.0
        %4533 = vmatpush.msra.mxu0 %v4494
        %4534 = vmatpush.msra.mxu0 %v4493
        %4535 = vmatmul.f32.gmra.mxu0 %v4496
        %v4536 = vpop.f32.mrf.mxu0
        %v4537 = vadd.f32 0.0, %v4536
        %4538 = vmatmul.f32.gmra.mxu0 %v4499
        %v4539 = vpop.f32.mrf.mxu0
        %v4540 = vadd.f32 0.0, %v4539
        %4541 = vmatmul.f32.gmra.mxu0 %v4502
        %v4542 = vpop.f32.mrf.mxu0
        %v4543 = vadd.f32 0.0, %v4542
        %4544 = vmatmul.f32.gmra.mxu0 %v4505
        %v4545 = vpop.f32.mrf.mxu0
        %v4546 = vadd.f32 0.0, %v4545
        %4547 = vmatmul.f32.gmra.mxu0 %v4508
        %v4548 = vpop.f32.mrf.mxu0
        %v4549 = vadd.f32 0.0, %v4548
        %4550 = vmatmul.f32.gmra.mxu0 %v4511
        %v4551 = vpop.f32.mrf.mxu0
        %v4552 = vadd.f32 0.0, %v4551
        %4553 = vmatmul.f32.gmra.mxu0 %v4514
        %v4554 = vpop.f32.mrf.mxu0
        %v4555 = vadd.f32 0.0, %v4554
        %4556 = vmatmul.f32.gmra.mxu0 %v4517
        %v4557 = vpop.f32.mrf.mxu0
        %v4558 = vadd.f32 0.0, %v4557
        %4559 = vdwg.mxu0
        %v4560 = vadd.f32 %v4475, %v4537
        %v4561 = vadd.f32 %v4476, %v4540
        %v4562 = vadd.f32 %v4477, %v4543
        %v4563 = vadd.f32 %v4478, %v4546
        %v4564 = vadd.f32 %v4479, %v4549
        %v4565 = vadd.f32 %v4480, %v4552
        %v4566 = vadd.f32 %v4481, %v4555
        %v4567 = vadd.f32 %v4482, %v4558
        %v4568 = vld [vmem:[%s4483 + $0x1] sm:$0xff]
        %v4569 = vld [vmem:[%s4483 + $0x11] sm:$0xff]
        %v4570 = vld [vmem:[%s4483 + $0x21] sm:$0xff]
        %v4571 = vld [vmem:[%s4483 + $0x31] sm:$0xff]
        %v4572 = vld [vmem:[%s4483 + $0x41] sm:$0xff]
        %v4573 = vld [vmem:[%s4483 + $0x51] sm:$0xff]
        %v4574 = vld [vmem:[%s4483 + $0x61] sm:$0xff]
        %v4575 = vld [vmem:[%s4483 + $0x71] sm:$0xff]
        %s4576 = scalar_lea.vmem %s6, 112
        %v4577 = vld [vmem:[%s4576] sm:$0xff]
        %v4578 = vld [vmem:[%s4576 + $0x8] sm:$0xff]
        %v4580 = vsel %vm487, %v4568, 0
        %v4583 = vsel %vm487, %v4569, 0
        %v4586 = vsel %vm487, %v4570, 0
        %v4589 = vsel %vm487, %v4571, 0
        %v4592 = vsel %vm487, %v4572, 0
        %v4595 = vsel %vm487, %v4573, 0
        %v4598 = vsel %vm487, %v4574, 0
        %v4601 = vsel %vm487, %v4575, 0
        %4603 = vmatpush.msra.mxu0 0.0
        %4604 = vmatpush.msra.mxu0 0.0
        %4605 = vmatpush.msra.mxu0 0.0
        %4606 = vmatpush.msra.mxu0 0.0
        %4607 = vmatpush.msra.mxu0 0.0
        %4608 = vmatpush.msra.mxu0 0.0
        %4609 = vmatpush.msra.mxu0 0.0
        %4610 = vmatpush.msra.mxu0 0.0
        %4611 = vmatpush.msra.mxu0 0.0
        %4612 = vmatpush.msra.mxu0 0.0
        %4613 = vmatpush.msra.mxu0 0.0
        %4614 = vmatpush.msra.mxu0 0.0
        %4615 = vmatpush.msra.mxu0 0.0
        %4616 = vmatpush.msra.mxu0 0.0
        %4617 = vmatpush.msra.mxu0 %v4578
        %4618 = vmatpush.msra.mxu0 %v4577
        %4619 = vmatmul.f32.gmra.mxu0 %v4580
        %v4620 = vpop.f32.mrf.mxu0
        %v4621 = vadd.f32 0.0, %v4620
        %4622 = vmatmul.f32.gmra.mxu0 %v4583
        %v4623 = vpop.f32.mrf.mxu0
        %v4624 = vadd.f32 0.0, %v4623
        %4625 = vmatmul.f32.gmra.mxu0 %v4586
        %v4626 = vpop.f32.mrf.mxu0
        %v4627 = vadd.f32 0.0, %v4626
        %4628 = vmatmul.f32.gmra.mxu0 %v4589
        %v4629 = vpop.f32.mrf.mxu0
        %v4630 = vadd.f32 0.0, %v4629
        %4631 = vmatmul.f32.gmra.mxu0 %v4592
        %v4632 = vpop.f32.mrf.mxu0
        %v4633 = vadd.f32 0.0, %v4632
        %4634 = vmatmul.f32.gmra.mxu0 %v4595
        %v4635 = vpop.f32.mrf.mxu0
        %v4636 = vadd.f32 0.0, %v4635
        %4637 = vmatmul.f32.gmra.mxu0 %v4598
        %v4638 = vpop.f32.mrf.mxu0
        %v4639 = vadd.f32 0.0, %v4638
        %4640 = vmatmul.f32.gmra.mxu0 %v4601
        %v4641 = vpop.f32.mrf.mxu0
        %v4642 = vadd.f32 0.0, %v4641
        %4643 = vdwg.mxu0
        %v4644 = vadd.f32 %v4560, %v4621
        %v4645 = vadd.f32 %v4561, %v4624
        %v4646 = vadd.f32 %v4562, %v4627
        %v4647 = vadd.f32 %v4563, %v4630
        %v4648 = vadd.f32 %v4564, %v4633
        %v4649 = vadd.f32 %v4565, %v4636
        %v4650 = vadd.f32 %v4566, %v4639
        %v4651 = vadd.f32 %v4567, %v4642
        %v4652 = vld [vmem:[%s4483 + $0x2] sm:$0xff]
        %v4653 = vld [vmem:[%s4483 + $0x12] sm:$0xff]
        %v4654 = vld [vmem:[%s4483 + $0x22] sm:$0xff]
        %v4655 = vld [vmem:[%s4483 + $0x32] sm:$0xff]
        %v4656 = vld [vmem:[%s4483 + $0x42] sm:$0xff]
        %v4657 = vld [vmem:[%s4483 + $0x52] sm:$0xff]
        %v4658 = vld [vmem:[%s4483 + $0x62] sm:$0xff]
        %v4659 = vld [vmem:[%s4483 + $0x72] sm:$0xff]
        %s4660 = scalar_lea.vmem %s6, 128
        %v4661 = vld [vmem:[%s4660] sm:$0xff]
        %v4662 = vld [vmem:[%s4660 + $0x8] sm:$0xff]
        %v4664 = vsel %vm487, %v4652, 0
        %v4667 = vsel %vm487, %v4653, 0
        %v4670 = vsel %vm487, %v4654, 0
        %v4673 = vsel %vm487, %v4655, 0
        %v4676 = vsel %vm487, %v4656, 0
        %v4679 = vsel %vm487, %v4657, 0
        %v4682 = vsel %vm487, %v4658, 0
        %v4685 = vsel %vm487, %v4659, 0
        %4687 = vmatpush.msra.mxu0 0.0
        %4688 = vmatpush.msra.mxu0 0.0
        %4689 = vmatpush.msra.mxu0 0.0
        %4690 = vmatpush.msra.mxu0 0.0
        %4691 = vmatpush.msra.mxu0 0.0
        %4692 = vmatpush.msra.mxu0 0.0
        %4693 = vmatpush.msra.mxu0 0.0
        %4694 = vmatpush.msra.mxu0 0.0
        %4695 = vmatpush.msra.mxu0 0.0
        %4696 = vmatpush.msra.mxu0 0.0
        %4697 = vmatpush.msra.mxu0 0.0
        %4698 = vmatpush.msra.mxu0 0.0
        %4699 = vmatpush.msra.mxu0 0.0
        %4700 = vmatpush.msra.mxu0 0.0
        %4701 = vmatpush.msra.mxu0 %v4662
        %4702 = vmatpush.msra.mxu0 %v4661
        %4703 = vmatmul.f32.gmra.mxu0 %v4664
        %v4704 = vpop.f32.mrf.mxu0
        %v4705 = vadd.f32 0.0, %v4704
        %4706 = vmatmul.f32.gmra.mxu0 %v4667
        %v4707 = vpop.f32.mrf.mxu0
        %v4708 = vadd.f32 0.0, %v4707
        %4709 = vmatmul.f32.gmra.mxu0 %v4670
        %v4710 = vpop.f32.mrf.mxu0
        %v4711 = vadd.f32 0.0, %v4710
        %4712 = vmatmul.f32.gmra.mxu0 %v4673
        %v4713 = vpop.f32.mrf.mxu0
        %v4714 = vadd.f32 0.0, %v4713
        %4715 = vmatmul.f32.gmra.mxu0 %v4676
        %v4716 = vpop.f32.mrf.mxu0
        %v4717 = vadd.f32 0.0, %v4716
        %4718 = vmatmul.f32.gmra.mxu0 %v4679
        %v4719 = vpop.f32.mrf.mxu0
        %v4720 = vadd.f32 0.0, %v4719
        %4721 = vmatmul.f32.gmra.mxu0 %v4682
        %v4722 = vpop.f32.mrf.mxu0
        %v4723 = vadd.f32 0.0, %v4722
        %4724 = vmatmul.f32.gmra.mxu0 %v4685
        %v4725 = vpop.f32.mrf.mxu0
        %v4726 = vadd.f32 0.0, %v4725
        %4727 = vdwg.mxu0
        %v4728 = vadd.f32 %v4644, %v4705
        %v4729 = vadd.f32 %v4645, %v4708
        %v4730 = vadd.f32 %v4646, %v4711
        %v4731 = vadd.f32 %v4647, %v4714
        %v4732 = vadd.f32 %v4648, %v4717
        %v4733 = vadd.f32 %v4649, %v4720
        %v4734 = vadd.f32 %v4650, %v4723
        %v4735 = vadd.f32 %v4651, %v4726
        %v4737 = vperm.slane %v3995, 0
        %v4739 = vadd.f32 %v4728, %v4737
        %v4740 = vadd.f32 %v4729, %v4737
        %v4741 = vadd.f32 %v4730, %v4737
        %v4742 = vadd.f32 %v4731, %v4737
        %v4743 = vadd.f32 %v4732, %v4737
        %v4744 = vadd.f32 %v4733, %v4737
        %v4745 = vadd.f32 %v4734, %v4737
        %v4746 = vadd.f32 %v4735, %v4737
        %v4747 = vmax.f32 %v4739, 0.0
        %v4748 = vmax.f32 %v4740, 0.0
        %v4749 = vmax.f32 %v4741, 0.0
        %v4750 = vmax.f32 %v4742, 0.0
        %v4751 = vmax.f32 %v4743, 0.0
        %v4752 = vmax.f32 %v4744, 0.0
        %v4753 = vmax.f32 %v4745, 0.0
        %v4754 = vmax.f32 %v4746, 0.0
        %s4755 = scalar_lea.vmem [#allocation4], 16
        %4756 = vst.msk [vmem:[%s4755 + $0x1] sm:$0xff] %vm487, %v4747
        %4757 = vst.msk [vmem:[%s4755 + $0x11] sm:$0xff] %vm487, %v4748
        %4758 = vst.msk [vmem:[%s4755 + $0x21] sm:$0xff] %vm487, %v4749
        %4759 = vst.msk [vmem:[%s4755 + $0x31] sm:$0xff] %vm487, %v4750
        %4760 = vst.msk [vmem:[%s4755 + $0x41] sm:$0xff] %vm487, %v4751
        %4761 = vst.msk [vmem:[%s4755 + $0x51] sm:$0xff] %vm487, %v4752
        %4762 = vst.msk [vmem:[%s4755 + $0x61] sm:$0xff] %vm487, %v4753
        %4763 = vst.msk [vmem:[%s4755 + $0x71] sm:$0xff] %vm487, %v4754
        %v4764 = vld [vmem:[%s9] sm:$0x1]
        %v4765 = vld [vmem:[#allocation4] sm:$0xff]
        %v4766 = vld [vmem:[#allocation4 + $0x10] sm:$0xff]
        %v4767 = vld [vmem:[#allocation4 + $0x20] sm:$0xff]
        %v4768 = vld [vmem:[#allocation4 + $0x30] sm:$0xff]
        %v4769 = vld [vmem:[#allocation4 + $0x40] sm:$0xff]
        %v4770 = vld [vmem:[#allocation4 + $0x50] sm:$0xff]
        %v4771 = vld [vmem:[#allocation4 + $0x60] sm:$0xff]
        %v4772 = vld [vmem:[#allocation4 + $0x70] sm:$0xff]
        %v4773 = vld [vmem:[%s8] sm:$0xff]
        %v4774 = vld [vmem:[%s8 + $0x8] sm:$0xff]
        %v4775 = vld [vmem:[#allocation4 + $0x1] sm:$0xff]
        %v4776 = vld [vmem:[#allocation4 + $0x11] sm:$0xff]
        %v4777 = vld [vmem:[#allocation4 + $0x21] sm:$0xff]
        %v4778 = vld [vmem:[#allocation4 + $0x31] sm:$0xff]
        %v4779 = vld [vmem:[#allocation4 + $0x41] sm:$0xff]
        %v4780 = vld [vmem:[#allocation4 + $0x51] sm:$0xff]
        %v4781 = vld [vmem:[#allocation4 + $0x61] sm:$0xff]
        %v4782 = vld [vmem:[#allocation4 + $0x71] sm:$0xff]
        %s4783 = scalar_lea.vmem %s8, 16
        %v4784 = vld [vmem:[%s4783] sm:$0xff]
        %v4785 = vld [vmem:[%s4783 + $0x8] sm:$0xff]
        %v4787 = vsel %vm487, %v4775, 0
        %v4790 = vsel %vm487, %v4776, 0
        %v4793 = vsel %vm487, %v4777, 0
        %v4796 = vsel %vm487, %v4778, 0
        %v4799 = vsel %vm487, %v4779, 0
        %v4802 = vsel %vm487, %v4780, 0
        %v4805 = vsel %vm487, %v4781, 0
        %v4808 = vsel %vm487, %v4782, 0
        %4810 = vmatpush.msra.mxu0 0.0
        %4811 = vmatpush.msra.mxu0 0.0
        %4812 = vmatpush.msra.mxu0 0.0
        %4813 = vmatpush.msra.mxu0 0.0
        %4814 = vmatpush.msra.mxu0 0.0
        %4815 = vmatpush.msra.mxu0 0.0
        %4816 = vmatpush.msra.mxu0 0.0
        %4817 = vmatpush.msra.mxu0 0.0
        %4818 = vmatpush.msra.mxu0 0.0
        %4819 = vmatpush.msra.mxu0 0.0
        %4820 = vmatpush.msra.mxu0 0.0
        %4821 = vmatpush.msra.mxu0 0.0
        %4822 = vmatpush.msra.mxu0 0.0
        %4823 = vmatpush.msra.mxu0 0.0
        %4824 = vmatpush.msra.mxu0 %v4785
        %4825 = vmatpush.msra.mxu0 %v4784
        %4826 = vmatmul.f32.gmra.mxu0 %v4787
        %v4827 = vpop.f32.mrf.mxu0
        %v4828 = vadd.f32 0.0, %v4827
        %4829 = vmatmul.f32.gmra.mxu0 %v4790
        %v4830 = vpop.f32.mrf.mxu0
        %v4831 = vadd.f32 0.0, %v4830
        %4832 = vmatmul.f32.gmra.mxu0 %v4793
        %v4833 = vpop.f32.mrf.mxu0
        %v4834 = vadd.f32 0.0, %v4833
        %4835 = vmatmul.f32.gmra.mxu0 %v4796
        %v4836 = vpop.f32.mrf.mxu0
        %v4837 = vadd.f32 0.0, %v4836
        %4838 = vmatmul.f32.gmra.mxu0 %v4799
        %v4839 = vpop.f32.mrf.mxu0
        %v4840 = vadd.f32 0.0, %v4839
        %4841 = vmatmul.f32.gmra.mxu0 %v4802
        %v4842 = vpop.f32.mrf.mxu0
        %v4843 = vadd.f32 0.0, %v4842
        %4844 = vmatmul.f32.gmra.mxu0 %v4805
        %v4845 = vpop.f32.mrf.mxu0
        %v4846 = vadd.f32 0.0, %v4845
        %4847 = vmatmul.f32.gmra.mxu0 %v4808
        %v4848 = vpop.f32.mrf.mxu0
        %v4849 = vadd.f32 0.0, %v4848
        %4850 = vdwg.mxu0
        %v4852 = vsel %vm487, %v4765, 0
        %v4855 = vsel %vm487, %v4766, 0
        %v4858 = vsel %vm487, %v4767, 0
        %v4861 = vsel %vm487, %v4768, 0
        %v4864 = vsel %vm487, %v4769, 0
        %v4867 = vsel %vm487, %v4770, 0
        %v4870 = vsel %vm487, %v4771, 0
        %v4873 = vsel %vm487, %v4772, 0
        %4875 = vmatpush.msra.mxu0 0.0
        %4876 = vmatpush.msra.mxu0 0.0
        %4877 = vmatpush.msra.mxu0 0.0
        %4878 = vmatpush.msra.mxu0 0.0
        %4879 = vmatpush.msra.mxu0 0.0
        %4880 = vmatpush.msra.mxu0 0.0
        %4881 = vmatpush.msra.mxu0 0.0
        %4882 = vmatpush.msra.mxu0 0.0
        %4883 = vmatpush.msra.mxu0 0.0
        %4884 = vmatpush.msra.mxu0 0.0
        %4885 = vmatpush.msra.mxu0 0.0
        %4886 = vmatpush.msra.mxu0 0.0
        %4887 = vmatpush.msra.mxu0 0.0
        %4888 = vmatpush.msra.mxu0 0.0
        %4889 = vmatpush.msra.mxu0 %v4774
        %4890 = vmatpush.msra.mxu0 %v4773
        %4891 = vmatmul.f32.gmra.mxu0 %v4852
        %v4892 = vpop.f32.mrf.mxu0
        %v4893 = vadd.f32 %v4828, %v4892
        %4894 = vmatmul.f32.gmra.mxu0 %v4855
        %v4895 = vpop.f32.mrf.mxu0
        %v4896 = vadd.f32 %v4831, %v4895
        %4897 = vmatmul.f32.gmra.mxu0 %v4858
        %v4898 = vpop.f32.mrf.mxu0
        %v4899 = vadd.f32 %v4834, %v4898
        %4900 = vmatmul.f32.gmra.mxu0 %v4861
        %v4901 = vpop.f32.mrf.mxu0
        %v4902 = vadd.f32 %v4837, %v4901
        %4903 = vmatmul.f32.gmra.mxu0 %v4864
        %v4904 = vpop.f32.mrf.mxu0
        %v4905 = vadd.f32 %v4840, %v4904
        %4906 = vmatmul.f32.gmra.mxu0 %v4867
        %v4907 = vpop.f32.mrf.mxu0
        %v4908 = vadd.f32 %v4843, %v4907
        %4909 = vmatmul.f32.gmra.mxu0 %v4870
        %v4910 = vpop.f32.mrf.mxu0
        %v4911 = vadd.f32 %v4846, %v4910
        %4912 = vmatmul.f32.gmra.mxu0 %v4873
        %v4913 = vpop.f32.mrf.mxu0
        %v4914 = vadd.f32 %v4849, %v4913
        %4915 = vdwg.mxu0
        %v4916 = vld [vmem:[#allocation4 + $0x2] sm:$0xff]
        %v4917 = vld [vmem:[#allocation4 + $0x12] sm:$0xff]
        %v4918 = vld [vmem:[#allocation4 + $0x22] sm:$0xff]
        %v4919 = vld [vmem:[#allocation4 + $0x32] sm:$0xff]
        %v4920 = vld [vmem:[#allocation4 + $0x42] sm:$0xff]
        %v4921 = vld [vmem:[#allocation4 + $0x52] sm:$0xff]
        %v4922 = vld [vmem:[#allocation4 + $0x62] sm:$0xff]
        %v4923 = vld [vmem:[#allocation4 + $0x72] sm:$0xff]
        %s4924 = scalar_lea.vmem %s8, 32
        %v4925 = vld [vmem:[%s4924] sm:$0xff]
        %v4926 = vld [vmem:[%s4924 + $0x8] sm:$0xff]
        %v4928 = vsel %vm487, %v4916, 0
        %v4931 = vsel %vm487, %v4917, 0
        %v4934 = vsel %vm487, %v4918, 0
        %v4937 = vsel %vm487, %v4919, 0
        %v4940 = vsel %vm487, %v4920, 0
        %v4943 = vsel %vm487, %v4921, 0
        %v4946 = vsel %vm487, %v4922, 0
        %v4949 = vsel %vm487, %v4923, 0
        %4951 = vmatpush.msra.mxu0 0.0
        %4952 = vmatpush.msra.mxu0 0.0
        %4953 = vmatpush.msra.mxu0 0.0
        %4954 = vmatpush.msra.mxu0 0.0
        %4955 = vmatpush.msra.mxu0 0.0
        %4956 = vmatpush.msra.mxu0 0.0
        %4957 = vmatpush.msra.mxu0 0.0
        %4958 = vmatpush.msra.mxu0 0.0
        %4959 = vmatpush.msra.mxu0 0.0
        %4960 = vmatpush.msra.mxu0 0.0
        %4961 = vmatpush.msra.mxu0 0.0
        %4962 = vmatpush.msra.mxu0 0.0
        %4963 = vmatpush.msra.mxu0 0.0
        %4964 = vmatpush.msra.mxu0 0.0
        %4965 = vmatpush.msra.mxu0 %v4926
        %4966 = vmatpush.msra.mxu0 %v4925
        %4967 = vmatmul.f32.gmra.mxu0 %v4928
        %v4968 = vpop.f32.mrf.mxu0
        %v4969 = vadd.f32 0.0, %v4968
        %4970 = vmatmul.f32.gmra.mxu0 %v4931
        %v4971 = vpop.f32.mrf.mxu0
        %v4972 = vadd.f32 0.0, %v4971
        %4973 = vmatmul.f32.gmra.mxu0 %v4934
        %v4974 = vpop.f32.mrf.mxu0
        %v4975 = vadd.f32 0.0, %v4974
        %4976 = vmatmul.f32.gmra.mxu0 %v4937
        %v4977 = vpop.f32.mrf.mxu0
        %v4978 = vadd.f32 0.0, %v4977
        %4979 = vmatmul.f32.gmra.mxu0 %v4940
        %v4980 = vpop.f32.mrf.mxu0
        %v4981 = vadd.f32 0.0, %v4980
        %4982 = vmatmul.f32.gmra.mxu0 %v4943
        %v4983 = vpop.f32.mrf.mxu0
        %v4984 = vadd.f32 0.0, %v4983
        %4985 = vmatmul.f32.gmra.mxu0 %v4946
        %v4986 = vpop.f32.mrf.mxu0
        %v4987 = vadd.f32 0.0, %v4986
        %4988 = vmatmul.f32.gmra.mxu0 %v4949
        %v4989 = vpop.f32.mrf.mxu0
        %v4990 = vadd.f32 0.0, %v4989
        %4991 = vdwg.mxu0
        %v4992 = vadd.f32 %v4893, %v4969
        %v4993 = vadd.f32 %v4896, %v4972
        %v4994 = vadd.f32 %v4899, %v4975
        %v4995 = vadd.f32 %v4902, %v4978
        %v4996 = vadd.f32 %v4905, %v4981
        %v4997 = vadd.f32 %v4908, %v4984
        %v4998 = vadd.f32 %v4911, %v4987
        %v4999 = vadd.f32 %v4914, %v4990
        %v5000 = vld [vmem:[%s4755] sm:$0xff]
        %v5001 = vld [vmem:[%s4755 + $0x10] sm:$0xff]
        %v5002 = vld [vmem:[%s4755 + $0x20] sm:$0xff]
        %v5003 = vld [vmem:[%s4755 + $0x30] sm:$0xff]
        %v5004 = vld [vmem:[%s4755 + $0x40] sm:$0xff]
        %v5005 = vld [vmem:[%s4755 + $0x50] sm:$0xff]
        %v5006 = vld [vmem:[%s4755 + $0x60] sm:$0xff]
        %v5007 = vld [vmem:[%s4755 + $0x70] sm:$0xff]
        %s5008 = scalar_lea.vmem %s8, 48
        %v5009 = vld [vmem:[%s5008] sm:$0xff]
        %v5010 = vld [vmem:[%s5008 + $0x8] sm:$0xff]
        %v5012 = vsel %vm487, %v5000, 0
        %v5015 = vsel %vm487, %v5001, 0
        %v5018 = vsel %vm487, %v5002, 0
        %v5021 = vsel %vm487, %v5003, 0
        %v5024 = vsel %vm487, %v5004, 0
        %v5027 = vsel %vm487, %v5005, 0
        %v5030 = vsel %vm487, %v5006, 0
        %v5033 = vsel %vm487, %v5007, 0
        %5035 = vmatpush.msra.mxu0 0.0
        %5036 = vmatpush.msra.mxu0 0.0
        %5037 = vmatpush.msra.mxu0 0.0
        %5038 = vmatpush.msra.mxu0 0.0
        %5039 = vmatpush.msra.mxu0 0.0
        %5040 = vmatpush.msra.mxu0 0.0
        %5041 = vmatpush.msra.mxu0 0.0
        %5042 = vmatpush.msra.mxu0 0.0
        %5043 = vmatpush.msra.mxu0 0.0
        %5044 = vmatpush.msra.mxu0 0.0
        %5045 = vmatpush.msra.mxu0 0.0
        %5046 = vmatpush.msra.mxu0 0.0
        %5047 = vmatpush.msra.mxu0 0.0
        %5048 = vmatpush.msra.mxu0 0.0
        %5049 = vmatpush.msra.mxu0 %v5010
        %5050 = vmatpush.msra.mxu0 %v5009
        %5051 = vmatmul.f32.gmra.mxu0 %v5012
        %v5052 = vpop.f32.mrf.mxu0
        %v5053 = vadd.f32 0.0, %v5052
        %5054 = vmatmul.f32.gmra.mxu0 %v5015
        %v5055 = vpop.f32.mrf.mxu0
        %v5056 = vadd.f32 0.0, %v5055
        %5057 = vmatmul.f32.gmra.mxu0 %v5018
        %v5058 = vpop.f32.mrf.mxu0
        %v5059 = vadd.f32 0.0, %v5058
        %5060 = vmatmul.f32.gmra.mxu0 %v5021
        %v5061 = vpop.f32.mrf.mxu0
        %v5062 = vadd.f32 0.0, %v5061
        %5063 = vmatmul.f32.gmra.mxu0 %v5024
        %v5064 = vpop.f32.mrf.mxu0
        %v5065 = vadd.f32 0.0, %v5064
        %5066 = vmatmul.f32.gmra.mxu0 %v5027
        %v5067 = vpop.f32.mrf.mxu0
        %v5068 = vadd.f32 0.0, %v5067
        %5069 = vmatmul.f32.gmra.mxu0 %v5030
        %v5070 = vpop.f32.mrf.mxu0
        %v5071 = vadd.f32 0.0, %v5070
        %5072 = vmatmul.f32.gmra.mxu0 %v5033
        %v5073 = vpop.f32.mrf.mxu0
        %v5074 = vadd.f32 0.0, %v5073
        %5075 = vdwg.mxu0
        %v5076 = vadd.f32 %v4992, %v5053
        %v5077 = vadd.f32 %v4993, %v5056
        %v5078 = vadd.f32 %v4994, %v5059
        %v5079 = vadd.f32 %v4995, %v5062
        %v5080 = vadd.f32 %v4996, %v5065
        %v5081 = vadd.f32 %v4997, %v5068
        %v5082 = vadd.f32 %v4998, %v5071
        %v5083 = vadd.f32 %v4999, %v5074
        %v5084 = vld [vmem:[%s4755 + $0x1] sm:$0xff]
        %v5085 = vld [vmem:[%s4755 + $0x11] sm:$0xff]
        %v5086 = vld [vmem:[%s4755 + $0x21] sm:$0xff]
        %v5087 = vld [vmem:[%s4755 + $0x31] sm:$0xff]
        %v5088 = vld [vmem:[%s4755 + $0x41] sm:$0xff]
        %v5089 = vld [vmem:[%s4755 + $0x51] sm:$0xff]
        %v5090 = vld [vmem:[%s4755 + $0x61] sm:$0xff]
        %v5091 = vld [vmem:[%s4755 + $0x71] sm:$0xff]
        %s5092 = scalar_lea.vmem %s8, 64
        %v5093 = vld [vmem:[%s5092] sm:$0xff]
        %v5094 = vld [vmem:[%s5092 + $0x8] sm:$0xff]
        %v5096 = vsel %vm487, %v5084, 0
        %v5099 = vsel %vm487, %v5085, 0
        %v5102 = vsel %vm487, %v5086, 0
        %v5105 = vsel %vm487, %v5087, 0
        %v5108 = vsel %vm487, %v5088, 0
        %v5111 = vsel %vm487, %v5089, 0
        %v5114 = vsel %vm487, %v5090, 0
        %v5117 = vsel %vm487, %v5091, 0
        %5119 = vmatpush.msra.mxu0 0.0
        %5120 = vmatpush.msra.mxu0 0.0
        %5121 = vmatpush.msra.mxu0 0.0
        %5122 = vmatpush.msra.mxu0 0.0
        %5123 = vmatpush.msra.mxu0 0.0
        %5124 = vmatpush.msra.mxu0 0.0
        %5125 = vmatpush.msra.mxu0 0.0
        %5126 = vmatpush.msra.mxu0 0.0
        %5127 = vmatpush.msra.mxu0 0.0
        %5128 = vmatpush.msra.mxu0 0.0
        %5129 = vmatpush.msra.mxu0 0.0
        %5130 = vmatpush.msra.mxu0 0.0
        %5131 = vmatpush.msra.mxu0 0.0
        %5132 = vmatpush.msra.mxu0 0.0
        %5133 = vmatpush.msra.mxu0 %v5094
        %5134 = vmatpush.msra.mxu0 %v5093
        %5135 = vmatmul.f32.gmra.mxu0 %v5096
        %v5136 = vpop.f32.mrf.mxu0
        %v5137 = vadd.f32 0.0, %v5136
        %5138 = vmatmul.f32.gmra.mxu0 %v5099
        %v5139 = vpop.f32.mrf.mxu0
        %v5140 = vadd.f32 0.0, %v5139
        %5141 = vmatmul.f32.gmra.mxu0 %v5102
        %v5142 = vpop.f32.mrf.mxu0
        %v5143 = vadd.f32 0.0, %v5142
        %5144 = vmatmul.f32.gmra.mxu0 %v5105
        %v5145 = vpop.f32.mrf.mxu0
        %v5146 = vadd.f32 0.0, %v5145
        %5147 = vmatmul.f32.gmra.mxu0 %v5108
        %v5148 = vpop.f32.mrf.mxu0
        %v5149 = vadd.f32 0.0, %v5148
        %5150 = vmatmul.f32.gmra.mxu0 %v5111
        %v5151 = vpop.f32.mrf.mxu0
        %v5152 = vadd.f32 0.0, %v5151
        %5153 = vmatmul.f32.gmra.mxu0 %v5114
        %v5154 = vpop.f32.mrf.mxu0
        %v5155 = vadd.f32 0.0, %v5154
        %5156 = vmatmul.f32.gmra.mxu0 %v5117
        %v5157 = vpop.f32.mrf.mxu0
        %v5158 = vadd.f32 0.0, %v5157
        %5159 = vdwg.mxu0
        %v5160 = vadd.f32 %v5076, %v5137
        %v5161 = vadd.f32 %v5077, %v5140
        %v5162 = vadd.f32 %v5078, %v5143
        %v5163 = vadd.f32 %v5079, %v5146
        %v5164 = vadd.f32 %v5080, %v5149
        %v5165 = vadd.f32 %v5081, %v5152
        %v5166 = vadd.f32 %v5082, %v5155
        %v5167 = vadd.f32 %v5083, %v5158
        %v5168 = vld [vmem:[%s4755 + $0x2] sm:$0xff]
        %v5169 = vld [vmem:[%s4755 + $0x12] sm:$0xff]
        %v5170 = vld [vmem:[%s4755 + $0x22] sm:$0xff]
        %v5171 = vld [vmem:[%s4755 + $0x32] sm:$0xff]
        %v5172 = vld [vmem:[%s4755 + $0x42] sm:$0xff]
        %v5173 = vld [vmem:[%s4755 + $0x52] sm:$0xff]
        %v5174 = vld [vmem:[%s4755 + $0x62] sm:$0xff]
        %v5175 = vld [vmem:[%s4755 + $0x72] sm:$0xff]
        %s5176 = scalar_lea.vmem %s8, 80
        %v5177 = vld [vmem:[%s5176] sm:$0xff]
        %v5178 = vld [vmem:[%s5176 + $0x8] sm:$0xff]
        %v5180 = vsel %vm487, %v5168, 0
        %v5183 = vsel %vm487, %v5169, 0
        %v5186 = vsel %vm487, %v5170, 0
        %v5189 = vsel %vm487, %v5171, 0
        %v5192 = vsel %vm487, %v5172, 0
        %v5195 = vsel %vm487, %v5173, 0
        %v5198 = vsel %vm487, %v5174, 0
        %v5201 = vsel %vm487, %v5175, 0
        %5203 = vmatpush.msra.mxu0 0.0
        %5204 = vmatpush.msra.mxu0 0.0
        %5205 = vmatpush.msra.mxu0 0.0
        %5206 = vmatpush.msra.mxu0 0.0
        %5207 = vmatpush.msra.mxu0 0.0
        %5208 = vmatpush.msra.mxu0 0.0
        %5209 = vmatpush.msra.mxu0 0.0
        %5210 = vmatpush.msra.mxu0 0.0
        %5211 = vmatpush.msra.mxu0 0.0
        %5212 = vmatpush.msra.mxu0 0.0
        %5213 = vmatpush.msra.mxu0 0.0
        %5214 = vmatpush.msra.mxu0 0.0
        %5215 = vmatpush.msra.mxu0 0.0
        %5216 = vmatpush.msra.mxu0 0.0
        %5217 = vmatpush.msra.mxu0 %v5178
        %5218 = vmatpush.msra.mxu0 %v5177
        %5219 = vmatmul.f32.gmra.mxu0 %v5180
        %v5220 = vpop.f32.mrf.mxu0
        %v5221 = vadd.f32 0.0, %v5220
        %5222 = vmatmul.f32.gmra.mxu0 %v5183
        %v5223 = vpop.f32.mrf.mxu0
        %v5224 = vadd.f32 0.0, %v5223
        %5225 = vmatmul.f32.gmra.mxu0 %v5186
        %v5226 = vpop.f32.mrf.mxu0
        %v5227 = vadd.f32 0.0, %v5226
        %5228 = vmatmul.f32.gmra.mxu0 %v5189
        %v5229 = vpop.f32.mrf.mxu0
        %v5230 = vadd.f32 0.0, %v5229
        %5231 = vmatmul.f32.gmra.mxu0 %v5192
        %v5232 = vpop.f32.mrf.mxu0
        %v5233 = vadd.f32 0.0, %v5232
        %5234 = vmatmul.f32.gmra.mxu0 %v5195
        %v5235 = vpop.f32.mrf.mxu0
        %v5236 = vadd.f32 0.0, %v5235
        %5237 = vmatmul.f32.gmra.mxu0 %v5198
        %v5238 = vpop.f32.mrf.mxu0
        %v5239 = vadd.f32 0.0, %v5238
        %5240 = vmatmul.f32.gmra.mxu0 %v5201
        %v5241 = vpop.f32.mrf.mxu0
        %v5242 = vadd.f32 0.0, %v5241
        %5243 = vdwg.mxu0
        %v5244 = vadd.f32 %v5160, %v5221
        %v5245 = vadd.f32 %v5161, %v5224
        %v5246 = vadd.f32 %v5162, %v5227
        %v5247 = vadd.f32 %v5163, %v5230
        %v5248 = vadd.f32 %v5164, %v5233
        %v5249 = vadd.f32 %v5165, %v5236
        %v5250 = vadd.f32 %v5166, %v5239
        %v5251 = vadd.f32 %v5167, %v5242
        %s5252 = scalar_lea.vmem [#allocation4], 32
        %v5253 = vld [vmem:[%s5252] sm:$0xff]
        %v5254 = vld [vmem:[%s5252 + $0x10] sm:$0xff]
        %v5255 = vld [vmem:[%s5252 + $0x20] sm:$0xff]
        %v5256 = vld [vmem:[%s5252 + $0x30] sm:$0xff]
        %v5257 = vld [vmem:[%s5252 + $0x40] sm:$0xff]
        %v5258 = vld [vmem:[%s5252 + $0x50] sm:$0xff]
        %v5259 = vld [vmem:[%s5252 + $0x60] sm:$0xff]
        %v5260 = vld [vmem:[%s5252 + $0x70] sm:$0xff]
        %s5261 = scalar_lea.vmem %s8, 96
        %v5262 = vld [vmem:[%s5261] sm:$0xff]
        %v5263 = vld [vmem:[%s5261 + $0x8] sm:$0xff]
        %v5265 = vsel %vm487, %v5253, 0
        %v5268 = vsel %vm487, %v5254, 0
        %v5271 = vsel %vm487, %v5255, 0
        %v5274 = vsel %vm487, %v5256, 0
        %v5277 = vsel %vm487, %v5257, 0
        %v5280 = vsel %vm487, %v5258, 0
        %v5283 = vsel %vm487, %v5259, 0
        %v5286 = vsel %vm487, %v5260, 0
        %5288 = vmatpush.msra.mxu0 0.0
        %5289 = vmatpush.msra.mxu0 0.0
        %5290 = vmatpush.msra.mxu0 0.0
        %5291 = vmatpush.msra.mxu0 0.0
        %5292 = vmatpush.msra.mxu0 0.0
        %5293 = vmatpush.msra.mxu0 0.0
        %5294 = vmatpush.msra.mxu0 0.0
        %5295 = vmatpush.msra.mxu0 0.0
        %5296 = vmatpush.msra.mxu0 0.0
        %5297 = vmatpush.msra.mxu0 0.0
        %5298 = vmatpush.msra.mxu0 0.0
        %5299 = vmatpush.msra.mxu0 0.0
        %5300 = vmatpush.msra.mxu0 0.0
        %5301 = vmatpush.msra.mxu0 0.0
        %5302 = vmatpush.msra.mxu0 %v5263
        %5303 = vmatpush.msra.mxu0 %v5262
        %5304 = vmatmul.f32.gmra.mxu0 %v5265
        %v5305 = vpop.f32.mrf.mxu0
        %v5306 = vadd.f32 0.0, %v5305
        %5307 = vmatmul.f32.gmra.mxu0 %v5268
        %v5308 = vpop.f32.mrf.mxu0
        %v5309 = vadd.f32 0.0, %v5308
        %5310 = vmatmul.f32.gmra.mxu0 %v5271
        %v5311 = vpop.f32.mrf.mxu0
        %v5312 = vadd.f32 0.0, %v5311
        %5313 = vmatmul.f32.gmra.mxu0 %v5274
        %v5314 = vpop.f32.mrf.mxu0
        %v5315 = vadd.f32 0.0, %v5314
        %5316 = vmatmul.f32.gmra.mxu0 %v5277
        %v5317 = vpop.f32.mrf.mxu0
        %v5318 = vadd.f32 0.0, %v5317
        %5319 = vmatmul.f32.gmra.mxu0 %v5280
        %v5320 = vpop.f32.mrf.mxu0
        %v5321 = vadd.f32 0.0, %v5320
        %5322 = vmatmul.f32.gmra.mxu0 %v5283
        %v5323 = vpop.f32.mrf.mxu0
        %v5324 = vadd.f32 0.0, %v5323
        %5325 = vmatmul.f32.gmra.mxu0 %v5286
        %v5326 = vpop.f32.mrf.mxu0
        %v5327 = vadd.f32 0.0, %v5326
        %5328 = vdwg.mxu0
        %v5329 = vadd.f32 %v5244, %v5306
        %v5330 = vadd.f32 %v5245, %v5309
        %v5331 = vadd.f32 %v5246, %v5312
        %v5332 = vadd.f32 %v5247, %v5315
        %v5333 = vadd.f32 %v5248, %v5318
        %v5334 = vadd.f32 %v5249, %v5321
        %v5335 = vadd.f32 %v5250, %v5324
        %v5336 = vadd.f32 %v5251, %v5327
        %v5337 = vld [vmem:[%s5252 + $0x1] sm:$0xff]
        %v5338 = vld [vmem:[%s5252 + $0x11] sm:$0xff]
        %v5339 = vld [vmem:[%s5252 + $0x21] sm:$0xff]
        %v5340 = vld [vmem:[%s5252 + $0x31] sm:$0xff]
        %v5341 = vld [vmem:[%s5252 + $0x41] sm:$0xff]
        %v5342 = vld [vmem:[%s5252 + $0x51] sm:$0xff]
        %v5343 = vld [vmem:[%s5252 + $0x61] sm:$0xff]
        %v5344 = vld [vmem:[%s5252 + $0x71] sm:$0xff]
        %s5345 = scalar_lea.vmem %s8, 112
        %v5346 = vld [vmem:[%s5345] sm:$0xff]
        %v5347 = vld [vmem:[%s5345 + $0x8] sm:$0xff]
        %v5349 = vsel %vm487, %v5337, 0
        %v5352 = vsel %vm487, %v5338, 0
        %v5355 = vsel %vm487, %v5339, 0
        %v5358 = vsel %vm487, %v5340, 0
        %v5361 = vsel %vm487, %v5341, 0
        %v5364 = vsel %vm487, %v5342, 0
        %v5367 = vsel %vm487, %v5343, 0
        %v5370 = vsel %vm487, %v5344, 0
        %5372 = vmatpush.msra.mxu0 0.0
        %5373 = vmatpush.msra.mxu0 0.0
        %5374 = vmatpush.msra.mxu0 0.0
        %5375 = vmatpush.msra.mxu0 0.0
        %5376 = vmatpush.msra.mxu0 0.0
        %5377 = vmatpush.msra.mxu0 0.0
        %5378 = vmatpush.msra.mxu0 0.0
        %5379 = vmatpush.msra.mxu0 0.0
        %5380 = vmatpush.msra.mxu0 0.0
        %5381 = vmatpush.msra.mxu0 0.0
        %5382 = vmatpush.msra.mxu0 0.0
        %5383 = vmatpush.msra.mxu0 0.0
        %5384 = vmatpush.msra.mxu0 0.0
        %5385 = vmatpush.msra.mxu0 0.0
        %5386 = vmatpush.msra.mxu0 %v5347
        %5387 = vmatpush.msra.mxu0 %v5346
        %5388 = vmatmul.f32.gmra.mxu0 %v5349
        %v5389 = vpop.f32.mrf.mxu0
        %v5390 = vadd.f32 0.0, %v5389
        %5391 = vmatmul.f32.gmra.mxu0 %v5352
        %v5392 = vpop.f32.mrf.mxu0
        %v5393 = vadd.f32 0.0, %v5392
        %5394 = vmatmul.f32.gmra.mxu0 %v5355
        %v5395 = vpop.f32.mrf.mxu0
        %v5396 = vadd.f32 0.0, %v5395
        %5397 = vmatmul.f32.gmra.mxu0 %v5358
        %v5398 = vpop.f32.mrf.mxu0
        %v5399 = vadd.f32 0.0, %v5398
        %5400 = vmatmul.f32.gmra.mxu0 %v5361
        %v5401 = vpop.f32.mrf.mxu0
        %v5402 = vadd.f32 0.0, %v5401
        %5403 = vmatmul.f32.gmra.mxu0 %v5364
        %v5404 = vpop.f32.mrf.mxu0
        %v5405 = vadd.f32 0.0, %v5404
        %5406 = vmatmul.f32.gmra.mxu0 %v5367
        %v5407 = vpop.f32.mrf.mxu0
        %v5408 = vadd.f32 0.0, %v5407
        %5409 = vmatmul.f32.gmra.mxu0 %v5370
        %v5410 = vpop.f32.mrf.mxu0
        %v5411 = vadd.f32 0.0, %v5410
        %5412 = vdwg.mxu0
        %v5413 = vadd.f32 %v5329, %v5390
        %v5414 = vadd.f32 %v5330, %v5393
        %v5415 = vadd.f32 %v5331, %v5396
        %v5416 = vadd.f32 %v5332, %v5399
        %v5417 = vadd.f32 %v5333, %v5402
        %v5418 = vadd.f32 %v5334, %v5405
        %v5419 = vadd.f32 %v5335, %v5408
        %v5420 = vadd.f32 %v5336, %v5411
        %v5421 = vld [vmem:[%s5252 + $0x2] sm:$0xff]
        %v5422 = vld [vmem:[%s5252 + $0x12] sm:$0xff]
        %v5423 = vld [vmem:[%s5252 + $0x22] sm:$0xff]
        %v5424 = vld [vmem:[%s5252 + $0x32] sm:$0xff]
        %v5425 = vld [vmem:[%s5252 + $0x42] sm:$0xff]
        %v5426 = vld [vmem:[%s5252 + $0x52] sm:$0xff]
        %v5427 = vld [vmem:[%s5252 + $0x62] sm:$0xff]
        %v5428 = vld [vmem:[%s5252 + $0x72] sm:$0xff]
        %s5429 = scalar_lea.vmem %s8, 128
        %v5430 = vld [vmem:[%s5429] sm:$0xff]
        %v5431 = vld [vmem:[%s5429 + $0x8] sm:$0xff]
        %v5433 = vsel %vm487, %v5421, 0
        %v5436 = vsel %vm487, %v5422, 0
        %v5439 = vsel %vm487, %v5423, 0
        %v5442 = vsel %vm487, %v5424, 0
        %v5445 = vsel %vm487, %v5425, 0
        %v5448 = vsel %vm487, %v5426, 0
        %v5451 = vsel %vm487, %v5427, 0
        %v5454 = vsel %vm487, %v5428, 0
        %5456 = vmatpush.msra.mxu0 0.0
        %5457 = vmatpush.msra.mxu0 0.0
        %5458 = vmatpush.msra.mxu0 0.0
        %5459 = vmatpush.msra.mxu0 0.0
        %5460 = vmatpush.msra.mxu0 0.0
        %5461 = vmatpush.msra.mxu0 0.0
        %5462 = vmatpush.msra.mxu0 0.0
        %5463 = vmatpush.msra.mxu0 0.0
        %5464 = vmatpush.msra.mxu0 0.0
        %5465 = vmatpush.msra.mxu0 0.0
        %5466 = vmatpush.msra.mxu0 0.0
        %5467 = vmatpush.msra.mxu0 0.0
        %5468 = vmatpush.msra.mxu0 0.0
        %5469 = vmatpush.msra.mxu0 0.0
        %5470 = vmatpush.msra.mxu0 %v5431
        %5471 = vmatpush.msra.mxu0 %v5430
        %5472 = vmatmul.f32.gmra.mxu0 %v5433
        %v5473 = vpop.f32.mrf.mxu0
        %v5474 = vadd.f32 0.0, %v5473
        %5475 = vmatmul.f32.gmra.mxu0 %v5436
        %v5476 = vpop.f32.mrf.mxu0
        %v5477 = vadd.f32 0.0, %v5476
        %5478 = vmatmul.f32.gmra.mxu0 %v5439
        %v5479 = vpop.f32.mrf.mxu0
        %v5480 = vadd.f32 0.0, %v5479
        %5481 = vmatmul.f32.gmra.mxu0 %v5442
        %v5482 = vpop.f32.mrf.mxu0
        %v5483 = vadd.f32 0.0, %v5482
        %5484 = vmatmul.f32.gmra.mxu0 %v5445
        %v5485 = vpop.f32.mrf.mxu0
        %v5486 = vadd.f32 0.0, %v5485
        %5487 = vmatmul.f32.gmra.mxu0 %v5448
        %v5488 = vpop.f32.mrf.mxu0
        %v5489 = vadd.f32 0.0, %v5488
        %5490 = vmatmul.f32.gmra.mxu0 %v5451
        %v5491 = vpop.f32.mrf.mxu0
        %v5492 = vadd.f32 0.0, %v5491
        %5493 = vmatmul.f32.gmra.mxu0 %v5454
        %v5494 = vpop.f32.mrf.mxu0
        %v5495 = vadd.f32 0.0, %v5494
        %5496 = vdwg.mxu0
        %v5497 = vadd.f32 %v5413, %v5474
        %v5498 = vadd.f32 %v5414, %v5477
        %v5499 = vadd.f32 %v5415, %v5480
        %v5500 = vadd.f32 %v5416, %v5483
        %v5501 = vadd.f32 %v5417, %v5486
        %v5502 = vadd.f32 %v5418, %v5489
        %v5503 = vadd.f32 %v5419, %v5492
        %v5504 = vadd.f32 %v5420, %v5495
        %v5506 = vperm.slane %v4764, 0
        %v5508 = vadd.f32 %v5497, %v5506
        %v5509 = vadd.f32 %v5498, %v5506
        %v5510 = vadd.f32 %v5499, %v5506
        %v5511 = vadd.f32 %v5500, %v5506
        %v5512 = vadd.f32 %v5501, %v5506
        %v5513 = vadd.f32 %v5502, %v5506
        %v5514 = vadd.f32 %v5503, %v5506
        %v5515 = vadd.f32 %v5504, %v5506
        %v5516 = vmax.f32 %v5508, 0.0
        %v5517 = vmax.f32 %v5509, 0.0
        %v5518 = vmax.f32 %v5510, 0.0
        %v5519 = vmax.f32 %v5511, 0.0
        %v5520 = vmax.f32 %v5512, 0.0
        %v5521 = vmax.f32 %v5513, 0.0
        %v5522 = vmax.f32 %v5514, 0.0
        %v5523 = vmax.f32 %v5515, 0.0
        %vm5524 = vcmask 195584
        %5525 = vst.msk [vmem:[#allocation7] sm:$0xff] %vm5524, %v5516
        %5526 = vst.msk [vmem:[#allocation7 + $0x8] sm:$0xff] %vm5524, %v5517
        %5527 = vst.msk [vmem:[#allocation7 + $0x10] sm:$0xff] %vm5524, %v5518
        %5528 = vst.msk [vmem:[#allocation7 + $0x18] sm:$0xff] %vm5524, %v5519
        %5529 = vst.msk [vmem:[#allocation7 + $0x20] sm:$0xff] %vm5524, %v5520
        %5530 = vst.msk [vmem:[#allocation7 + $0x28] sm:$0xff] %vm5524, %v5521
        %5531 = vst.msk [vmem:[#allocation7 + $0x30] sm:$0xff] %vm5524, %v5522
        %5532 = vst.msk [vmem:[#allocation7 + $0x38] sm:$0xff] %vm5524, %v5523
        %v5533 = vld [vmem:[#allocation7] ss:$2 sm:$0xf]
        %s5534 = scalar_lea.vmem [#allocation7], 8
        %v5535 = vld [vmem:[%s5534] ss:$2 sm:$0xf]
        %s5536 = scalar_lea.vmem [#allocation7], 16
        %v5537 = vld [vmem:[%s5536] ss:$2 sm:$0xf]
        %s5538 = scalar_lea.vmem [#allocation7], 24
        %v5539 = vld [vmem:[%s5538] ss:$2 sm:$0xf]
        %s5540 = scalar_lea.vmem [#allocation7], 32
        %v5541 = vld [vmem:[%s5540] ss:$2 sm:$0xf]
        %s5542 = scalar_lea.vmem [#allocation7], 40
        %v5543 = vld [vmem:[%s5542] ss:$2 sm:$0xf]
        %s5544 = scalar_lea.vmem [#allocation7], 48
        %v5545 = vld [vmem:[%s5544] ss:$2 sm:$0xf]
        %s5546 = scalar_lea.vmem [#allocation7], 56
        %v5547 = vld [vmem:[%s5546] ss:$2 sm:$0xf]
        %s5548 = scalar_lea.vmem [#allocation7], 1
        %v5549 = vld [vmem:[%s5548] ss:$2 sm:$0xf]
        %s5550 = scalar_lea.vmem [#allocation7], 9
        %v5551 = vld [vmem:[%s5550] ss:$2 sm:$0xf]
        %s5552 = scalar_lea.vmem [#allocation7], 17
        %v5553 = vld [vmem:[%s5552] ss:$2 sm:$0xf]
        %s5554 = scalar_lea.vmem [#allocation7], 25
        %v5555 = vld [vmem:[%s5554] ss:$2 sm:$0xf]
        %s5556 = scalar_lea.vmem [#allocation7], 33
        %v5557 = vld [vmem:[%s5556] ss:$2 sm:$0xf]
        %s5558 = scalar_lea.vmem [#allocation7], 41
        %v5559 = vld [vmem:[%s5558] ss:$2 sm:$0xf]
        %s5560 = scalar_lea.vmem [#allocation7], 49
        %v5561 = vld [vmem:[%s5560] ss:$2 sm:$0xf]
        %s5562 = scalar_lea.vmem [#allocation7], 57
        %v5563 = vld [vmem:[%s5562] ss:$2 sm:$0xf]
        %v5564 = vmax.f32 %v5533, %v5549
        %v5565 = vmax.f32 %v5535, %v5551
        %v5566 = vmax.f32 %v5537, %v5553
        %v5567 = vmax.f32 %v5539, %v5555
        %v5568 = vmax.f32 %v5541, %v5557
        %v5569 = vmax.f32 %v5543, %v5559
        %v5570 = vmax.f32 %v5545, %v5561
        %v5571 = vmax.f32 %v5547, %v5563
        %vm5572 = vcmask 191488
        %5573 = vst.msk [vmem:[#allocation8] sm:$0xf] %vm5572, %v5564
        %5574 = vst.msk [vmem:[#allocation8 + $0x4] sm:$0xf] %vm5572, %v5565
        %5575 = vst.msk [vmem:[#allocation8 + $0x8] sm:$0xf] %vm5572, %v5566
        %5576 = vst.msk [vmem:[#allocation8 + $0xc] sm:$0xf] %vm5572, %v5567
        %5577 = vst.msk [vmem:[#allocation8 + $0x10] sm:$0xf] %vm5572, %v5568
        %5578 = vst.msk [vmem:[#allocation8 + $0x14] sm:$0xf] %vm5572, %v5569
        %5579 = vst.msk [vmem:[#allocation8 + $0x18] sm:$0xf] %vm5572, %v5570
        %5580 = vst.msk [vmem:[#allocation8 + $0x1c] sm:$0xf] %vm5572, %v5571
        %v5581 = vld [vmem:[#allocation8] sm:$0xf]
        %v5582 = vld [vmem:[#allocation8 + $0x8] sm:$0xf]
        %v5583 = vld [vmem:[#allocation8 + $0x10] sm:$0xf]
        %v5584 = vld [vmem:[#allocation8 + $0x18] sm:$0xf]
        %s5585 = scalar_lea.vmem [#allocation8], 4
        %v5586 = vld [vmem:[%s5585] sm:$0xf]
        %v5587 = vld [vmem:[%s5585 + $0x8] sm:$0xf]
        %v5588 = vld [vmem:[%s5585 + $0x10] sm:$0xf]
        %v5589 = vld [vmem:[%s5585 + $0x18] sm:$0xf]
        %v5590 = vmax.f32 %v5581, %v5586
        %v5591 = vmax.f32 %v5582, %v5587
        %v5592 = vmax.f32 %v5583, %v5588
        %v5593 = vmax.f32 %v5584, %v5589
        %5594 = vst.msk [vmem:[#allocation9] sm:$0xf] %vm5572, %v5590
        %5595 = vst.msk [vmem:[#allocation9 + $0x4] sm:$0xf] %vm5572, %v5591
        %5596 = vst.msk [vmem:[#allocation9 + $0x8] sm:$0xf] %vm5572, %v5592
        %5597 = vst.msk [vmem:[#allocation9 + $0xc] sm:$0xf] %vm5572, %v5593
        %v5598 = vld [vmem:[%s11] sm:$0x3]
        %v5599 = vld [vmem:[#allocation9] sm:$0x1]
        %v5600 = vld [vmem:[%s10] sm:$0xff]
        %v5601 = vld [vmem:[%s10 + $0x8] sm:$0xff]
        %v5602 = vld [vmem:[%s10 + $0x10] sm:$0xff]
        %v5603 = vld [vmem:[%s10 + $0x18] sm:$0xff]
        %v5604 = vld [vmem:[%s10 + $0x20] sm:$0xff]
        %v5605 = vld [vmem:[%s10 + $0x28] sm:$0xff]
        %v5607 = vsel %vm5524, %v5599, 0
        %5609 = vmatpush.msra.mxu0 0.0
        %5610 = vmatpush.msra.mxu0 0.0
        %5611 = vmatpush.msra.mxu0 0.0
        %5612 = vmatpush.msra.mxu0 0.0
        %5613 = vmatpush.msra.mxu0 0.0
        %5614 = vmatpush.msra.mxu0 0.0
        %5615 = vmatpush.msra.mxu0 0.0
        %5616 = vmatpush.msra.mxu0 0.0
        %5617 = vmatpush.msra.mxu0 0.0
        %5618 = vmatpush.msra.mxu0 0.0
        %5619 = vmatpush.msra.mxu0 0.0
        %5620 = vmatpush.msra.mxu0 0.0
        %5621 = vmatpush.msra.mxu0 0.0
        %5622 = vmatpush.msra.mxu0 %v5604
        %5623 = vmatpush.msra.mxu0 %v5602
        %5624 = vmatpush.msra.mxu0 %v5600
        %5625 = vmatmul.f32.gmra.mxu0 %v5607
        %v5626 = vpop.f32.mrf.mxu0
        %v5627 = vadd.f32 0.0, %v5626
        %5628 = vdwg.mxu0
        %5629 = vmatpush.msra.mxu0 0.0
        %5630 = vmatpush.msra.mxu0 0.0
        %5631 = vmatpush.msra.mxu0 0.0
        %5632 = vmatpush.msra.mxu0 0.0
        %5633 = vmatpush.msra.mxu0 0.0
        %5634 = vmatpush.msra.mxu0 0.0
        %5635 = vmatpush.msra.mxu0 0.0
        %5636 = vmatpush.msra.mxu0 0.0
        %5637 = vmatpush.msra.mxu0 0.0
        %5638 = vmatpush.msra.mxu0 0.0
        %5639 = vmatpush.msra.mxu0 0.0
        %5640 = vmatpush.msra.mxu0 0.0
        %5641 = vmatpush.msra.mxu0 0.0
        %5642 = vmatpush.msra.mxu0 %v5605
        %5643 = vmatpush.msra.mxu0 %v5603
        %5644 = vmatpush.msra.mxu0 %v5601
        %5645 = vmatmul.f32.gmra.mxu0 %v5607
        %v5646 = vpop.f32.mrf.mxu0
        %v5647 = vadd.f32 0.0, %v5646
        %5648 = vdwg.mxu0
        %v5651 = vrot.slane %v5647, 7
        %vm5652 = vcmask 1040384
        %v5653 = vsel %vm5652, %v5627, %v5651
        %v5655 = vadd.f32 %v5598, %v5653
        %v5656 = vld [vmem:[#allocation9 + $0x1] sm:$0x1]
        %s5657 = scalar_lea.vmem %s10, 48
        %v5658 = vld [vmem:[%s5657] sm:$0xff]
        %v5659 = vld [vmem:[%s5657 + $0x8] sm:$0xff]
        %v5660 = vld [vmem:[%s5657 + $0x10] sm:$0xff]
        %v5661 = vld [vmem:[%s5657 + $0x18] sm:$0xff]
        %v5662 = vld [vmem:[%s5657 + $0x20] sm:$0xff]
        %v5663 = vld [vmem:[%s5657 + $0x28] sm:$0xff]
        %v5665 = vsel %vm5524, %v5656, 0
        %5667 = vmatpush.msra.mxu0 0.0
        %5668 = vmatpush.msra.mxu0 0.0
        %5669 = vmatpush.msra.mxu0 0.0
        %5670 = vmatpush.msra.mxu0 0.0
        %5671 = vmatpush.msra.mxu0 0.0
        %5672 = vmatpush.msra.mxu0 0.0
        %5673 = vmatpush.msra.mxu0 0.0
        %5674 = vmatpush.msra.mxu0 0.0
        %5675 = vmatpush.msra.mxu0 0.0
        %5676 = vmatpush.msra.mxu0 0.0
        %5677 = vmatpush.msra.mxu0 0.0
        %5678 = vmatpush.msra.mxu0 0.0
        %5679 = vmatpush.msra.mxu0 0.0
        %5680 = vmatpush.msra.mxu0 %v5662
        %5681 = vmatpush.msra.mxu0 %v5660
        %5682 = vmatpush.msra.mxu0 %v5658
        %5683 = vmatmul.f32.gmra.mxu0 %v5665
        %v5684 = vpop.f32.mrf.mxu0
        %v5685 = vadd.f32 0.0, %v5684
        %5686 = vdwg.mxu0
        %5687 = vmatpush.msra.mxu0 0.0
        %5688 = vmatpush.msra.mxu0 0.0
        %5689 = vmatpush.msra.mxu0 0.0
        %5690 = vmatpush.msra.mxu0 0.0
        %5691 = vmatpush.msra.mxu0 0.0
        %5692 = vmatpush.msra.mxu0 0.0
        %5693 = vmatpush.msra.mxu0 0.0
        %5694 = vmatpush.msra.mxu0 0.0
        %5695 = vmatpush.msra.mxu0 0.0
        %5696 = vmatpush.msra.mxu0 0.0
        %5697 = vmatpush.msra.mxu0 0.0
        %5698 = vmatpush.msra.mxu0 0.0
        %5699 = vmatpush.msra.mxu0 0.0
        %5700 = vmatpush.msra.mxu0 %v5663
        %5701 = vmatpush.msra.mxu0 %v5661
        %5702 = vmatpush.msra.mxu0 %v5659
        %5703 = vmatmul.f32.gmra.mxu0 %v5665
        %v5704 = vpop.f32.mrf.mxu0
        %v5705 = vadd.f32 0.0, %v5704
        %5706 = vdwg.mxu0
        %v5709 = vrot.slane %v5705, 7
        %v5710 = vsel %vm5652, %v5685, %v5709
        %v5712 = vadd.f32 %v5655, %v5710
        %v5713 = vld [vmem:[#allocation9 + $0x2] sm:$0x1]
        %s5714 = scalar_lea.vmem %s10, 96
        %v5715 = vld [vmem:[%s5714] sm:$0xff]
        %v5716 = vld [vmem:[%s5714 + $0x8] sm:$0xff]
        %v5717 = vld [vmem:[%s5714 + $0x10] sm:$0xff]
        %v5718 = vld [vmem:[%s5714 + $0x18] sm:$0xff]
        %v5719 = vld [vmem:[%s5714 + $0x20] sm:$0xff]
        %v5720 = vld [vmem:[%s5714 + $0x28] sm:$0xff]
        %v5722 = vsel %vm5524, %v5713, 0
        %5724 = vmatpush.msra.mxu0 0.0
        %5725 = vmatpush.msra.mxu0 0.0
        %5726 = vmatpush.msra.mxu0 0.0
        %5727 = vmatpush.msra.mxu0 0.0
        %5728 = vmatpush.msra.mxu0 0.0
        %5729 = vmatpush.msra.mxu0 0.0
        %5730 = vmatpush.msra.mxu0 0.0
        %5731 = vmatpush.msra.mxu0 0.0
        %5732 = vmatpush.msra.mxu0 0.0
        %5733 = vmatpush.msra.mxu0 0.0
        %5734 = vmatpush.msra.mxu0 0.0
        %5735 = vmatpush.msra.mxu0 0.0
        %5736 = vmatpush.msra.mxu0 0.0
        %5737 = vmatpush.msra.mxu0 %v5719
        %5738 = vmatpush.msra.mxu0 %v5717
        %5739 = vmatpush.msra.mxu0 %v5715
        %5740 = vmatmul.f32.gmra.mxu0 %v5722
        %v5741 = vpop.f32.mrf.mxu0
        %v5742 = vadd.f32 0.0, %v5741
        %5743 = vdwg.mxu0
        %5744 = vmatpush.msra.mxu0 0.0
        %5745 = vmatpush.msra.mxu0 0.0
        %5746 = vmatpush.msra.mxu0 0.0
        %5747 = vmatpush.msra.mxu0 0.0
        %5748 = vmatpush.msra.mxu0 0.0
        %5749 = vmatpush.msra.mxu0 0.0
        %5750 = vmatpush.msra.mxu0 0.0
        %5751 = vmatpush.msra.mxu0 0.0
        %5752 = vmatpush.msra.mxu0 0.0
        %5753 = vmatpush.msra.mxu0 0.0
        %5754 = vmatpush.msra.mxu0 0.0
        %5755 = vmatpush.msra.mxu0 0.0
        %5756 = vmatpush.msra.mxu0 0.0
        %5757 = vmatpush.msra.mxu0 %v5720
        %5758 = vmatpush.msra.mxu0 %v5718
        %5759 = vmatpush.msra.mxu0 %v5716
        %5760 = vmatmul.f32.gmra.mxu0 %v5722
        %v5761 = vpop.f32.mrf.mxu0
        %v5762 = vadd.f32 0.0, %v5761
        %5763 = vdwg.mxu0
        %v5766 = vrot.slane %v5762, 7
        %v5767 = vsel %vm5652, %v5742, %v5766
        %v5769 = vadd.f32 %v5712, %v5767
        %v5770 = vld [vmem:[#allocation9 + $0x3] sm:$0x1]
        %s5771 = scalar_lea.vmem %s10, 144
        %v5772 = vld [vmem:[%s5771] sm:$0xff]
        %v5773 = vld [vmem:[%s5771 + $0x8] sm:$0xff]
        %v5774 = vld [vmem:[%s5771 + $0x10] sm:$0xff]
        %v5775 = vld [vmem:[%s5771 + $0x18] sm:$0xff]
        %v5776 = vld [vmem:[%s5771 + $0x20] sm:$0xff]
        %v5777 = vld [vmem:[%s5771 + $0x28] sm:$0xff]
        %v5779 = vsel %vm5524, %v5770, 0
        %5781 = vmatpush.msra.mxu0 0.0
        %5782 = vmatpush.msra.mxu0 0.0
        %5783 = vmatpush.msra.mxu0 0.0
        %5784 = vmatpush.msra.mxu0 0.0
        %5785 = vmatpush.msra.mxu0 0.0
        %5786 = vmatpush.msra.mxu0 0.0
        %5787 = vmatpush.msra.mxu0 0.0
        %5788 = vmatpush.msra.mxu0 0.0
        %5789 = vmatpush.msra.mxu0 0.0
        %5790 = vmatpush.msra.mxu0 0.0
        %5791 = vmatpush.msra.mxu0 0.0
        %5792 = vmatpush.msra.mxu0 0.0
        %5793 = vmatpush.msra.mxu0 0.0
        %5794 = vmatpush.msra.mxu0 %v5776
        %5795 = vmatpush.msra.mxu0 %v5774
        %5796 = vmatpush.msra.mxu0 %v5772
        %5797 = vmatmul.f32.gmra.mxu0 %v5779
        %v5798 = vpop.f32.mrf.mxu0
        %v5799 = vadd.f32 0.0, %v5798
        %5800 = vdwg.mxu0
        %5801 = vmatpush.msra.mxu0 0.0
        %5802 = vmatpush.msra.mxu0 0.0
        %5803 = vmatpush.msra.mxu0 0.0
        %5804 = vmatpush.msra.mxu0 0.0
        %5805 = vmatpush.msra.mxu0 0.0
        %5806 = vmatpush.msra.mxu0 0.0
        %5807 = vmatpush.msra.mxu0 0.0
        %5808 = vmatpush.msra.mxu0 0.0
        %5809 = vmatpush.msra.mxu0 0.0
        %5810 = vmatpush.msra.mxu0 0.0
        %5811 = vmatpush.msra.mxu0 0.0
        %5812 = vmatpush.msra.mxu0 0.0
        %5813 = vmatpush.msra.mxu0 0.0
        %5814 = vmatpush.msra.mxu0 %v5777
        %5815 = vmatpush.msra.mxu0 %v5775
        %5816 = vmatpush.msra.mxu0 %v5773
        %5817 = vmatmul.f32.gmra.mxu0 %v5779
        %v5818 = vpop.f32.mrf.mxu0
        %v5819 = vadd.f32 0.0, %v5818
        %5820 = vdwg.mxu0
        %v5823 = vrot.slane %v5819, 7
        %v5824 = vsel %vm5652, %v5799, %v5823
        %v5826 = vadd.f32 %v5769, %v5824
        %s5827 = scalar_lea.vmem [#allocation9], 4
        %v5828 = vld [vmem:[%s5827] sm:$0x1]
        %s5829 = scalar_lea.vmem %s10, 192
        %v5830 = vld [vmem:[%s5829] sm:$0xff]
        %v5831 = vld [vmem:[%s5829 + $0x8] sm:$0xff]
        %v5832 = vld [vmem:[%s5829 + $0x10] sm:$0xff]
        %v5833 = vld [vmem:[%s5829 + $0x18] sm:$0xff]
        %v5834 = vld [vmem:[%s5829 + $0x20] sm:$0xff]
        %v5835 = vld [vmem:[%s5829 + $0x28] sm:$0xff]
        %v5837 = vsel %vm5524, %v5828, 0
        %5839 = vmatpush.msra.mxu0 0.0
        %5840 = vmatpush.msra.mxu0 0.0
        %5841 = vmatpush.msra.mxu0 0.0
        %5842 = vmatpush.msra.mxu0 0.0
        %5843 = vmatpush.msra.mxu0 0.0
        %5844 = vmatpush.msra.mxu0 0.0
        %5845 = vmatpush.msra.mxu0 0.0
        %5846 = vmatpush.msra.mxu0 0.0
        %5847 = vmatpush.msra.mxu0 0.0
        %5848 = vmatpush.msra.mxu0 0.0
        %5849 = vmatpush.msra.mxu0 0.0
        %5850 = vmatpush.msra.mxu0 0.0
        %5851 = vmatpush.msra.mxu0 0.0
        %5852 = vmatpush.msra.mxu0 %v5834
        %5853 = vmatpush.msra.mxu0 %v5832
        %5854 = vmatpush.msra.mxu0 %v5830
        %5855 = vmatmul.f32.gmra.mxu0 %v5837
        %v5856 = vpop.f32.mrf.mxu0
        %v5857 = vadd.f32 0.0, %v5856
        %5858 = vdwg.mxu0
        %5859 = vmatpush.msra.mxu0 0.0
        %5860 = vmatpush.msra.mxu0 0.0
        %5861 = vmatpush.msra.mxu0 0.0
        %5862 = vmatpush.msra.mxu0 0.0
        %5863 = vmatpush.msra.mxu0 0.0
        %5864 = vmatpush.msra.mxu0 0.0
        %5865 = vmatpush.msra.mxu0 0.0
        %5866 = vmatpush.msra.mxu0 0.0
        %5867 = vmatpush.msra.mxu0 0.0
        %5868 = vmatpush.msra.mxu0 0.0
        %5869 = vmatpush.msra.mxu0 0.0
        %5870 = vmatpush.msra.mxu0 0.0
        %5871 = vmatpush.msra.mxu0 0.0
        %5872 = vmatpush.msra.mxu0 %v5835
        %5873 = vmatpush.msra.mxu0 %v5833
        %5874 = vmatpush.msra.mxu0 %v5831
        %5875 = vmatmul.f32.gmra.mxu0 %v5837
        %v5876 = vpop.f32.mrf.mxu0
        %v5877 = vadd.f32 0.0, %v5876
        %5878 = vdwg.mxu0
        %v5881 = vrot.slane %v5877, 7
        %v5882 = vsel %vm5652, %v5857, %v5881
        %v5884 = vadd.f32 %v5826, %v5882
        %v5885 = vld [vmem:[%s5827 + $0x1] sm:$0x1]
        %s5886 = scalar_lea.vmem %s10, 240
        %v5887 = vld [vmem:[%s5886] sm:$0xff]
        %v5888 = vld [vmem:[%s5886 + $0x8] sm:$0xff]
        %v5889 = vld [vmem:[%s5886 + $0x10] sm:$0xff]
        %v5890 = vld [vmem:[%s5886 + $0x18] sm:$0xff]
        %v5891 = vld [vmem:[%s5886 + $0x20] sm:$0xff]
        %v5892 = vld [vmem:[%s5886 + $0x28] sm:$0xff]
        %v5894 = vsel %vm5524, %v5885, 0
        %5896 = vmatpush.msra.mxu0 0.0
        %5897 = vmatpush.msra.mxu0 0.0
        %5898 = vmatpush.msra.mxu0 0.0
        %5899 = vmatpush.msra.mxu0 0.0
        %5900 = vmatpush.msra.mxu0 0.0
        %5901 = vmatpush.msra.mxu0 0.0
        %5902 = vmatpush.msra.mxu0 0.0
        %5903 = vmatpush.msra.mxu0 0.0
        %5904 = vmatpush.msra.mxu0 0.0
        %5905 = vmatpush.msra.mxu0 0.0
        %5906 = vmatpush.msra.mxu0 0.0
        %5907 = vmatpush.msra.mxu0 0.0
        %5908 = vmatpush.msra.mxu0 0.0
        %5909 = vmatpush.msra.mxu0 %v5891
        %5910 = vmatpush.msra.mxu0 %v5889
        %5911 = vmatpush.msra.mxu0 %v5887
        %5912 = vmatmul.f32.gmra.mxu0 %v5894
        %v5913 = vpop.f32.mrf.mxu0
        %v5914 = vadd.f32 0.0, %v5913
        %5915 = vdwg.mxu0
        %5916 = vmatpush.msra.mxu0 0.0
        %5917 = vmatpush.msra.mxu0 0.0
        %5918 = vmatpush.msra.mxu0 0.0
        %5919 = vmatpush.msra.mxu0 0.0
        %5920 = vmatpush.msra.mxu0 0.0
        %5921 = vmatpush.msra.mxu0 0.0
        %5922 = vmatpush.msra.mxu0 0.0
        %5923 = vmatpush.msra.mxu0 0.0
        %5924 = vmatpush.msra.mxu0 0.0
        %5925 = vmatpush.msra.mxu0 0.0
        %5926 = vmatpush.msra.mxu0 0.0
        %5927 = vmatpush.msra.mxu0 0.0
        %5928 = vmatpush.msra.mxu0 0.0
        %5929 = vmatpush.msra.mxu0 %v5892
        %5930 = vmatpush.msra.mxu0 %v5890
        %5931 = vmatpush.msra.mxu0 %v5888
        %5932 = vmatmul.f32.gmra.mxu0 %v5894
        %v5933 = vpop.f32.mrf.mxu0
        %v5934 = vadd.f32 0.0, %v5933
        %5935 = vdwg.mxu0
        %v5938 = vrot.slane %v5934, 7
        %v5939 = vsel %vm5652, %v5914, %v5938
        %v5941 = vadd.f32 %v5884, %v5939
        %v5942 = vld [vmem:[%s5827 + $0x2] sm:$0x1]
        %s5943 = scalar_lea.vmem %s10, 288
        %v5944 = vld [vmem:[%s5943] sm:$0xff]
        %v5945 = vld [vmem:[%s5943 + $0x8] sm:$0xff]
        %v5946 = vld [vmem:[%s5943 + $0x10] sm:$0xff]
        %v5947 = vld [vmem:[%s5943 + $0x18] sm:$0xff]
        %v5948 = vld [vmem:[%s5943 + $0x20] sm:$0xff]
        %v5949 = vld [vmem:[%s5943 + $0x28] sm:$0xff]
        %v5951 = vsel %vm5524, %v5942, 0
        %5953 = vmatpush.msra.mxu0 0.0
        %5954 = vmatpush.msra.mxu0 0.0
        %5955 = vmatpush.msra.mxu0 0.0
        %5956 = vmatpush.msra.mxu0 0.0
        %5957 = vmatpush.msra.mxu0 0.0
        %5958 = vmatpush.msra.mxu0 0.0
        %5959 = vmatpush.msra.mxu0 0.0
        %5960 = vmatpush.msra.mxu0 0.0
        %5961 = vmatpush.msra.mxu0 0.0
        %5962 = vmatpush.msra.mxu0 0.0
        %5963 = vmatpush.msra.mxu0 0.0
        %5964 = vmatpush.msra.mxu0 0.0
        %5965 = vmatpush.msra.mxu0 0.0
        %5966 = vmatpush.msra.mxu0 %v5948
        %5967 = vmatpush.msra.mxu0 %v5946
        %5968 = vmatpush.msra.mxu0 %v5944
        %5969 = vmatmul.f32.gmra.mxu0 %v5951
        %v5970 = vpop.f32.mrf.mxu0
        %v5971 = vadd.f32 0.0, %v5970
        %5972 = vdwg.mxu0
        %5973 = vmatpush.msra.mxu0 0.0
        %5974 = vmatpush.msra.mxu0 0.0
        %5975 = vmatpush.msra.mxu0 0.0
        %5976 = vmatpush.msra.mxu0 0.0
        %5977 = vmatpush.msra.mxu0 0.0
        %5978 = vmatpush.msra.mxu0 0.0
        %5979 = vmatpush.msra.mxu0 0.0
        %5980 = vmatpush.msra.mxu0 0.0
        %5981 = vmatpush.msra.mxu0 0.0
        %5982 = vmatpush.msra.mxu0 0.0
        %5983 = vmatpush.msra.mxu0 0.0
        %5984 = vmatpush.msra.mxu0 0.0
        %5985 = vmatpush.msra.mxu0 0.0
        %5986 = vmatpush.msra.mxu0 %v5949
        %5987 = vmatpush.msra.mxu0 %v5947
        %5988 = vmatpush.msra.mxu0 %v5945
        %5989 = vmatmul.f32.gmra.mxu0 %v5951
        %v5990 = vpop.f32.mrf.mxu0
        %v5991 = vadd.f32 0.0, %v5990
        %5992 = vdwg.mxu0
        %v5995 = vrot.slane %v5991, 7
        %v5996 = vsel %vm5652, %v5971, %v5995
        %v5998 = vadd.f32 %v5941, %v5996
        %v5999 = vld [vmem:[%s5827 + $0x3] sm:$0x1]
        %s6000 = scalar_lea.vmem %s10, 336
        %v6001 = vld [vmem:[%s6000] sm:$0xff]
        %v6002 = vld [vmem:[%s6000 + $0x8] sm:$0xff]
        %v6003 = vld [vmem:[%s6000 + $0x10] sm:$0xff]
        %v6004 = vld [vmem:[%s6000 + $0x18] sm:$0xff]
        %v6005 = vld [vmem:[%s6000 + $0x20] sm:$0xff]
        %v6006 = vld [vmem:[%s6000 + $0x28] sm:$0xff]
        %v6008 = vsel %vm5524, %v5999, 0
        %6010 = vmatpush.msra.mxu0 0.0
        %6011 = vmatpush.msra.mxu0 0.0
        %6012 = vmatpush.msra.mxu0 0.0
        %6013 = vmatpush.msra.mxu0 0.0
        %6014 = vmatpush.msra.mxu0 0.0
        %6015 = vmatpush.msra.mxu0 0.0
        %6016 = vmatpush.msra.mxu0 0.0
        %6017 = vmatpush.msra.mxu0 0.0
        %6018 = vmatpush.msra.mxu0 0.0
        %6019 = vmatpush.msra.mxu0 0.0
        %6020 = vmatpush.msra.mxu0 0.0
        %6021 = vmatpush.msra.mxu0 0.0
        %6022 = vmatpush.msra.mxu0 0.0
        %6023 = vmatpush.msra.mxu0 %v6005
        %6024 = vmatpush.msra.mxu0 %v6003
        %6025 = vmatpush.msra.mxu0 %v6001
        %6026 = vmatmul.f32.gmra.mxu0 %v6008
        %v6027 = vpop.f32.mrf.mxu0
        %v6028 = vadd.f32 0.0, %v6027
        %6029 = vdwg.mxu0
        %6030 = vmatpush.msra.mxu0 0.0
        %6031 = vmatpush.msra.mxu0 0.0
        %6032 = vmatpush.msra.mxu0 0.0
        %6033 = vmatpush.msra.mxu0 0.0
        %6034 = vmatpush.msra.mxu0 0.0
        %6035 = vmatpush.msra.mxu0 0.0
        %6036 = vmatpush.msra.mxu0 0.0
        %6037 = vmatpush.msra.mxu0 0.0
        %6038 = vmatpush.msra.mxu0 0.0
        %6039 = vmatpush.msra.mxu0 0.0
        %6040 = vmatpush.msra.mxu0 0.0
        %6041 = vmatpush.msra.mxu0 0.0
        %6042 = vmatpush.msra.mxu0 0.0
        %6043 = vmatpush.msra.mxu0 %v6006
        %6044 = vmatpush.msra.mxu0 %v6004
        %6045 = vmatpush.msra.mxu0 %v6002
        %6046 = vmatmul.f32.gmra.mxu0 %v6008
        %v6047 = vpop.f32.mrf.mxu0
        %v6048 = vadd.f32 0.0, %v6047
        %6049 = vdwg.mxu0
        %v6052 = vrot.slane %v6048, 7
        %v6053 = vsel %vm5652, %v6028, %v6052
        %v6055 = vadd.f32 %v5998, %v6053
        %s6056 = scalar_lea.vmem [#allocation9], 8
        %v6057 = vld [vmem:[%s6056] sm:$0x1]
        %s6058 = scalar_lea.vmem %s10, 384
        %v6059 = vld [vmem:[%s6058] sm:$0xff]
        %v6060 = vld [vmem:[%s6058 + $0x8] sm:$0xff]
        %v6061 = vld [vmem:[%s6058 + $0x10] sm:$0xff]
        %v6062 = vld [vmem:[%s6058 + $0x18] sm:$0xff]
        %v6063 = vld [vmem:[%s6058 + $0x20] sm:$0xff]
        %v6064 = vld [vmem:[%s6058 + $0x28] sm:$0xff]
        %v6066 = vsel %vm5524, %v6057, 0
        %6068 = vmatpush.msra.mxu0 0.0
        %6069 = vmatpush.msra.mxu0 0.0
        %6070 = vmatpush.msra.mxu0 0.0
        %6071 = vmatpush.msra.mxu0 0.0
        %6072 = vmatpush.msra.mxu0 0.0
        %6073 = vmatpush.msra.mxu0 0.0
        %6074 = vmatpush.msra.mxu0 0.0
        %6075 = vmatpush.msra.mxu0 0.0
        %6076 = vmatpush.msra.mxu0 0.0
        %6077 = vmatpush.msra.mxu0 0.0
        %6078 = vmatpush.msra.mxu0 0.0
        %6079 = vmatpush.msra.mxu0 0.0
        %6080 = vmatpush.msra.mxu0 0.0
        %6081 = vmatpush.msra.mxu0 %v6063
        %6082 = vmatpush.msra.mxu0 %v6061
        %6083 = vmatpush.msra.mxu0 %v6059
        %6084 = vmatmul.f32.gmra.mxu0 %v6066
        %v6085 = vpop.f32.mrf.mxu0
        %v6086 = vadd.f32 0.0, %v6085
        %6087 = vdwg.mxu0
        %6088 = vmatpush.msra.mxu0 0.0
        %6089 = vmatpush.msra.mxu0 0.0
        %6090 = vmatpush.msra.mxu0 0.0
        %6091 = vmatpush.msra.mxu0 0.0
        %6092 = vmatpush.msra.mxu0 0.0
        %6093 = vmatpush.msra.mxu0 0.0
        %6094 = vmatpush.msra.mxu0 0.0
        %6095 = vmatpush.msra.mxu0 0.0
        %6096 = vmatpush.msra.mxu0 0.0
        %6097 = vmatpush.msra.mxu0 0.0
        %6098 = vmatpush.msra.mxu0 0.0
        %6099 = vmatpush.msra.mxu0 0.0
        %6100 = vmatpush.msra.mxu0 0.0
        %6101 = vmatpush.msra.mxu0 %v6064
        %6102 = vmatpush.msra.mxu0 %v6062
        %6103 = vmatpush.msra.mxu0 %v6060
        %6104 = vmatmul.f32.gmra.mxu0 %v6066
        %v6105 = vpop.f32.mrf.mxu0
        %v6106 = vadd.f32 0.0, %v6105
        %6107 = vdwg.mxu0
        %v6110 = vrot.slane %v6106, 7
        %v6111 = vsel %vm5652, %v6086, %v6110
        %v6113 = vadd.f32 %v6055, %v6111
        %v6114 = vld [vmem:[%s6056 + $0x1] sm:$0x1]
        %s6115 = scalar_lea.vmem %s10, 432
        %v6116 = vld [vmem:[%s6115] sm:$0xff]
        %v6117 = vld [vmem:[%s6115 + $0x8] sm:$0xff]
        %v6118 = vld [vmem:[%s6115 + $0x10] sm:$0xff]
        %v6119 = vld [vmem:[%s6115 + $0x18] sm:$0xff]
        %v6120 = vld [vmem:[%s6115 + $0x20] sm:$0xff]
        %v6121 = vld [vmem:[%s6115 + $0x28] sm:$0xff]
        %v6123 = vsel %vm5524, %v6114, 0
        %6125 = vmatpush.msra.mxu0 0.0
        %6126 = vmatpush.msra.mxu0 0.0
        %6127 = vmatpush.msra.mxu0 0.0
        %6128 = vmatpush.msra.mxu0 0.0
        %6129 = vmatpush.msra.mxu0 0.0
        %6130 = vmatpush.msra.mxu0 0.0
        %6131 = vmatpush.msra.mxu0 0.0
        %6132 = vmatpush.msra.mxu0 0.0
        %6133 = vmatpush.msra.mxu0 0.0
        %6134 = vmatpush.msra.mxu0 0.0
        %6135 = vmatpush.msra.mxu0 0.0
        %6136 = vmatpush.msra.mxu0 0.0
        %6137 = vmatpush.msra.mxu0 0.0
        %6138 = vmatpush.msra.mxu0 %v6120
        %6139 = vmatpush.msra.mxu0 %v6118
        %6140 = vmatpush.msra.mxu0 %v6116
        %6141 = vmatmul.f32.gmra.mxu0 %v6123
        %v6142 = vpop.f32.mrf.mxu0
        %v6143 = vadd.f32 0.0, %v6142
        %6144 = vdwg.mxu0
        %6145 = vmatpush.msra.mxu0 0.0
        %6146 = vmatpush.msra.mxu0 0.0
        %6147 = vmatpush.msra.mxu0 0.0
        %6148 = vmatpush.msra.mxu0 0.0
        %6149 = vmatpush.msra.mxu0 0.0
        %6150 = vmatpush.msra.mxu0 0.0
        %6151 = vmatpush.msra.mxu0 0.0
        %6152 = vmatpush.msra.mxu0 0.0
        %6153 = vmatpush.msra.mxu0 0.0
        %6154 = vmatpush.msra.mxu0 0.0
        %6155 = vmatpush.msra.mxu0 0.0
        %6156 = vmatpush.msra.mxu0 0.0
        %6157 = vmatpush.msra.mxu0 0.0
        %6158 = vmatpush.msra.mxu0 %v6121
        %6159 = vmatpush.msra.mxu0 %v6119
        %6160 = vmatpush.msra.mxu0 %v6117
        %6161 = vmatmul.f32.gmra.mxu0 %v6123
        %v6162 = vpop.f32.mrf.mxu0
        %v6163 = vadd.f32 0.0, %v6162
        %6164 = vdwg.mxu0
        %v6167 = vrot.slane %v6163, 7
        %v6168 = vsel %vm5652, %v6143, %v6167
        %v6170 = vadd.f32 %v6113, %v6168
        %v6171 = vld [vmem:[%s6056 + $0x2] sm:$0x1]
        %s6172 = scalar_lea.vmem %s10, 480
        %v6173 = vld [vmem:[%s6172] sm:$0xff]
        %v6174 = vld [vmem:[%s6172 + $0x8] sm:$0xff]
        %v6175 = vld [vmem:[%s6172 + $0x10] sm:$0xff]
        %v6176 = vld [vmem:[%s6172 + $0x18] sm:$0xff]
        %v6177 = vld [vmem:[%s6172 + $0x20] sm:$0xff]
        %v6178 = vld [vmem:[%s6172 + $0x28] sm:$0xff]
        %v6180 = vsel %vm5524, %v6171, 0
        %6182 = vmatpush.msra.mxu0 0.0
        %6183 = vmatpush.msra.mxu0 0.0
        %6184 = vmatpush.msra.mxu0 0.0
        %6185 = vmatpush.msra.mxu0 0.0
        %6186 = vmatpush.msra.mxu0 0.0
        %6187 = vmatpush.msra.mxu0 0.0
        %6188 = vmatpush.msra.mxu0 0.0
        %6189 = vmatpush.msra.mxu0 0.0
        %6190 = vmatpush.msra.mxu0 0.0
        %6191 = vmatpush.msra.mxu0 0.0
        %6192 = vmatpush.msra.mxu0 0.0
        %6193 = vmatpush.msra.mxu0 0.0
        %6194 = vmatpush.msra.mxu0 0.0
        %6195 = vmatpush.msra.mxu0 %v6177
        %6196 = vmatpush.msra.mxu0 %v6175
        %6197 = vmatpush.msra.mxu0 %v6173
        %6198 = vmatmul.f32.gmra.mxu0 %v6180
        %v6199 = vpop.f32.mrf.mxu0
        %v6200 = vadd.f32 0.0, %v6199
        %6201 = vdwg.mxu0
        %6202 = vmatpush.msra.mxu0 0.0
        %6203 = vmatpush.msra.mxu0 0.0
        %6204 = vmatpush.msra.mxu0 0.0
        %6205 = vmatpush.msra.mxu0 0.0
        %6206 = vmatpush.msra.mxu0 0.0
        %6207 = vmatpush.msra.mxu0 0.0
        %6208 = vmatpush.msra.mxu0 0.0
        %6209 = vmatpush.msra.mxu0 0.0
        %6210 = vmatpush.msra.mxu0 0.0
        %6211 = vmatpush.msra.mxu0 0.0
        %6212 = vmatpush.msra.mxu0 0.0
        %6213 = vmatpush.msra.mxu0 0.0
        %6214 = vmatpush.msra.mxu0 0.0
        %6215 = vmatpush.msra.mxu0 %v6178
        %6216 = vmatpush.msra.mxu0 %v6176
        %6217 = vmatpush.msra.mxu0 %v6174
        %6218 = vmatmul.f32.gmra.mxu0 %v6180
        %v6219 = vpop.f32.mrf.mxu0
        %v6220 = vadd.f32 0.0, %v6219
        %6221 = vdwg.mxu0
        %v6224 = vrot.slane %v6220, 7
        %v6225 = vsel %vm5652, %v6200, %v6224
        %v6227 = vadd.f32 %v6170, %v6225
        %v6228 = vld [vmem:[%s6056 + $0x3] sm:$0x1]
        %s6229 = scalar_lea.vmem %s10, 528
        %v6230 = vld [vmem:[%s6229] sm:$0xff]
        %v6231 = vld [vmem:[%s6229 + $0x8] sm:$0xff]
        %v6232 = vld [vmem:[%s6229 + $0x10] sm:$0xff]
        %v6233 = vld [vmem:[%s6229 + $0x18] sm:$0xff]
        %v6234 = vld [vmem:[%s6229 + $0x20] sm:$0xff]
        %v6235 = vld [vmem:[%s6229 + $0x28] sm:$0xff]
        %v6237 = vsel %vm5524, %v6228, 0
        %6239 = vmatpush.msra.mxu0 0.0
        %6240 = vmatpush.msra.mxu0 0.0
        %6241 = vmatpush.msra.mxu0 0.0
        %6242 = vmatpush.msra.mxu0 0.0
        %6243 = vmatpush.msra.mxu0 0.0
        %6244 = vmatpush.msra.mxu0 0.0
        %6245 = vmatpush.msra.mxu0 0.0
        %6246 = vmatpush.msra.mxu0 0.0
        %6247 = vmatpush.msra.mxu0 0.0
        %6248 = vmatpush.msra.mxu0 0.0
        %6249 = vmatpush.msra.mxu0 0.0
        %6250 = vmatpush.msra.mxu0 0.0
        %6251 = vmatpush.msra.mxu0 0.0
        %6252 = vmatpush.msra.mxu0 %v6234
        %6253 = vmatpush.msra.mxu0 %v6232
        %6254 = vmatpush.msra.mxu0 %v6230
        %6255 = vmatmul.f32.gmra.mxu0 %v6237
        %v6256 = vpop.f32.mrf.mxu0
        %v6257 = vadd.f32 0.0, %v6256
        %6258 = vdwg.mxu0
        %6259 = vmatpush.msra.mxu0 0.0
        %6260 = vmatpush.msra.mxu0 0.0
        %6261 = vmatpush.msra.mxu0 0.0
        %6262 = vmatpush.msra.mxu0 0.0
        %6263 = vmatpush.msra.mxu0 0.0
        %6264 = vmatpush.msra.mxu0 0.0
        %6265 = vmatpush.msra.mxu0 0.0
        %6266 = vmatpush.msra.mxu0 0.0
        %6267 = vmatpush.msra.mxu0 0.0
        %6268 = vmatpush.msra.mxu0 0.0
        %6269 = vmatpush.msra.mxu0 0.0
        %6270 = vmatpush.msra.mxu0 0.0
        %6271 = vmatpush.msra.mxu0 0.0
        %6272 = vmatpush.msra.mxu0 %v6235
        %6273 = vmatpush.msra.mxu0 %v6233
        %6274 = vmatpush.msra.mxu0 %v6231
        %6275 = vmatmul.f32.gmra.mxu0 %v6237
        %v6276 = vpop.f32.mrf.mxu0
        %v6277 = vadd.f32 0.0, %v6276
        %6278 = vdwg.mxu0
        %v6281 = vrot.slane %v6277, 7
        %v6282 = vsel %vm5652, %v6257, %v6281
        %v6284 = vadd.f32 %v6227, %v6282
        %s6285 = scalar_lea.vmem [#allocation9], 12
        %v6286 = vld [vmem:[%s6285] sm:$0x1]
        %s6287 = scalar_lea.vmem %s10, 576
        %v6288 = vld [vmem:[%s6287] sm:$0xff]
        %v6289 = vld [vmem:[%s6287 + $0x8] sm:$0xff]
        %v6290 = vld [vmem:[%s6287 + $0x10] sm:$0xff]
        %v6291 = vld [vmem:[%s6287 + $0x18] sm:$0xff]
        %v6292 = vld [vmem:[%s6287 + $0x20] sm:$0xff]
        %v6293 = vld [vmem:[%s6287 + $0x28] sm:$0xff]
        %v6295 = vsel %vm5524, %v6286, 0
        %6297 = vmatpush.msra.mxu0 0.0
        %6298 = vmatpush.msra.mxu0 0.0
        %6299 = vmatpush.msra.mxu0 0.0
        %6300 = vmatpush.msra.mxu0 0.0
        %6301 = vmatpush.msra.mxu0 0.0
        %6302 = vmatpush.msra.mxu0 0.0
        %6303 = vmatpush.msra.mxu0 0.0
        %6304 = vmatpush.msra.mxu0 0.0
        %6305 = vmatpush.msra.mxu0 0.0
        %6306 = vmatpush.msra.mxu0 0.0
        %6307 = vmatpush.msra.mxu0 0.0
        %6308 = vmatpush.msra.mxu0 0.0
        %6309 = vmatpush.msra.mxu0 0.0
        %6310 = vmatpush.msra.mxu0 %v6292
        %6311 = vmatpush.msra.mxu0 %v6290
        %6312 = vmatpush.msra.mxu0 %v6288
        %6313 = vmatmul.f32.gmra.mxu0 %v6295
        %v6314 = vpop.f32.mrf.mxu0
        %v6315 = vadd.f32 0.0, %v6314
        %6316 = vdwg.mxu0
        %6317 = vmatpush.msra.mxu0 0.0
        %6318 = vmatpush.msra.mxu0 0.0
        %6319 = vmatpush.msra.mxu0 0.0
        %6320 = vmatpush.msra.mxu0 0.0
        %6321 = vmatpush.msra.mxu0 0.0
        %6322 = vmatpush.msra.mxu0 0.0
        %6323 = vmatpush.msra.mxu0 0.0
        %6324 = vmatpush.msra.mxu0 0.0
        %6325 = vmatpush.msra.mxu0 0.0
        %6326 = vmatpush.msra.mxu0 0.0
        %6327 = vmatpush.msra.mxu0 0.0
        %6328 = vmatpush.msra.mxu0 0.0
        %6329 = vmatpush.msra.mxu0 0.0
        %6330 = vmatpush.msra.mxu0 %v6293
        %6331 = vmatpush.msra.mxu0 %v6291
        %6332 = vmatpush.msra.mxu0 %v6289
        %6333 = vmatmul.f32.gmra.mxu0 %v6295
        %v6334 = vpop.f32.mrf.mxu0
        %v6335 = vadd.f32 0.0, %v6334
        %6336 = vdwg.mxu0
        %v6339 = vrot.slane %v6335, 7
        %v6340 = vsel %vm5652, %v6315, %v6339
        %v6342 = vadd.f32 %v6284, %v6340
        %v6343 = vld [vmem:[%s6285 + $0x1] sm:$0x1]
        %s6344 = scalar_lea.vmem %s10, 624
        %v6345 = vld [vmem:[%s6344] sm:$0xff]
        %v6346 = vld [vmem:[%s6344 + $0x8] sm:$0xff]
        %v6347 = vld [vmem:[%s6344 + $0x10] sm:$0xff]
        %v6348 = vld [vmem:[%s6344 + $0x18] sm:$0xff]
        %v6349 = vld [vmem:[%s6344 + $0x20] sm:$0xff]
        %v6350 = vld [vmem:[%s6344 + $0x28] sm:$0xff]
        %v6352 = vsel %vm5524, %v6343, 0
        %6354 = vmatpush.msra.mxu0 0.0
        %6355 = vmatpush.msra.mxu0 0.0
        %6356 = vmatpush.msra.mxu0 0.0
        %6357 = vmatpush.msra.mxu0 0.0
        %6358 = vmatpush.msra.mxu0 0.0
        %6359 = vmatpush.msra.mxu0 0.0
        %6360 = vmatpush.msra.mxu0 0.0
        %6361 = vmatpush.msra.mxu0 0.0
        %6362 = vmatpush.msra.mxu0 0.0
        %6363 = vmatpush.msra.mxu0 0.0
        %6364 = vmatpush.msra.mxu0 0.0
        %6365 = vmatpush.msra.mxu0 0.0
        %6366 = vmatpush.msra.mxu0 0.0
        %6367 = vmatpush.msra.mxu0 %v6349
        %6368 = vmatpush.msra.mxu0 %v6347
        %6369 = vmatpush.msra.mxu0 %v6345
        %6370 = vmatmul.f32.gmra.mxu0 %v6352
        %v6371 = vpop.f32.mrf.mxu0
        %v6372 = vadd.f32 0.0, %v6371
        %6373 = vdwg.mxu0
        %6374 = vmatpush.msra.mxu0 0.0
        %6375 = vmatpush.msra.mxu0 0.0
        %6376 = vmatpush.msra.mxu0 0.0
        %6377 = vmatpush.msra.mxu0 0.0
        %6378 = vmatpush.msra.mxu0 0.0
        %6379 = vmatpush.msra.mxu0 0.0
        %6380 = vmatpush.msra.mxu0 0.0
        %6381 = vmatpush.msra.mxu0 0.0
        %6382 = vmatpush.msra.mxu0 0.0
        %6383 = vmatpush.msra.mxu0 0.0
        %6384 = vmatpush.msra.mxu0 0.0
        %6385 = vmatpush.msra.mxu0 0.0
        %6386 = vmatpush.msra.mxu0 0.0
        %6387 = vmatpush.msra.mxu0 %v6350
        %6388 = vmatpush.msra.mxu0 %v6348
        %6389 = vmatpush.msra.mxu0 %v6346
        %6390 = vmatmul.f32.gmra.mxu0 %v6352
        %v6391 = vpop.f32.mrf.mxu0
        %v6392 = vadd.f32 0.0, %v6391
        %6393 = vdwg.mxu0
        %v6396 = vrot.slane %v6392, 7
        %v6397 = vsel %vm5652, %v6372, %v6396
        %v6399 = vadd.f32 %v6342, %v6397
        %v6400 = vld [vmem:[%s6285 + $0x2] sm:$0x1]
        %s6401 = scalar_lea.vmem %s10, 672
        %v6402 = vld [vmem:[%s6401] sm:$0xff]
        %v6403 = vld [vmem:[%s6401 + $0x8] sm:$0xff]
        %v6404 = vld [vmem:[%s6401 + $0x10] sm:$0xff]
        %v6405 = vld [vmem:[%s6401 + $0x18] sm:$0xff]
        %v6406 = vld [vmem:[%s6401 + $0x20] sm:$0xff]
        %v6407 = vld [vmem:[%s6401 + $0x28] sm:$0xff]
        %v6409 = vsel %vm5524, %v6400, 0
        %6411 = vmatpush.msra.mxu0 0.0
        %6412 = vmatpush.msra.mxu0 0.0
        %6413 = vmatpush.msra.mxu0 0.0
        %6414 = vmatpush.msra.mxu0 0.0
        %6415 = vmatpush.msra.mxu0 0.0
        %6416 = vmatpush.msra.mxu0 0.0
        %6417 = vmatpush.msra.mxu0 0.0
        %6418 = vmatpush.msra.mxu0 0.0
        %6419 = vmatpush.msra.mxu0 0.0
        %6420 = vmatpush.msra.mxu0 0.0
        %6421 = vmatpush.msra.mxu0 0.0
        %6422 = vmatpush.msra.mxu0 0.0
        %6423 = vmatpush.msra.mxu0 0.0
        %6424 = vmatpush.msra.mxu0 %v6406
        %6425 = vmatpush.msra.mxu0 %v6404
        %6426 = vmatpush.msra.mxu0 %v6402
        %6427 = vmatmul.f32.gmra.mxu0 %v6409
        %v6428 = vpop.f32.mrf.mxu0
        %v6429 = vadd.f32 0.0, %v6428
        %6430 = vdwg.mxu0
        %6431 = vmatpush.msra.mxu0 0.0
        %6432 = vmatpush.msra.mxu0 0.0
        %6433 = vmatpush.msra.mxu0 0.0
        %6434 = vmatpush.msra.mxu0 0.0
        %6435 = vmatpush.msra.mxu0 0.0
        %6436 = vmatpush.msra.mxu0 0.0
        %6437 = vmatpush.msra.mxu0 0.0
        %6438 = vmatpush.msra.mxu0 0.0
        %6439 = vmatpush.msra.mxu0 0.0
        %6440 = vmatpush.msra.mxu0 0.0
        %6441 = vmatpush.msra.mxu0 0.0
        %6442 = vmatpush.msra.mxu0 0.0
        %6443 = vmatpush.msra.mxu0 0.0
        %6444 = vmatpush.msra.mxu0 %v6407
        %6445 = vmatpush.msra.mxu0 %v6405
        %6446 = vmatpush.msra.mxu0 %v6403
        %6447 = vmatmul.f32.gmra.mxu0 %v6409
        %v6448 = vpop.f32.mrf.mxu0
        %v6449 = vadd.f32 0.0, %v6448
        %6450 = vdwg.mxu0
        %v6453 = vrot.slane %v6449, 7
        %v6454 = vsel %vm5652, %v6429, %v6453
        %v6456 = vadd.f32 %v6399, %v6454
        %v6457 = vld [vmem:[%s6285 + $0x3] sm:$0x1]
        %s6458 = scalar_lea.vmem %s10, 720
        %v6459 = vld [vmem:[%s6458] sm:$0xff]
        %v6460 = vld [vmem:[%s6458 + $0x8] sm:$0xff]
        %v6461 = vld [vmem:[%s6458 + $0x10] sm:$0xff]
        %v6462 = vld [vmem:[%s6458 + $0x18] sm:$0xff]
        %v6463 = vld [vmem:[%s6458 + $0x20] sm:$0xff]
        %v6464 = vld [vmem:[%s6458 + $0x28] sm:$0xff]
        %v6466 = vsel %vm5524, %v6457, 0
        %6468 = vmatpush.msra.mxu0 0.0
        %6469 = vmatpush.msra.mxu0 0.0
        %6470 = vmatpush.msra.mxu0 0.0
        %6471 = vmatpush.msra.mxu0 0.0
        %6472 = vmatpush.msra.mxu0 0.0
        %6473 = vmatpush.msra.mxu0 0.0
        %6474 = vmatpush.msra.mxu0 0.0
        %6475 = vmatpush.msra.mxu0 0.0
        %6476 = vmatpush.msra.mxu0 0.0
        %6477 = vmatpush.msra.mxu0 0.0
        %6478 = vmatpush.msra.mxu0 0.0
        %6479 = vmatpush.msra.mxu0 0.0
        %6480 = vmatpush.msra.mxu0 0.0
        %6481 = vmatpush.msra.mxu0 %v6463
        %6482 = vmatpush.msra.mxu0 %v6461
        %6483 = vmatpush.msra.mxu0 %v6459
        %6484 = vmatmul.f32.gmra.mxu0 %v6466
        %v6485 = vpop.f32.mrf.mxu0
        %v6486 = vadd.f32 0.0, %v6485
        %6487 = vdwg.mxu0
        %6488 = vmatpush.msra.mxu0 0.0
        %6489 = vmatpush.msra.mxu0 0.0
        %6490 = vmatpush.msra.mxu0 0.0
        %6491 = vmatpush.msra.mxu0 0.0
        %6492 = vmatpush.msra.mxu0 0.0
        %6493 = vmatpush.msra.mxu0 0.0
        %6494 = vmatpush.msra.mxu0 0.0
        %6495 = vmatpush.msra.mxu0 0.0
        %6496 = vmatpush.msra.mxu0 0.0
        %6497 = vmatpush.msra.mxu0 0.0
        %6498 = vmatpush.msra.mxu0 0.0
        %6499 = vmatpush.msra.mxu0 0.0
        %6500 = vmatpush.msra.mxu0 0.0
        %6501 = vmatpush.msra.mxu0 %v6464
        %6502 = vmatpush.msra.mxu0 %v6462
        %6503 = vmatpush.msra.mxu0 %v6460
        %6504 = vmatmul.f32.gmra.mxu0 %v6466
        %v6505 = vpop.f32.mrf.mxu0
        %v6506 = vadd.f32 0.0, %v6505
        %6507 = vdwg.mxu0
        %v6510 = vrot.slane %v6506, 7
        %v6511 = vsel %vm5652, %v6486, %v6510
        %v6513 = vadd.f32 %v6456, %v6511
        %v6514 = vmax.f32 %v6513, 0.0
        %v6515 = vld [vmem:[%s12] sm:$0xff]
        %v6516 = vld [vmem:[%s12 + $0x8] sm:$0xff]
        %v6517 = vld [vmem:[%s12 + $0x10] sm:$0xff]
        %v6518 = vld [vmem:[%s12 + $0x18] sm:$0xff]
        %v6519 = vld [vmem:[%s12 + $0x20] sm:$0xff]
        %v6520 = vld [vmem:[%s12 + $0x28] sm:$0xff]
        %v6521 = vld [vmem:[%s12 + $0x30] sm:$0xff]
        %v6522 = vld [vmem:[%s12 + $0x38] sm:$0xff]
        %v6523 = vld [vmem:[%s12 + $0x40] sm:$0xff]
        %v6524 = vld [vmem:[%s12 + $0x48] sm:$0xff]
        %v6525 = vld [vmem:[%s12 + $0x50] sm:$0xff]
        %v6526 = vld [vmem:[%s12 + $0x58] sm:$0xff]
        %v6527 = vld [vmem:[%s12 + $0x60] sm:$0xff]
        %v6528 = vld [vmem:[%s12 + $0x68] sm:$0xff]
        %v6529 = vld [vmem:[%s12 + $0x70] sm:$0xff]
        %v6530 = vld [vmem:[%s12 + $0x78] sm:$0xff]
        %v6531 = vld [vmem:[%s12 + $0x80] sm:$0xff]
        %v6532 = vld [vmem:[%s12 + $0x88] sm:$0xff]
        %v6533 = vld [vmem:[%s12 + $0x90] sm:$0xff]
        %v6534 = vld [vmem:[%s12 + $0x98] sm:$0xff]
        %v6535 = vld [vmem:[%s12 + $0xa0] sm:$0xff]
        %v6536 = vld [vmem:[%s12 + $0xa8] sm:$0xff]
        %v6537 = vld [vmem:[%s12 + $0xb0] sm:$0xff]
        %v6538 = vld [vmem:[%s12 + $0xb8] sm:$0xff]
        %v6539 = vld [vmem:[%s13] sm:$0x1]
        %v6541 = vperm.slane %v6514, 0
        %v6542 = vperm.slane %v6514, 1
        %vm6544 = vcmask 523264
        %v6545 = vsel %vm6544, %v6542, 0
        %6547 = vmatpush.msra.mxu0 %v6530
        %6548 = vmatpush.msra.mxu0 %v6529
        %6549 = vmatpush.msra.mxu0 %v6528
        %6550 = vmatpush.msra.mxu0 %v6527
        %6551 = vmatpush.msra.mxu0 %v6526
        %6552 = vmatpush.msra.mxu0 %v6525
        %6553 = vmatpush.msra.mxu0 %v6524
        %6554 = vmatpush.msra.mxu0 %v6523
        %6555 = vmatpush.msra.mxu0 %v6522
        %6556 = vmatpush.msra.mxu0 %v6521
        %6557 = vmatpush.msra.mxu0 %v6520
        %6558 = vmatpush.msra.mxu0 %v6519
        %6559 = vmatpush.msra.mxu0 %v6518
        %6560 = vmatpush.msra.mxu0 %v6517
        %6561 = vmatpush.msra.mxu0 %v6516
        %6562 = vmatpush.msra.mxu0 %v6515
        %6563 = vmatmul.f32.gmra.mxu0 %v6541
        %v6564 = vpop.f32.mrf.mxu0
        %v6565 = vadd.f32 %v6539, %v6564
        %6566 = vdwg.mxu0
        %6567 = vmatpush.msra.mxu0 0.0
        %6568 = vmatpush.msra.mxu0 0.0
        %6569 = vmatpush.msra.mxu0 0.0
        %6570 = vmatpush.msra.mxu0 0.0
        %6571 = vmatpush.msra.mxu0 0.0
        %6572 = vmatpush.msra.mxu0 0.0
        %6573 = vmatpush.msra.mxu0 0.0
        %6574 = vmatpush.msra.mxu0 0.0
        %6575 = vmatpush.msra.mxu0 %v6538
        %6576 = vmatpush.msra.mxu0 %v6537
        %6577 = vmatpush.msra.mxu0 %v6536
        %6578 = vmatpush.msra.mxu0 %v6535
        %6579 = vmatpush.msra.mxu0 %v6534
        %6580 = vmatpush.msra.mxu0 %v6533
        %6581 = vmatpush.msra.mxu0 %v6532
        %6582 = vmatpush.msra.mxu0 %v6531
        %6583 = vmatmul.f32.gmra.mxu0 %v6545
        %v6584 = vpop.f32.mrf.mxu0
        %v6585 = vadd.f32 %v6565, %v6584
        %6586 = vdwg.mxu0
        %6587 = vst [vmem:[%s459] sm:$0x1] %v6585
        %s6588 = sand.u32 %s335, 1
        %s6589 = scalar_lea.sflag [#allocation11], %s6588
        %s6590 = sand.u32 %s335, 1
        %s6591 = scalar_lea.vmem [#allocation10], %s6590
        // Predicated region
        $region77: #{mri_cnn_forward.1} parent=75 // pred_check
          %p6592 = pneg %p345
        $region78: #{mri_cnn_forward.1} parent=75 // pred_check_branch
          %6594 = sbr.rel (%p6592) target = $region80
        $region79: #{mri_cnn_forward.1} parent=75 // pred_region
          %6596 = vsyncadd %s6589, 0
          %s6597 = scalar_lea.hbm %s14, %s28
          %s6599 = sshll.u32 %s6591, 4
          %s6600 = int_to_ptr.vmem [resolvable:$true] %s6599
          %s6601 = sshll.u32 %s6597, 4
          %s6602 = int_to_ptr.hbm [resolvable:$true] %s6601
          %6604 = dma.vmem_to_hbm [thread:$0]  %s6600, 16, %s6602, %s6589
        $region80: #{mri_cnn_forward.1} parent=75 // pred_fallthru
          _
      $region76: #{mri_cnn_forward.1} parent=5 // pred_fallthru
        _
      %p6605 = scmp.le.s32.totalorder 2, %s23
      // Predicated region
      $region81: #{mri_cnn_forward.1} parent=5 // pred_check
        %p6606 = pneg %p6605
      $region82: #{mri_cnn_forward.1} parent=5 // pred_check_branch
        %6608 = sbr.rel (%p6606) target = $region84
      $region83: #{mri_cnn_forward.1} parent=5 // pred_region
        %s6609 = ssub.s32 %s23, 2
        // Predicated region
        $region85: #{mri_cnn_forward.1} parent=83 // pred_check
          %p6610 = pneg %p351
        $region86: #{mri_cnn_forward.1} parent=83 // pred_check_branch
          %6612 = sbr.rel (%p6610) target = $region88
        $region87: #{mri_cnn_forward.1} parent=83 // pred_region
          %s6613 = sand.u32 %s336, 1
          %s6614 = scalar_lea.sflag [#allocation11], %s6613
          %s6615 = sand.u32 %s336, 1
          %s6616 = scalar_lea.vmem [#allocation10], %s6615
          %6618 = dma.done %s6614, 16
        $region88: #{mri_cnn_forward.1} parent=83 // pred_fallthru
          _
      $region84: #{mri_cnn_forward.1} parent=5 // pred_fallthru
        _
    $region6: #{mri_cnn_forward.1} parent=1 // loop_footer
      %s27 = sadd.s32 1, %s23
    $region7: #{mri_cnn_forward.1} parent=1 // loop_footer_branch
      %22 = sbr.rel target = $region3
    $region8: #{mri_cnn_forward.1} parent=1 // loop_exit
      _
    %6619 = vsyncpa [#allocation11], 1
    %s6620 = scalar_lea.sflag [#allocation11], 1
    %6621 = vsyncpa %s6620, 1

</llo_original>
